<compile_context>
chip_gen: v7x
topology: tpu7x:2x2x1
jax: 0.10.0
libtpu: 0.0.40
codegen_flags: <defaults>
</compile_context>

<pallas_src>
import math

import numpy as np

import jax
import jax.numpy as jnp
from jax import lax
from jax.experimental import pallas as pl
from jax.experimental.pallas import tpu as pltpu

LANE = 128                       # lane-padded channel width carried end-to-end
K_STEM = 256                     # padded stem im2col depth (7*7*3 = 147 -> 256)
_VMEM_LIMIT = 32 * 1024 * 1024   # scoped-VMEM budget (safe on v5e / v6e / v7x)


# ----------------------------------------------------------------------------
# Host-side 0/1 tap matrices: G[k] @ X selects, for every output grid position,
# the input position shifted by the (di, dj) tap of a 3x3 window (zero row when
# the source falls outside the image -> conv zero padding for free).
# ----------------------------------------------------------------------------
def _tap_matrices(hi, wi, ho, wo, stride):
    m = np.zeros((9, ho * wo, hi * wi), np.float32)
    for di in range(3):
        for dj in range(3):
            k = di * 3 + dj
            for i in range(ho):
                for j in range(wo):
                    si, sj = i * stride + di - 1, j * stride + dj - 1
                    if 0 <= si < hi and 0 <= sj < wi:
                        m[k, i * wo + j, si * wi + sj] = 1.0
    return jnp.asarray(m, jnp.bfloat16)


# ----------------------------------------------------------------------------
# In-kernel helper: 3x3 conv (stride 1 or 2) as 9 accumulated shifted-tap
# matmuls, + bias + ReLU, bf16 out.
# ----------------------------------------------------------------------------
def _conv3x3_taps(t, g_ref, w_ref, b_ref, *, identity_tap=None):
    f32 = jnp.float32
    acc = jnp.zeros((g_ref.shape[1], w_ref.shape[-1]), f32)
    for k in range(9):
        if k == identity_tap:                       # G[k] is the identity -> skip the matmul
            tk = t
        else:
            tk = jnp.dot(g_ref[k], t, preferred_element_type=f32).astype(jnp.bfloat16)
        acc = acc + jnp.dot(tk, w_ref[k], preferred_element_type=f32)
    return jnp.maximum(acc + b_ref[...], 0.0).astype(jnp.bfloat16)


# ----------------------------------------------------------------------------
# The fused megakernel: one grid step == one image.
# ----------------------------------------------------------------------------
def _cnn_kernel(patches_ref, g1_ref, g2_ref,
                w_stem_ref, b_stem_ref,
                w1_dc_ref, b1_dc_ref, w1_c2_ref, b1_c2_ref, w1_c3_ref, b1_c3_ref,
                w2_dc_ref, b2_dc_ref, w2_c2_ref, b2_c2_ref, w2_c3_ref, b2_c3_ref,
                wqkv_ref, bqkv_ref, o_ref):
    f32, bf16 = jnp.float32, jnp.bfloat16
    C = w_stem_ref.shape[1]            # 128  (lane-padded channels)
    pb = g1_ref.shape[1]               # 64   (8x8 grid -> rows per stem parity block)

    # ---- stem 7x7/s2 conv (BN scale folded, ReLU), one parity block at a time
    def stem_block(g):
        a = patches_ref[g * pb:(g + 1) * pb, :]
        y = jnp.dot(a, w_stem_ref[...], preferred_element_type=f32) + b_stem_ref[...]
        return jnp.maximum(y, 0.0).astype(bf16)

    def shift(gk, v):                  # 0/1 row-selection matmul == spatial shift
        return jnp.dot(gk, v, preferred_element_type=f32)

    # ---- fused 3x3/s2 maxpool: 9 taps from the 4 parity blocks.  Out-of-image
    #      taps contribute 0 (zero rows of G), which never wins because the stem
    #      outputs are post-ReLU >= 0.
    s = stem_block(0)                                   # (even row, even col)
    pooled = s.astype(f32)
    s = stem_block(1)                                   # (even row, odd col)
    pooled = jnp.maximum(pooled, s.astype(f32))
    pooled = jnp.maximum(pooled, shift(g1_ref[3], s))   # col j-1
    s = stem_block(2)                                   # (odd row, even col)
    pooled = jnp.maximum(pooled, s.astype(f32))
    pooled = jnp.maximum(pooled, shift(g1_ref[1], s))   # row i-1
    s = stem_block(3)                                   # (odd row, odd col)
    pooled = jnp.maximum(pooled, s.astype(f32))
    pooled = jnp.maximum(pooled, shift(g1_ref[3], s))
    pooled = jnp.maximum(pooled, shift(g1_ref[1], s))
    pooled = jnp.maximum(pooled, shift(g1_ref[0], s))   # row i-1, col j-1
    x = pooled.astype(bf16)                             # (64, C)  == the 8x8 grid

    # ---- layer1 bottleneck (stride 1): fused [down | conv1] 1x1, N = 2C ------
    y = jnp.dot(x, w1_dc_ref[...], preferred_element_type=f32) + b1_dc_ref[...]
    identity = y[:, :C]                                 # downsample branch (no ReLU)
    t = jnp.maximum(y[:, C:], 0.0).astype(bf16)         # conv1 + ReLU
    t = _conv3x3_taps(t, g1_ref, w1_c2_ref, b1_c2_ref, identity_tap=4)
    y = jnp.dot(t, w1_c3_ref[...], preferred_element_type=f32) + b1_c3_ref[...]
    x = jnp.maximum(y + identity, 0.0).astype(bf16)     # (64, C)

    # ---- layer2 bottleneck (stride 2) ----------------------------------------
    y = jnp.dot(x, w2_dc_ref[...], preferred_element_type=f32) + b2_dc_ref[...]
    # 1x1/s2 down branch == stride-1 down then keep even/even rows (G2 center tap)
    identity = jnp.dot(g2_ref[4], y[:, :C].astype(bf16), preferred_element_type=f32)
    t = jnp.maximum(y[:, C:], 0.0).astype(bf16)         # conv1 + ReLU on the full 8x8 grid
    t = _conv3x3_taps(t, g2_ref, w2_c2_ref, b2_c2_ref)  # 3x3/s2 -> 4x4 grid (16 rows)
    y = jnp.dot(t, w2_c3_ref[...], preferred_element_type=f32) + b2_c3_ref[...]
    tok = jnp.maximum(y + identity, 0.0).astype(bf16)   # (16, C) tokens of this image

    # ---- single-head self-attention over this image's 16 tokens --------------
    qkv = jnp.dot(tok, wqkv_ref[...], preferred_element_type=f32) + bqkv_ref[...]
    q = qkv[:, :C].astype(bf16)                         # 1/sqrt(C) already folded into Wq
    k = qkv[:, C:2 * C].astype(bf16)
    v = qkv[:, 2 * C:].astype(bf16)
    s = lax.dot_general(q, k, (((1,), (1,)), ((), ())),
                        preferred_element_type=f32)     # (16, 16) scores
    m = jnp.max(s, axis=-1, keepdims=True)
    p = jnp.exp(s - m)
    p = (p * pl.reciprocal(jnp.sum(p, axis=-1, keepdims=True), approx=True)).astype(bf16)
    o_ref[...] = jnp.dot(p, v, preferred_element_type=f32)


# ----------------------------------------------------------------------------
# JAX glue: stem im2col (parity-ordered rows) + the single pallas_call.
# ----------------------------------------------------------------------------
def _stem_patches(x):
    """im2col for the 7x7/s2/p3 stem conv.

    Rows are ordered (batch, row-parity, col-parity, i, j) so each image's 256-row
    block splits into 4 contiguous 64-row parity blocks, letting the 3x3/s2 maxpool
    be fused into the kernel.  The K dim is zero-extended to K_STEM while building
    the patch matrix (no separate pad of a materialized array).
    """
    B, H, W, Cin = x.shape
    xp = jnp.pad(x, ((0, 0), (3, 3), (3, 3), (0, 0)))
    oh = (H + 6 - 7) // 2 + 1
    ow = (W + 6 - 7) // 2 + 1
    cols = []
    for di in range(7):
        for dj in range(7):
            cols.append(xp[:, di:di + 2 * oh:2, dj:dj + 2 * ow:2, :])
    kdim = 49 * Cin
    p = jnp.stack(cols, axis=3).reshape(B, oh, ow, kdim)
    p = p.reshape(B, oh // 2, 2, ow // 2, 2, kdim)      # (b, i, ph, j, pw, K)
    p = p.transpose(0, 2, 4, 1, 3, 5)                   # (b, ph, pw, i, j, K)
    p = p.reshape(B * 4 * (oh // 2) * (ow // 2), kdim)
    pad = jnp.zeros((p.shape[0], K_STEM - kdim), p.dtype)
    return jnp.concatenate([p, pad], axis=1)            # (B*256, K_STEM)


def cnn_forward(params, image_nchw):
    """image_nchw: (B, 3, 32, 32) f32  ->  (B, 16, 128) f32 attention output."""
    B, Cin, H, W = image_nchw.shape
    assert (Cin, H, W) == (3, 32, 32), "reduced stand-in expects 3x32x32 images"
    x = jnp.transpose(image_nchw, (0, 2, 3, 1)).astype(jnp.bfloat16)   # NHWC
    patches = _stem_patches(x)                                         # (B*256, 256) bf16

    p = params
    weight_args = (p["g1"], p["g2"], p["w_stem"], p["b_stem"],
                   p["w1_dc"], p["b1_dc"], p["w1_c2"], p["b1_c2"], p["w1_c3"], p["b1_c3"],
                   p["w2_dc"], p["b2_dc"], p["w2_c2"], p["b2_c2"], p["w2_c3"], p["b2_c3"],
                   p["wqkv"], p["bqkv"])
    rows_per_img = patches.shape[0] // B                               # 256
    seq = p["g2"].shape[1]                                             # 16 tokens / image

    in_specs = [pl.BlockSpec((rows_per_img, K_STEM), lambda b: (b, 0))]
    in_specs += [pl.BlockSpec(a.shape, lambda b, n=a.ndim: (0,) * n) for a in weight_args]

    out = pl.pallas_call(
        _cnn_kernel,
        out_shape=jax.ShapeDtypeStruct((B * seq, LANE), jnp.float32),
        grid_spec=pltpu.PrefetchScalarGridSpec(
            num_scalar_prefetch=0,
            grid=(B,),
            in_specs=in_specs,
            out_specs=pl.BlockSpec((seq, LANE), lambda b: (b, 0)),
        ),
        compiler_params=pltpu.CompilerParams(
            dimension_semantics=("parallel",),
            vmem_limit_bytes=_VMEM_LIMIT),
    )(patches, *weight_args)
    return out.reshape(B, seq, LANE)


# ----------------------------------------------------------------------------
# Parameter init: conv weights ~ N(0, 0.01) (as CNN._random_init_weights), fresh
# eval-mode BN folded into the weights, everything pre-padded / pre-reshaped /
# pre-fused once so the forward never pads or slices weights.
# ----------------------------------------------------------------------------
def init_params(key):
    ks = jax.random.split(key, 10)
    C = LANE
    bn_scale = 1.0 / math.sqrt(1.0 + 1e-5)   # gamma=1, mean=0, var=1, eps=1e-5

    def conv_w(k, kh, kw, cin, cout):
        return jax.random.normal(k, (kh, kw, cin, cout), jnp.float32) * 0.01 * bn_scale

    def pad1x1(w, cin, cout):
        return jnp.zeros((C, C), jnp.float32).at[:cin, :cout].set(w.reshape(cin, cout))

    def taps3x3(w, cin, cout):
        out = jnp.zeros((9, C, C), jnp.float32)
        out = out.at[:, :cin, :cout].set(w.reshape(9, cin, cout))
        return out.astype(jnp.bfloat16)

    def bias0(n):
        return jnp.zeros((1, n), jnp.float32)   # conv bias=False, BN beta=0 -> zero bias

    # stem: 7x7/s2, 3 -> 16
    w = conv_w(ks[0], 7, 7, 3, 16).reshape(49 * 3, 16)
    w_stem = jnp.zeros((K_STEM, C), jnp.float32).at[:147, :16].set(w).astype(jnp.bfloat16)

    # layer1 (in=16, planes=16, out=64), stride 1; [down | conv1] fused along N
    w1_dc = jnp.concatenate([pad1x1(conv_w(ks[1], 1, 1, 16, 64), 16, 64),
                             pad1x1(conv_w(ks[2], 1, 1, 16, 16), 16, 16)],
                            axis=1).astype(jnp.bfloat16)
    w1_c2 = taps3x3(conv_w(ks[3], 3, 3, 16, 16), 16, 16)
    w1_c3 = pad1x1(conv_w(ks[4], 1, 1, 16, 64), 16, 64).astype(jnp.bfloat16)

    # layer2 (in=64, planes=32, out=128), stride 2
    w2_dc = jnp.concatenate([pad1x1(conv_w(ks[5], 1, 1, 64, 128), 64, 128),
                             pad1x1(conv_w(ks[6], 1, 1, 64, 32), 64, 32)],
                            axis=1).astype(jnp.bfloat16)
    w2_c2 = taps3x3(conv_w(ks[7], 3, 3, 32, 32), 32, 32)
    w2_c3 = pad1x1(conv_w(ks[8], 1, 1, 32, 128), 32, 128).astype(jnp.bfloat16)

    # single-head attention; 1/sqrt(C) folded into Wq (note: C_feat == LANE here)
    kq, kk, kv = jax.random.split(ks[9], 3)
    wq = jax.random.normal(kq, (C, C), jnp.float32) * 0.02 / math.sqrt(C)
    wk = jax.random.normal(kk, (C, C), jnp.float32) * 0.02
    wv = jax.random.normal(kv, (C, C), jnp.float32) * 0.02
    wqkv = jnp.concatenate([wq, wk, wv], axis=1).astype(jnp.bfloat16)

    return {
        "g1": _tap_matrices(8, 8, 8, 8, 1),   # (9, 64, 64) stride-1 taps on the 8x8 grid
        "g2": _tap_matrices(8, 8, 4, 4, 2),   # (9, 16, 64) stride-2 taps 8x8 -> 4x4
        "w_stem": w_stem, "b_stem": bias0(C),
        "w1_dc": w1_dc, "b1_dc": bias0(2 * C),
        "w1_c2": w1_c2, "b1_c2": bias0(C),
        "w1_c3": w1_c3, "b1_c3": bias0(C),
        "w2_dc": w2_dc, "b2_dc": bias0(2 * C),
        "w2_c2": w2_c2, "b2_c2": bias0(C),
        "w2_c3": w2_c3, "b2_c3": bias0(C),
        "wqkv": wqkv, "bqkv": bias0(3 * C),
    }


if __name__ == "__main__":
    key = jax.random.PRNGKey(0)
    img_key, param_key = jax.random.split(key)
    image = jax.random.normal(img_key, (2, 3, 32, 32), jnp.float32)   # NCHW
    params = init_params(param_key)

    fwd = jax.jit(lambda img: cnn_forward(params, img))
    out = jax.block_until_ready(fwd(image))

    assert out.shape == (2, 16, LANE), out.shape
    assert out.dtype == jnp.float32
    assert bool(jnp.all(jnp.isfinite(out)))
    print("KERNEL_OK")
</pallas_src>

<mosaic_0001>
module attributes {stable_mosaic.version = 11 : i64} {
  func.func @_cnn_kernel(%arg0: i32, %arg1: memref<256x256xbf16, #tpu.memory_space<vmem>>, %arg2: memref<9x64x64xbf16, #tpu.memory_space<vmem>>, %arg3: memref<9x16x64xbf16, #tpu.memory_space<vmem>>, %arg4: memref<256x128xbf16, #tpu.memory_space<vmem>>, %arg5: memref<1x128xf32, #tpu.memory_space<vmem>>, %arg6: memref<128x256xbf16, #tpu.memory_space<vmem>>, %arg7: memref<1x256xf32, #tpu.memory_space<vmem>>, %arg8: memref<9x128x128xbf16, #tpu.memory_space<vmem>>, %arg9: memref<1x128xf32, #tpu.memory_space<vmem>>, %arg10: memref<128x128xbf16, #tpu.memory_space<vmem>>, %arg11: memref<1x128xf32, #tpu.memory_space<vmem>>, %arg12: memref<128x256xbf16, #tpu.memory_space<vmem>>, %arg13: memref<1x256xf32, #tpu.memory_space<vmem>>, %arg14: memref<9x128x128xbf16, #tpu.memory_space<vmem>>, %arg15: memref<1x128xf32, #tpu.memory_space<vmem>>, %arg16: memref<128x128xbf16, #tpu.memory_space<vmem>>, %arg17: memref<1x128xf32, #tpu.memory_space<vmem>>, %arg18: memref<128x384xbf16, #tpu.memory_space<vmem>>, %arg19: memref<1x384xf32, #tpu.memory_space<vmem>>, %arg20: memref<16x128xf32, #tpu.memory_space<vmem>>) attributes {dimension_semantics = [#tpu.dimension_semantics<parallel>], iteration_bounds = array<i64: 2>, scalar_prefetch = 0 : i64, scratch_operands = 0 : i64, tpu.core_type = #tpu.core_type<tc>, window_params = [{transform_indices = @transform_0, window_bounds = array<i64: 256, 256>}, {pipeline_mode = #tpu.pipeline_mode<synchronous>, transform_indices = @transform_1, window_bounds = array<i64: 9, 64, 64>}, {pipeline_mode = #tpu.pipeline_mode<synchronous>, transform_indices = @transform_2, window_bounds = array<i64: 9, 16, 64>}, {pipeline_mode = #tpu.pipeline_mode<synchronous>, transform_indices = @transform_3, window_bounds = array<i64: 256, 128>}, {pipeline_mode = #tpu.pipeline_mode<synchronous>, transform_indices = @transform_4, window_bounds = array<i64: 1, 128>}, {pipeline_mode = #tpu.pipeline_mode<synchronous>, transform_indices = @transform_5, window_bounds = array<i64: 128, 256>}, {pipeline_mode = #tpu.pipeline_mode<synchronous>, transform_indices = @transform_6, window_bounds = array<i64: 1, 256>}, {pipeline_mode = #tpu.pipeline_mode<synchronous>, transform_indices = @transform_7, window_bounds = array<i64: 9, 128, 128>}, {pipeline_mode = #tpu.pipeline_mode<synchronous>, transform_indices = @transform_8, window_bounds = array<i64: 1, 128>}, {pipeline_mode = #tpu.pipeline_mode<synchronous>, transform_indices = @transform_9, window_bounds = array<i64: 128, 128>}, {pipeline_mode = #tpu.pipeline_mode<synchronous>, transform_indices = @transform_10, window_bounds = array<i64: 1, 128>}, {pipeline_mode = #tpu.pipeline_mode<synchronous>, transform_indices = @transform_11, window_bounds = array<i64: 128, 256>}, {pipeline_mode = #tpu.pipeline_mode<synchronous>, transform_indices = @transform_12, window_bounds = array<i64: 1, 256>}, {pipeline_mode = #tpu.pipeline_mode<synchronous>, transform_indices = @transform_13, window_bounds = array<i64: 9, 128, 128>}, {pipeline_mode = #tpu.pipeline_mode<synchronous>, transform_indices = @transform_14, window_bounds = array<i64: 1, 128>}, {pipeline_mode = #tpu.pipeline_mode<synchronous>, transform_indices = @transform_15, window_bounds = array<i64: 128, 128>}, {pipeline_mode = #tpu.pipeline_mode<synchronous>, transform_indices = @transform_16, window_bounds = array<i64: 1, 128>}, {pipeline_mode = #tpu.pipeline_mode<synchronous>, transform_indices = @transform_17, window_bounds = array<i64: 128, 384>}, {pipeline_mode = #tpu.pipeline_mode<synchronous>, transform_indices = @transform_18, window_bounds = array<i64: 1, 384>}, {transform_indices = @transform_19, window_bounds = array<i64: 16, 128>}]} {
    %c0 = arith.constant 0 : index
    %c0_0 = arith.constant 0 : index
    %0 = vector.load %arg1[%c0, %c0_0] : memref<256x256xbf16, #tpu.memory_space<vmem>>, vector<64x256xbf16>
    %c0_1 = arith.constant 0 : index
    %c0_2 = arith.constant 0 : index
    %1 = vector.load %arg4[%c0_1, %c0_2] : memref<256x128xbf16, #tpu.memory_space<vmem>>, vector<256x128xbf16>
    %cst = arith.constant dense<0.000000e+00> : vector<64x128xf32>
    %2 = tpu.matmul %0, %1, %cst {dimension_numbers = #tpu.dot_dimension_numbers<[1], [0], [0], [1], [0, 0, 1, 1], [], []>} : vector<64x256xbf16>, vector<256x128xbf16>, vector<64x128xf32> -> vector<64x128xf32>
    %c0_3 = arith.constant 0 : index
    %c0_4 = arith.constant 0 : index
    %3 = vector.load %arg5[%c0_3, %c0_4] : memref<1x128xf32, #tpu.memory_space<vmem>>, vector<1x128xf32>
    %4 = vector.broadcast %3 : vector<1x128xf32> to vector<64x128xf32>
    %5 = arith.addf %2, %4 : vector<64x128xf32>
    %cst_5 = arith.constant 0.000000e+00 : f32
    %6 = vector.broadcast %cst_5 : f32 to vector<64x128xf32>
    %7 = arith.maximumf %5, %6 : vector<64x128xf32>
    %8 = arith.truncf %7 : vector<64x128xf32> to vector<64x128xbf16>
    %9 = arith.extf %8 : vector<64x128xbf16> to vector<64x128xf32>
    %c64 = arith.constant 64 : index
    %c0_6 = arith.constant 0 : index
    %10 = vector.load %arg1[%c64, %c0_6] : memref<256x256xbf16, #tpu.memory_space<vmem>>, vector<64x256xbf16>
    %c0_7 = arith.constant 0 : index
    %c0_8 = arith.constant 0 : index
    %11 = vector.load %arg4[%c0_7, %c0_8] : memref<256x128xbf16, #tpu.memory_space<vmem>>, vector<256x128xbf16>
    %cst_9 = arith.constant dense<0.000000e+00> : vector<64x128xf32>
    %12 = tpu.matmul %10, %11, %cst_9 {dimension_numbers = #tpu.dot_dimension_numbers<[1], [0], [0], [1], [0, 0, 1, 1], [], []>} : vector<64x256xbf16>, vector<256x128xbf16>, vector<64x128xf32> -> vector<64x128xf32>
    %c0_10 = arith.constant 0 : index
    %c0_11 = arith.constant 0 : index
    %13 = vector.load %arg5[%c0_10, %c0_11] : memref<1x128xf32, #tpu.memory_space<vmem>>, vector<1x128xf32>
    %14 = vector.broadcast %13 : vector<1x128xf32> to vector<64x128xf32>
    %15 = arith.addf %12, %14 : vector<64x128xf32>
    %cst_12 = arith.constant 0.000000e+00 : f32
    %16 = vector.broadcast %cst_12 : f32 to vector<64x128xf32>
    %17 = arith.maximumf %15, %16 : vector<64x128xf32>
    %18 = arith.truncf %17 : vector<64x128xf32> to vector<64x128xbf16>
    %19 = arith.extf %18 : vector<64x128xbf16> to vector<64x128xf32>
    %20 = arith.maximumf %9, %19 : vector<64x128xf32>
    %c3 = arith.constant 3 : index
    %c0_13 = arith.constant 0 : index
    %c0_14 = arith.constant 0 : index
    %21 = vector.load %arg2[%c3, %c0_13, %c0_14] : memref<9x64x64xbf16, #tpu.memory_space<vmem>>, vector<1x64x64xbf16>
    %22 = vector.shape_cast %21 : vector<1x64x64xbf16> to vector<64x64xbf16>
    %cst_15 = arith.constant dense<0.000000e+00> : vector<64x128xf32>
    %23 = tpu.matmul %22, %18, %cst_15 {dimension_numbers = #tpu.dot_dimension_numbers<[1], [0], [0], [1], [0, 0, 1, 1], [], []>} : vector<64x64xbf16>, vector<64x128xbf16>, vector<64x128xf32> -> vector<64x128xf32>
    %24 = arith.maximumf %20, %23 : vector<64x128xf32>
    %c128 = arith.constant 128 : index
    %c0_16 = arith.constant 0 : index
    %25 = vector.load %arg1[%c128, %c0_16] : memref<256x256xbf16, #tpu.memory_space<vmem>>, vector<64x256xbf16>
    %c0_17 = arith.constant 0 : index
    %c0_18 = arith.constant 0 : index
    %26 = vector.load %arg4[%c0_17, %c0_18] : memref<256x128xbf16, #tpu.memory_space<vmem>>, vector<256x128xbf16>
    %cst_19 = arith.constant dense<0.000000e+00> : vector<64x128xf32>
    %27 = tpu.matmul %25, %26, %cst_19 {dimension_numbers = #tpu.dot_dimension_numbers<[1], [0], [0], [1], [0, 0, 1, 1], [], []>} : vector<64x256xbf16>, vector<256x128xbf16>, vector<64x128xf32> -> vector<64x128xf32>
    %c0_20 = arith.constant 0 : index
    %c0_21 = arith.constant 0 : index
    %28 = vector.load %arg5[%c0_20, %c0_21] : memref<1x128xf32, #tpu.memory_space<vmem>>, vector<1x128xf32>
    %29 = vector.broadcast %28 : vector<1x128xf32> to vector<64x128xf32>
    %30 = arith.addf %27, %29 : vector<64x128xf32>
    %cst_22 = arith.constant 0.000000e+00 : f32
    %31 = vector.broadcast %cst_22 : f32 to vector<64x128xf32>
    %32 = arith.maximumf %30, %31 : vector<64x128xf32>
    %33 = arith.truncf %32 : vector<64x128xf32> to vector<64x128xbf16>
    %34 = arith.extf %33 : vector<64x128xbf16> to vector<64x128xf32>
    %35 = arith.maximumf %24, %34 : vector<64x128xf32>
    %c1 = arith.constant 1 : index
    %c0_23 = arith.constant 0 : index
    %c0_24 = arith.constant 0 : index
    %36 = vector.load %arg2[%c1, %c0_23, %c0_24] : memref<9x64x64xbf16, #tpu.memory_space<vmem>>, vector<1x64x64xbf16>
    %37 = vector.shape_cast %36 : vector<1x64x64xbf16> to vector<64x64xbf16>
    %cst_25 = arith.constant dense<0.000000e+00> : vector<64x128xf32>
    %38 = tpu.matmul %37, %33, %cst_25 {dimension_numbers = #tpu.dot_dimension_numbers<[1], [0], [0], [1], [0, 0, 1, 1], [], []>} : vector<64x64xbf16>, vector<64x128xbf16>, vector<64x128xf32> -> vector<64x128xf32>
    %39 = arith.maximumf %35, %38 : vector<64x128xf32>
    %c192 = arith.constant 192 : index
    %c0_26 = arith.constant 0 : index
    %40 = vector.load %arg1[%c192, %c0_26] : memref<256x256xbf16, #tpu.memory_space<vmem>>, vector<64x256xbf16>
    %c0_27 = arith.constant 0 : index
    %c0_28 = arith.constant 0 : index
    %41 = vector.load %arg4[%c0_27, %c0_28] : memref<256x128xbf16, #tpu.memory_space<vmem>>, vector<256x128xbf16>
    %cst_29 = arith.constant dense<0.000000e+00> : vector<64x128xf32>
    %42 = tpu.matmul %40, %41, %cst_29 {dimension_numbers = #tpu.dot_dimension_numbers<[1], [0], [0], [1], [0, 0, 1, 1], [], []>} : vector<64x256xbf16>, vector<256x128xbf16>, vector<64x128xf32> -> vector<64x128xf32>
    %c0_30 = arith.constant 0 : index
    %c0_31 = arith.constant 0 : index
    %43 = vector.load %arg5[%c0_30, %c0_31] : memref<1x128xf32, #tpu.memory_space<vmem>>, vector<1x128xf32>
    %44 = vector.broadcast %43 : vector<1x128xf32> to vector<64x128xf32>
    %45 = arith.addf %42, %44 : vector<64x128xf32>
    %cst_32 = arith.constant 0.000000e+00 : f32
    %46 = vector.broadcast %cst_32 : f32 to vector<64x128xf32>
    %47 = arith.maximumf %45, %46 : vector<64x128xf32>
    %48 = arith.truncf %47 : vector<64x128xf32> to vector<64x128xbf16>
    %49 = arith.extf %48 : vector<64x128xbf16> to vector<64x128xf32>
    %50 = arith.maximumf %39, %49 : vector<64x128xf32>
    %c3_33 = arith.constant 3 : index
    %c0_34 = arith.constant 0 : index
    %c0_35 = arith.constant 0 : index
    %51 = vector.load %arg2[%c3_33, %c0_34, %c0_35] : memref<9x64x64xbf16, #tpu.memory_space<vmem>>, vector<1x64x64xbf16>
    %52 = vector.shape_cast %51 : vector<1x64x64xbf16> to vector<64x64xbf16>
    %cst_36 = arith.constant dense<0.000000e+00> : vector<64x128xf32>
    %53 = tpu.matmul %52, %48, %cst_36 {dimension_numbers = #tpu.dot_dimension_numbers<[1], [0], [0], [1], [0, 0, 1, 1], [], []>} : vector<64x64xbf16>, vector<64x128xbf16>, vector<64x128xf32> -> vector<64x128xf32>
    %54 = arith.maximumf %50, %53 : vector<64x128xf32>
    %c1_37 = arith.constant 1 : index
    %c0_38 = arith.constant 0 : index
    %c0_39 = arith.constant 0 : index
    %55 = vector.load %arg2[%c1_37, %c0_38, %c0_39] : memref<9x64x64xbf16, #tpu.memory_space<vmem>>, vector<1x64x64xbf16>
    %56 = vector.shape_cast %55 : vector<1x64x64xbf16> to vector<64x64xbf16>
    %cst_40 = arith.constant dense<0.000000e+00> : vector<64x128xf32>
    %57 = tpu.matmul %56, %48, %cst_40 {dimension_numbers = #tpu.dot_dimension_numbers<[1], [0], [0], [1], [0, 0, 1, 1], [], []>} : vector<64x64xbf16>, vector<64x128xbf16>, vector<64x128xf32> -> vector<64x128xf32>
    %58 = arith.maximumf %54, %57 : vector<64x128xf32>
    %c0_41 = arith.constant 0 : index
    %c0_42 = arith.constant 0 : index
    %c0_43 = arith.constant 0 : index
    %59 = vector.load %arg2[%c0_41, %c0_42, %c0_43] : memref<9x64x64xbf16, #tpu.memory_space<vmem>>, vector<1x64x64xbf16>
    %60 = vector.shape_cast %59 : vector<1x64x64xbf16> to vector<64x64xbf16>
    %cst_44 = arith.constant dense<0.000000e+00> : vector<64x128xf32>
    %61 = tpu.matmul %60, %48, %cst_44 {dimension_numbers = #tpu.dot_dimension_numbers<[1], [0], [0], [1], [0, 0, 1, 1], [], []>} : vector<64x64xbf16>, vector<64x128xbf16>, vector<64x128xf32> -> vector<64x128xf32>
    %62 = arith.maximumf %58, %61 : vector<64x128xf32>
    %63 = arith.truncf %62 : vector<64x128xf32> to vector<64x128xbf16>
    %c0_45 = arith.constant 0 : index
    %c0_46 = arith.constant 0 : index
    %64 = vector.load %arg6[%c0_45, %c0_46] : memref<128x256xbf16, #tpu.memory_space<vmem>>, vector<128x256xbf16>
    %cst_47 = arith.constant dense<0.000000e+00> : vector<64x256xf32>
    %65 = tpu.matmul %63, %64, %cst_47 {dimension_numbers = #tpu.dot_dimension_numbers<[1], [0], [0], [1], [0, 0, 1, 1], [], []>} : vector<64x128xbf16>, vector<128x256xbf16>, vector<64x256xf32> -> vector<64x256xf32>
    %c0_48 = arith.constant 0 : index
    %c0_49 = arith.constant 0 : index
    %66 = vector.load %arg7[%c0_48, %c0_49] : memref<1x256xf32, #tpu.memory_space<vmem>>, vector<1x256xf32>
    %67 = vector.broadcast %66 : vector<1x256xf32> to vector<64x256xf32>
    %68 = arith.addf %65, %67 : vector<64x256xf32>
    %69 = vector.extract_strided_slice %68 {offsets = [0, 0], sizes = [64, 128], strides = [1, 1]} : vector<64x256xf32> to vector<64x128xf32>
    %70 = vector.extract_strided_slice %68 {offsets = [0, 128], sizes = [64, 128], strides = [1, 1]} : vector<64x256xf32> to vector<64x128xf32>
    %cst_50 = arith.constant 0.000000e+00 : f32
    %71 = vector.broadcast %cst_50 : f32 to vector<64x128xf32>
    %72 = arith.maximumf %70, %71 : vector<64x128xf32>
    %73 = arith.truncf %72 : vector<64x128xf32> to vector<64x128xbf16>
    %cst_51 = arith.constant 0.000000e+00 : f32
    %74 = vector.broadcast %cst_51 : f32 to vector<64x128xf32>
    %c0_52 = arith.constant 0 : index
    %c0_53 = arith.constant 0 : index
    %c0_54 = arith.constant 0 : index
    %75 = vector.load %arg2[%c0_52, %c0_53, %c0_54] : memref<9x64x64xbf16, #tpu.memory_space<vmem>>, vector<1x64x64xbf16>
    %76 = vector.shape_cast %75 : vector<1x64x64xbf16> to vector<64x64xbf16>
    %cst_55 = arith.constant dense<0.000000e+00> : vector<64x128xf32>
    %77 = tpu.matmul %76, %73, %cst_55 {dimension_numbers = #tpu.dot_dimension_numbers<[1], [0], [0], [1], [0, 0, 1, 1], [], []>} : vector<64x64xbf16>, vector<64x128xbf16>, vector<64x128xf32> -> vector<64x128xf32>
    %78 = arith.truncf %77 : vector<64x128xf32> to vector<64x128xbf16>
    %c0_56 = arith.constant 0 : index
    %c0_57 = arith.constant 0 : index
    %c0_58 = arith.constant 0 : index
    %79 = vector.load %arg8[%c0_56, %c0_57, %c0_58] : memref<9x128x128xbf16, #tpu.memory_space<vmem>>, vector<1x128x128xbf16>
    %80 = vector.shape_cast %79 : vector<1x128x128xbf16> to vector<128x128xbf16>
    %cst_59 = arith.constant dense<0.000000e+00> : vector<64x128xf32>
    %81 = tpu.matmul %78, %80, %cst_59 {dimension_numbers = #tpu.dot_dimension_numbers<[1], [0], [0], [1], [0, 0, 1, 1], [], []>} : vector<64x128xbf16>, vector<128x128xbf16>, vector<64x128xf32> -> vector<64x128xf32>
    %82 = arith.addf %74, %81 : vector<64x128xf32>
    %c1_60 = arith.constant 1 : index
    %c0_61 = arith.constant 0 : index
    %c0_62 = arith.constant 0 : index
    %83 = vector.load %arg2[%c1_60, %c0_61, %c0_62] : memref<9x64x64xbf16, #tpu.memory_space<vmem>>, vector<1x64x64xbf16>
    %84 = vector.shape_cast %83 : vector<1x64x64xbf16> to vector<64x64xbf16>
    %cst_63 = arith.constant dense<0.000000e+00> : vector<64x128xf32>
    %85 = tpu.matmul %84, %73, %cst_63 {dimension_numbers = #tpu.dot_dimension_numbers<[1], [0], [0], [1], [0, 0, 1, 1], [], []>} : vector<64x64xbf16>, vector<64x128xbf16>, vector<64x128xf32> -> vector<64x128xf32>
    %86 = arith.truncf %85 : vector<64x128xf32> to vector<64x128xbf16>
    %c1_64 = arith.constant 1 : index
    %c0_65 = arith.constant 0 : index
    %c0_66 = arith.constant 0 : index
    %87 = vector.load %arg8[%c1_64, %c0_65, %c0_66] : memref<9x128x128xbf16, #tpu.memory_space<vmem>>, vector<1x128x128xbf16>
    %88 = vector.shape_cast %87 : vector<1x128x128xbf16> to vector<128x128xbf16>
    %cst_67 = arith.constant dense<0.000000e+00> : vector<64x128xf32>
    %89 = tpu.matmul %86, %88, %cst_67 {dimension_numbers = #tpu.dot_dimension_numbers<[1], [0], [0], [1], [0, 0, 1, 1], [], []>} : vector<64x128xbf16>, vector<128x128xbf16>, vector<64x128xf32> -> vector<64x128xf32>
    %90 = arith.addf %82, %89 : vector<64x128xf32>
    %c2 = arith.constant 2 : index
    %c0_68 = arith.constant 0 : index
    %c0_69 = arith.constant 0 : index
    %91 = vector.load %arg2[%c2, %c0_68, %c0_69] : memref<9x64x64xbf16, #tpu.memory_space<vmem>>, vector<1x64x64xbf16>
    %92 = vector.shape_cast %91 : vector<1x64x64xbf16> to vector<64x64xbf16>
    %cst_70 = arith.constant dense<0.000000e+00> : vector<64x128xf32>
    %93 = tpu.matmul %92, %73, %cst_70 {dimension_numbers = #tpu.dot_dimension_numbers<[1], [0], [0], [1], [0, 0, 1, 1], [], []>} : vector<64x64xbf16>, vector<64x128xbf16>, vector<64x128xf32> -> vector<64x128xf32>
    %94 = arith.truncf %93 : vector<64x128xf32> to vector<64x128xbf16>
    %c2_71 = arith.constant 2 : index
    %c0_72 = arith.constant 0 : index
    %c0_73 = arith.constant 0 : index
    %95 = vector.load %arg8[%c2_71, %c0_72, %c0_73] : memref<9x128x128xbf16, #tpu.memory_space<vmem>>, vector<1x128x128xbf16>
    %96 = vector.shape_cast %95 : vector<1x128x128xbf16> to vector<128x128xbf16>
    %cst_74 = arith.constant dense<0.000000e+00> : vector<64x128xf32>
    %97 = tpu.matmul %94, %96, %cst_74 {dimension_numbers = #tpu.dot_dimension_numbers<[1], [0], [0], [1], [0, 0, 1, 1], [], []>} : vector<64x128xbf16>, vector<128x128xbf16>, vector<64x128xf32> -> vector<64x128xf32>
    %98 = arith.addf %90, %97 : vector<64x128xf32>
    %c3_75 = arith.constant 3 : index
    %c0_76 = arith.constant 0 : index
    %c0_77 = arith.constant 0 : index
    %99 = vector.load %arg2[%c3_75, %c0_76, %c0_77] : memref<9x64x64xbf16, #tpu.memory_space<vmem>>, vector<1x64x64xbf16>
    %100 = vector.shape_cast %99 : vector<1x64x64xbf16> to vector<64x64xbf16>
    %cst_78 = arith.constant dense<0.000000e+00> : vector<64x128xf32>
    %101 = tpu.matmul %100, %73, %cst_78 {dimension_numbers = #tpu.dot_dimension_numbers<[1], [0], [0], [1], [0, 0, 1, 1], [], []>} : vector<64x64xbf16>, vector<64x128xbf16>, vector<64x128xf32> -> vector<64x128xf32>
    %102 = arith.truncf %101 : vector<64x128xf32> to vector<64x128xbf16>
    %c3_79 = arith.constant 3 : index
    %c0_80 = arith.constant 0 : index
    %c0_81 = arith.constant 0 : index
    %103 = vector.load %arg8[%c3_79, %c0_80, %c0_81] : memref<9x128x128xbf16, #tpu.memory_space<vmem>>, vector<1x128x128xbf16>
    %104 = vector.shape_cast %103 : vector<1x128x128xbf16> to vector<128x128xbf16>
    %cst_82 = arith.constant dense<0.000000e+00> : vector<64x128xf32>
    %105 = tpu.matmul %102, %104, %cst_82 {dimension_numbers = #tpu.dot_dimension_numbers<[1], [0], [0], [1], [0, 0, 1, 1], [], []>} : vector<64x128xbf16>, vector<128x128xbf16>, vector<64x128xf32> -> vector<64x128xf32>
    %106 = arith.addf %98, %105 : vector<64x128xf32>
    %c4 = arith.constant 4 : index
    %c0_83 = arith.constant 0 : index
    %c0_84 = arith.constant 0 : index
    %107 = vector.load %arg8[%c4, %c0_83, %c0_84] : memref<9x128x128xbf16, #tpu.memory_space<vmem>>, vector<1x128x128xbf16>
    %108 = vector.shape_cast %107 : vector<1x128x128xbf16> to vector<128x128xbf16>
    %cst_85 = arith.constant dense<0.000000e+00> : vector<64x128xf32>
    %109 = tpu.matmul %73, %108, %cst_85 {dimension_numbers = #tpu.dot_dimension_numbers<[1], [0], [0], [1], [0, 0, 1, 1], [], []>} : vector<64x128xbf16>, vector<128x128xbf16>, vector<64x128xf32> -> vector<64x128xf32>
    %110 = arith.addf %106, %109 : vector<64x128xf32>
    %c5 = arith.constant 5 : index
    %c0_86 = arith.constant 0 : index
    %c0_87 = arith.constant 0 : index
    %111 = vector.load %arg2[%c5, %c0_86, %c0_87] : memref<9x64x64xbf16, #tpu.memory_space<vmem>>, vector<1x64x64xbf16>
    %112 = vector.shape_cast %111 : vector<1x64x64xbf16> to vector<64x64xbf16>
    %cst_88 = arith.constant dense<0.000000e+00> : vector<64x128xf32>
    %113 = tpu.matmul %112, %73, %cst_88 {dimension_numbers = #tpu.dot_dimension_numbers<[1], [0], [0], [1], [0, 0, 1, 1], [], []>} : vector<64x64xbf16>, vector<64x128xbf16>, vector<64x128xf32> -> vector<64x128xf32>
    %114 = arith.truncf %113 : vector<64x128xf32> to vector<64x128xbf16>
    %c5_89 = arith.constant 5 : index
    %c0_90 = arith.constant 0 : index
    %c0_91 = arith.constant 0 : index
    %115 = vector.load %arg8[%c5_89, %c0_90, %c0_91] : memref<9x128x128xbf16, #tpu.memory_space<vmem>>, vector<1x128x128xbf16>
    %116 = vector.shape_cast %115 : vector<1x128x128xbf16> to vector<128x128xbf16>
    %cst_92 = arith.constant dense<0.000000e+00> : vector<64x128xf32>
    %117 = tpu.matmul %114, %116, %cst_92 {dimension_numbers = #tpu.dot_dimension_numbers<[1], [0], [0], [1], [0, 0, 1, 1], [], []>} : vector<64x128xbf16>, vector<128x128xbf16>, vector<64x128xf32> -> vector<64x128xf32>
    %118 = arith.addf %110, %117 : vector<64x128xf32>
    %c6 = arith.constant 6 : index
    %c0_93 = arith.constant 0 : index
    %c0_94 = arith.constant 0 : index
    %119 = vector.load %arg2[%c6, %c0_93, %c0_94] : memref<9x64x64xbf16, #tpu.memory_space<vmem>>, vector<1x64x64xbf16>
    %120 = vector.shape_cast %119 : vector<1x64x64xbf16> to vector<64x64xbf16>
    %cst_95 = arith.constant dense<0.000000e+00> : vector<64x128xf32>
    %121 = tpu.matmul %120, %73, %cst_95 {dimension_numbers = #tpu.dot_dimension_numbers<[1], [0], [0], [1], [0, 0, 1, 1], [], []>} : vector<64x64xbf16>, vector<64x128xbf16>, vector<64x128xf32> -> vector<64x128xf32>
    %122 = arith.truncf %121 : vector<64x128xf32> to vector<64x128xbf16>
    %c6_96 = arith.constant 6 : index
    %c0_97 = arith.constant 0 : index
    %c0_98 = arith.constant 0 : index
    %123 = vector.load %arg8[%c6_96, %c0_97, %c0_98] : memref<9x128x128xbf16, #tpu.memory_space<vmem>>, vector<1x128x128xbf16>
    %124 = vector.shape_cast %123 : vector<1x128x128xbf16> to vector<128x128xbf16>
    %cst_99 = arith.constant dense<0.000000e+00> : vector<64x128xf32>
    %125 = tpu.matmul %122, %124, %cst_99 {dimension_numbers = #tpu.dot_dimension_numbers<[1], [0], [0], [1], [0, 0, 1, 1], [], []>} : vector<64x128xbf16>, vector<128x128xbf16>, vector<64x128xf32> -> vector<64x128xf32>
    %126 = arith.addf %118, %125 : vector<64x128xf32>
    %c7 = arith.constant 7 : index
    %c0_100 = arith.constant 0 : index
    %c0_101 = arith.constant 0 : index
    %127 = vector.load %arg2[%c7, %c0_100, %c0_101] : memref<9x64x64xbf16, #tpu.memory_space<vmem>>, vector<1x64x64xbf16>
    %128 = vector.shape_cast %127 : vector<1x64x64xbf16> to vector<64x64xbf16>
    %cst_102 = arith.constant dense<0.000000e+00> : vector<64x128xf32>
    %129 = tpu.matmul %128, %73, %cst_102 {dimension_numbers = #tpu.dot_dimension_numbers<[1], [0], [0], [1], [0, 0, 1, 1], [], []>} : vector<64x64xbf16>, vector<64x128xbf16>, vector<64x128xf32> -> vector<64x128xf32>
    %130 = arith.truncf %129 : vector<64x128xf32> to vector<64x128xbf16>
    %c7_103 = arith.constant 7 : index
    %c0_104 = arith.constant 0 : index
    %c0_105 = arith.constant 0 : index
    %131 = vector.load %arg8[%c7_103, %c0_104, %c0_105] : memref<9x128x128xbf16, #tpu.memory_space<vmem>>, vector<1x128x128xbf16>
    %132 = vector.shape_cast %131 : vector<1x128x128xbf16> to vector<128x128xbf16>
    %cst_106 = arith.constant dense<0.000000e+00> : vector<64x128xf32>
    %133 = tpu.matmul %130, %132, %cst_106 {dimension_numbers = #tpu.dot_dimension_numbers<[1], [0], [0], [1], [0, 0, 1, 1], [], []>} : vector<64x128xbf16>, vector<128x128xbf16>, vector<64x128xf32> -> vector<64x128xf32>
    %134 = arith.addf %126, %133 : vector<64x128xf32>
    %c8 = arith.constant 8 : index
    %c0_107 = arith.constant 0 : index
    %c0_108 = arith.constant 0 : index
    %135 = vector.load %arg2[%c8, %c0_107, %c0_108] : memref<9x64x64xbf16, #tpu.memory_space<vmem>>, vector<1x64x64xbf16>
    %136 = vector.shape_cast %135 : vector<1x64x64xbf16> to vector<64x64xbf16>
    %cst_109 = arith.constant dense<0.000000e+00> : vector<64x128xf32>
    %137 = tpu.matmul %136, %73, %cst_109 {dimension_numbers = #tpu.dot_dimension_numbers<[1], [0], [0], [1], [0, 0, 1, 1], [], []>} : vector<64x64xbf16>, vector<64x128xbf16>, vector<64x128xf32> -> vector<64x128xf32>
    %138 = arith.truncf %137 : vector<64x128xf32> to vector<64x128xbf16>
    %c8_110 = arith.constant 8 : index
    %c0_111 = arith.constant 0 : index
    %c0_112 = arith.constant 0 : index
    %139 = vector.load %arg8[%c8_110, %c0_111, %c0_112] : memref<9x128x128xbf16, #tpu.memory_space<vmem>>, vector<1x128x128xbf16>
    %140 = vector.shape_cast %139 : vector<1x128x128xbf16> to vector<128x128xbf16>
    %cst_113 = arith.constant dense<0.000000e+00> : vector<64x128xf32>
    %141 = tpu.matmul %138, %140, %cst_113 {dimension_numbers = #tpu.dot_dimension_numbers<[1], [0], [0], [1], [0, 0, 1, 1], [], []>} : vector<64x128xbf16>, vector<128x128xbf16>, vector<64x128xf32> -> vector<64x128xf32>
    %142 = arith.addf %134, %141 : vector<64x128xf32>
    %c0_114 = arith.constant 0 : index
    %c0_115 = arith.constant 0 : index
    %143 = vector.load %arg9[%c0_114, %c0_115] : memref<1x128xf32, #tpu.memory_space<vmem>>, vector<1x128xf32>
    %144 = vector.broadcast %143 : vector<1x128xf32> to vector<64x128xf32>
    %145 = arith.addf %142, %144 : vector<64x128xf32>
    %cst_116 = arith.constant 0.000000e+00 : f32
    %146 = vector.broadcast %cst_116 : f32 to vector<64x128xf32>
    %147 = arith.maximumf %145, %146 : vector<64x128xf32>
    %148 = arith.truncf %147 : vector<64x128xf32> to vector<64x128xbf16>
    %c0_117 = arith.constant 0 : index
    %c0_118 = arith.constant 0 : index
    %149 = vector.load %arg10[%c0_117, %c0_118] : memref<128x128xbf16, #tpu.memory_space<vmem>>, vector<128x128xbf16>
    %cst_119 = arith.constant dense<0.000000e+00> : vector<64x128xf32>
    %150 = tpu.matmul %148, %149, %cst_119 {dimension_numbers = #tpu.dot_dimension_numbers<[1], [0], [0], [1], [0, 0, 1, 1], [], []>} : vector<64x128xbf16>, vector<128x128xbf16>, vector<64x128xf32> -> vector<64x128xf32>
    %c0_120 = arith.constant 0 : index
    %c0_121 = arith.constant 0 : index
    %151 = vector.load %arg11[%c0_120, %c0_121] : memref<1x128xf32, #tpu.memory_space<vmem>>, vector<1x128xf32>
    %152 = vector.broadcast %151 : vector<1x128xf32> to vector<64x128xf32>
    %153 = arith.addf %150, %152 : vector<64x128xf32>
    %154 = arith.addf %153, %69 : vector<64x128xf32>
    %cst_122 = arith.constant 0.000000e+00 : f32
    %155 = vector.broadcast %cst_122 : f32 to vector<64x128xf32>
    %156 = arith.maximumf %154, %155 : vector<64x128xf32>
    %157 = arith.truncf %156 : vector<64x128xf32> to vector<64x128xbf16>
    %c0_123 = arith.constant 0 : index
    %c0_124 = arith.constant 0 : index
    %158 = vector.load %arg12[%c0_123, %c0_124] : memref<128x256xbf16, #tpu.memory_space<vmem>>, vector<128x256xbf16>
    %cst_125 = arith.constant dense<0.000000e+00> : vector<64x256xf32>
    %159 = tpu.matmul %157, %158, %cst_125 {dimension_numbers = #tpu.dot_dimension_numbers<[1], [0], [0], [1], [0, 0, 1, 1], [], []>} : vector<64x128xbf16>, vector<128x256xbf16>, vector<64x256xf32> -> vector<64x256xf32>
    %c0_126 = arith.constant 0 : index
    %c0_127 = arith.constant 0 : index
    %160 = vector.load %arg13[%c0_126, %c0_127] : memref<1x256xf32, #tpu.memory_space<vmem>>, vector<1x256xf32>
    %161 = vector.broadcast %160 : vector<1x256xf32> to vector<64x256xf32>
    %162 = arith.addf %159, %161 : vector<64x256xf32>
    %c4_128 = arith.constant 4 : index
    %c0_129 = arith.constant 0 : index
    %c0_130 = arith.constant 0 : index
    %163 = vector.load %arg3[%c4_128, %c0_129, %c0_130] : memref<9x16x64xbf16, #tpu.memory_space<vmem>>, vector<1x16x64xbf16>
    %164 = vector.shape_cast %163 : vector<1x16x64xbf16> to vector<16x64xbf16>
    %165 = vector.extract_strided_slice %162 {offsets = [0, 0], sizes = [64, 128], strides = [1, 1]} : vector<64x256xf32> to vector<64x128xf32>
    %166 = arith.truncf %165 : vector<64x128xf32> to vector<64x128xbf16>
    %cst_131 = arith.constant dense<0.000000e+00> : vector<16x128xf32>
    %167 = tpu.matmul %164, %166, %cst_131 {dimension_numbers = #tpu.dot_dimension_numbers<[1], [0], [0], [1], [0, 0, 1, 1], [], []>} : vector<16x64xbf16>, vector<64x128xbf16>, vector<16x128xf32> -> vector<16x128xf32>
    %168 = vector.extract_strided_slice %162 {offsets = [0, 128], sizes = [64, 128], strides = [1, 1]} : vector<64x256xf32> to vector<64x128xf32>
    %cst_132 = arith.constant 0.000000e+00 : f32
    %169 = vector.broadcast %cst_132 : f32 to vector<64x128xf32>
    %170 = arith.maximumf %168, %169 : vector<64x128xf32>
    %171 = arith.truncf %170 : vector<64x128xf32> to vector<64x128xbf16>
    %cst_133 = arith.constant 0.000000e+00 : f32
    %172 = vector.broadcast %cst_133 : f32 to vector<16x128xf32>
    %c0_134 = arith.constant 0 : index
    %c0_135 = arith.constant 0 : index
    %c0_136 = arith.constant 0 : index
    %173 = vector.load %arg3[%c0_134, %c0_135, %c0_136] : memref<9x16x64xbf16, #tpu.memory_space<vmem>>, vector<1x16x64xbf16>
    %174 = vector.shape_cast %173 : vector<1x16x64xbf16> to vector<16x64xbf16>
    %cst_137 = arith.constant dense<0.000000e+00> : vector<16x128xf32>
    %175 = tpu.matmul %174, %171, %cst_137 {dimension_numbers = #tpu.dot_dimension_numbers<[1], [0], [0], [1], [0, 0, 1, 1], [], []>} : vector<16x64xbf16>, vector<64x128xbf16>, vector<16x128xf32> -> vector<16x128xf32>
    %176 = arith.truncf %175 : vector<16x128xf32> to vector<16x128xbf16>
    %c0_138 = arith.constant 0 : index
    %c0_139 = arith.constant 0 : index
    %c0_140 = arith.constant 0 : index
    %177 = vector.load %arg14[%c0_138, %c0_139, %c0_140] : memref<9x128x128xbf16, #tpu.memory_space<vmem>>, vector<1x128x128xbf16>
    %178 = vector.shape_cast %177 : vector<1x128x128xbf16> to vector<128x128xbf16>
    %cst_141 = arith.constant dense<0.000000e+00> : vector<16x128xf32>
    %179 = tpu.matmul %176, %178, %cst_141 {dimension_numbers = #tpu.dot_dimension_numbers<[1], [0], [0], [1], [0, 0, 1, 1], [], []>} : vector<16x128xbf16>, vector<128x128xbf16>, vector<16x128xf32> -> vector<16x128xf32>
    %180 = arith.addf %172, %179 : vector<16x128xf32>
    %c1_142 = arith.constant 1 : index
    %c0_143 = arith.constant 0 : index
    %c0_144 = arith.constant 0 : index
    %181 = vector.load %arg3[%c1_142, %c0_143, %c0_144] : memref<9x16x64xbf16, #tpu.memory_space<vmem>>, vector<1x16x64xbf16>
    %182 = vector.shape_cast %181 : vector<1x16x64xbf16> to vector<16x64xbf16>
    %cst_145 = arith.constant dense<0.000000e+00> : vector<16x128xf32>
    %183 = tpu.matmul %182, %171, %cst_145 {dimension_numbers = #tpu.dot_dimension_numbers<[1], [0], [0], [1], [0, 0, 1, 1], [], []>} : vector<16x64xbf16>, vector<64x128xbf16>, vector<16x128xf32> -> vector<16x128xf32>
    %184 = arith.truncf %183 : vector<16x128xf32> to vector<16x128xbf16>
    %c1_146 = arith.constant 1 : index
    %c0_147 = arith.constant 0 : index
    %c0_148 = arith.constant 0 : index
    %185 = vector.load %arg14[%c1_146, %c0_147, %c0_148] : memref<9x128x128xbf16, #tpu.memory_space<vmem>>, vector<1x128x128xbf16>
    %186 = vector.shape_cast %185 : vector<1x128x128xbf16> to vector<128x128xbf16>
    %cst_149 = arith.constant dense<0.000000e+00> : vector<16x128xf32>
    %187 = tpu.matmul %184, %186, %cst_149 {dimension_numbers = #tpu.dot_dimension_numbers<[1], [0], [0], [1], [0, 0, 1, 1], [], []>} : vector<16x128xbf16>, vector<128x128xbf16>, vector<16x128xf32> -> vector<16x128xf32>
    %188 = arith.addf %180, %187 : vector<16x128xf32>
    %c2_150 = arith.constant 2 : index
    %c0_151 = arith.constant 0 : index
    %c0_152 = arith.constant 0 : index
    %189 = vector.load %arg3[%c2_150, %c0_151, %c0_152] : memref<9x16x64xbf16, #tpu.memory_space<vmem>>, vector<1x16x64xbf16>
    %190 = vector.shape_cast %189 : vector<1x16x64xbf16> to vector<16x64xbf16>
    %cst_153 = arith.constant dense<0.000000e+00> : vector<16x128xf32>
    %191 = tpu.matmul %190, %171, %cst_153 {dimension_numbers = #tpu.dot_dimension_numbers<[1], [0], [0], [1], [0, 0, 1, 1], [], []>} : vector<16x64xbf16>, vector<64x128xbf16>, vector<16x128xf32> -> vector<16x128xf32>
    %192 = arith.truncf %191 : vector<16x128xf32> to vector<16x128xbf16>
    %c2_154 = arith.constant 2 : index
    %c0_155 = arith.constant 0 : index
    %c0_156 = arith.constant 0 : index
    %193 = vector.load %arg14[%c2_154, %c0_155, %c0_156] : memref<9x128x128xbf16, #tpu.memory_space<vmem>>, vector<1x128x128xbf16>
    %194 = vector.shape_cast %193 : vector<1x128x128xbf16> to vector<128x128xbf16>
    %cst_157 = arith.constant dense<0.000000e+00> : vector<16x128xf32>
    %195 = tpu.matmul %192, %194, %cst_157 {dimension_numbers = #tpu.dot_dimension_numbers<[1], [0], [0], [1], [0, 0, 1, 1], [], []>} : vector<16x128xbf16>, vector<128x128xbf16>, vector<16x128xf32> -> vector<16x128xf32>
    %196 = arith.addf %188, %195 : vector<16x128xf32>
    %c3_158 = arith.constant 3 : index
    %c0_159 = arith.constant 0 : index
    %c0_160 = arith.constant 0 : index
    %197 = vector.load %arg3[%c3_158, %c0_159, %c0_160] : memref<9x16x64xbf16, #tpu.memory_space<vmem>>, vector<1x16x64xbf16>
    %198 = vector.shape_cast %197 : vector<1x16x64xbf16> to vector<16x64xbf16>
    %cst_161 = arith.constant dense<0.000000e+00> : vector<16x128xf32>
    %199 = tpu.matmul %198, %171, %cst_161 {dimension_numbers = #tpu.dot_dimension_numbers<[1], [0], [0], [1], [0, 0, 1, 1], [], []>} : vector<16x64xbf16>, vector<64x128xbf16>, vector<16x128xf32> -> vector<16x128xf32>
    %200 = arith.truncf %199 : vector<16x128xf32> to vector<16x128xbf16>
    %c3_162 = arith.constant 3 : index
    %c0_163 = arith.constant 0 : index
    %c0_164 = arith.constant 0 : index
    %201 = vector.load %arg14[%c3_162, %c0_163, %c0_164] : memref<9x128x128xbf16, #tpu.memory_space<vmem>>, vector<1x128x128xbf16>
    %202 = vector.shape_cast %201 : vector<1x128x128xbf16> to vector<128x128xbf16>
    %cst_165 = arith.constant dense<0.000000e+00> : vector<16x128xf32>
    %203 = tpu.matmul %200, %202, %cst_165 {dimension_numbers = #tpu.dot_dimension_numbers<[1], [0], [0], [1], [0, 0, 1, 1], [], []>} : vector<16x128xbf16>, vector<128x128xbf16>, vector<16x128xf32> -> vector<16x128xf32>
    %204 = arith.addf %196, %203 : vector<16x128xf32>
    %c4_166 = arith.constant 4 : index
    %c0_167 = arith.constant 0 : index
    %c0_168 = arith.constant 0 : index
    %205 = vector.load %arg3[%c4_166, %c0_167, %c0_168] : memref<9x16x64xbf16, #tpu.memory_space<vmem>>, vector<1x16x64xbf16>
    %206 = vector.shape_cast %205 : vector<1x16x64xbf16> to vector<16x64xbf16>
    %cst_169 = arith.constant dense<0.000000e+00> : vector<16x128xf32>
    %207 = tpu.matmul %206, %171, %cst_169 {dimension_numbers = #tpu.dot_dimension_numbers<[1], [0], [0], [1], [0, 0, 1, 1], [], []>} : vector<16x64xbf16>, vector<64x128xbf16>, vector<16x128xf32> -> vector<16x128xf32>
    %208 = arith.truncf %207 : vector<16x128xf32> to vector<16x128xbf16>
    %c4_170 = arith.constant 4 : index
    %c0_171 = arith.constant 0 : index
    %c0_172 = arith.constant 0 : index
    %209 = vector.load %arg14[%c4_170, %c0_171, %c0_172] : memref<9x128x128xbf16, #tpu.memory_space<vmem>>, vector<1x128x128xbf16>
    %210 = vector.shape_cast %209 : vector<1x128x128xbf16> to vector<128x128xbf16>
    %cst_173 = arith.constant dense<0.000000e+00> : vector<16x128xf32>
    %211 = tpu.matmul %208, %210, %cst_173 {dimension_numbers = #tpu.dot_dimension_numbers<[1], [0], [0], [1], [0, 0, 1, 1], [], []>} : vector<16x128xbf16>, vector<128x128xbf16>, vector<16x128xf32> -> vector<16x128xf32>
    %212 = arith.addf %204, %211 : vector<16x128xf32>
    %c5_174 = arith.constant 5 : index
    %c0_175 = arith.constant 0 : index
    %c0_176 = arith.constant 0 : index
    %213 = vector.load %arg3[%c5_174, %c0_175, %c0_176] : memref<9x16x64xbf16, #tpu.memory_space<vmem>>, vector<1x16x64xbf16>
    %214 = vector.shape_cast %213 : vector<1x16x64xbf16> to vector<16x64xbf16>
    %cst_177 = arith.constant dense<0.000000e+00> : vector<16x128xf32>
    %215 = tpu.matmul %214, %171, %cst_177 {dimension_numbers = #tpu.dot_dimension_numbers<[1], [0], [0], [1], [0, 0, 1, 1], [], []>} : vector<16x64xbf16>, vector<64x128xbf16>, vector<16x128xf32> -> vector<16x128xf32>
    %216 = arith.truncf %215 : vector<16x128xf32> to vector<16x128xbf16>
    %c5_178 = arith.constant 5 : index
    %c0_179 = arith.constant 0 : index
    %c0_180 = arith.constant 0 : index
    %217 = vector.load %arg14[%c5_178, %c0_179, %c0_180] : memref<9x128x128xbf16, #tpu.memory_space<vmem>>, vector<1x128x128xbf16>
    %218 = vector.shape_cast %217 : vector<1x128x128xbf16> to vector<128x128xbf16>
    %cst_181 = arith.constant dense<0.000000e+00> : vector<16x128xf32>
    %219 = tpu.matmul %216, %218, %cst_181 {dimension_numbers = #tpu.dot_dimension_numbers<[1], [0], [0], [1], [0, 0, 1, 1], [], []>} : vector<16x128xbf16>, vector<128x128xbf16>, vector<16x128xf32> -> vector<16x128xf32>
    %220 = arith.addf %212, %219 : vector<16x128xf32>
    %c6_182 = arith.constant 6 : index
    %c0_183 = arith.constant 0 : index
    %c0_184 = arith.constant 0 : index
    %221 = vector.load %arg3[%c6_182, %c0_183, %c0_184] : memref<9x16x64xbf16, #tpu.memory_space<vmem>>, vector<1x16x64xbf16>
    %222 = vector.shape_cast %221 : vector<1x16x64xbf16> to vector<16x64xbf16>
    %cst_185 = arith.constant dense<0.000000e+00> : vector<16x128xf32>
    %223 = tpu.matmul %222, %171, %cst_185 {dimension_numbers = #tpu.dot_dimension_numbers<[1], [0], [0], [1], [0, 0, 1, 1], [], []>} : vector<16x64xbf16>, vector<64x128xbf16>, vector<16x128xf32> -> vector<16x128xf32>
    %224 = arith.truncf %223 : vector<16x128xf32> to vector<16x128xbf16>
    %c6_186 = arith.constant 6 : index
    %c0_187 = arith.constant 0 : index
    %c0_188 = arith.constant 0 : index
    %225 = vector.load %arg14[%c6_186, %c0_187, %c0_188] : memref<9x128x128xbf16, #tpu.memory_space<vmem>>, vector<1x128x128xbf16>
    %226 = vector.shape_cast %225 : vector<1x128x128xbf16> to vector<128x128xbf16>
    %cst_189 = arith.constant dense<0.000000e+00> : vector<16x128xf32>
    %227 = tpu.matmul %224, %226, %cst_189 {dimension_numbers = #tpu.dot_dimension_numbers<[1], [0], [0], [1], [0, 0, 1, 1], [], []>} : vector<16x128xbf16>, vector<128x128xbf16>, vector<16x128xf32> -> vector<16x128xf32>
    %228 = arith.addf %220, %227 : vector<16x128xf32>
    %c7_190 = arith.constant 7 : index
    %c0_191 = arith.constant 0 : index
    %c0_192 = arith.constant 0 : index
    %229 = vector.load %arg3[%c7_190, %c0_191, %c0_192] : memref<9x16x64xbf16, #tpu.memory_space<vmem>>, vector<1x16x64xbf16>
    %230 = vector.shape_cast %229 : vector<1x16x64xbf16> to vector<16x64xbf16>
    %cst_193 = arith.constant dense<0.000000e+00> : vector<16x128xf32>
    %231 = tpu.matmul %230, %171, %cst_193 {dimension_numbers = #tpu.dot_dimension_numbers<[1], [0], [0], [1], [0, 0, 1, 1], [], []>} : vector<16x64xbf16>, vector<64x128xbf16>, vector<16x128xf32> -> vector<16x128xf32>
    %232 = arith.truncf %231 : vector<16x128xf32> to vector<16x128xbf16>
    %c7_194 = arith.constant 7 : index
    %c0_195 = arith.constant 0 : index
    %c0_196 = arith.constant 0 : index
    %233 = vector.load %arg14[%c7_194, %c0_195, %c0_196] : memref<9x128x128xbf16, #tpu.memory_space<vmem>>, vector<1x128x128xbf16>
    %234 = vector.shape_cast %233 : vector<1x128x128xbf16> to vector<128x128xbf16>
    %cst_197 = arith.constant dense<0.000000e+00> : vector<16x128xf32>
    %235 = tpu.matmul %232, %234, %cst_197 {dimension_numbers = #tpu.dot_dimension_numbers<[1], [0], [0], [1], [0, 0, 1, 1], [], []>} : vector<16x128xbf16>, vector<128x128xbf16>, vector<16x128xf32> -> vector<16x128xf32>
    %236 = arith.addf %228, %235 : vector<16x128xf32>
    %c8_198 = arith.constant 8 : index
    %c0_199 = arith.constant 0 : index
    %c0_200 = arith.constant 0 : index
    %237 = vector.load %arg3[%c8_198, %c0_199, %c0_200] : memref<9x16x64xbf16, #tpu.memory_space<vmem>>, vector<1x16x64xbf16>
    %238 = vector.shape_cast %237 : vector<1x16x64xbf16> to vector<16x64xbf16>
    %cst_201 = arith.constant dense<0.000000e+00> : vector<16x128xf32>
    %239 = tpu.matmul %238, %171, %cst_201 {dimension_numbers = #tpu.dot_dimension_numbers<[1], [0], [0], [1], [0, 0, 1, 1], [], []>} : vector<16x64xbf16>, vector<64x128xbf16>, vector<16x128xf32> -> vector<16x128xf32>
    %240 = arith.truncf %239 : vector<16x128xf32> to vector<16x128xbf16>
    %c8_202 = arith.constant 8 : index
    %c0_203 = arith.constant 0 : index
    %c0_204 = arith.constant 0 : index
    %241 = vector.load %arg14[%c8_202, %c0_203, %c0_204] : memref<9x128x128xbf16, #tpu.memory_space<vmem>>, vector<1x128x128xbf16>
    %242 = vector.shape_cast %241 : vector<1x128x128xbf16> to vector<128x128xbf16>
    %cst_205 = arith.constant dense<0.000000e+00> : vector<16x128xf32>
    %243 = tpu.matmul %240, %242, %cst_205 {dimension_numbers = #tpu.dot_dimension_numbers<[1], [0], [0], [1], [0, 0, 1, 1], [], []>} : vector<16x128xbf16>, vector<128x128xbf16>, vector<16x128xf32> -> vector<16x128xf32>
    %244 = arith.addf %236, %243 : vector<16x128xf32>
    %c0_206 = arith.constant 0 : index
    %c0_207 = arith.constant 0 : index
    %245 = vector.load %arg15[%c0_206, %c0_207] : memref<1x128xf32, #tpu.memory_space<vmem>>, vector<1x128xf32>
    %246 = vector.broadcast %245 : vector<1x128xf32> to vector<16x128xf32>
    %247 = arith.addf %244, %246 : vector<16x128xf32>
    %cst_208 = arith.constant 0.000000e+00 : f32
    %248 = vector.broadcast %cst_208 : f32 to vector<16x128xf32>
    %249 = arith.maximumf %247, %248 : vector<16x128xf32>
    %250 = arith.truncf %249 : vector<16x128xf32> to vector<16x128xbf16>
    %c0_209 = arith.constant 0 : index
    %c0_210 = arith.constant 0 : index
    %251 = vector.load %arg16[%c0_209, %c0_210] : memref<128x128xbf16, #tpu.memory_space<vmem>>, vector<128x128xbf16>
    %cst_211 = arith.constant dense<0.000000e+00> : vector<16x128xf32>
    %252 = tpu.matmul %250, %251, %cst_211 {dimension_numbers = #tpu.dot_dimension_numbers<[1], [0], [0], [1], [0, 0, 1, 1], [], []>} : vector<16x128xbf16>, vector<128x128xbf16>, vector<16x128xf32> -> vector<16x128xf32>
    %c0_212 = arith.constant 0 : index
    %c0_213 = arith.constant 0 : index
    %253 = vector.load %arg17[%c0_212, %c0_213] : memref<1x128xf32, #tpu.memory_space<vmem>>, vector<1x128xf32>
    %254 = vector.broadcast %253 : vector<1x128xf32> to vector<16x128xf32>
    %255 = arith.addf %252, %254 : vector<16x128xf32>
    %256 = arith.addf %255, %167 : vector<16x128xf32>
    %cst_214 = arith.constant 0.000000e+00 : f32
    %257 = vector.broadcast %cst_214 : f32 to vector<16x128xf32>
    %258 = arith.maximumf %256, %257 : vector<16x128xf32>
    %259 = arith.truncf %258 : vector<16x128xf32> to vector<16x128xbf16>
    %c0_215 = arith.constant 0 : index
    %c0_216 = arith.constant 0 : index
    %260 = vector.load %arg18[%c0_215, %c0_216] : memref<128x384xbf16, #tpu.memory_space<vmem>>, vector<128x384xbf16>
    %cst_217 = arith.constant dense<0.000000e+00> : vector<16x384xf32>
    %261 = tpu.matmul %259, %260, %cst_217 {dimension_numbers = #tpu.dot_dimension_numbers<[1], [0], [0], [1], [0, 0, 1, 1], [], []>} : vector<16x128xbf16>, vector<128x384xbf16>, vector<16x384xf32> -> vector<16x384xf32>
    %c0_218 = arith.constant 0 : index
    %c0_219 = arith.constant 0 : index
    %262 = vector.load %arg19[%c0_218, %c0_219] : memref<1x384xf32, #tpu.memory_space<vmem>>, vector<1x384xf32>
    %263 = vector.broadcast %262 : vector<1x384xf32> to vector<16x384xf32>
    %264 = arith.addf %261, %263 : vector<16x384xf32>
    %265 = vector.extract_strided_slice %264 {offsets = [0, 0], sizes = [16, 128], strides = [1, 1]} : vector<16x384xf32> to vector<16x128xf32>
    %266 = arith.truncf %265 : vector<16x128xf32> to vector<16x128xbf16>
    %267 = vector.extract_strided_slice %264 {offsets = [0, 128], sizes = [16, 128], strides = [1, 1]} : vector<16x384xf32> to vector<16x128xf32>
    %268 = arith.truncf %267 : vector<16x128xf32> to vector<16x128xbf16>
    %269 = vector.extract_strided_slice %264 {offsets = [0, 256], sizes = [16, 128], strides = [1, 1]} : vector<16x384xf32> to vector<16x128xf32>
    %270 = arith.truncf %269 : vector<16x128xf32> to vector<16x128xbf16>
    %cst_220 = arith.constant dense<0.000000e+00> : vector<16x16xf32>
    %271 = tpu.matmul %266, %268, %cst_220 {dimension_numbers = #tpu.dot_dimension_numbers<[1], [1], [0], [0], [0, 0, 1, 0], [], []>} : vector<16x128xbf16>, vector<16x128xbf16>, vector<16x16xf32> -> vector<16x16xf32>
    %cst_221 = arith.constant dense<0xFF800000> : vector<16xf32>
    %272 = vector.multi_reduction <maximumf>, %271, %cst_221 [1] : vector<16x16xf32> to vector<16xf32>
    %273 = vector.shape_cast %272 : vector<16xf32> to vector<16x1xf32>
    %274 = vector.broadcast %273 : vector<16x1xf32> to vector<16x16xf32>
    %275 = arith.subf %271, %274 : vector<16x16xf32>
    %276 = math.exp %275 : vector<16x16xf32>
    %cst_222 = arith.constant dense<0.000000e+00> : vector<16xf32>
    %277 = vector.multi_reduction <add>, %276, %cst_222 [1] : vector<16x16xf32> to vector<16xf32>
    %278 = vector.shape_cast %277 : vector<16xf32> to vector<16x1xf32>
    %279 = tpu.reciprocal %278 {approx = true} : vector<16x1xf32> -> vector<16x1xf32>
    %280 = vector.broadcast %279 : vector<16x1xf32> to vector<16x16xf32>
    %281 = arith.mulf %276, %280 : vector<16x16xf32>
    %282 = arith.truncf %281 : vector<16x16xf32> to vector<16x16xbf16>
    %cst_223 = arith.constant dense<0.000000e+00> : vector<16x128xf32>
    %283 = tpu.matmul %282, %270, %cst_223 {dimension_numbers = #tpu.dot_dimension_numbers<[1], [0], [0], [1], [0, 0, 1, 1], [], []>} : vector<16x16xbf16>, vector<16x128xbf16>, vector<16x128xf32> -> vector<16x128xf32>
    %c0_224 = arith.constant 0 : index
    %c0_225 = arith.constant 0 : index
    %284 = vector.load %arg20[%c0_224, %c0_225] : memref<16x128xf32, #tpu.memory_space<vmem>>, vector<16x128xf32>
    tpu.vector_store %arg20[%c0_224, %c0_225], %283 {strides = array<i32>} : memref<16x128xf32, #tpu.memory_space<vmem>>, vector<16x128xf32>,
    return
  }
  func.func @transform_0(%arg0: i32) -> (i32, i32) {
    %c0_i32 = arith.constant 0 : i32
    %c0_i32_0 = arith.constant 0 : i32
    return %arg0, %c0_i32 : i32, i32
  }
  func.func @transform_1(%arg0: i32) -> (i32, i32, i32) {
    %c0_i32 = arith.constant 0 : i32
    %c0_i32_0 = arith.constant 0 : i32
    %c0_i32_1 = arith.constant 0 : i32
    %c0_i32_2 = arith.constant 0 : i32
    return %c0_i32, %c0_i32_0, %c0_i32_1 : i32, i32, i32
  }
  func.func @transform_2(%arg0: i32) -> (i32, i32, i32) {
    %c0_i32 = arith.constant 0 : i32
    %c0_i32_0 = arith.constant 0 : i32
    %c0_i32_1 = arith.constant 0 : i32
    %c0_i32_2 = arith.constant 0 : i32
    return %c0_i32, %c0_i32_0, %c0_i32_1 : i32, i32, i32
  }
  func.func @transform_3(%arg0: i32) -> (i32, i32) {
    %c0_i32 = arith.constant 0 : i32
    %c0_i32_0 = arith.constant 0 : i32
    %c0_i32_1 = arith.constant 0 : i32
    return %c0_i32, %c0_i32_0 : i32, i32
  }
  func.func @transform_4(%arg0: i32) -> (i32, i32) {
    %c0_i32 = arith.constant 0 : i32
    %c0_i32_0 = arith.constant 0 : i32
    %c0_i32_1 = arith.constant 0 : i32
    return %c0_i32, %c0_i32_0 : i32, i32
  }
  func.func @transform_5(%arg0: i32) -> (i32, i32) {
    %c0_i32 = arith.constant 0 : i32
    %c0_i32_0 = arith.constant 0 : i32
    %c0_i32_1 = arith.constant 0 : i32
    return %c0_i32, %c0_i32_0 : i32, i32
  }
  func.func @transform_6(%arg0: i32) -> (i32, i32) {
    %c0_i32 = arith.constant 0 : i32
    %c0_i32_0 = arith.constant 0 : i32
    %c0_i32_1 = arith.constant 0 : i32
    return %c0_i32, %c0_i32_0 : i32, i32
  }
  func.func @transform_7(%arg0: i32) -> (i32, i32, i32) {
    %c0_i32 = arith.constant 0 : i32
    %c0_i32_0 = arith.constant 0 : i32
    %c0_i32_1 = arith.constant 0 : i32
    %c0_i32_2 = arith.constant 0 : i32
    return %c0_i32, %c0_i32_0, %c0_i32_1 : i32, i32, i32
  }
  func.func @transform_8(%arg0: i32) -> (i32, i32) {
    %c0_i32 = arith.constant 0 : i32
    %c0_i32_0 = arith.constant 0 : i32
    %c0_i32_1 = arith.constant 0 : i32
    return %c0_i32, %c0_i32_0 : i32, i32
  }
  func.func @transform_9(%arg0: i32) -> (i32, i32) {
    %c0_i32 = arith.constant 0 : i32
    %c0_i32_0 = arith.constant 0 : i32
    %c0_i32_1 = arith.constant 0 : i32
    return %c0_i32, %c0_i32_0 : i32, i32
  }
  func.func @transform_10(%arg0: i32) -> (i32, i32) {
    %c0_i32 = arith.constant 0 : i32
    %c0_i32_0 = arith.constant 0 : i32
    %c0_i32_1 = arith.constant 0 : i32
    return %c0_i32, %c0_i32_0 : i32, i32
  }
  func.func @transform_11(%arg0: i32) -> (i32, i32) {
    %c0_i32 = arith.constant 0 : i32
    %c0_i32_0 = arith.constant 0 : i32
    %c0_i32_1 = arith.constant 0 : i32
    return %c0_i32, %c0_i32_0 : i32, i32
  }
  func.func @transform_12(%arg0: i32) -> (i32, i32) {
    %c0_i32 = arith.constant 0 : i32
    %c0_i32_0 = arith.constant 0 : i32
    %c0_i32_1 = arith.constant 0 : i32
    return %c0_i32, %c0_i32_0 : i32, i32
  }
  func.func @transform_13(%arg0: i32) -> (i32, i32, i32) {
    %c0_i32 = arith.constant 0 : i32
    %c0_i32_0 = arith.constant 0 : i32
    %c0_i32_1 = arith.constant 0 : i32
    %c0_i32_2 = arith.constant 0 : i32
    return %c0_i32, %c0_i32_0, %c0_i32_1 : i32, i32, i32
  }
  func.func @transform_14(%arg0: i32) -> (i32, i32) {
    %c0_i32 = arith.constant 0 : i32
    %c0_i32_0 = arith.constant 0 : i32
    %c0_i32_1 = arith.constant 0 : i32
    return %c0_i32, %c0_i32_0 : i32, i32
  }
  func.func @transform_15(%arg0: i32) -> (i32, i32) {
    %c0_i32 = arith.constant 0 : i32
    %c0_i32_0 = arith.constant 0 : i32
    %c0_i32_1 = arith.constant 0 : i32
    return %c0_i32, %c0_i32_0 : i32, i32
  }
  func.func @transform_16(%arg0: i32) -> (i32, i32) {
    %c0_i32 = arith.constant 0 : i32
    %c0_i32_0 = arith.constant 0 : i32
    %c0_i32_1 = arith.constant 0 : i32
    return %c0_i32, %c0_i32_0 : i32, i32
  }
  func.func @transform_17(%arg0: i32) -> (i32, i32) {
    %c0_i32 = arith.constant 0 : i32
    %c0_i32_0 = arith.constant 0 : i32
    %c0_i32_1 = arith.constant 0 : i32
    return %c0_i32, %c0_i32_0 : i32, i32
  }
  func.func @transform_18(%arg0: i32) -> (i32, i32) {
    %c0_i32 = arith.constant 0 : i32
    %c0_i32_0 = arith.constant 0 : i32
    %c0_i32_1 = arith.constant 0 : i32
    return %c0_i32, %c0_i32_0 : i32, i32
  }
  func.func @transform_19(%arg0: i32) -> (i32, i32) {
    %c0_i32 = arith.constant 0 : i32
    %c0_i32_0 = arith.constant 0 : i32
    return %arg0, %c0_i32 : i32, i32
  }
}

</mosaic_0001>

<llo_original>
// kernel: _lambda_.1
$region0: #{_lambda_.1}
  #allocation0 [shape = 'u32[]', space=smem, size = 0x4, offset = 0x4, fixed_abs, tag = 'smem constant byte address 0x4 - core index']
  #allocation1 [shape = 'u32[144,128]{1,0:T(1,128)}', space=vmem, size = 0x12000, scoped, tag = 'internal scratch']
  %s0 = inlined_call_operand.vmem [shape: bf16[512,256], index: 0, kind: input, shape index: {}]
  %s1 = inlined_call_operand.vmem [shape: bf16[9,64,64], index: 1, kind: input, shape index: {}]
  %s2 = inlined_call_operand.vmem [shape: bf16[9,16,64], index: 2, kind: input, shape index: {}]
  %s3 = inlined_call_operand.vmem [shape: bf16[256,128], index: 3, kind: input, shape index: {}]
  %s4 = inlined_call_operand.vmem [shape: f32[1,128], index: 4, kind: input, shape index: {}, may-alias: {4,8,10,14,16}]
  %s5 = inlined_call_operand.vmem [shape: bf16[128,256], index: 5, kind: input, shape index: {}]
  %s6 = inlined_call_operand.vmem [shape: f32[1,256], index: 6, kind: input, shape index: {}, may-alias: {6,12}]
  %s7 = inlined_call_operand.vmem [shape: bf16[9,128,128], index: 7, kind: input, shape index: {}]
  %s8 = inlined_call_operand.vmem [shape: f32[1,128], index: 8, kind: input, shape index: {}, may-alias: {4,8,10,14,16}]
  %s9 = inlined_call_operand.vmem [shape: bf16[128,128], index: 9, kind: input, shape index: {}]
  %s10 = inlined_call_operand.vmem [shape: f32[1,128], index: 10, kind: input, shape index: {}, may-alias: {4,8,10,14,16}]
  %s11 = inlined_call_operand.vmem [shape: bf16[128,256], index: 11, kind: input, shape index: {}]
  %s12 = inlined_call_operand.vmem [shape: f32[1,256], index: 12, kind: input, shape index: {}, may-alias: {6,12}]
  %s13 = inlined_call_operand.vmem [shape: bf16[9,128,128], index: 13, kind: input, shape index: {}]
  %s14 = inlined_call_operand.vmem [shape: f32[1,128], index: 14, kind: input, shape index: {}, may-alias: {4,8,10,14,16}]
  %s15 = inlined_call_operand.vmem [shape: bf16[128,128], index: 15, kind: input, shape index: {}]
  %s16 = inlined_call_operand.vmem [shape: f32[1,128], index: 16, kind: input, shape index: {}, may-alias: {4,8,10,14,16}]
  %s17 = inlined_call_operand.vmem [shape: bf16[128,384], index: 17, kind: input, shape index: {}]
  %s18 = inlined_call_operand.vmem [shape: f32[1,384], index: 18, kind: input, shape index: {}]
  %s19 = inlined_call_operand.hbm [shape: f32[32,128], index: 19, kind: output, shape index: {}]
  %s20 = sld [smem:[#allocation0]]
  $region109: #{_lambda_.1} parent=0
    _
  %s22 = ssub.s32 1, %s20
  %s23 = scalar_select 0, %s22, %s20
  $region1: #{_lambda_.1} parent=0
    #allocation2 [shape = 'u8[16384]{0}', space=vmem, size = 0x4000, scoped, tag = 'output window, operand 0']
    #allocation3 [shape = 's32[2]{0}', space=sflag, size = 0x8, scoped, tag = 'scoped memory for _lambda_.1']
    %24 = vsyncpa [#allocation3], 0
    %s25 = scalar_lea.sflag [#allocation3], 1
    %26 = vsyncpa %s25, 0
    loop: start=0, step=1, limit=4
    $region2: #{_lambda_.1} parent=1 // loop_pre_header
      _
    $region3: #{_lambda_.1} parent=1 // loop_header
      %s28 = sphi 0, %s32
      %p29 = scmp.ge.s32.totalorder %s28, 4
      %s38 = sphi 0, %s40
      %s41 = sphi 0, %s38
      %s42 = sphi 0, %s41
      %s58 = sphi 0, %s42
      %s62 = sphi 0, %s62
      %s64 = sphi 0, %s62
      %s65 = sphi 0, %s64
      %s79 = sphi 0, %s65
      %s83 = sphi 0, %s83
      %s85 = sphi 0, %s83
      %s86 = sphi 0, %s85
      %s100 = sphi 0, %s86
      %s104 = sphi 0, %s104
      %s106 = sphi 0, %s104
      %s107 = sphi 0, %s106
      %s121 = sphi 0, %s107
      %s125 = sphi 0, %s125
      %s127 = sphi 0, %s125
      %s128 = sphi 0, %s127
      %s142 = sphi 0, %s128
      %s146 = sphi 0, %s146
      %s148 = sphi 0, %s146
      %s149 = sphi 0, %s148
      %s163 = sphi 0, %s149
      %s167 = sphi 0, %s167
      %s169 = sphi 0, %s167
      %s170 = sphi 0, %s169
      %s184 = sphi 0, %s170
      %s188 = sphi 0, %s188
      %s190 = sphi 0, %s188
      %s191 = sphi 0, %s190
      %s205 = sphi 0, %s191
      %s209 = sphi 0, %s209
      %s211 = sphi 0, %s209
      %s212 = sphi 0, %s211
      %s226 = sphi 0, %s212
      %s230 = sphi 0, %s230
      %s232 = sphi 0, %s230
      %s233 = sphi 0, %s232
      %s247 = sphi 0, %s233
      %s251 = sphi 0, %s251
      %s253 = sphi 0, %s251
      %s254 = sphi 0, %s253
      %s268 = sphi 0, %s254
      %s272 = sphi 0, %s272
      %s274 = sphi 0, %s272
      %s275 = sphi 0, %s274
      %s289 = sphi 0, %s275
      %s293 = sphi 0, %s293
      %s295 = sphi 0, %s293
      %s296 = sphi 0, %s295
      %s310 = sphi 0, %s296
      %s314 = sphi 0, %s314
      %s316 = sphi 0, %s314
      %s317 = sphi 0, %s316
      %s331 = sphi 0, %s317
      %s335 = sphi 0, %s335
      %s337 = sphi 0, %s335
      %s338 = sphi 0, %s337
      %s352 = sphi 0, %s338
      %s356 = sphi 0, %s356
      %s358 = sphi 0, %s356
      %s359 = sphi 0, %s358
      %s373 = sphi 0, %s359
      %s377 = sphi 0, %s377
      %s379 = sphi 0, %s377
      %s380 = sphi 0, %s379
      %s394 = sphi 0, %s380
      %s398 = sphi 0, %s398
      %s400 = sphi 0, %s398
      %s401 = sphi 0, %s400
      %s415 = sphi 0, %s401
      %s419 = sphi 0, %s419
      %s421 = sphi 0, %s419
      %s422 = sphi 0, %s421
      %s436 = sphi 0, %s422
      %s442 = sphi 0, %s444
      %s445 = sphi 0, %s442
      %s446 = sphi 0, %s445
      %s462 = sphi 0, %s446
    $region4: #{_lambda_.1} parent=1 // loop_header_branch
      %31 = sbr.rel (%p29) target = $region8
    $region5: #{_lambda_.1} parent=1 // loop_body
      %s33 = ssub.s32 %s28, 1
      %s34 = ssub.s32 %s28, 2
      %s35 = sadd.s32 %s28, 1
      %s36 = ssub.s32 %s28, %s35
      %p37 = scmp.eq.s32.totalorder %s36, 0
      %s39 = sadd.s32 %s38, 1
      %s40 = scalar_select %p37, %s38, %s39
      %p43 = pneg %p37
      %p44 = scmp.eq.s32.totalorder %s28, 1
      %p45 = por %p43, %p44
      %p46 = scmp.ne.s32.totalorder %s38, %s41
      %p47 = scmp.eq.s32.totalorder %s28, 0
      %p48 = por %p46, %p47
      %p49 = scmp.ne.s32.totalorder %s38, %s41
      %p50 = scmp.eq.s32.totalorder %s33, 1
      %p51 = por %p49, %p50
      %p52 = scmp.ne.s32.totalorder %s41, %s42
      %p53 = scmp.eq.s32.totalorder %s33, 0
      %p54 = por %p52, %p53
      %p55 = scmp.ne.s32.totalorder %s41, %s42
      %p56 = scmp.eq.s32.totalorder %s34, 1
      %p57 = por %p55, %p56
      %p59 = scmp.ne.s32.totalorder %s42, %s58
      %p60 = scmp.eq.s32.totalorder %s34, 0
      %p61 = por %p59, %p60
      %s63 = sadd.s32 %s62, 1
      %p66 = scmp.eq.s32.totalorder %s28, 1
      %p67 = scmp.ne.s32.totalorder %s62, %s64
      %p68 = scmp.eq.s32.totalorder %s28, 0
      %p69 = por %p67, %p68
      %p70 = scmp.ne.s32.totalorder %s62, %s64
      %p71 = scmp.eq.s32.totalorder %s33, 1
      %p72 = por %p70, %p71
      %p73 = scmp.ne.s32.totalorder %s64, %s65
      %p74 = scmp.eq.s32.totalorder %s33, 0
      %p75 = por %p73, %p74
      %p76 = scmp.ne.s32.totalorder %s64, %s65
      %p77 = scmp.eq.s32.totalorder %s34, 1
      %p78 = por %p76, %p77
      %p80 = scmp.ne.s32.totalorder %s65, %s79
      %p81 = scmp.eq.s32.totalorder %s34, 0
      %p82 = por %p80, %p81
      %s84 = sadd.s32 %s83, 1
      %p87 = scmp.eq.s32.totalorder %s28, 1
      %p88 = scmp.ne.s32.totalorder %s83, %s85
      %p89 = scmp.eq.s32.totalorder %s28, 0
      %p90 = por %p88, %p89
      %p91 = scmp.ne.s32.totalorder %s83, %s85
      %p92 = scmp.eq.s32.totalorder %s33, 1
      %p93 = por %p91, %p92
      %p94 = scmp.ne.s32.totalorder %s85, %s86
      %p95 = scmp.eq.s32.totalorder %s33, 0
      %p96 = por %p94, %p95
      %p97 = scmp.ne.s32.totalorder %s85, %s86
      %p98 = scmp.eq.s32.totalorder %s34, 1
      %p99 = por %p97, %p98
      %p101 = scmp.ne.s32.totalorder %s86, %s100
      %p102 = scmp.eq.s32.totalorder %s34, 0
      %p103 = por %p101, %p102
      %s105 = sadd.s32 %s104, 1
      %p108 = scmp.eq.s32.totalorder %s28, 1
      %p109 = scmp.ne.s32.totalorder %s104, %s106
      %p110 = scmp.eq.s32.totalorder %s28, 0
      %p111 = por %p109, %p110
      %p112 = scmp.ne.s32.totalorder %s104, %s106
      %p113 = scmp.eq.s32.totalorder %s33, 1
      %p114 = por %p112, %p113
      %p115 = scmp.ne.s32.totalorder %s106, %s107
      %p116 = scmp.eq.s32.totalorder %s33, 0
      %p117 = por %p115, %p116
      %p118 = scmp.ne.s32.totalorder %s106, %s107
      %p119 = scmp.eq.s32.totalorder %s34, 1
      %p120 = por %p118, %p119
      %p122 = scmp.ne.s32.totalorder %s107, %s121
      %p123 = scmp.eq.s32.totalorder %s34, 0
      %p124 = por %p122, %p123
      %s126 = sadd.s32 %s125, 1
      %p129 = scmp.eq.s32.totalorder %s28, 1
      %p130 = scmp.ne.s32.totalorder %s125, %s127
      %p131 = scmp.eq.s32.totalorder %s28, 0
      %p132 = por %p130, %p131
      %p133 = scmp.ne.s32.totalorder %s125, %s127
      %p134 = scmp.eq.s32.totalorder %s33, 1
      %p135 = por %p133, %p134
      %p136 = scmp.ne.s32.totalorder %s127, %s128
      %p137 = scmp.eq.s32.totalorder %s33, 0
      %p138 = por %p136, %p137
      %p139 = scmp.ne.s32.totalorder %s127, %s128
      %p140 = scmp.eq.s32.totalorder %s34, 1
      %p141 = por %p139, %p140
      %p143 = scmp.ne.s32.totalorder %s128, %s142
      %p144 = scmp.eq.s32.totalorder %s34, 0
      %p145 = por %p143, %p144
      %s147 = sadd.s32 %s146, 1
      %p150 = scmp.eq.s32.totalorder %s28, 1
      %p151 = scmp.ne.s32.totalorder %s146, %s148
      %p152 = scmp.eq.s32.totalorder %s28, 0
      %p153 = por %p151, %p152
      %p154 = scmp.ne.s32.totalorder %s146, %s148
      %p155 = scmp.eq.s32.totalorder %s33, 1
      %p156 = por %p154, %p155
      %p157 = scmp.ne.s32.totalorder %s148, %s149
      %p158 = scmp.eq.s32.totalorder %s33, 0
      %p159 = por %p157, %p158
      %p160 = scmp.ne.s32.totalorder %s148, %s149
      %p161 = scmp.eq.s32.totalorder %s34, 1
      %p162 = por %p160, %p161
      %p164 = scmp.ne.s32.totalorder %s149, %s163
      %p165 = scmp.eq.s32.totalorder %s34, 0
      %p166 = por %p164, %p165
      %s168 = sadd.s32 %s167, 1
      %p171 = scmp.eq.s32.totalorder %s28, 1
      %p172 = scmp.ne.s32.totalorder %s167, %s169
      %p173 = scmp.eq.s32.totalorder %s28, 0
      %p174 = por %p172, %p173
      %p175 = scmp.ne.s32.totalorder %s167, %s169
      %p176 = scmp.eq.s32.totalorder %s33, 1
      %p177 = por %p175, %p176
      %p178 = scmp.ne.s32.totalorder %s169, %s170
      %p179 = scmp.eq.s32.totalorder %s33, 0
      %p180 = por %p178, %p179
      %p181 = scmp.ne.s32.totalorder %s169, %s170
      %p182 = scmp.eq.s32.totalorder %s34, 1
      %p183 = por %p181, %p182
      %p185 = scmp.ne.s32.totalorder %s170, %s184
      %p186 = scmp.eq.s32.totalorder %s34, 0
      %p187 = por %p185, %p186
      %s189 = sadd.s32 %s188, 1
      %p192 = scmp.eq.s32.totalorder %s28, 1
      %p193 = scmp.ne.s32.totalorder %s188, %s190
      %p194 = scmp.eq.s32.totalorder %s28, 0
      %p195 = por %p193, %p194
      %p196 = scmp.ne.s32.totalorder %s188, %s190
      %p197 = scmp.eq.s32.totalorder %s33, 1
      %p198 = por %p196, %p197
      %p199 = scmp.ne.s32.totalorder %s190, %s191
      %p200 = scmp.eq.s32.totalorder %s33, 0
      %p201 = por %p199, %p200
      %p202 = scmp.ne.s32.totalorder %s190, %s191
      %p203 = scmp.eq.s32.totalorder %s34, 1
      %p204 = por %p202, %p203
      %p206 = scmp.ne.s32.totalorder %s191, %s205
      %p207 = scmp.eq.s32.totalorder %s34, 0
      %p208 = por %p206, %p207
      %s210 = sadd.s32 %s209, 1
      %p213 = scmp.eq.s32.totalorder %s28, 1
      %p214 = scmp.ne.s32.totalorder %s209, %s211
      %p215 = scmp.eq.s32.totalorder %s28, 0
      %p216 = por %p214, %p215
      %p217 = scmp.ne.s32.totalorder %s209, %s211
      %p218 = scmp.eq.s32.totalorder %s33, 1
      %p219 = por %p217, %p218
      %p220 = scmp.ne.s32.totalorder %s211, %s212
      %p221 = scmp.eq.s32.totalorder %s33, 0
      %p222 = por %p220, %p221
      %p223 = scmp.ne.s32.totalorder %s211, %s212
      %p224 = scmp.eq.s32.totalorder %s34, 1
      %p225 = por %p223, %p224
      %p227 = scmp.ne.s32.totalorder %s212, %s226
      %p228 = scmp.eq.s32.totalorder %s34, 0
      %p229 = por %p227, %p228
      %s231 = sadd.s32 %s230, 1
      %p234 = scmp.eq.s32.totalorder %s28, 1
      %p235 = scmp.ne.s32.totalorder %s230, %s232
      %p236 = scmp.eq.s32.totalorder %s28, 0
      %p237 = por %p235, %p236
      %p238 = scmp.ne.s32.totalorder %s230, %s232
      %p239 = scmp.eq.s32.totalorder %s33, 1
      %p240 = por %p238, %p239
      %p241 = scmp.ne.s32.totalorder %s232, %s233
      %p242 = scmp.eq.s32.totalorder %s33, 0
      %p243 = por %p241, %p242
      %p244 = scmp.ne.s32.totalorder %s232, %s233
      %p245 = scmp.eq.s32.totalorder %s34, 1
      %p246 = por %p244, %p245
      %p248 = scmp.ne.s32.totalorder %s233, %s247
      %p249 = scmp.eq.s32.totalorder %s34, 0
      %p250 = por %p248, %p249
      %s252 = sadd.s32 %s251, 1
      %p255 = scmp.eq.s32.totalorder %s28, 1
      %p256 = scmp.ne.s32.totalorder %s251, %s253
      %p257 = scmp.eq.s32.totalorder %s28, 0
      %p258 = por %p256, %p257
      %p259 = scmp.ne.s32.totalorder %s251, %s253
      %p260 = scmp.eq.s32.totalorder %s33, 1
      %p261 = por %p259, %p260
      %p262 = scmp.ne.s32.totalorder %s253, %s254
      %p263 = scmp.eq.s32.totalorder %s33, 0
      %p264 = por %p262, %p263
      %p265 = scmp.ne.s32.totalorder %s253, %s254
      %p266 = scmp.eq.s32.totalorder %s34, 1
      %p267 = por %p265, %p266
      %p269 = scmp.ne.s32.totalorder %s254, %s268
      %p270 = scmp.eq.s32.totalorder %s34, 0
      %p271 = por %p269, %p270
      %s273 = sadd.s32 %s272, 1
      %p276 = scmp.eq.s32.totalorder %s28, 1
      %p277 = scmp.ne.s32.totalorder %s272, %s274
      %p278 = scmp.eq.s32.totalorder %s28, 0
      %p279 = por %p277, %p278
      %p280 = scmp.ne.s32.totalorder %s272, %s274
      %p281 = scmp.eq.s32.totalorder %s33, 1
      %p282 = por %p280, %p281
      %p283 = scmp.ne.s32.totalorder %s274, %s275
      %p284 = scmp.eq.s32.totalorder %s33, 0
      %p285 = por %p283, %p284
      %p286 = scmp.ne.s32.totalorder %s274, %s275
      %p287 = scmp.eq.s32.totalorder %s34, 1
      %p288 = por %p286, %p287
      %p290 = scmp.ne.s32.totalorder %s275, %s289
      %p291 = scmp.eq.s32.totalorder %s34, 0
      %p292 = por %p290, %p291
      %s294 = sadd.s32 %s293, 1
      %p297 = scmp.eq.s32.totalorder %s28, 1
      %p298 = scmp.ne.s32.totalorder %s293, %s295
      %p299 = scmp.eq.s32.totalorder %s28, 0
      %p300 = por %p298, %p299
      %p301 = scmp.ne.s32.totalorder %s293, %s295
      %p302 = scmp.eq.s32.totalorder %s33, 1
      %p303 = por %p301, %p302
      %p304 = scmp.ne.s32.totalorder %s295, %s296
      %p305 = scmp.eq.s32.totalorder %s33, 0
      %p306 = por %p304, %p305
      %p307 = scmp.ne.s32.totalorder %s295, %s296
      %p308 = scmp.eq.s32.totalorder %s34, 1
      %p309 = por %p307, %p308
      %p311 = scmp.ne.s32.totalorder %s296, %s310
      %p312 = scmp.eq.s32.totalorder %s34, 0
      %p313 = por %p311, %p312
      %s315 = sadd.s32 %s314, 1
      %p318 = scmp.eq.s32.totalorder %s28, 1
      %p319 = scmp.ne.s32.totalorder %s314, %s316
      %p320 = scmp.eq.s32.totalorder %s28, 0
      %p321 = por %p319, %p320
      %p322 = scmp.ne.s32.totalorder %s314, %s316
      %p323 = scmp.eq.s32.totalorder %s33, 1
      %p324 = por %p322, %p323
      %p325 = scmp.ne.s32.totalorder %s316, %s317
      %p326 = scmp.eq.s32.totalorder %s33, 0
      %p327 = por %p325, %p326
      %p328 = scmp.ne.s32.totalorder %s316, %s317
      %p329 = scmp.eq.s32.totalorder %s34, 1
      %p330 = por %p328, %p329
      %p332 = scmp.ne.s32.totalorder %s317, %s331
      %p333 = scmp.eq.s32.totalorder %s34, 0
      %p334 = por %p332, %p333
      %s336 = sadd.s32 %s335, 1
      %p339 = scmp.eq.s32.totalorder %s28, 1
      %p340 = scmp.ne.s32.totalorder %s335, %s337
      %p341 = scmp.eq.s32.totalorder %s28, 0
      %p342 = por %p340, %p341
      %p343 = scmp.ne.s32.totalorder %s335, %s337
      %p344 = scmp.eq.s32.totalorder %s33, 1
      %p345 = por %p343, %p344
      %p346 = scmp.ne.s32.totalorder %s337, %s338
      %p347 = scmp.eq.s32.totalorder %s33, 0
      %p348 = por %p346, %p347
      %p349 = scmp.ne.s32.totalorder %s337, %s338
      %p350 = scmp.eq.s32.totalorder %s34, 1
      %p351 = por %p349, %p350
      %p353 = scmp.ne.s32.totalorder %s338, %s352
      %p354 = scmp.eq.s32.totalorder %s34, 0
      %p355 = por %p353, %p354
      %s357 = sadd.s32 %s356, 1
      %p360 = scmp.eq.s32.totalorder %s28, 1
      %p361 = scmp.ne.s32.totalorder %s356, %s358
      %p362 = scmp.eq.s32.totalorder %s28, 0
      %p363 = por %p361, %p362
      %p364 = scmp.ne.s32.totalorder %s356, %s358
      %p365 = scmp.eq.s32.totalorder %s33, 1
      %p366 = por %p364, %p365
      %p367 = scmp.ne.s32.totalorder %s358, %s359
      %p368 = scmp.eq.s32.totalorder %s33, 0
      %p369 = por %p367, %p368
      %p370 = scmp.ne.s32.totalorder %s358, %s359
      %p371 = scmp.eq.s32.totalorder %s34, 1
      %p372 = por %p370, %p371
      %p374 = scmp.ne.s32.totalorder %s359, %s373
      %p375 = scmp.eq.s32.totalorder %s34, 0
      %p376 = por %p374, %p375
      %s378 = sadd.s32 %s377, 1
      %p381 = scmp.eq.s32.totalorder %s28, 1
      %p382 = scmp.ne.s32.totalorder %s377, %s379
      %p383 = scmp.eq.s32.totalorder %s28, 0
      %p384 = por %p382, %p383
      %p385 = scmp.ne.s32.totalorder %s377, %s379
      %p386 = scmp.eq.s32.totalorder %s33, 1
      %p387 = por %p385, %p386
      %p388 = scmp.ne.s32.totalorder %s379, %s380
      %p389 = scmp.eq.s32.totalorder %s33, 0
      %p390 = por %p388, %p389
      %p391 = scmp.ne.s32.totalorder %s379, %s380
      %p392 = scmp.eq.s32.totalorder %s34, 1
      %p393 = por %p391, %p392
      %p395 = scmp.ne.s32.totalorder %s380, %s394
      %p396 = scmp.eq.s32.totalorder %s34, 0
      %p397 = por %p395, %p396
      %s399 = sadd.s32 %s398, 1
      %p402 = scmp.eq.s32.totalorder %s28, 1
      %p403 = scmp.ne.s32.totalorder %s398, %s400
      %p404 = scmp.eq.s32.totalorder %s28, 0
      %p405 = por %p403, %p404
      %p406 = scmp.ne.s32.totalorder %s398, %s400
      %p407 = scmp.eq.s32.totalorder %s33, 1
      %p408 = por %p406, %p407
      %p409 = scmp.ne.s32.totalorder %s400, %s401
      %p410 = scmp.eq.s32.totalorder %s33, 0
      %p411 = por %p409, %p410
      %p412 = scmp.ne.s32.totalorder %s400, %s401
      %p413 = scmp.eq.s32.totalorder %s34, 1
      %p414 = por %p412, %p413
      %p416 = scmp.ne.s32.totalorder %s401, %s415
      %p417 = scmp.eq.s32.totalorder %s34, 0
      %p418 = por %p416, %p417
      %s420 = sadd.s32 %s419, 1
      %p423 = scmp.eq.s32.totalorder %s28, 1
      %p424 = scmp.ne.s32.totalorder %s419, %s421
      %p425 = scmp.eq.s32.totalorder %s28, 0
      %p426 = por %p424, %p425
      %p427 = scmp.ne.s32.totalorder %s419, %s421
      %p428 = scmp.eq.s32.totalorder %s33, 1
      %p429 = por %p427, %p428
      %p430 = scmp.ne.s32.totalorder %s421, %s422
      %p431 = scmp.eq.s32.totalorder %s33, 0
      %p432 = por %p430, %p431
      %p433 = scmp.ne.s32.totalorder %s421, %s422
      %p434 = scmp.eq.s32.totalorder %s34, 1
      %p435 = por %p433, %p434
      %p437 = scmp.ne.s32.totalorder %s422, %s436
      %p438 = scmp.eq.s32.totalorder %s34, 0
      %p439 = por %p437, %p438
      %s440 = ssub.s32 %s28, %s35
      %p441 = scmp.eq.s32.totalorder %s440, 0
      %s443 = sadd.s32 %s442, 1
      %s444 = scalar_select %p441, %s442, %s443
      %p447 = pneg %p441
      %p448 = scmp.eq.s32.totalorder %s28, 1
      %p449 = por %p447, %p448
      %p450 = scmp.ne.s32.totalorder %s442, %s445
      %p451 = scmp.eq.s32.totalorder %s28, 0
      %p452 = por %p450, %p451
      %p453 = scmp.ne.s32.totalorder %s442, %s445
      %p454 = scmp.eq.s32.totalorder %s33, 1
      %p455 = por %p453, %p454
      %p456 = scmp.ne.s32.totalorder %s445, %s446
      %p457 = scmp.eq.s32.totalorder %s33, 0
      %p458 = por %p456, %p457
      %p459 = scmp.ne.s32.totalorder %s445, %s446
      %p460 = scmp.eq.s32.totalorder %s34, 1
      %p461 = por %p459, %p460
      %p463 = scmp.ne.s32.totalorder %s446, %s462
      %p464 = scmp.eq.s32.totalorder %s34, 0
      %p465 = por %p463, %p464
      %p466 = scmp.le.s32.totalorder 1, %s28
      %p467 = scmp.lt.s32.totalorder %s28, 3
      %p468 = pnand %p466, %p467
      %p469 = pneg %p468
      // Predicated region
      $region9: #{_lambda_.1} parent=5 // pred_check
        _
      $region10: #{_lambda_.1} parent=5 // pred_check_branch
        %471 = sbr.rel (%p468) target = $region12
      $region11: #{_lambda_.1} parent=5 // pred_region
        %s472 = ssub.s32 %s28, 1
        // Predicated region
        $region13: #{_lambda_.1} parent=11 // pred_check
          %p473 = pneg %p75
        $region14: #{_lambda_.1} parent=11 // pred_check_branch
          %475 = sbr.rel (%p473) target = $region16
        $region15: #{_lambda_.1} parent=11 // pred_region
          _
        $region16: #{_lambda_.1} parent=11 // pred_fallthru
          _
        // Predicated region
        $region17: #{_lambda_.1} parent=11 // pred_check
          %p476 = pneg %p96
        $region18: #{_lambda_.1} parent=11 // pred_check_branch
          %478 = sbr.rel (%p476) target = $region20
        $region19: #{_lambda_.1} parent=11 // pred_region
          _
        $region20: #{_lambda_.1} parent=11 // pred_fallthru
          _
        // Predicated region
        $region21: #{_lambda_.1} parent=11 // pred_check
          %p479 = pneg %p117
        $region22: #{_lambda_.1} parent=11 // pred_check_branch
          %481 = sbr.rel (%p479) target = $region24
        $region23: #{_lambda_.1} parent=11 // pred_region
          _
        $region24: #{_lambda_.1} parent=11 // pred_fallthru
          _
        // Predicated region
        $region25: #{_lambda_.1} parent=11 // pred_check
          %p482 = pneg %p138
        $region26: #{_lambda_.1} parent=11 // pred_check_branch
          %484 = sbr.rel (%p482) target = $region28
        $region27: #{_lambda_.1} parent=11 // pred_region
          _
        $region28: #{_lambda_.1} parent=11 // pred_fallthru
          _
        // Predicated region
        $region29: #{_lambda_.1} parent=11 // pred_check
          %p485 = pneg %p159
        $region30: #{_lambda_.1} parent=11 // pred_check_branch
          %487 = sbr.rel (%p485) target = $region32
        $region31: #{_lambda_.1} parent=11 // pred_region
          _
        $region32: #{_lambda_.1} parent=11 // pred_fallthru
          _
        // Predicated region
        $region33: #{_lambda_.1} parent=11 // pred_check
          %p488 = pneg %p180
        $region34: #{_lambda_.1} parent=11 // pred_check_branch
          %490 = sbr.rel (%p488) target = $region36
        $region35: #{_lambda_.1} parent=11 // pred_region
          _
        $region36: #{_lambda_.1} parent=11 // pred_fallthru
          _
        // Predicated region
        $region37: #{_lambda_.1} parent=11 // pred_check
          %p491 = pneg %p201
        $region38: #{_lambda_.1} parent=11 // pred_check_branch
          %493 = sbr.rel (%p491) target = $region40
        $region39: #{_lambda_.1} parent=11 // pred_region
          _
        $region40: #{_lambda_.1} parent=11 // pred_fallthru
          _
        // Predicated region
        $region41: #{_lambda_.1} parent=11 // pred_check
          %p494 = pneg %p222
        $region42: #{_lambda_.1} parent=11 // pred_check_branch
          %496 = sbr.rel (%p494) target = $region44
        $region43: #{_lambda_.1} parent=11 // pred_region
          _
        $region44: #{_lambda_.1} parent=11 // pred_fallthru
          _
        // Predicated region
        $region45: #{_lambda_.1} parent=11 // pred_check
          %p497 = pneg %p243
        $region46: #{_lambda_.1} parent=11 // pred_check_branch
          %499 = sbr.rel (%p497) target = $region48
        $region47: #{_lambda_.1} parent=11 // pred_region
          _
        $region48: #{_lambda_.1} parent=11 // pred_fallthru
          _
        // Predicated region
        $region49: #{_lambda_.1} parent=11 // pred_check
          %p500 = pneg %p264
        $region50: #{_lambda_.1} parent=11 // pred_check_branch
          %502 = sbr.rel (%p500) target = $region52
        $region51: #{_lambda_.1} parent=11 // pred_region
          _
        $region52: #{_lambda_.1} parent=11 // pred_fallthru
          _
        // Predicated region
        $region53: #{_lambda_.1} parent=11 // pred_check
          %p503 = pneg %p285
        $region54: #{_lambda_.1} parent=11 // pred_check_branch
          %505 = sbr.rel (%p503) target = $region56
        $region55: #{_lambda_.1} parent=11 // pred_region
          _
        $region56: #{_lambda_.1} parent=11 // pred_fallthru
          _
        // Predicated region
        $region57: #{_lambda_.1} parent=11 // pred_check
          %p506 = pneg %p306
        $region58: #{_lambda_.1} parent=11 // pred_check_branch
          %508 = sbr.rel (%p506) target = $region60
        $region59: #{_lambda_.1} parent=11 // pred_region
          _
        $region60: #{_lambda_.1} parent=11 // pred_fallthru
          _
        // Predicated region
        $region61: #{_lambda_.1} parent=11 // pred_check
          %p509 = pneg %p327
        $region62: #{_lambda_.1} parent=11 // pred_check_branch
          %511 = sbr.rel (%p509) target = $region64
        $region63: #{_lambda_.1} parent=11 // pred_region
          _
        $region64: #{_lambda_.1} parent=11 // pred_fallthru
          _
        // Predicated region
        $region65: #{_lambda_.1} parent=11 // pred_check
          %p512 = pneg %p348
        $region66: #{_lambda_.1} parent=11 // pred_check_branch
          %514 = sbr.rel (%p512) target = $region68
        $region67: #{_lambda_.1} parent=11 // pred_region
          _
        $region68: #{_lambda_.1} parent=11 // pred_fallthru
          _
        // Predicated region
        $region69: #{_lambda_.1} parent=11 // pred_check
          %p515 = pneg %p369
        $region70: #{_lambda_.1} parent=11 // pred_check_branch
          %517 = sbr.rel (%p515) target = $region72
        $region71: #{_lambda_.1} parent=11 // pred_region
          _
        $region72: #{_lambda_.1} parent=11 // pred_fallthru
          _
        // Predicated region
        $region73: #{_lambda_.1} parent=11 // pred_check
          %p518 = pneg %p390
        $region74: #{_lambda_.1} parent=11 // pred_check_branch
          %520 = sbr.rel (%p518) target = $region76
        $region75: #{_lambda_.1} parent=11 // pred_region
          _
        $region76: #{_lambda_.1} parent=11 // pred_fallthru
          _
        // Predicated region
        $region77: #{_lambda_.1} parent=11 // pred_check
          %p521 = pneg %p411
        $region78: #{_lambda_.1} parent=11 // pred_check_branch
          %523 = sbr.rel (%p521) target = $region80
        $region79: #{_lambda_.1} parent=11 // pred_region
          _
        $region80: #{_lambda_.1} parent=11 // pred_fallthru
          _
        // Predicated region
        $region81: #{_lambda_.1} parent=11 // pred_check
          %p524 = pneg %p432
        $region82: #{_lambda_.1} parent=11 // pred_check_branch
          %526 = sbr.rel (%p524) target = $region84
        $region83: #{_lambda_.1} parent=11 // pred_region
          _
        $region84: #{_lambda_.1} parent=11 // pred_fallthru
          _
      $region12: #{_lambda_.1} parent=5 // pred_fallthru
        _
      %p527 = scmp.lt.s32.totalorder %s28, 2
      // Predicated region
      $region85: #{_lambda_.1} parent=5 // pred_check
        %p528 = pneg %p527
      $region86: #{_lambda_.1} parent=5 // pred_check_branch
        %530 = sbr.rel (%p528) target = $region88
      $region87: #{_lambda_.1} parent=5 // pred_region
        // Predicated region
        $region89: #{_lambda_.1} parent=87 // pred_check
          %p531 = pneg %p48
        $region90: #{_lambda_.1} parent=87 // pred_check_branch
          %533 = sbr.rel (%p531) target = $region92
        $region91: #{_lambda_.1} parent=87 // pred_region
          %s534 = smul.u32 32, %s28
          %p535 = scmp.lt.s32.totalorder %s534, 63
          %s536 = scalar_select %p535, %s534, 63
          %s537 = smul.addr %s536, 2
          %s538 = smul.addr %s537, 4
          %s539 = scalar_lea.vmem %s0, %s538
          %s540 = smul.u32 32, %s28
        $region92: #{_lambda_.1} parent=87 // pred_fallthru
          _
      $region88: #{_lambda_.1} parent=5 // pred_fallthru
        _
      %p541 = scmp.le.s32.totalorder 1, %s28
      %p542 = scmp.lt.s32.totalorder %s28, 3
      %p543 = pnand %p541, %p542
      %p544 = pneg %p543
      // Predicated region
      $region93: #{_lambda_.1} parent=5 // pred_check
        _
      $region94: #{_lambda_.1} parent=5 // pred_check_branch
        %546 = sbr.rel (%p543) target = $region96
      $region95: #{_lambda_.1} parent=5 // pred_region
        %s547 = ssub.s32 %s28, 1
        %s548 = smul.u32 32, %s33
        %p549 = scmp.lt.s32.totalorder %s548, 63
        %s550 = scalar_select %p549, %s548, 63
        %s551 = smul.addr %s550, 2
        %s552 = smul.addr %s551, 4
        %s553 = scalar_lea.vmem %s0, %s552
        %p554 = pneg %p54
        %p555 = pneg %p51
        %p556 = pneg %p75
        %p557 = pneg %p72
        %p558 = pneg %p96
        %p559 = pneg %p93
        %p560 = pneg %p117
        %p561 = pneg %p114
        %p562 = pneg %p138
        %p563 = pneg %p135
        %p564 = pneg %p159
        %p565 = pneg %p156
        %p566 = pneg %p180
        %p567 = pneg %p177
        %p568 = pneg %p201
        %p569 = pneg %p198
        %p570 = pneg %p222
        %p571 = pneg %p219
        %p572 = pneg %p243
        %p573 = pneg %p240
        %p574 = pneg %p264
        %p575 = pneg %p261
        %p576 = pneg %p285
        %p577 = pneg %p282
        %p578 = pneg %p306
        %p579 = pneg %p303
        %p580 = pneg %p327
        %p581 = pneg %p324
        %p582 = pneg %p348
        %p583 = pneg %p345
        %p584 = pneg %p369
        %p585 = pneg %p366
        %p586 = pneg %p390
        %p587 = pneg %p387
        %p588 = pneg %p411
        %p589 = pneg %p408
        %p590 = pneg %p432
        %p591 = pneg %p429
        %p592 = pneg %p458
        %p593 = pneg %p455
        %s594 = sand.u32 %s445, 1
        %s595 = scalar_lea.sflag [#allocation3], %s594
        %s596 = sand.u32 %s445, 1
        %s597 = smul.addr %s596, 16
        %s598 = scalar_lea.vmem [#allocation2], %s597
        %s599 = smul.u32 32, %s33
        %p600 = scmp.lt.s32.totalorder %s599, 63
        %s601 = scalar_select %p600, %s599, 63
        %s602 = smul.addr %s601, 2
        %s603 = smul.addr %s602, 4
        %s604 = scalar_lea.vmem %s0, %s603
        %s605 = smul.u32 32, %s33
        %s606 = smul.u32 2, %s33
        %v608 = vld [vmem:[%s604] sm:$0xff]
        %v609 = vld [vmem:[%s604 + $0x8] sm:$0xff]
        %v610 = vld [vmem:[%s604 + $0x10] sm:$0xff]
        %v611 = vld [vmem:[%s604 + $0x18] sm:$0xff]
        %v612 = vld [vmem:[%s604 + $0x20] sm:$0xff]
        %v613 = vld [vmem:[%s604 + $0x28] sm:$0xff]
        %v614 = vld [vmem:[%s604 + $0x30] sm:$0xff]
        %v615 = vld [vmem:[%s604 + $0x38] sm:$0xff]
        %v616 = vld [vmem:[%s3] sm:$0xf]
        %v617 = vld [vmem:[%s3 + $0x4] sm:$0xf]
        %v618 = vld [vmem:[%s3 + $0x8] sm:$0xf]
        %v619 = vld [vmem:[%s3 + $0xc] sm:$0xf]
        %v620 = vld [vmem:[%s3 + $0x10] sm:$0xf]
        %v621 = vld [vmem:[%s3 + $0x14] sm:$0xf]
        %v622 = vld [vmem:[%s3 + $0x18] sm:$0xf]
        %v623 = vld [vmem:[%s3 + $0x1c] sm:$0xf]
        %v624 = vld [vmem:[%s3 + $0x20] sm:$0xf]
        %v625 = vld [vmem:[%s3 + $0x24] sm:$0xf]
        %v626 = vld [vmem:[%s3 + $0x28] sm:$0xf]
        %v627 = vld [vmem:[%s3 + $0x2c] sm:$0xf]
        %v628 = vld [vmem:[%s3 + $0x30] sm:$0xf]
        %v629 = vld [vmem:[%s3 + $0x34] sm:$0xf]
        %v630 = vld [vmem:[%s3 + $0x38] sm:$0xf]
        %v631 = vld [vmem:[%s3 + $0x3c] sm:$0xf]
        %v632 = vld [vmem:[%s3 + $0x40] sm:$0xf]
        %v633 = vld [vmem:[%s3 + $0x44] sm:$0xf]
        %v634 = vld [vmem:[%s3 + $0x48] sm:$0xf]
        %v635 = vld [vmem:[%s3 + $0x4c] sm:$0xf]
        %v636 = vld [vmem:[%s3 + $0x50] sm:$0xf]
        %v637 = vld [vmem:[%s3 + $0x54] sm:$0xf]
        %v638 = vld [vmem:[%s3 + $0x58] sm:$0xf]
        %v639 = vld [vmem:[%s3 + $0x5c] sm:$0xf]
        %v640 = vld [vmem:[%s3 + $0x60] sm:$0xf]
        %v641 = vld [vmem:[%s3 + $0x64] sm:$0xf]
        %v642 = vld [vmem:[%s3 + $0x68] sm:$0xf]
        %v643 = vld [vmem:[%s3 + $0x6c] sm:$0xf]
        %v644 = vld [vmem:[%s3 + $0x70] sm:$0xf]
        %v645 = vld [vmem:[%s3 + $0x74] sm:$0xf]
        %v646 = vld [vmem:[%s3 + $0x78] sm:$0xf]
        %v647 = vld [vmem:[%s3 + $0x7c] sm:$0xf]
        %v648 = vld [vmem:[%s4] sm:$0x1]
        %v650 = vlaneseq
        %v651 = vshrl.u32 %v650, 7
        %v652 = vsub.s32 0, %v651
        %v653 = vrot.slane %v648, %v652
        %v663 = vunpack.c.l.b16 %v608
        %v664 = vunpack.c.h.b16 %v608
        %v665 = vunpack.c.l.b16 %v609
        %v666 = vunpack.c.h.b16 %v609
        %v667 = vunpack.c.l.b16 %v610
        %v668 = vunpack.c.h.b16 %v610
        %v669 = vunpack.c.l.b16 %v611
        %v670 = vunpack.c.h.b16 %v611
        %v671 = vunpack.c.l.b16 %v612
        %v672 = vunpack.c.h.b16 %v612
        %v673 = vunpack.c.l.b16 %v613
        %v674 = vunpack.c.h.b16 %v613
        %v675 = vunpack.c.l.b16 %v614
        %v676 = vunpack.c.h.b16 %v614
        %v677 = vunpack.c.l.b16 %v615
        %v678 = vunpack.c.h.b16 %v615
        %v679 = vpack.c.b16 %v665, %v663
        %v680 = vpack.c.b16 %v666, %v664
        %v681 = vpack.c.b16 %v669, %v667
        %v682 = vpack.c.b16 %v670, %v668
        %v683 = vpack.c.b16 %v673, %v671
        %v684 = vpack.c.b16 %v674, %v672
        %v685 = vpack.c.b16 %v677, %v675
        %v686 = vpack.c.b16 %v678, %v676
        %v727 = vunpack.c.l.b16 %v616
        %v728 = vunpack.c.l.b16 %v617
        %v729 = vunpack.c.l.b16 %v618
        %v730 = vunpack.c.l.b16 %v619
        %v731 = vunpack.c.l.b16 %v620
        %v732 = vunpack.c.l.b16 %v621
        %v733 = vunpack.c.l.b16 %v622
        %v734 = vunpack.c.l.b16 %v623
        %v735 = vunpack.c.l.b16 %v624
        %v736 = vunpack.c.l.b16 %v625
        %v737 = vunpack.c.l.b16 %v626
        %v738 = vunpack.c.l.b16 %v627
        %v739 = vunpack.c.l.b16 %v628
        %v740 = vunpack.c.l.b16 %v629
        %v741 = vunpack.c.l.b16 %v630
        %v742 = vunpack.c.l.b16 %v631
        %v743 = vunpack.c.l.b16 %v632
        %v744 = vunpack.c.l.b16 %v633
        %v745 = vunpack.c.l.b16 %v634
        %v746 = vunpack.c.l.b16 %v635
        %v747 = vunpack.c.l.b16 %v636
        %v748 = vunpack.c.l.b16 %v637
        %v749 = vunpack.c.l.b16 %v638
        %v750 = vunpack.c.l.b16 %v639
        %v751 = vunpack.c.l.b16 %v640
        %v752 = vunpack.c.l.b16 %v641
        %v753 = vunpack.c.l.b16 %v642
        %v754 = vunpack.c.l.b16 %v643
        %v755 = vunpack.c.l.b16 %v644
        %v756 = vunpack.c.l.b16 %v645
        %v757 = vunpack.c.l.b16 %v646
        %v758 = vunpack.c.l.b16 %v647
        %v759 = vpack.c.b16 %v728, %v727
        %v760 = vpack.c.b16 %v730, %v729
        %v761 = vpack.c.b16 %v732, %v731
        %v762 = vpack.c.b16 %v734, %v733
        %v763 = vpack.c.b16 %v736, %v735
        %v764 = vpack.c.b16 %v738, %v737
        %v765 = vpack.c.b16 %v740, %v739
        %v766 = vpack.c.b16 %v742, %v741
        %v767 = vpack.c.b16 %v744, %v743
        %v768 = vpack.c.b16 %v746, %v745
        %v769 = vpack.c.b16 %v748, %v747
        %v770 = vpack.c.b16 %v750, %v749
        %v771 = vpack.c.b16 %v752, %v751
        %v772 = vpack.c.b16 %v754, %v753
        %v773 = vpack.c.b16 %v756, %v755
        %v774 = vpack.c.b16 %v758, %v757
        %791 = vmatprep.subr.bf16.mxu0 0
        %792 = vmatpush1.bf16.msra.mxu0 %v759
        %793 = vmatprep.subr.bf16.mxu0 0
        %794 = vmatpush1.bf16.msra.mxu0 %v760
        %795 = vmatprep.subr.bf16.mxu0 0
        %796 = vmatpush1.bf16.msra.mxu0 %v761
        %797 = vmatprep.subr.bf16.mxu0 0
        %798 = vmatpush1.bf16.msra.mxu0 %v762
        %799 = vmatprep.subr.bf16.mxu0 0
        %800 = vmatpush1.bf16.msra.mxu0 %v763
        %801 = vmatprep.subr.bf16.mxu0 0
        %802 = vmatpush1.bf16.msra.mxu0 %v764
        %803 = vmatprep.subr.bf16.mxu0 0
        %804 = vmatpush1.bf16.msra.mxu0 %v765
        %805 = vmatprep.subr.bf16.mxu0 0
        %806 = vmatpush1.bf16.msra.mxu0 %v766
        %807 = vmatprep.subr.bf16.mxu0 0
        %808 = vmatpush1.bf16.msra.mxu0 %v767
        %809 = vmatprep.subr.bf16.mxu0 0
        %810 = vmatpush1.bf16.msra.mxu0 %v768
        %811 = vmatprep.subr.bf16.mxu0 0
        %812 = vmatpush1.bf16.msra.mxu0 %v769
        %813 = vmatprep.subr.bf16.mxu0 0
        %814 = vmatpush1.bf16.msra.mxu0 %v770
        %815 = vmatprep.subr.bf16.mxu0 0
        %816 = vmatpush1.bf16.msra.mxu0 %v771
        %817 = vmatprep.subr.bf16.mxu0 0
        %818 = vmatpush1.bf16.msra.mxu0 %v772
        %819 = vmatprep.subr.bf16.mxu0 0
        %820 = vmatpush1.bf16.msra.mxu0 %v773
        %821 = vmatprep.subr.bf16.mxu0 0
        %822 = vmatpush1.bf16.msra.mxu0 %v774
        %823 = vmatprep.mubr.bf16.mxu0 %v680
        %824 = vmatmul.mubr.bf16.gmra.mrb[0].mxu0 %v679
        %v825 = vpop.f32.mrb[0].mxu0
        %v826 = vadd.f32 %v653, %v825
        %v827 = vpop.f32.mrb[0].mxu0
        %v828 = vpop.f32.mrb[0].mxu0
        %v829 = vadd.f32 %v653, %v828
        %v830 = vpop.f32.mrb[0].mxu0
        %831 = vmatprep.mubr.bf16.mxu0 %v682
        %832 = vmatmul.mubr.bf16.gmra.mrb[0].mxu0 %v681
        %v833 = vpop.f32.mrb[0].mxu0
        %v834 = vadd.f32 %v653, %v833
        %v835 = vpop.f32.mrb[0].mxu0
        %v836 = vpop.f32.mrb[0].mxu0
        %v837 = vadd.f32 %v653, %v836
        %v838 = vpop.f32.mrb[0].mxu0
        %839 = vmatprep.mubr.bf16.mxu0 %v684
        %840 = vmatmul.mubr.bf16.gmra.mrb[0].mxu0 %v683
        %v841 = vpop.f32.mrb[0].mxu0
        %v842 = vadd.f32 %v653, %v841
        %v843 = vpop.f32.mrb[0].mxu0
        %v844 = vpop.f32.mrb[0].mxu0
        %v845 = vadd.f32 %v653, %v844
        %v846 = vpop.f32.mrb[0].mxu0
        %847 = vmatprep.mubr.bf16.mxu0 %v686
        %848 = vmatmul.mubr.bf16.gmra.mrb[0].mxu0 %v685
        %v849 = vpop.f32.mrb[0].mxu0
        %v850 = vadd.f32 %v653, %v849
        %v851 = vpop.f32.mrb[0].mxu0
        %v852 = vpop.f32.mrb[0].mxu0
        %v853 = vadd.f32 %v653, %v852
        %v854 = vpop.f32.mrb[0].mxu0
        %855 = vdwg.mxu0
        %v856 = vmax.f32 %v826, 0.0
        %v857 = vmax.f32 %v829, 0.0
        %v858 = vmax.f32 %v834, 0.0
        %v859 = vmax.f32 %v837, 0.0
        %v860 = vmax.f32 %v842, 0.0
        %v861 = vmax.f32 %v845, 0.0
        %v862 = vmax.f32 %v850, 0.0
        %v863 = vmax.f32 %v853, 0.0
        %v864 = vpack.c.bf16 %v857, %v856
        %v865 = vpack.c.bf16 %v859, %v858
        %v866 = vpack.c.bf16 %v861, %v860
        %v867 = vpack.c.bf16 %v863, %v862
        %v868 = vunpack.c.l.bf16 %v864
        %v869 = vunpack.c.h.bf16 %v864
        %v870 = vunpack.c.l.bf16 %v865
        %v871 = vunpack.c.h.bf16 %v865
        %v872 = vunpack.c.l.bf16 %v866
        %v873 = vunpack.c.h.bf16 %v866
        %v874 = vunpack.c.l.bf16 %v867
        %v875 = vunpack.c.h.bf16 %v867
        %v876 = vld [vmem:[%s604 + $0x40] sm:$0xff]
        %v877 = vld [vmem:[%s604 + $0x48] sm:$0xff]
        %v878 = vld [vmem:[%s604 + $0x50] sm:$0xff]
        %v879 = vld [vmem:[%s604 + $0x58] sm:$0xff]
        %v880 = vld [vmem:[%s604 + $0x60] sm:$0xff]
        %v881 = vld [vmem:[%s604 + $0x68] sm:$0xff]
        %v882 = vld [vmem:[%s604 + $0x70] sm:$0xff]
        %v883 = vld [vmem:[%s604 + $0x78] sm:$0xff]
        %v892 = vunpack.c.l.b16 %v876
        %v893 = vunpack.c.h.b16 %v876
        %v894 = vunpack.c.l.b16 %v877
        %v895 = vunpack.c.h.b16 %v877
        %v896 = vunpack.c.l.b16 %v878
        %v897 = vunpack.c.h.b16 %v878
        %v898 = vunpack.c.l.b16 %v879
        %v899 = vunpack.c.h.b16 %v879
        %v900 = vunpack.c.l.b16 %v880
        %v901 = vunpack.c.h.b16 %v880
        %v902 = vunpack.c.l.b16 %v881
        %v903 = vunpack.c.h.b16 %v881
        %v904 = vunpack.c.l.b16 %v882
        %v905 = vunpack.c.h.b16 %v882
        %v906 = vunpack.c.l.b16 %v883
        %v907 = vunpack.c.h.b16 %v883
        %v908 = vpack.c.b16 %v894, %v892
        %v909 = vpack.c.b16 %v895, %v893
        %v910 = vpack.c.b16 %v898, %v896
        %v911 = vpack.c.b16 %v899, %v897
        %v912 = vpack.c.b16 %v902, %v900
        %v913 = vpack.c.b16 %v903, %v901
        %v914 = vpack.c.b16 %v906, %v904
        %v915 = vpack.c.b16 %v907, %v905
        %924 = vmatprep.subr.bf16.mxu0 0
        %925 = vmatpush1.bf16.msra.mxu0 %v759
        %926 = vmatprep.subr.bf16.mxu0 0
        %927 = vmatpush1.bf16.msra.mxu0 %v760
        %928 = vmatprep.subr.bf16.mxu0 0
        %929 = vmatpush1.bf16.msra.mxu0 %v761
        %930 = vmatprep.subr.bf16.mxu0 0
        %931 = vmatpush1.bf16.msra.mxu0 %v762
        %932 = vmatprep.subr.bf16.mxu0 0
        %933 = vmatpush1.bf16.msra.mxu0 %v763
        %934 = vmatprep.subr.bf16.mxu0 0
        %935 = vmatpush1.bf16.msra.mxu0 %v764
        %936 = vmatprep.subr.bf16.mxu0 0
        %937 = vmatpush1.bf16.msra.mxu0 %v765
        %938 = vmatprep.subr.bf16.mxu0 0
        %939 = vmatpush1.bf16.msra.mxu0 %v766
        %940 = vmatprep.subr.bf16.mxu0 0
        %941 = vmatpush1.bf16.msra.mxu0 %v767
        %942 = vmatprep.subr.bf16.mxu0 0
        %943 = vmatpush1.bf16.msra.mxu0 %v768
        %944 = vmatprep.subr.bf16.mxu0 0
        %945 = vmatpush1.bf16.msra.mxu0 %v769
        %946 = vmatprep.subr.bf16.mxu0 0
        %947 = vmatpush1.bf16.msra.mxu0 %v770
        %948 = vmatprep.subr.bf16.mxu0 0
        %949 = vmatpush1.bf16.msra.mxu0 %v771
        %950 = vmatprep.subr.bf16.mxu0 0
        %951 = vmatpush1.bf16.msra.mxu0 %v772
        %952 = vmatprep.subr.bf16.mxu0 0
        %953 = vmatpush1.bf16.msra.mxu0 %v773
        %954 = vmatprep.subr.bf16.mxu0 0
        %955 = vmatpush1.bf16.msra.mxu0 %v774
        %956 = vmatprep.mubr.bf16.mxu0 %v909
        %957 = vmatmul.mubr.bf16.gmra.mrb[0].mxu0 %v908
        %v958 = vpop.f32.mrb[0].mxu0
        %v959 = vadd.f32 %v653, %v958
        %v960 = vpop.f32.mrb[0].mxu0
        %v961 = vpop.f32.mrb[0].mxu0
        %v962 = vadd.f32 %v653, %v961
        %v963 = vpop.f32.mrb[0].mxu0
        %964 = vmatprep.mubr.bf16.mxu0 %v911
        %965 = vmatmul.mubr.bf16.gmra.mrb[0].mxu0 %v910
        %v966 = vpop.f32.mrb[0].mxu0
        %v967 = vadd.f32 %v653, %v966
        %v968 = vpop.f32.mrb[0].mxu0
        %v969 = vpop.f32.mrb[0].mxu0
        %v970 = vadd.f32 %v653, %v969
        %v971 = vpop.f32.mrb[0].mxu0
        %972 = vmatprep.mubr.bf16.mxu0 %v913
        %973 = vmatmul.mubr.bf16.gmra.mrb[0].mxu0 %v912
        %v974 = vpop.f32.mrb[0].mxu0
        %v975 = vadd.f32 %v653, %v974
        %v976 = vpop.f32.mrb[0].mxu0
        %v977 = vpop.f32.mrb[0].mxu0
        %v978 = vadd.f32 %v653, %v977
        %v979 = vpop.f32.mrb[0].mxu0
        %980 = vmatprep.mubr.bf16.mxu0 %v915
        %981 = vmatmul.mubr.bf16.gmra.mrb[0].mxu0 %v914
        %v982 = vpop.f32.mrb[0].mxu0
        %v983 = vadd.f32 %v653, %v982
        %v984 = vpop.f32.mrb[0].mxu0
        %v985 = vpop.f32.mrb[0].mxu0
        %v986 = vadd.f32 %v653, %v985
        %v987 = vpop.f32.mrb[0].mxu0
        %988 = vdwg.mxu0
        %v989 = vmax.f32 %v959, 0.0
        %v990 = vmax.f32 %v962, 0.0
        %v991 = vmax.f32 %v967, 0.0
        %v992 = vmax.f32 %v970, 0.0
        %v993 = vmax.f32 %v975, 0.0
        %v994 = vmax.f32 %v978, 0.0
        %v995 = vmax.f32 %v983, 0.0
        %v996 = vmax.f32 %v986, 0.0
        %v997 = vpack.c.bf16 %v990, %v989
        %v998 = vpack.c.bf16 %v992, %v991
        %v999 = vpack.c.bf16 %v994, %v993
        %v1000 = vpack.c.bf16 %v996, %v995
        %v1001 = vunpack.c.l.bf16 %v997
        %v1002 = vunpack.c.h.bf16 %v997
        %v1003 = vunpack.c.l.bf16 %v998
        %v1004 = vunpack.c.h.bf16 %v998
        %v1005 = vunpack.c.l.bf16 %v999
        %v1006 = vunpack.c.h.bf16 %v999
        %v1007 = vunpack.c.l.bf16 %v1000
        %v1008 = vunpack.c.h.bf16 %v1000
        %v1009 = vmax.f32 %v868, %v1001
        %v1010 = vmax.f32 %v869, %v1002
        %v1011 = vmax.f32 %v870, %v1003
        %v1012 = vmax.f32 %v871, %v1004
        %v1013 = vmax.f32 %v872, %v1005
        %v1014 = vmax.f32 %v873, %v1006
        %v1015 = vmax.f32 %v874, %v1007
        %v1016 = vmax.f32 %v875, %v1008
        %s1017 = scalar_lea.vmem %s1, 96
        %v1018 = vld [vmem:[%s1017] sm:$0xf]
        %v1019 = vld [vmem:[%s1017 + $0x4] sm:$0xf]
        %v1020 = vld [vmem:[%s1017 + $0x8] sm:$0xf]
        %v1021 = vld [vmem:[%s1017 + $0xc] sm:$0xf]
        %v1022 = vld [vmem:[%s1017 + $0x10] sm:$0xf]
        %v1023 = vld [vmem:[%s1017 + $0x14] sm:$0xf]
        %v1024 = vld [vmem:[%s1017 + $0x18] sm:$0xf]
        %v1025 = vld [vmem:[%s1017 + $0x1c] sm:$0xf]
        %v1034 = vunpack.c.l.b16 %v1018
        %v1035 = vunpack.c.l.b16 %v1019
        %v1036 = vunpack.c.l.b16 %v1020
        %v1037 = vunpack.c.l.b16 %v1021
        %v1038 = vunpack.c.l.b16 %v1022
        %v1039 = vunpack.c.l.b16 %v1023
        %v1040 = vunpack.c.l.b16 %v1024
        %v1041 = vunpack.c.l.b16 %v1025
        %v1042 = vpack.c.b16 %v1035, %v1034
        %v1043 = vpack.c.b16 %v1037, %v1036
        %v1044 = vpack.c.b16 %v1039, %v1038
        %v1045 = vpack.c.b16 %v1041, %v1040
        %vm1046 = vcmask 523264
        %v1048 = vsel %vm1046, %v1042, 0
        %v1051 = vsel %vm1046, %v1043, 0
        %v1054 = vsel %vm1046, %v1044, 0
        %v1057 = vsel %vm1046, %v1045, 0
        %1059 = vmatprep.subr.bf16.mxu0 0
        %1060 = vmatpush1.bf16.msra.mxu0 %v997
        %1061 = vmatprep.subr.bf16.mxu0 0
        %1062 = vmatpush1.bf16.msra.mxu0 %v998
        %1063 = vmatprep.subr.bf16.mxu0 0
        %1064 = vmatpush1.bf16.msra.mxu0 %v999
        %1065 = vmatprep.subr.bf16.mxu0 0
        %1066 = vmatpush1.bf16.msra.mxu0 %v1000
        %1067 = vmatprep.subr.bf16.mxu0 0
        %1068 = vmatpush1.bf16.msra.mxu0 0
        %1069 = vmatprep.subr.bf16.mxu0 0
        %1070 = vmatpush1.bf16.msra.mxu0 0
        %1071 = vmatprep.subr.bf16.mxu0 0
        %1072 = vmatpush1.bf16.msra.mxu0 0
        %1073 = vmatprep.subr.bf16.mxu0 0
        %1074 = vmatpush1.bf16.msra.mxu0 0
        %1075 = vmatprep.subr.bf16.mxu0 0
        %1076 = vmatpush1.bf16.msra.mxu0 0
        %1077 = vmatprep.subr.bf16.mxu0 0
        %1078 = vmatpush1.bf16.msra.mxu0 0
        %1079 = vmatprep.subr.bf16.mxu0 0
        %1080 = vmatpush1.bf16.msra.mxu0 0
        %1081 = vmatprep.subr.bf16.mxu0 0
        %1082 = vmatpush1.bf16.msra.mxu0 0
        %1083 = vmatprep.subr.bf16.mxu0 0
        %1084 = vmatpush1.bf16.msra.mxu0 0
        %1085 = vmatprep.subr.bf16.mxu0 0
        %1086 = vmatpush1.bf16.msra.mxu0 0
        %1087 = vmatprep.subr.bf16.mxu0 0
        %1088 = vmatpush1.bf16.msra.mxu0 0
        %1089 = vmatprep.subr.bf16.mxu0 0
        %1090 = vmatpush1.bf16.msra.mxu0 0
        %1091 = vmatprep.mubr.bf16.mxu0 0
        %1092 = vmatmul.mubr.bf16.gmra.mrb[0].mxu0 %v1048
        %v1093 = vpop.f32.mrb[0].mxu0
        %v1094 = vadd.f32 0.0, %v1093
        %v1095 = vpop.f32.mrb[0].mxu0
        %v1096 = vpop.f32.mrb[0].mxu0
        %v1097 = vadd.f32 0.0, %v1096
        %v1098 = vpop.f32.mrb[0].mxu0
        %1099 = vmatprep.mubr.bf16.mxu0 0
        %1100 = vmatmul.mubr.bf16.gmra.mrb[0].mxu0 %v1051
        %v1101 = vpop.f32.mrb[0].mxu0
        %v1102 = vadd.f32 0.0, %v1101
        %v1103 = vpop.f32.mrb[0].mxu0
        %v1104 = vpop.f32.mrb[0].mxu0
        %v1105 = vadd.f32 0.0, %v1104
        %v1106 = vpop.f32.mrb[0].mxu0
        %1107 = vmatprep.mubr.bf16.mxu0 0
        %1108 = vmatmul.mubr.bf16.gmra.mrb[0].mxu0 %v1054
        %v1109 = vpop.f32.mrb[0].mxu0
        %v1110 = vadd.f32 0.0, %v1109
        %v1111 = vpop.f32.mrb[0].mxu0
        %v1112 = vpop.f32.mrb[0].mxu0
        %v1113 = vadd.f32 0.0, %v1112
        %v1114 = vpop.f32.mrb[0].mxu0
        %1115 = vmatprep.mubr.bf16.mxu0 0
        %1116 = vmatmul.mubr.bf16.gmra.mrb[0].mxu0 %v1057
        %v1117 = vpop.f32.mrb[0].mxu0
        %v1118 = vadd.f32 0.0, %v1117
        %v1119 = vpop.f32.mrb[0].mxu0
        %v1120 = vpop.f32.mrb[0].mxu0
        %v1121 = vadd.f32 0.0, %v1120
        %v1122 = vpop.f32.mrb[0].mxu0
        %1123 = vdwg.mxu0
        %v1124 = vmax.f32 %v1009, %v1094
        %v1125 = vmax.f32 %v1010, %v1097
        %v1126 = vmax.f32 %v1011, %v1102
        %v1127 = vmax.f32 %v1012, %v1105
        %v1128 = vmax.f32 %v1013, %v1110
        %v1129 = vmax.f32 %v1014, %v1113
        %v1130 = vmax.f32 %v1015, %v1118
        %v1131 = vmax.f32 %v1016, %v1121
        %v1132 = vld [vmem:[%s604 + $0x80] sm:$0xff]
        %v1133 = vld [vmem:[%s604 + $0x88] sm:$0xff]
        %v1134 = vld [vmem:[%s604 + $0x90] sm:$0xff]
        %v1135 = vld [vmem:[%s604 + $0x98] sm:$0xff]
        %v1136 = vld [vmem:[%s604 + $0xa0] sm:$0xff]
        %v1137 = vld [vmem:[%s604 + $0xa8] sm:$0xff]
        %v1138 = vld [vmem:[%s604 + $0xb0] sm:$0xff]
        %v1139 = vld [vmem:[%s604 + $0xb8] sm:$0xff]
        %v1148 = vunpack.c.l.b16 %v1132
        %v1149 = vunpack.c.h.b16 %v1132
        %v1150 = vunpack.c.l.b16 %v1133
        %v1151 = vunpack.c.h.b16 %v1133
        %v1152 = vunpack.c.l.b16 %v1134
        %v1153 = vunpack.c.h.b16 %v1134
        %v1154 = vunpack.c.l.b16 %v1135
        %v1155 = vunpack.c.h.b16 %v1135
        %v1156 = vunpack.c.l.b16 %v1136
        %v1157 = vunpack.c.h.b16 %v1136
        %v1158 = vunpack.c.l.b16 %v1137
        %v1159 = vunpack.c.h.b16 %v1137
        %v1160 = vunpack.c.l.b16 %v1138
        %v1161 = vunpack.c.h.b16 %v1138
        %v1162 = vunpack.c.l.b16 %v1139
        %v1163 = vunpack.c.h.b16 %v1139
        %v1164 = vpack.c.b16 %v1150, %v1148
        %v1165 = vpack.c.b16 %v1151, %v1149
        %v1166 = vpack.c.b16 %v1154, %v1152
        %v1167 = vpack.c.b16 %v1155, %v1153
        %v1168 = vpack.c.b16 %v1158, %v1156
        %v1169 = vpack.c.b16 %v1159, %v1157
        %v1170 = vpack.c.b16 %v1162, %v1160
        %v1171 = vpack.c.b16 %v1163, %v1161
        %1180 = vmatprep.subr.bf16.mxu0 0
        %1181 = vmatpush1.bf16.msra.mxu0 %v759
        %1182 = vmatprep.subr.bf16.mxu0 0
        %1183 = vmatpush1.bf16.msra.mxu0 %v760
        %1184 = vmatprep.subr.bf16.mxu0 0
        %1185 = vmatpush1.bf16.msra.mxu0 %v761
        %1186 = vmatprep.subr.bf16.mxu0 0
        %1187 = vmatpush1.bf16.msra.mxu0 %v762
        %1188 = vmatprep.subr.bf16.mxu0 0
        %1189 = vmatpush1.bf16.msra.mxu0 %v763
        %1190 = vmatprep.subr.bf16.mxu0 0
        %1191 = vmatpush1.bf16.msra.mxu0 %v764
        %1192 = vmatprep.subr.bf16.mxu0 0
        %1193 = vmatpush1.bf16.msra.mxu0 %v765
        %1194 = vmatprep.subr.bf16.mxu0 0
        %1195 = vmatpush1.bf16.msra.mxu0 %v766
        %1196 = vmatprep.subr.bf16.mxu0 0
        %1197 = vmatpush1.bf16.msra.mxu0 %v767
        %1198 = vmatprep.subr.bf16.mxu0 0
        %1199 = vmatpush1.bf16.msra.mxu0 %v768
        %1200 = vmatprep.subr.bf16.mxu0 0
        %1201 = vmatpush1.bf16.msra.mxu0 %v769
        %1202 = vmatprep.subr.bf16.mxu0 0
        %1203 = vmatpush1.bf16.msra.mxu0 %v770
        %1204 = vmatprep.subr.bf16.mxu0 0
        %1205 = vmatpush1.bf16.msra.mxu0 %v771
        %1206 = vmatprep.subr.bf16.mxu0 0
        %1207 = vmatpush1.bf16.msra.mxu0 %v772
        %1208 = vmatprep.subr.bf16.mxu0 0
        %1209 = vmatpush1.bf16.msra.mxu0 %v773
        %1210 = vmatprep.subr.bf16.mxu0 0
        %1211 = vmatpush1.bf16.msra.mxu0 %v774
        %1212 = vmatprep.mubr.bf16.mxu0 %v1165
        %1213 = vmatmul.mubr.bf16.gmra.mrb[0].mxu0 %v1164
        %v1214 = vpop.f32.mrb[0].mxu0
        %v1215 = vadd.f32 %v653, %v1214
        %v1216 = vpop.f32.mrb[0].mxu0
        %v1217 = vpop.f32.mrb[0].mxu0
        %v1218 = vadd.f32 %v653, %v1217
        %v1219 = vpop.f32.mrb[0].mxu0
        %1220 = vmatprep.mubr.bf16.mxu0 %v1167
        %1221 = vmatmul.mubr.bf16.gmra.mrb[0].mxu0 %v1166
        %v1222 = vpop.f32.mrb[0].mxu0
        %v1223 = vadd.f32 %v653, %v1222
        %v1224 = vpop.f32.mrb[0].mxu0
        %v1225 = vpop.f32.mrb[0].mxu0
        %v1226 = vadd.f32 %v653, %v1225
        %v1227 = vpop.f32.mrb[0].mxu0
        %1228 = vmatprep.mubr.bf16.mxu0 %v1169
        %1229 = vmatmul.mubr.bf16.gmra.mrb[0].mxu0 %v1168
        %v1230 = vpop.f32.mrb[0].mxu0
        %v1231 = vadd.f32 %v653, %v1230
        %v1232 = vpop.f32.mrb[0].mxu0
        %v1233 = vpop.f32.mrb[0].mxu0
        %v1234 = vadd.f32 %v653, %v1233
        %v1235 = vpop.f32.mrb[0].mxu0
        %1236 = vmatprep.mubr.bf16.mxu0 %v1171
        %1237 = vmatmul.mubr.bf16.gmra.mrb[0].mxu0 %v1170
        %v1238 = vpop.f32.mrb[0].mxu0
        %v1239 = vadd.f32 %v653, %v1238
        %v1240 = vpop.f32.mrb[0].mxu0
        %v1241 = vpop.f32.mrb[0].mxu0
        %v1242 = vadd.f32 %v653, %v1241
        %v1243 = vpop.f32.mrb[0].mxu0
        %1244 = vdwg.mxu0
        %v1245 = vmax.f32 %v1215, 0.0
        %v1246 = vmax.f32 %v1218, 0.0
        %v1247 = vmax.f32 %v1223, 0.0
        %v1248 = vmax.f32 %v1226, 0.0
        %v1249 = vmax.f32 %v1231, 0.0
        %v1250 = vmax.f32 %v1234, 0.0
        %v1251 = vmax.f32 %v1239, 0.0
        %v1252 = vmax.f32 %v1242, 0.0
        %v1253 = vpack.c.bf16 %v1246, %v1245
        %v1254 = vpack.c.bf16 %v1248, %v1247
        %v1255 = vpack.c.bf16 %v1250, %v1249
        %v1256 = vpack.c.bf16 %v1252, %v1251
        %v1257 = vunpack.c.l.bf16 %v1253
        %v1258 = vunpack.c.h.bf16 %v1253
        %v1259 = vunpack.c.l.bf16 %v1254
        %v1260 = vunpack.c.h.bf16 %v1254
        %v1261 = vunpack.c.l.bf16 %v1255
        %v1262 = vunpack.c.h.bf16 %v1255
        %v1263 = vunpack.c.l.bf16 %v1256
        %v1264 = vunpack.c.h.bf16 %v1256
        %v1265 = vmax.f32 %v1124, %v1257
        %v1266 = vmax.f32 %v1125, %v1258
        %v1267 = vmax.f32 %v1126, %v1259
        %v1268 = vmax.f32 %v1127, %v1260
        %v1269 = vmax.f32 %v1128, %v1261
        %v1270 = vmax.f32 %v1129, %v1262
        %v1271 = vmax.f32 %v1130, %v1263
        %v1272 = vmax.f32 %v1131, %v1264
        %s1273 = scalar_lea.vmem %s1, 32
        %v1274 = vld [vmem:[%s1273] sm:$0xf]
        %v1275 = vld [vmem:[%s1273 + $0x4] sm:$0xf]
        %v1276 = vld [vmem:[%s1273 + $0x8] sm:$0xf]
        %v1277 = vld [vmem:[%s1273 + $0xc] sm:$0xf]
        %v1278 = vld [vmem:[%s1273 + $0x10] sm:$0xf]
        %v1279 = vld [vmem:[%s1273 + $0x14] sm:$0xf]
        %v1280 = vld [vmem:[%s1273 + $0x18] sm:$0xf]
        %v1281 = vld [vmem:[%s1273 + $0x1c] sm:$0xf]
        %v1290 = vunpack.c.l.b16 %v1274
        %v1291 = vunpack.c.l.b16 %v1275
        %v1292 = vunpack.c.l.b16 %v1276
        %v1293 = vunpack.c.l.b16 %v1277
        %v1294 = vunpack.c.l.b16 %v1278
        %v1295 = vunpack.c.l.b16 %v1279
        %v1296 = vunpack.c.l.b16 %v1280
        %v1297 = vunpack.c.l.b16 %v1281
        %v1298 = vpack.c.b16 %v1291, %v1290
        %v1299 = vpack.c.b16 %v1293, %v1292
        %v1300 = vpack.c.b16 %v1295, %v1294
        %v1301 = vpack.c.b16 %v1297, %v1296
        %v1303 = vsel %vm1046, %v1298, 0
        %v1306 = vsel %vm1046, %v1299, 0
        %v1309 = vsel %vm1046, %v1300, 0
        %v1312 = vsel %vm1046, %v1301, 0
        %1314 = vmatprep.subr.bf16.mxu0 0
        %1315 = vmatpush1.bf16.msra.mxu0 %v1253
        %1316 = vmatprep.subr.bf16.mxu0 0
        %1317 = vmatpush1.bf16.msra.mxu0 %v1254
        %1318 = vmatprep.subr.bf16.mxu0 0
        %1319 = vmatpush1.bf16.msra.mxu0 %v1255
        %1320 = vmatprep.subr.bf16.mxu0 0
        %1321 = vmatpush1.bf16.msra.mxu0 %v1256
        %1322 = vmatprep.subr.bf16.mxu0 0
        %1323 = vmatpush1.bf16.msra.mxu0 0
        %1324 = vmatprep.subr.bf16.mxu0 0
        %1325 = vmatpush1.bf16.msra.mxu0 0
        %1326 = vmatprep.subr.bf16.mxu0 0
        %1327 = vmatpush1.bf16.msra.mxu0 0
        %1328 = vmatprep.subr.bf16.mxu0 0
        %1329 = vmatpush1.bf16.msra.mxu0 0
        %1330 = vmatprep.subr.bf16.mxu0 0
        %1331 = vmatpush1.bf16.msra.mxu0 0
        %1332 = vmatprep.subr.bf16.mxu0 0
        %1333 = vmatpush1.bf16.msra.mxu0 0
        %1334 = vmatprep.subr.bf16.mxu0 0
        %1335 = vmatpush1.bf16.msra.mxu0 0
        %1336 = vmatprep.subr.bf16.mxu0 0
        %1337 = vmatpush1.bf16.msra.mxu0 0
        %1338 = vmatprep.subr.bf16.mxu0 0
        %1339 = vmatpush1.bf16.msra.mxu0 0
        %1340 = vmatprep.subr.bf16.mxu0 0
        %1341 = vmatpush1.bf16.msra.mxu0 0
        %1342 = vmatprep.subr.bf16.mxu0 0
        %1343 = vmatpush1.bf16.msra.mxu0 0
        %1344 = vmatprep.subr.bf16.mxu0 0
        %1345 = vmatpush1.bf16.msra.mxu0 0
        %1346 = vmatprep.mubr.bf16.mxu0 0
        %1347 = vmatmul.mubr.bf16.gmra.mrb[0].mxu0 %v1303
        %v1348 = vpop.f32.mrb[0].mxu0
        %v1349 = vadd.f32 0.0, %v1348
        %v1350 = vpop.f32.mrb[0].mxu0
        %v1351 = vpop.f32.mrb[0].mxu0
        %v1352 = vadd.f32 0.0, %v1351
        %v1353 = vpop.f32.mrb[0].mxu0
        %1354 = vmatprep.mubr.bf16.mxu0 0
        %1355 = vmatmul.mubr.bf16.gmra.mrb[0].mxu0 %v1306
        %v1356 = vpop.f32.mrb[0].mxu0
        %v1357 = vadd.f32 0.0, %v1356
        %v1358 = vpop.f32.mrb[0].mxu0
        %v1359 = vpop.f32.mrb[0].mxu0
        %v1360 = vadd.f32 0.0, %v1359
        %v1361 = vpop.f32.mrb[0].mxu0
        %1362 = vmatprep.mubr.bf16.mxu0 0
        %1363 = vmatmul.mubr.bf16.gmra.mrb[0].mxu0 %v1309
        %v1364 = vpop.f32.mrb[0].mxu0
        %v1365 = vadd.f32 0.0, %v1364
        %v1366 = vpop.f32.mrb[0].mxu0
        %v1367 = vpop.f32.mrb[0].mxu0
        %v1368 = vadd.f32 0.0, %v1367
        %v1369 = vpop.f32.mrb[0].mxu0
        %1370 = vmatprep.mubr.bf16.mxu0 0
        %1371 = vmatmul.mubr.bf16.gmra.mrb[0].mxu0 %v1312
        %v1372 = vpop.f32.mrb[0].mxu0
        %v1373 = vadd.f32 0.0, %v1372
        %v1374 = vpop.f32.mrb[0].mxu0
        %v1375 = vpop.f32.mrb[0].mxu0
        %v1376 = vadd.f32 0.0, %v1375
        %v1377 = vpop.f32.mrb[0].mxu0
        %1378 = vdwg.mxu0
        %v1379 = vmax.f32 %v1265, %v1349
        %v1380 = vmax.f32 %v1266, %v1352
        %v1381 = vmax.f32 %v1267, %v1357
        %v1382 = vmax.f32 %v1268, %v1360
        %v1383 = vmax.f32 %v1269, %v1365
        %v1384 = vmax.f32 %v1270, %v1368
        %v1385 = vmax.f32 %v1271, %v1373
        %v1386 = vmax.f32 %v1272, %v1376
        %v1387 = vld [vmem:[%s604 + $0xc0] sm:$0xff]
        %v1388 = vld [vmem:[%s604 + $0xc8] sm:$0xff]
        %v1389 = vld [vmem:[%s604 + $0xd0] sm:$0xff]
        %v1390 = vld [vmem:[%s604 + $0xd8] sm:$0xff]
        %v1391 = vld [vmem:[%s604 + $0xe0] sm:$0xff]
        %v1392 = vld [vmem:[%s604 + $0xe8] sm:$0xff]
        %v1393 = vld [vmem:[%s604 + $0xf0] sm:$0xff]
        %v1394 = vld [vmem:[%s604 + $0xf8] sm:$0xff]
        %v1403 = vunpack.c.l.b16 %v1387
        %v1404 = vunpack.c.h.b16 %v1387
        %v1405 = vunpack.c.l.b16 %v1388
        %v1406 = vunpack.c.h.b16 %v1388
        %v1407 = vunpack.c.l.b16 %v1389
        %v1408 = vunpack.c.h.b16 %v1389
        %v1409 = vunpack.c.l.b16 %v1390
        %v1410 = vunpack.c.h.b16 %v1390
        %v1411 = vunpack.c.l.b16 %v1391
        %v1412 = vunpack.c.h.b16 %v1391
        %v1413 = vunpack.c.l.b16 %v1392
        %v1414 = vunpack.c.h.b16 %v1392
        %v1415 = vunpack.c.l.b16 %v1393
        %v1416 = vunpack.c.h.b16 %v1393
        %v1417 = vunpack.c.l.b16 %v1394
        %v1418 = vunpack.c.h.b16 %v1394
        %v1419 = vpack.c.b16 %v1405, %v1403
        %v1420 = vpack.c.b16 %v1406, %v1404
        %v1421 = vpack.c.b16 %v1409, %v1407
        %v1422 = vpack.c.b16 %v1410, %v1408
        %v1423 = vpack.c.b16 %v1413, %v1411
        %v1424 = vpack.c.b16 %v1414, %v1412
        %v1425 = vpack.c.b16 %v1417, %v1415
        %v1426 = vpack.c.b16 %v1418, %v1416
        %1435 = vmatprep.subr.bf16.mxu0 0
        %1436 = vmatpush1.bf16.msra.mxu0 %v759
        %1437 = vmatprep.subr.bf16.mxu0 0
        %1438 = vmatpush1.bf16.msra.mxu0 %v760
        %1439 = vmatprep.subr.bf16.mxu0 0
        %1440 = vmatpush1.bf16.msra.mxu0 %v761
        %1441 = vmatprep.subr.bf16.mxu0 0
        %1442 = vmatpush1.bf16.msra.mxu0 %v762
        %1443 = vmatprep.subr.bf16.mxu0 0
        %1444 = vmatpush1.bf16.msra.mxu0 %v763
        %1445 = vmatprep.subr.bf16.mxu0 0
        %1446 = vmatpush1.bf16.msra.mxu0 %v764
        %1447 = vmatprep.subr.bf16.mxu0 0
        %1448 = vmatpush1.bf16.msra.mxu0 %v765
        %1449 = vmatprep.subr.bf16.mxu0 0
        %1450 = vmatpush1.bf16.msra.mxu0 %v766
        %1451 = vmatprep.subr.bf16.mxu0 0
        %1452 = vmatpush1.bf16.msra.mxu0 %v767
        %1453 = vmatprep.subr.bf16.mxu0 0
        %1454 = vmatpush1.bf16.msra.mxu0 %v768
        %1455 = vmatprep.subr.bf16.mxu0 0
        %1456 = vmatpush1.bf16.msra.mxu0 %v769
        %1457 = vmatprep.subr.bf16.mxu0 0
        %1458 = vmatpush1.bf16.msra.mxu0 %v770
        %1459 = vmatprep.subr.bf16.mxu0 0
        %1460 = vmatpush1.bf16.msra.mxu0 %v771
        %1461 = vmatprep.subr.bf16.mxu0 0
        %1462 = vmatpush1.bf16.msra.mxu0 %v772
        %1463 = vmatprep.subr.bf16.mxu0 0
        %1464 = vmatpush1.bf16.msra.mxu0 %v773
        %1465 = vmatprep.subr.bf16.mxu0 0
        %1466 = vmatpush1.bf16.msra.mxu0 %v774
        %1467 = vmatprep.mubr.bf16.mxu0 %v1420
        %1468 = vmatmul.mubr.bf16.gmra.mrb[0].mxu0 %v1419
        %v1469 = vpop.f32.mrb[0].mxu0
        %v1470 = vadd.f32 %v653, %v1469
        %v1471 = vpop.f32.mrb[0].mxu0
        %v1472 = vpop.f32.mrb[0].mxu0
        %v1473 = vadd.f32 %v653, %v1472
        %v1474 = vpop.f32.mrb[0].mxu0
        %1475 = vmatprep.mubr.bf16.mxu0 %v1422
        %1476 = vmatmul.mubr.bf16.gmra.mrb[0].mxu0 %v1421
        %v1477 = vpop.f32.mrb[0].mxu0
        %v1478 = vadd.f32 %v653, %v1477
        %v1479 = vpop.f32.mrb[0].mxu0
        %v1480 = vpop.f32.mrb[0].mxu0
        %v1481 = vadd.f32 %v653, %v1480
        %v1482 = vpop.f32.mrb[0].mxu0
        %1483 = vmatprep.mubr.bf16.mxu0 %v1424
        %1484 = vmatmul.mubr.bf16.gmra.mrb[0].mxu0 %v1423
        %v1485 = vpop.f32.mrb[0].mxu0
        %v1486 = vadd.f32 %v653, %v1485
        %v1487 = vpop.f32.mrb[0].mxu0
        %v1488 = vpop.f32.mrb[0].mxu0
        %v1489 = vadd.f32 %v653, %v1488
        %v1490 = vpop.f32.mrb[0].mxu0
        %1491 = vmatprep.mubr.bf16.mxu0 %v1426
        %1492 = vmatmul.mubr.bf16.gmra.mrb[0].mxu0 %v1425
        %v1493 = vpop.f32.mrb[0].mxu0
        %v1494 = vadd.f32 %v653, %v1493
        %v1495 = vpop.f32.mrb[0].mxu0
        %v1496 = vpop.f32.mrb[0].mxu0
        %v1497 = vadd.f32 %v653, %v1496
        %v1498 = vpop.f32.mrb[0].mxu0
        %1499 = vdwg.mxu0
        %v1500 = vmax.f32 %v1470, 0.0
        %v1501 = vmax.f32 %v1473, 0.0
        %v1502 = vmax.f32 %v1478, 0.0
        %v1503 = vmax.f32 %v1481, 0.0
        %v1504 = vmax.f32 %v1486, 0.0
        %v1505 = vmax.f32 %v1489, 0.0
        %v1506 = vmax.f32 %v1494, 0.0
        %v1507 = vmax.f32 %v1497, 0.0
        %v1508 = vpack.c.bf16 %v1501, %v1500
        %v1509 = vpack.c.bf16 %v1503, %v1502
        %v1510 = vpack.c.bf16 %v1505, %v1504
        %v1511 = vpack.c.bf16 %v1507, %v1506
        %v1512 = vunpack.c.l.bf16 %v1508
        %v1513 = vunpack.c.h.bf16 %v1508
        %v1514 = vunpack.c.l.bf16 %v1509
        %v1515 = vunpack.c.h.bf16 %v1509
        %v1516 = vunpack.c.l.bf16 %v1510
        %v1517 = vunpack.c.h.bf16 %v1510
        %v1518 = vunpack.c.l.bf16 %v1511
        %v1519 = vunpack.c.h.bf16 %v1511
        %v1520 = vmax.f32 %v1379, %v1512
        %v1521 = vmax.f32 %v1380, %v1513
        %v1522 = vmax.f32 %v1381, %v1514
        %v1523 = vmax.f32 %v1382, %v1515
        %v1524 = vmax.f32 %v1383, %v1516
        %v1525 = vmax.f32 %v1384, %v1517
        %v1526 = vmax.f32 %v1385, %v1518
        %v1527 = vmax.f32 %v1386, %v1519
        %1528 = vmatprep.subr.bf16.mxu0 0
        %1529 = vmatpush1.bf16.msra.mxu0 %v1508
        %1530 = vmatprep.subr.bf16.mxu0 0
        %1531 = vmatpush1.bf16.msra.mxu0 %v1509
        %1532 = vmatprep.subr.bf16.mxu0 0
        %1533 = vmatpush1.bf16.msra.mxu0 %v1510
        %1534 = vmatprep.subr.bf16.mxu0 0
        %1535 = vmatpush1.bf16.msra.mxu0 %v1511
        %1536 = vmatprep.subr.bf16.mxu0 0
        %1537 = vmatpush1.bf16.msra.mxu0 0
        %1538 = vmatprep.subr.bf16.mxu0 0
        %1539 = vmatpush1.bf16.msra.mxu0 0
        %1540 = vmatprep.subr.bf16.mxu0 0
        %1541 = vmatpush1.bf16.msra.mxu0 0
        %1542 = vmatprep.subr.bf16.mxu0 0
        %1543 = vmatpush1.bf16.msra.mxu0 0
        %1544 = vmatprep.subr.bf16.mxu0 0
        %1545 = vmatpush1.bf16.msra.mxu0 0
        %1546 = vmatprep.subr.bf16.mxu0 0
        %1547 = vmatpush1.bf16.msra.mxu0 0
        %1548 = vmatprep.subr.bf16.mxu0 0
        %1549 = vmatpush1.bf16.msra.mxu0 0
        %1550 = vmatprep.subr.bf16.mxu0 0
        %1551 = vmatpush1.bf16.msra.mxu0 0
        %1552 = vmatprep.subr.bf16.mxu0 0
        %1553 = vmatpush1.bf16.msra.mxu0 0
        %1554 = vmatprep.subr.bf16.mxu0 0
        %1555 = vmatpush1.bf16.msra.mxu0 0
        %1556 = vmatprep.subr.bf16.mxu0 0
        %1557 = vmatpush1.bf16.msra.mxu0 0
        %1558 = vmatprep.subr.bf16.mxu0 0
        %1559 = vmatpush1.bf16.msra.mxu0 0
        %1560 = vmatprep.mubr.bf16.mxu0 0
        %1561 = vmatmul.mubr.bf16.gmra.mrb[0].mxu0 %v1048
        %v1562 = vpop.f32.mrb[0].mxu0
        %v1563 = vadd.f32 0.0, %v1562
        %v1564 = vpop.f32.mrb[0].mxu0
        %v1565 = vpop.f32.mrb[0].mxu0
        %v1566 = vadd.f32 0.0, %v1565
        %v1567 = vpop.f32.mrb[0].mxu0
        %1568 = vmatprep.mubr.bf16.mxu0 0
        %1569 = vmatmul.mubr.bf16.gmra.mrb[0].mxu0 %v1051
        %v1570 = vpop.f32.mrb[0].mxu0
        %v1571 = vadd.f32 0.0, %v1570
        %v1572 = vpop.f32.mrb[0].mxu0
        %v1573 = vpop.f32.mrb[0].mxu0
        %v1574 = vadd.f32 0.0, %v1573
        %v1575 = vpop.f32.mrb[0].mxu0
        %1576 = vmatprep.mubr.bf16.mxu0 0
        %1577 = vmatmul.mubr.bf16.gmra.mrb[0].mxu0 %v1054
        %v1578 = vpop.f32.mrb[0].mxu0
        %v1579 = vadd.f32 0.0, %v1578
        %v1580 = vpop.f32.mrb[0].mxu0
        %v1581 = vpop.f32.mrb[0].mxu0
        %v1582 = vadd.f32 0.0, %v1581
        %v1583 = vpop.f32.mrb[0].mxu0
        %1584 = vmatprep.mubr.bf16.mxu0 0
        %1585 = vmatmul.mubr.bf16.gmra.mrb[0].mxu0 %v1057
        %v1586 = vpop.f32.mrb[0].mxu0
        %v1587 = vadd.f32 0.0, %v1586
        %v1588 = vpop.f32.mrb[0].mxu0
        %v1589 = vpop.f32.mrb[0].mxu0
        %v1590 = vadd.f32 0.0, %v1589
        %v1591 = vpop.f32.mrb[0].mxu0
        %1592 = vdwg.mxu0
        %v1593 = vmax.f32 %v1520, %v1563
        %v1594 = vmax.f32 %v1521, %v1566
        %v1595 = vmax.f32 %v1522, %v1571
        %v1596 = vmax.f32 %v1523, %v1574
        %v1597 = vmax.f32 %v1524, %v1579
        %v1598 = vmax.f32 %v1525, %v1582
        %v1599 = vmax.f32 %v1526, %v1587
        %v1600 = vmax.f32 %v1527, %v1590
        %1601 = vmatprep.subr.bf16.mxu0 0
        %1602 = vmatpush1.bf16.msra.mxu0 %v1508
        %1603 = vmatprep.subr.bf16.mxu0 0
        %1604 = vmatpush1.bf16.msra.mxu0 %v1509
        %1605 = vmatprep.subr.bf16.mxu0 0
        %1606 = vmatpush1.bf16.msra.mxu0 %v1510
        %1607 = vmatprep.subr.bf16.mxu0 0
        %1608 = vmatpush1.bf16.msra.mxu0 %v1511
        %1609 = vmatprep.subr.bf16.mxu0 0
        %1610 = vmatpush1.bf16.msra.mxu0 0
        %1611 = vmatprep.subr.bf16.mxu0 0
        %1612 = vmatpush1.bf16.msra.mxu0 0
        %1613 = vmatprep.subr.bf16.mxu0 0
        %1614 = vmatpush1.bf16.msra.mxu0 0
        %1615 = vmatprep.subr.bf16.mxu0 0
        %1616 = vmatpush1.bf16.msra.mxu0 0
        %1617 = vmatprep.subr.bf16.mxu0 0
        %1618 = vmatpush1.bf16.msra.mxu0 0
        %1619 = vmatprep.subr.bf16.mxu0 0
        %1620 = vmatpush1.bf16.msra.mxu0 0
        %1621 = vmatprep.subr.bf16.mxu0 0
        %1622 = vmatpush1.bf16.msra.mxu0 0
        %1623 = vmatprep.subr.bf16.mxu0 0
        %1624 = vmatpush1.bf16.msra.mxu0 0
        %1625 = vmatprep.subr.bf16.mxu0 0
        %1626 = vmatpush1.bf16.msra.mxu0 0
        %1627 = vmatprep.subr.bf16.mxu0 0
        %1628 = vmatpush1.bf16.msra.mxu0 0
        %1629 = vmatprep.subr.bf16.mxu0 0
        %1630 = vmatpush1.bf16.msra.mxu0 0
        %1631 = vmatprep.subr.bf16.mxu0 0
        %1632 = vmatpush1.bf16.msra.mxu0 0
        %1633 = vmatprep.mubr.bf16.mxu0 0
        %1634 = vmatmul.mubr.bf16.gmra.mrb[0].mxu0 %v1303
        %v1635 = vpop.f32.mrb[0].mxu0
        %v1636 = vadd.f32 0.0, %v1635
        %v1637 = vpop.f32.mrb[0].mxu0
        %v1638 = vpop.f32.mrb[0].mxu0
        %v1639 = vadd.f32 0.0, %v1638
        %v1640 = vpop.f32.mrb[0].mxu0
        %1641 = vmatprep.mubr.bf16.mxu0 0
        %1642 = vmatmul.mubr.bf16.gmra.mrb[0].mxu0 %v1306
        %v1643 = vpop.f32.mrb[0].mxu0
        %v1644 = vadd.f32 0.0, %v1643
        %v1645 = vpop.f32.mrb[0].mxu0
        %v1646 = vpop.f32.mrb[0].mxu0
        %v1647 = vadd.f32 0.0, %v1646
        %v1648 = vpop.f32.mrb[0].mxu0
        %1649 = vmatprep.mubr.bf16.mxu0 0
        %1650 = vmatmul.mubr.bf16.gmra.mrb[0].mxu0 %v1309
        %v1651 = vpop.f32.mrb[0].mxu0
        %v1652 = vadd.f32 0.0, %v1651
        %v1653 = vpop.f32.mrb[0].mxu0
        %v1654 = vpop.f32.mrb[0].mxu0
        %v1655 = vadd.f32 0.0, %v1654
        %v1656 = vpop.f32.mrb[0].mxu0
        %1657 = vmatprep.mubr.bf16.mxu0 0
        %1658 = vmatmul.mubr.bf16.gmra.mrb[0].mxu0 %v1312
        %v1659 = vpop.f32.mrb[0].mxu0
        %v1660 = vadd.f32 0.0, %v1659
        %v1661 = vpop.f32.mrb[0].mxu0
        %v1662 = vpop.f32.mrb[0].mxu0
        %v1663 = vadd.f32 0.0, %v1662
        %v1664 = vpop.f32.mrb[0].mxu0
        %1665 = vdwg.mxu0
        %v1666 = vmax.f32 %v1593, %v1636
        %v1667 = vmax.f32 %v1594, %v1639
        %v1668 = vmax.f32 %v1595, %v1644
        %v1669 = vmax.f32 %v1596, %v1647
        %v1670 = vmax.f32 %v1597, %v1652
        %v1671 = vmax.f32 %v1598, %v1655
        %v1672 = vmax.f32 %v1599, %v1660
        %v1673 = vmax.f32 %v1600, %v1663
        %v1674 = vld [vmem:[%s1] sm:$0xf]
        %v1675 = vld [vmem:[%s1 + $0x4] sm:$0xf]
        %v1676 = vld [vmem:[%s1 + $0x8] sm:$0xf]
        %v1677 = vld [vmem:[%s1 + $0xc] sm:$0xf]
        %v1678 = vld [vmem:[%s1 + $0x10] sm:$0xf]
        %v1679 = vld [vmem:[%s1 + $0x14] sm:$0xf]
        %v1680 = vld [vmem:[%s1 + $0x18] sm:$0xf]
        %v1681 = vld [vmem:[%s1 + $0x1c] sm:$0xf]
        %v1690 = vunpack.c.l.b16 %v1674
        %v1691 = vunpack.c.l.b16 %v1675
        %v1692 = vunpack.c.l.b16 %v1676
        %v1693 = vunpack.c.l.b16 %v1677
        %v1694 = vunpack.c.l.b16 %v1678
        %v1695 = vunpack.c.l.b16 %v1679
        %v1696 = vunpack.c.l.b16 %v1680
        %v1697 = vunpack.c.l.b16 %v1681
        %v1698 = vpack.c.b16 %v1691, %v1690
        %v1699 = vpack.c.b16 %v1693, %v1692
        %v1700 = vpack.c.b16 %v1695, %v1694
        %v1701 = vpack.c.b16 %v1697, %v1696
        %v1703 = vsel %vm1046, %v1698, 0
        %v1706 = vsel %vm1046, %v1699, 0
        %v1709 = vsel %vm1046, %v1700, 0
        %v1712 = vsel %vm1046, %v1701, 0
        %1714 = vmatprep.subr.bf16.mxu0 0
        %1715 = vmatpush1.bf16.msra.mxu0 %v1508
        %1716 = vmatprep.subr.bf16.mxu0 0
        %1717 = vmatpush1.bf16.msra.mxu0 %v1509
        %1718 = vmatprep.subr.bf16.mxu0 0
        %1719 = vmatpush1.bf16.msra.mxu0 %v1510
        %1720 = vmatprep.subr.bf16.mxu0 0
        %1721 = vmatpush1.bf16.msra.mxu0 %v1511
        %1722 = vmatprep.subr.bf16.mxu0 0
        %1723 = vmatpush1.bf16.msra.mxu0 0
        %1724 = vmatprep.subr.bf16.mxu0 0
        %1725 = vmatpush1.bf16.msra.mxu0 0
        %1726 = vmatprep.subr.bf16.mxu0 0
        %1727 = vmatpush1.bf16.msra.mxu0 0
        %1728 = vmatprep.subr.bf16.mxu0 0
        %1729 = vmatpush1.bf16.msra.mxu0 0
        %1730 = vmatprep.subr.bf16.mxu0 0
        %1731 = vmatpush1.bf16.msra.mxu0 0
        %1732 = vmatprep.subr.bf16.mxu0 0
        %1733 = vmatpush1.bf16.msra.mxu0 0
        %1734 = vmatprep.subr.bf16.mxu0 0
        %1735 = vmatpush1.bf16.msra.mxu0 0
        %1736 = vmatprep.subr.bf16.mxu0 0
        %1737 = vmatpush1.bf16.msra.mxu0 0
        %1738 = vmatprep.subr.bf16.mxu0 0
        %1739 = vmatpush1.bf16.msra.mxu0 0
        %1740 = vmatprep.subr.bf16.mxu0 0
        %1741 = vmatpush1.bf16.msra.mxu0 0
        %1742 = vmatprep.subr.bf16.mxu0 0
        %1743 = vmatpush1.bf16.msra.mxu0 0
        %1744 = vmatprep.subr.bf16.mxu0 0
        %1745 = vmatpush1.bf16.msra.mxu0 0
        %1746 = vmatprep.mubr.bf16.mxu0 0
        %1747 = vmatmul.mubr.bf16.gmra.mrb[0].mxu0 %v1703
        %v1748 = vpop.f32.mrb[0].mxu0
        %v1749 = vadd.f32 0.0, %v1748
        %v1750 = vpop.f32.mrb[0].mxu0
        %v1751 = vpop.f32.mrb[0].mxu0
        %v1752 = vadd.f32 0.0, %v1751
        %v1753 = vpop.f32.mrb[0].mxu0
        %1754 = vmatprep.mubr.bf16.mxu0 0
        %1755 = vmatmul.mubr.bf16.gmra.mrb[0].mxu0 %v1706
        %v1756 = vpop.f32.mrb[0].mxu0
        %v1757 = vadd.f32 0.0, %v1756
        %v1758 = vpop.f32.mrb[0].mxu0
        %v1759 = vpop.f32.mrb[0].mxu0
        %v1760 = vadd.f32 0.0, %v1759
        %v1761 = vpop.f32.mrb[0].mxu0
        %1762 = vmatprep.mubr.bf16.mxu0 0
        %1763 = vmatmul.mubr.bf16.gmra.mrb[0].mxu0 %v1709
        %v1764 = vpop.f32.mrb[0].mxu0
        %v1765 = vadd.f32 0.0, %v1764
        %v1766 = vpop.f32.mrb[0].mxu0
        %v1767 = vpop.f32.mrb[0].mxu0
        %v1768 = vadd.f32 0.0, %v1767
        %v1769 = vpop.f32.mrb[0].mxu0
        %1770 = vmatprep.mubr.bf16.mxu0 0
        %1771 = vmatmul.mubr.bf16.gmra.mrb[0].mxu0 %v1712
        %v1772 = vpop.f32.mrb[0].mxu0
        %v1773 = vadd.f32 0.0, %v1772
        %v1774 = vpop.f32.mrb[0].mxu0
        %v1775 = vpop.f32.mrb[0].mxu0
        %v1776 = vadd.f32 0.0, %v1775
        %v1777 = vpop.f32.mrb[0].mxu0
        %1778 = vdwg.mxu0
        %v1779 = vmax.f32 %v1666, %v1749
        %v1780 = vmax.f32 %v1667, %v1752
        %v1781 = vmax.f32 %v1668, %v1757
        %v1782 = vmax.f32 %v1669, %v1760
        %v1783 = vmax.f32 %v1670, %v1765
        %v1784 = vmax.f32 %v1671, %v1768
        %v1785 = vmax.f32 %v1672, %v1773
        %v1786 = vmax.f32 %v1673, %v1776
        %v1787 = vpack.c.bf16 %v1780, %v1779
        %v1788 = vpack.c.bf16 %v1782, %v1781
        %v1789 = vpack.c.bf16 %v1784, %v1783
        %v1790 = vpack.c.bf16 %v1786, %v1785
        %v1791 = vld [vmem:[%s5] sm:$0xff]
        %v1792 = vld [vmem:[%s5 + $0x8] sm:$0xff]
        %v1793 = vld [vmem:[%s5 + $0x10] sm:$0xff]
        %v1794 = vld [vmem:[%s5 + $0x18] sm:$0xff]
        %v1795 = vld [vmem:[%s5 + $0x20] sm:$0xff]
        %v1796 = vld [vmem:[%s5 + $0x28] sm:$0xff]
        %v1797 = vld [vmem:[%s5 + $0x30] sm:$0xff]
        %v1798 = vld [vmem:[%s5 + $0x38] sm:$0xff]
        %v1799 = vld [vmem:[%s5 + $0x40] sm:$0xff]
        %v1800 = vld [vmem:[%s5 + $0x48] sm:$0xff]
        %v1801 = vld [vmem:[%s5 + $0x50] sm:$0xff]
        %v1802 = vld [vmem:[%s5 + $0x58] sm:$0xff]
        %v1803 = vld [vmem:[%s5 + $0x60] sm:$0xff]
        %v1804 = vld [vmem:[%s5 + $0x68] sm:$0xff]
        %v1805 = vld [vmem:[%s5 + $0x70] sm:$0xff]
        %v1806 = vld [vmem:[%s5 + $0x78] sm:$0xff]
        %v1807 = vld [vmem:[%s6] sm:$0x3]
        %v1809 = vlaneseq
        %v1810 = vshrl.u32 %v1809, 7
        %v1811 = vsub.s32 0, %v1810
        %v1812 = vrot.slane %v1807, %v1811
        %v1813 = vlaneseq
        %v1814 = vshrl.u32 %v1813, 7
        %v1815 = vsub.s32 1, %v1814
        %v1816 = vrot.slane %v1807, %v1815
        %v1835 = vunpack.c.l.b16 %v1791
        %v1836 = vunpack.c.h.b16 %v1791
        %v1837 = vunpack.c.l.b16 %v1792
        %v1838 = vunpack.c.h.b16 %v1792
        %v1839 = vunpack.c.l.b16 %v1793
        %v1840 = vunpack.c.h.b16 %v1793
        %v1841 = vunpack.c.l.b16 %v1794
        %v1842 = vunpack.c.h.b16 %v1794
        %v1843 = vunpack.c.l.b16 %v1795
        %v1844 = vunpack.c.h.b16 %v1795
        %v1845 = vunpack.c.l.b16 %v1796
        %v1846 = vunpack.c.h.b16 %v1796
        %v1847 = vunpack.c.l.b16 %v1797
        %v1848 = vunpack.c.h.b16 %v1797
        %v1849 = vunpack.c.l.b16 %v1798
        %v1850 = vunpack.c.h.b16 %v1798
        %v1851 = vunpack.c.l.b16 %v1799
        %v1852 = vunpack.c.h.b16 %v1799
        %v1853 = vunpack.c.l.b16 %v1800
        %v1854 = vunpack.c.h.b16 %v1800
        %v1855 = vunpack.c.l.b16 %v1801
        %v1856 = vunpack.c.h.b16 %v1801
        %v1857 = vunpack.c.l.b16 %v1802
        %v1858 = vunpack.c.h.b16 %v1802
        %v1859 = vunpack.c.l.b16 %v1803
        %v1860 = vunpack.c.h.b16 %v1803
        %v1861 = vunpack.c.l.b16 %v1804
        %v1862 = vunpack.c.h.b16 %v1804
        %v1863 = vunpack.c.l.b16 %v1805
        %v1864 = vunpack.c.h.b16 %v1805
        %v1865 = vunpack.c.l.b16 %v1806
        %v1866 = vunpack.c.h.b16 %v1806
        %v1867 = vpack.c.b16 %v1837, %v1835
        %v1868 = vpack.c.b16 %v1838, %v1836
        %v1869 = vpack.c.b16 %v1841, %v1839
        %v1870 = vpack.c.b16 %v1842, %v1840
        %v1871 = vpack.c.b16 %v1845, %v1843
        %v1872 = vpack.c.b16 %v1846, %v1844
        %v1873 = vpack.c.b16 %v1849, %v1847
        %v1874 = vpack.c.b16 %v1850, %v1848
        %v1875 = vpack.c.b16 %v1853, %v1851
        %v1876 = vpack.c.b16 %v1854, %v1852
        %v1877 = vpack.c.b16 %v1857, %v1855
        %v1878 = vpack.c.b16 %v1858, %v1856
        %v1879 = vpack.c.b16 %v1861, %v1859
        %v1880 = vpack.c.b16 %v1862, %v1860
        %v1881 = vpack.c.b16 %v1865, %v1863
        %v1882 = vpack.c.b16 %v1866, %v1864
        %1899 = vmatprep.subr.bf16.mxu0 %v1868
        %1900 = vmatpush1.bf16.msra.mxu0 %v1867
        %1901 = vmatprep.subr.bf16.mxu0 %v1870
        %1902 = vmatpush1.bf16.msra.mxu0 %v1869
        %1903 = vmatprep.subr.bf16.mxu0 %v1872
        %1904 = vmatpush1.bf16.msra.mxu0 %v1871
        %1905 = vmatprep.subr.bf16.mxu0 %v1874
        %1906 = vmatpush1.bf16.msra.mxu0 %v1873
        %1907 = vmatprep.subr.bf16.mxu0 %v1876
        %1908 = vmatpush1.bf16.msra.mxu0 %v1875
        %1909 = vmatprep.subr.bf16.mxu0 %v1878
        %1910 = vmatpush1.bf16.msra.mxu0 %v1877
        %1911 = vmatprep.subr.bf16.mxu0 %v1880
        %1912 = vmatpush1.bf16.msra.mxu0 %v1879
        %1913 = vmatprep.subr.bf16.mxu0 %v1882
        %1914 = vmatpush1.bf16.msra.mxu0 %v1881
        %1915 = vmatprep.subr.bf16.mxu0 0
        %1916 = vmatpush1.bf16.msra.mxu0 0
        %1917 = vmatprep.subr.bf16.mxu0 0
        %1918 = vmatpush1.bf16.msra.mxu0 0
        %1919 = vmatprep.subr.bf16.mxu0 0
        %1920 = vmatpush1.bf16.msra.mxu0 0
        %1921 = vmatprep.subr.bf16.mxu0 0
        %1922 = vmatpush1.bf16.msra.mxu0 0
        %1923 = vmatprep.subr.bf16.mxu0 0
        %1924 = vmatpush1.bf16.msra.mxu0 0
        %1925 = vmatprep.subr.bf16.mxu0 0
        %1926 = vmatpush1.bf16.msra.mxu0 0
        %1927 = vmatprep.subr.bf16.mxu0 0
        %1928 = vmatpush1.bf16.msra.mxu0 0
        %1929 = vmatprep.subr.bf16.mxu0 0
        %1930 = vmatpush1.bf16.msra.mxu0 0
        %1931 = vmatprep.mubr.bf16.mxu0 0
        %1932 = vmatmul.mubr.bf16.gmra.mrb[0].mxu0 %v1787
        %v1933 = vpop.f32.mrb[0].mxu0
        %v1934 = vadd.f32 %v1812, %v1933
        %v1935 = vpop.f32.mrb[0].mxu0
        %v1936 = vadd.f32 %v1816, %v1935
        %v1937 = vpop.f32.mrb[0].mxu0
        %v1938 = vadd.f32 %v1812, %v1937
        %v1939 = vpop.f32.mrb[0].mxu0
        %v1940 = vadd.f32 %v1816, %v1939
        %1941 = vmatprep.mubr.bf16.mxu0 0
        %1942 = vmatmul.mubr.bf16.gmra.mrb[0].mxu0 %v1788
        %v1943 = vpop.f32.mrb[0].mxu0
        %v1944 = vadd.f32 %v1812, %v1943
        %v1945 = vpop.f32.mrb[0].mxu0
        %v1946 = vadd.f32 %v1816, %v1945
        %v1947 = vpop.f32.mrb[0].mxu0
        %v1948 = vadd.f32 %v1812, %v1947
        %v1949 = vpop.f32.mrb[0].mxu0
        %v1950 = vadd.f32 %v1816, %v1949
        %1951 = vmatprep.mubr.bf16.mxu0 0
        %1952 = vmatmul.mubr.bf16.gmra.mrb[0].mxu0 %v1789
        %v1953 = vpop.f32.mrb[0].mxu0
        %v1954 = vadd.f32 %v1812, %v1953
        %v1955 = vpop.f32.mrb[0].mxu0
        %v1956 = vadd.f32 %v1816, %v1955
        %v1957 = vpop.f32.mrb[0].mxu0
        %v1958 = vadd.f32 %v1812, %v1957
        %v1959 = vpop.f32.mrb[0].mxu0
        %v1960 = vadd.f32 %v1816, %v1959
        %1961 = vmatprep.mubr.bf16.mxu0 0
        %1962 = vmatmul.mubr.bf16.gmra.mrb[0].mxu0 %v1790
        %v1963 = vpop.f32.mrb[0].mxu0
        %v1964 = vadd.f32 %v1812, %v1963
        %v1965 = vpop.f32.mrb[0].mxu0
        %v1966 = vadd.f32 %v1816, %v1965
        %v1967 = vpop.f32.mrb[0].mxu0
        %v1968 = vadd.f32 %v1812, %v1967
        %v1969 = vpop.f32.mrb[0].mxu0
        %v1970 = vadd.f32 %v1816, %v1969
        %1971 = vdwg.mxu0
        %v1972 = vmax.f32 %v1936, 0.0
        %v1973 = vmax.f32 %v1940, 0.0
        %v1974 = vmax.f32 %v1946, 0.0
        %v1975 = vmax.f32 %v1950, 0.0
        %v1976 = vmax.f32 %v1956, 0.0
        %v1977 = vmax.f32 %v1960, 0.0
        %v1978 = vmax.f32 %v1966, 0.0
        %v1979 = vmax.f32 %v1970, 0.0
        %v1980 = vpack.c.bf16 %v1973, %v1972
        %v1981 = vpack.c.bf16 %v1975, %v1974
        %v1982 = vpack.c.bf16 %v1977, %v1976
        %v1983 = vpack.c.bf16 %v1979, %v1978
        %1984 = vmatprep.subr.bf16.mxu0 0
        %1985 = vmatpush1.bf16.msra.mxu0 %v1980
        %1986 = vmatprep.subr.bf16.mxu0 0
        %1987 = vmatpush1.bf16.msra.mxu0 %v1981
        %1988 = vmatprep.subr.bf16.mxu0 0
        %1989 = vmatpush1.bf16.msra.mxu0 %v1982
        %1990 = vmatprep.subr.bf16.mxu0 0
        %1991 = vmatpush1.bf16.msra.mxu0 %v1983
        %1992 = vmatprep.subr.bf16.mxu0 0
        %1993 = vmatpush1.bf16.msra.mxu0 0
        %1994 = vmatprep.subr.bf16.mxu0 0
        %1995 = vmatpush1.bf16.msra.mxu0 0
        %1996 = vmatprep.subr.bf16.mxu0 0
        %1997 = vmatpush1.bf16.msra.mxu0 0
        %1998 = vmatprep.subr.bf16.mxu0 0
        %1999 = vmatpush1.bf16.msra.mxu0 0
        %2000 = vmatprep.subr.bf16.mxu0 0
        %2001 = vmatpush1.bf16.msra.mxu0 0
        %2002 = vmatprep.subr.bf16.mxu0 0
        %2003 = vmatpush1.bf16.msra.mxu0 0
        %2004 = vmatprep.subr.bf16.mxu0 0
        %2005 = vmatpush1.bf16.msra.mxu0 0
        %2006 = vmatprep.subr.bf16.mxu0 0
        %2007 = vmatpush1.bf16.msra.mxu0 0
        %2008 = vmatprep.subr.bf16.mxu0 0
        %2009 = vmatpush1.bf16.msra.mxu0 0
        %2010 = vmatprep.subr.bf16.mxu0 0
        %2011 = vmatpush1.bf16.msra.mxu0 0
        %2012 = vmatprep.subr.bf16.mxu0 0
        %2013 = vmatpush1.bf16.msra.mxu0 0
        %2014 = vmatprep.subr.bf16.mxu0 0
        %2015 = vmatpush1.bf16.msra.mxu0 0
        %2016 = vmatprep.mubr.bf16.mxu0 0
        %2017 = vmatmul.mubr.bf16.gmra.mrb[0].mxu0 %v1703
        %v2018 = vpop.f32.mrb[0].mxu0
        %v2019 = vadd.f32 0.0, %v2018
        %v2020 = vpop.f32.mrb[0].mxu0
        %v2021 = vpop.f32.mrb[0].mxu0
        %v2022 = vadd.f32 0.0, %v2021
        %v2023 = vpop.f32.mrb[0].mxu0
        %2024 = vmatprep.mubr.bf16.mxu0 0
        %2025 = vmatmul.mubr.bf16.gmra.mrb[0].mxu0 %v1706
        %v2026 = vpop.f32.mrb[0].mxu0
        %v2027 = vadd.f32 0.0, %v2026
        %v2028 = vpop.f32.mrb[0].mxu0
        %v2029 = vpop.f32.mrb[0].mxu0
        %v2030 = vadd.f32 0.0, %v2029
        %v2031 = vpop.f32.mrb[0].mxu0
        %2032 = vmatprep.mubr.bf16.mxu0 0
        %2033 = vmatmul.mubr.bf16.gmra.mrb[0].mxu0 %v1709
        %v2034 = vpop.f32.mrb[0].mxu0
        %v2035 = vadd.f32 0.0, %v2034
        %v2036 = vpop.f32.mrb[0].mxu0
        %v2037 = vpop.f32.mrb[0].mxu0
        %v2038 = vadd.f32 0.0, %v2037
        %v2039 = vpop.f32.mrb[0].mxu0
        %2040 = vmatprep.mubr.bf16.mxu0 0
        %2041 = vmatmul.mubr.bf16.gmra.mrb[0].mxu0 %v1712
        %v2042 = vpop.f32.mrb[0].mxu0
        %v2043 = vadd.f32 0.0, %v2042
        %v2044 = vpop.f32.mrb[0].mxu0
        %v2045 = vpop.f32.mrb[0].mxu0
        %v2046 = vadd.f32 0.0, %v2045
        %v2047 = vpop.f32.mrb[0].mxu0
        %2048 = vdwg.mxu0
        %v2049 = vpack.c.bf16 %v2022, %v2019
        %v2050 = vpack.c.bf16 %v2030, %v2027
        %v2051 = vpack.c.bf16 %v2038, %v2035
        %v2052 = vpack.c.bf16 %v2046, %v2043
        %v2053 = vld [vmem:[%s7] sm:$0xf]
        %v2054 = vld [vmem:[%s7 + $0x4] sm:$0xf]
        %v2055 = vld [vmem:[%s7 + $0x8] sm:$0xf]
        %v2056 = vld [vmem:[%s7 + $0xc] sm:$0xf]
        %v2057 = vld [vmem:[%s7 + $0x10] sm:$0xf]
        %v2058 = vld [vmem:[%s7 + $0x14] sm:$0xf]
        %v2059 = vld [vmem:[%s7 + $0x18] sm:$0xf]
        %v2060 = vld [vmem:[%s7 + $0x1c] sm:$0xf]
        %v2061 = vld [vmem:[%s7 + $0x20] sm:$0xf]
        %v2062 = vld [vmem:[%s7 + $0x24] sm:$0xf]
        %v2063 = vld [vmem:[%s7 + $0x28] sm:$0xf]
        %v2064 = vld [vmem:[%s7 + $0x2c] sm:$0xf]
        %v2065 = vld [vmem:[%s7 + $0x30] sm:$0xf]
        %v2066 = vld [vmem:[%s7 + $0x34] sm:$0xf]
        %v2067 = vld [vmem:[%s7 + $0x38] sm:$0xf]
        %v2068 = vld [vmem:[%s7 + $0x3c] sm:$0xf]
        %2069 = vmatprep.subr.bf16.mxu0 0
        %2070 = vmatpush1.bf16.msra.mxu0 %v1980
        %2071 = vmatprep.subr.bf16.mxu0 0
        %2072 = vmatpush1.bf16.msra.mxu0 %v1981
        %2073 = vmatprep.subr.bf16.mxu0 0
        %2074 = vmatpush1.bf16.msra.mxu0 %v1982
        %2075 = vmatprep.subr.bf16.mxu0 0
        %2076 = vmatpush1.bf16.msra.mxu0 %v1983
        %2077 = vmatprep.subr.bf16.mxu0 0
        %2078 = vmatpush1.bf16.msra.mxu0 0
        %2079 = vmatprep.subr.bf16.mxu0 0
        %2080 = vmatpush1.bf16.msra.mxu0 0
        %2081 = vmatprep.subr.bf16.mxu0 0
        %2082 = vmatpush1.bf16.msra.mxu0 0
        %2083 = vmatprep.subr.bf16.mxu0 0
        %2084 = vmatpush1.bf16.msra.mxu0 0
        %2085 = vmatprep.subr.bf16.mxu0 0
        %2086 = vmatpush1.bf16.msra.mxu0 0
        %2087 = vmatprep.subr.bf16.mxu0 0
        %2088 = vmatpush1.bf16.msra.mxu0 0
        %2089 = vmatprep.subr.bf16.mxu0 0
        %2090 = vmatpush1.bf16.msra.mxu0 0
        %2091 = vmatprep.subr.bf16.mxu0 0
        %2092 = vmatpush1.bf16.msra.mxu0 0
        %2093 = vmatprep.subr.bf16.mxu0 0
        %2094 = vmatpush1.bf16.msra.mxu0 0
        %2095 = vmatprep.subr.bf16.mxu0 0
        %2096 = vmatpush1.bf16.msra.mxu0 0
        %2097 = vmatprep.subr.bf16.mxu0 0
        %2098 = vmatpush1.bf16.msra.mxu0 0
        %2099 = vmatprep.subr.bf16.mxu0 0
        %2100 = vmatpush1.bf16.msra.mxu0 0
        %2101 = vmatprep.mubr.bf16.mxu0 0
        %2102 = vmatmul.mubr.bf16.gmra.mrb[0].mxu0 %v1303
        %v2103 = vpop.f32.mrb[0].mxu0
        %v2104 = vadd.f32 0.0, %v2103
        %v2105 = vpop.f32.mrb[0].mxu0
        %v2106 = vpop.f32.mrb[0].mxu0
        %v2107 = vadd.f32 0.0, %v2106
        %v2108 = vpop.f32.mrb[0].mxu0
        %2109 = vmatprep.mubr.bf16.mxu0 0
        %2110 = vmatmul.mubr.bf16.gmra.mrb[0].mxu0 %v1306
        %v2111 = vpop.f32.mrb[0].mxu0
        %v2112 = vadd.f32 0.0, %v2111
        %v2113 = vpop.f32.mrb[0].mxu0
        %v2114 = vpop.f32.mrb[0].mxu0
        %v2115 = vadd.f32 0.0, %v2114
        %v2116 = vpop.f32.mrb[0].mxu0
        %2117 = vmatprep.mubr.bf16.mxu0 0
        %2118 = vmatmul.mubr.bf16.gmra.mrb[0].mxu0 %v1309
        %v2119 = vpop.f32.mrb[0].mxu0
        %v2120 = vadd.f32 0.0, %v2119
        %v2121 = vpop.f32.mrb[0].mxu0
        %v2122 = vpop.f32.mrb[0].mxu0
        %v2123 = vadd.f32 0.0, %v2122
        %v2124 = vpop.f32.mrb[0].mxu0
        %2125 = vmatprep.mubr.bf16.mxu0 0
        %2126 = vmatmul.mubr.bf16.gmra.mrb[0].mxu0 %v1312
        %v2127 = vpop.f32.mrb[0].mxu0
        %v2128 = vadd.f32 0.0, %v2127
        %v2129 = vpop.f32.mrb[0].mxu0
        %v2130 = vpop.f32.mrb[0].mxu0
        %v2131 = vadd.f32 0.0, %v2130
        %v2132 = vpop.f32.mrb[0].mxu0
        %2133 = vdwg.mxu0
        %v2134 = vpack.c.bf16 %v2107, %v2104
        %v2135 = vpack.c.bf16 %v2115, %v2112
        %v2136 = vpack.c.bf16 %v2123, %v2120
        %v2137 = vpack.c.bf16 %v2131, %v2128
        %s2138 = scalar_lea.vmem %s7, 64
        %v2139 = vld [vmem:[%s2138] sm:$0xf]
        %v2140 = vld [vmem:[%s2138 + $0x4] sm:$0xf]
        %v2141 = vld [vmem:[%s2138 + $0x8] sm:$0xf]
        %v2142 = vld [vmem:[%s2138 + $0xc] sm:$0xf]
        %v2143 = vld [vmem:[%s2138 + $0x10] sm:$0xf]
        %v2144 = vld [vmem:[%s2138 + $0x14] sm:$0xf]
        %v2145 = vld [vmem:[%s2138 + $0x18] sm:$0xf]
        %v2146 = vld [vmem:[%s2138 + $0x1c] sm:$0xf]
        %v2147 = vld [vmem:[%s2138 + $0x20] sm:$0xf]
        %v2148 = vld [vmem:[%s2138 + $0x24] sm:$0xf]
        %v2149 = vld [vmem:[%s2138 + $0x28] sm:$0xf]
        %v2150 = vld [vmem:[%s2138 + $0x2c] sm:$0xf]
        %v2151 = vld [vmem:[%s2138 + $0x30] sm:$0xf]
        %v2152 = vld [vmem:[%s2138 + $0x34] sm:$0xf]
        %v2153 = vld [vmem:[%s2138 + $0x38] sm:$0xf]
        %v2154 = vld [vmem:[%s2138 + $0x3c] sm:$0xf]
        %v2171 = vunpack.c.l.b16 %v2139
        %v2172 = vunpack.c.l.b16 %v2140
        %v2173 = vunpack.c.l.b16 %v2141
        %v2174 = vunpack.c.l.b16 %v2142
        %v2175 = vunpack.c.l.b16 %v2143
        %v2176 = vunpack.c.l.b16 %v2144
        %v2177 = vunpack.c.l.b16 %v2145
        %v2178 = vunpack.c.l.b16 %v2146
        %v2179 = vunpack.c.l.b16 %v2147
        %v2180 = vunpack.c.l.b16 %v2148
        %v2181 = vunpack.c.l.b16 %v2149
        %v2182 = vunpack.c.l.b16 %v2150
        %v2183 = vunpack.c.l.b16 %v2151
        %v2184 = vunpack.c.l.b16 %v2152
        %v2185 = vunpack.c.l.b16 %v2153
        %v2186 = vunpack.c.l.b16 %v2154
        %v2187 = vpack.c.b16 %v2172, %v2171
        %v2188 = vpack.c.b16 %v2174, %v2173
        %v2189 = vpack.c.b16 %v2176, %v2175
        %v2190 = vpack.c.b16 %v2178, %v2177
        %v2191 = vpack.c.b16 %v2180, %v2179
        %v2192 = vpack.c.b16 %v2182, %v2181
        %v2193 = vpack.c.b16 %v2184, %v2183
        %v2194 = vpack.c.b16 %v2186, %v2185
        %2203 = vmatprep.subr.bf16.mxu0 0
        %2204 = vmatpush1.bf16.msra.mxu0 %v2187
        %2205 = vmatprep.subr.bf16.mxu0 0
        %2206 = vmatpush1.bf16.msra.mxu0 %v2188
        %2207 = vmatprep.subr.bf16.mxu0 0
        %2208 = vmatpush1.bf16.msra.mxu0 %v2189
        %2209 = vmatprep.subr.bf16.mxu0 0
        %2210 = vmatpush1.bf16.msra.mxu0 %v2190
        %2211 = vmatprep.subr.bf16.mxu0 0
        %2212 = vmatpush1.bf16.msra.mxu0 %v2191
        %2213 = vmatprep.subr.bf16.mxu0 0
        %2214 = vmatpush1.bf16.msra.mxu0 %v2192
        %2215 = vmatprep.subr.bf16.mxu0 0
        %2216 = vmatpush1.bf16.msra.mxu0 %v2193
        %2217 = vmatprep.subr.bf16.mxu0 0
        %2218 = vmatpush1.bf16.msra.mxu0 %v2194
        %2219 = vmatprep.subr.bf16.mxu0 0
        %2220 = vmatpush1.bf16.msra.mxu0 0
        %2221 = vmatprep.subr.bf16.mxu0 0
        %2222 = vmatpush1.bf16.msra.mxu0 0
        %2223 = vmatprep.subr.bf16.mxu0 0
        %2224 = vmatpush1.bf16.msra.mxu0 0
        %2225 = vmatprep.subr.bf16.mxu0 0
        %2226 = vmatpush1.bf16.msra.mxu0 0
        %2227 = vmatprep.subr.bf16.mxu0 0
        %2228 = vmatpush1.bf16.msra.mxu0 0
        %2229 = vmatprep.subr.bf16.mxu0 0
        %2230 = vmatpush1.bf16.msra.mxu0 0
        %2231 = vmatprep.subr.bf16.mxu0 0
        %2232 = vmatpush1.bf16.msra.mxu0 0
        %2233 = vmatprep.subr.bf16.mxu0 0
        %2234 = vmatpush1.bf16.msra.mxu0 0
        %2235 = vmatprep.mubr.bf16.mxu0 0
        %2236 = vmatmul.mubr.bf16.gmra.mrb[0].mxu0 %v2134
        %v2237 = vpop.f32.mrb[0].mxu0
        %v2238 = vadd.f32 0.0, %v2237
        %v2239 = vpop.f32.mrb[0].mxu0
        %v2240 = vpop.f32.mrb[0].mxu0
        %v2241 = vadd.f32 0.0, %v2240
        %v2242 = vpop.f32.mrb[0].mxu0
        %2243 = vmatprep.mubr.bf16.mxu0 0
        %2244 = vmatmul.mubr.bf16.gmra.mrb[0].mxu0 %v2135
        %v2245 = vpop.f32.mrb[0].mxu0
        %v2246 = vadd.f32 0.0, %v2245
        %v2247 = vpop.f32.mrb[0].mxu0
        %v2248 = vpop.f32.mrb[0].mxu0
        %v2249 = vadd.f32 0.0, %v2248
        %v2250 = vpop.f32.mrb[0].mxu0
        %2251 = vmatprep.mubr.bf16.mxu0 0
        %2252 = vmatmul.mubr.bf16.gmra.mrb[0].mxu0 %v2136
        %v2253 = vpop.f32.mrb[0].mxu0
        %v2254 = vadd.f32 0.0, %v2253
        %v2255 = vpop.f32.mrb[0].mxu0
        %v2256 = vpop.f32.mrb[0].mxu0
        %v2257 = vadd.f32 0.0, %v2256
        %v2258 = vpop.f32.mrb[0].mxu0
        %2259 = vmatprep.mubr.bf16.mxu0 0
        %2260 = vmatmul.mubr.bf16.gmra.mrb[0].mxu0 %v2137
        %v2261 = vpop.f32.mrb[0].mxu0
        %v2262 = vadd.f32 0.0, %v2261
        %v2263 = vpop.f32.mrb[0].mxu0
        %v2264 = vpop.f32.mrb[0].mxu0
        %v2265 = vadd.f32 0.0, %v2264
        %v2266 = vpop.f32.mrb[0].mxu0
        %2267 = vdwg.mxu0
        %v2284 = vunpack.c.l.b16 %v2053
        %v2285 = vunpack.c.l.b16 %v2054
        %v2286 = vunpack.c.l.b16 %v2055
        %v2287 = vunpack.c.l.b16 %v2056
        %v2288 = vunpack.c.l.b16 %v2057
        %v2289 = vunpack.c.l.b16 %v2058
        %v2290 = vunpack.c.l.b16 %v2059
        %v2291 = vunpack.c.l.b16 %v2060
        %v2292 = vunpack.c.l.b16 %v2061
        %v2293 = vunpack.c.l.b16 %v2062
        %v2294 = vunpack.c.l.b16 %v2063
        %v2295 = vunpack.c.l.b16 %v2064
        %v2296 = vunpack.c.l.b16 %v2065
        %v2297 = vunpack.c.l.b16 %v2066
        %v2298 = vunpack.c.l.b16 %v2067
        %v2299 = vunpack.c.l.b16 %v2068
        %v2300 = vpack.c.b16 %v2285, %v2284
        %v2301 = vpack.c.b16 %v2287, %v2286
        %v2302 = vpack.c.b16 %v2289, %v2288
        %v2303 = vpack.c.b16 %v2291, %v2290
        %v2304 = vpack.c.b16 %v2293, %v2292
        %v2305 = vpack.c.b16 %v2295, %v2294
        %v2306 = vpack.c.b16 %v2297, %v2296
        %v2307 = vpack.c.b16 %v2299, %v2298
        %2316 = vmatprep.subr.bf16.mxu0 0
        %2317 = vmatpush1.bf16.msra.mxu0 %v2300
        %2318 = vmatprep.subr.bf16.mxu0 0
        %2319 = vmatpush1.bf16.msra.mxu0 %v2301
        %2320 = vmatprep.subr.bf16.mxu0 0
        %2321 = vmatpush1.bf16.msra.mxu0 %v2302
        %2322 = vmatprep.subr.bf16.mxu0 0
        %2323 = vmatpush1.bf16.msra.mxu0 %v2303
        %2324 = vmatprep.subr.bf16.mxu0 0
        %2325 = vmatpush1.bf16.msra.mxu0 %v2304
        %2326 = vmatprep.subr.bf16.mxu0 0
        %2327 = vmatpush1.bf16.msra.mxu0 %v2305
        %2328 = vmatprep.subr.bf16.mxu0 0
        %2329 = vmatpush1.bf16.msra.mxu0 %v2306
        %2330 = vmatprep.subr.bf16.mxu0 0
        %2331 = vmatpush1.bf16.msra.mxu0 %v2307
        %2332 = vmatprep.subr.bf16.mxu0 0
        %2333 = vmatpush1.bf16.msra.mxu0 0
        %2334 = vmatprep.subr.bf16.mxu0 0
        %2335 = vmatpush1.bf16.msra.mxu0 0
        %2336 = vmatprep.subr.bf16.mxu0 0
        %2337 = vmatpush1.bf16.msra.mxu0 0
        %2338 = vmatprep.subr.bf16.mxu0 0
        %2339 = vmatpush1.bf16.msra.mxu0 0
        %2340 = vmatprep.subr.bf16.mxu0 0
        %2341 = vmatpush1.bf16.msra.mxu0 0
        %2342 = vmatprep.subr.bf16.mxu0 0
        %2343 = vmatpush1.bf16.msra.mxu0 0
        %2344 = vmatprep.subr.bf16.mxu0 0
        %2345 = vmatpush1.bf16.msra.mxu0 0
        %2346 = vmatprep.subr.bf16.mxu0 0
        %2347 = vmatpush1.bf16.msra.mxu0 0
        %2348 = vmatprep.mubr.bf16.mxu0 0
        %2349 = vmatmul.mubr.bf16.gmra.mrb[0].mxu0 %v2049
        %v2350 = vpop.f32.mrb[0].mxu0
        %v2351 = vadd.f32 %v2238, %v2350
        %v2352 = vpop.f32.mrb[0].mxu0
        %v2353 = vpop.f32.mrb[0].mxu0
        %v2354 = vadd.f32 %v2241, %v2353
        %v2355 = vpop.f32.mrb[0].mxu0
        %2356 = vmatprep.mubr.bf16.mxu0 0
        %2357 = vmatmul.mubr.bf16.gmra.mrb[0].mxu0 %v2050
        %v2358 = vpop.f32.mrb[0].mxu0
        %v2359 = vadd.f32 %v2246, %v2358
        %v2360 = vpop.f32.mrb[0].mxu0
        %v2361 = vpop.f32.mrb[0].mxu0
        %v2362 = vadd.f32 %v2249, %v2361
        %v2363 = vpop.f32.mrb[0].mxu0
        %2364 = vmatprep.mubr.bf16.mxu0 0
        %2365 = vmatmul.mubr.bf16.gmra.mrb[0].mxu0 %v2051
        %v2366 = vpop.f32.mrb[0].mxu0
        %v2367 = vadd.f32 %v2254, %v2366
        %v2368 = vpop.f32.mrb[0].mxu0
        %v2369 = vpop.f32.mrb[0].mxu0
        %v2370 = vadd.f32 %v2257, %v2369
        %v2371 = vpop.f32.mrb[0].mxu0
        %2372 = vmatprep.mubr.bf16.mxu0 0
        %2373 = vmatmul.mubr.bf16.gmra.mrb[0].mxu0 %v2052
        %v2374 = vpop.f32.mrb[0].mxu0
        %v2375 = vadd.f32 %v2262, %v2374
        %v2376 = vpop.f32.mrb[0].mxu0
        %v2377 = vpop.f32.mrb[0].mxu0
        %v2378 = vadd.f32 %v2265, %v2377
        %v2379 = vpop.f32.mrb[0].mxu0
        %2380 = vdwg.mxu0
        %s2381 = scalar_lea.vmem %s1, 64
        %v2382 = vld [vmem:[%s2381] sm:$0xf]
        %v2383 = vld [vmem:[%s2381 + $0x4] sm:$0xf]
        %v2384 = vld [vmem:[%s2381 + $0x8] sm:$0xf]
        %v2385 = vld [vmem:[%s2381 + $0xc] sm:$0xf]
        %v2386 = vld [vmem:[%s2381 + $0x10] sm:$0xf]
        %v2387 = vld [vmem:[%s2381 + $0x14] sm:$0xf]
        %v2388 = vld [vmem:[%s2381 + $0x18] sm:$0xf]
        %v2389 = vld [vmem:[%s2381 + $0x1c] sm:$0xf]
        %v2398 = vunpack.c.l.b16 %v2382
        %v2399 = vunpack.c.l.b16 %v2383
        %v2400 = vunpack.c.l.b16 %v2384
        %v2401 = vunpack.c.l.b16 %v2385
        %v2402 = vunpack.c.l.b16 %v2386
        %v2403 = vunpack.c.l.b16 %v2387
        %v2404 = vunpack.c.l.b16 %v2388
        %v2405 = vunpack.c.l.b16 %v2389
        %v2406 = vpack.c.b16 %v2399, %v2398
        %v2407 = vpack.c.b16 %v2401, %v2400
        %v2408 = vpack.c.b16 %v2403, %v2402
        %v2409 = vpack.c.b16 %v2405, %v2404
        %v2411 = vsel %vm1046, %v2406, 0
        %v2414 = vsel %vm1046, %v2407, 0
        %v2417 = vsel %vm1046, %v2408, 0
        %v2420 = vsel %vm1046, %v2409, 0
        %2422 = vmatprep.subr.bf16.mxu0 0
        %2423 = vmatpush1.bf16.msra.mxu0 %v1980
        %2424 = vmatprep.subr.bf16.mxu0 0
        %2425 = vmatpush1.bf16.msra.mxu0 %v1981
        %2426 = vmatprep.subr.bf16.mxu0 0
        %2427 = vmatpush1.bf16.msra.mxu0 %v1982
        %2428 = vmatprep.subr.bf16.mxu0 0
        %2429 = vmatpush1.bf16.msra.mxu0 %v1983
        %2430 = vmatprep.subr.bf16.mxu0 0
        %2431 = vmatpush1.bf16.msra.mxu0 0
        %2432 = vmatprep.subr.bf16.mxu0 0
        %2433 = vmatpush1.bf16.msra.mxu0 0
        %2434 = vmatprep.subr.bf16.mxu0 0
        %2435 = vmatpush1.bf16.msra.mxu0 0
        %2436 = vmatprep.subr.bf16.mxu0 0
        %2437 = vmatpush1.bf16.msra.mxu0 0
        %2438 = vmatprep.subr.bf16.mxu0 0
        %2439 = vmatpush1.bf16.msra.mxu0 0
        %2440 = vmatprep.subr.bf16.mxu0 0
        %2441 = vmatpush1.bf16.msra.mxu0 0
        %2442 = vmatprep.subr.bf16.mxu0 0
        %2443 = vmatpush1.bf16.msra.mxu0 0
        %2444 = vmatprep.subr.bf16.mxu0 0
        %2445 = vmatpush1.bf16.msra.mxu0 0
        %2446 = vmatprep.subr.bf16.mxu0 0
        %2447 = vmatpush1.bf16.msra.mxu0 0
        %2448 = vmatprep.subr.bf16.mxu0 0
        %2449 = vmatpush1.bf16.msra.mxu0 0
        %2450 = vmatprep.subr.bf16.mxu0 0
        %2451 = vmatpush1.bf16.msra.mxu0 0
        %2452 = vmatprep.subr.bf16.mxu0 0
        %2453 = vmatpush1.bf16.msra.mxu0 0
        %2454 = vmatprep.mubr.bf16.mxu0 0
        %2455 = vmatmul.mubr.bf16.gmra.mrb[0].mxu0 %v2411
        %v2456 = vpop.f32.mrb[0].mxu0
        %v2457 = vadd.f32 0.0, %v2456
        %v2458 = vpop.f32.mrb[0].mxu0
        %v2459 = vpop.f32.mrb[0].mxu0
        %v2460 = vadd.f32 0.0, %v2459
        %v2461 = vpop.f32.mrb[0].mxu0
        %2462 = vmatprep.mubr.bf16.mxu0 0
        %2463 = vmatmul.mubr.bf16.gmra.mrb[0].mxu0 %v2414
        %v2464 = vpop.f32.mrb[0].mxu0
        %v2465 = vadd.f32 0.0, %v2464
        %v2466 = vpop.f32.mrb[0].mxu0
        %v2467 = vpop.f32.mrb[0].mxu0
        %v2468 = vadd.f32 0.0, %v2467
        %v2469 = vpop.f32.mrb[0].mxu0
        %2470 = vmatprep.mubr.bf16.mxu0 0
        %2471 = vmatmul.mubr.bf16.gmra.mrb[0].mxu0 %v2417
        %v2472 = vpop.f32.mrb[0].mxu0
        %v2473 = vadd.f32 0.0, %v2472
        %v2474 = vpop.f32.mrb[0].mxu0
        %v2475 = vpop.f32.mrb[0].mxu0
        %v2476 = vadd.f32 0.0, %v2475
        %v2477 = vpop.f32.mrb[0].mxu0
        %2478 = vmatprep.mubr.bf16.mxu0 0
        %2479 = vmatmul.mubr.bf16.gmra.mrb[0].mxu0 %v2420
        %v2480 = vpop.f32.mrb[0].mxu0
        %v2481 = vadd.f32 0.0, %v2480
        %v2482 = vpop.f32.mrb[0].mxu0
        %v2483 = vpop.f32.mrb[0].mxu0
        %v2484 = vadd.f32 0.0, %v2483
        %v2485 = vpop.f32.mrb[0].mxu0
        %2486 = vdwg.mxu0
        %v2487 = vpack.c.bf16 %v2460, %v2457
        %v2488 = vpack.c.bf16 %v2468, %v2465
        %v2489 = vpack.c.bf16 %v2476, %v2473
        %v2490 = vpack.c.bf16 %v2484, %v2481
        %s2491 = scalar_lea.vmem %s7, 128
        %v2492 = vld [vmem:[%s2491] sm:$0xf]
        %v2493 = vld [vmem:[%s2491 + $0x4] sm:$0xf]
        %v2494 = vld [vmem:[%s2491 + $0x8] sm:$0xf]
        %v2495 = vld [vmem:[%s2491 + $0xc] sm:$0xf]
        %v2496 = vld [vmem:[%s2491 + $0x10] sm:$0xf]
        %v2497 = vld [vmem:[%s2491 + $0x14] sm:$0xf]
        %v2498 = vld [vmem:[%s2491 + $0x18] sm:$0xf]
        %v2499 = vld [vmem:[%s2491 + $0x1c] sm:$0xf]
        %v2500 = vld [vmem:[%s2491 + $0x20] sm:$0xf]
        %v2501 = vld [vmem:[%s2491 + $0x24] sm:$0xf]
        %v2502 = vld [vmem:[%s2491 + $0x28] sm:$0xf]
        %v2503 = vld [vmem:[%s2491 + $0x2c] sm:$0xf]
        %v2504 = vld [vmem:[%s2491 + $0x30] sm:$0xf]
        %v2505 = vld [vmem:[%s2491 + $0x34] sm:$0xf]
        %v2506 = vld [vmem:[%s2491 + $0x38] sm:$0xf]
        %v2507 = vld [vmem:[%s2491 + $0x3c] sm:$0xf]
        %v2524 = vunpack.c.l.b16 %v2492
        %v2525 = vunpack.c.l.b16 %v2493
        %v2526 = vunpack.c.l.b16 %v2494
        %v2527 = vunpack.c.l.b16 %v2495
        %v2528 = vunpack.c.l.b16 %v2496
        %v2529 = vunpack.c.l.b16 %v2497
        %v2530 = vunpack.c.l.b16 %v2498
        %v2531 = vunpack.c.l.b16 %v2499
        %v2532 = vunpack.c.l.b16 %v2500
        %v2533 = vunpack.c.l.b16 %v2501
        %v2534 = vunpack.c.l.b16 %v2502
        %v2535 = vunpack.c.l.b16 %v2503
        %v2536 = vunpack.c.l.b16 %v2504
        %v2537 = vunpack.c.l.b16 %v2505
        %v2538 = vunpack.c.l.b16 %v2506
        %v2539 = vunpack.c.l.b16 %v2507
        %v2540 = vpack.c.b16 %v2525, %v2524
        %v2541 = vpack.c.b16 %v2527, %v2526
        %v2542 = vpack.c.b16 %v2529, %v2528
        %v2543 = vpack.c.b16 %v2531, %v2530
        %v2544 = vpack.c.b16 %v2533, %v2532
        %v2545 = vpack.c.b16 %v2535, %v2534
        %v2546 = vpack.c.b16 %v2537, %v2536
        %v2547 = vpack.c.b16 %v2539, %v2538
        %2556 = vmatprep.subr.bf16.mxu0 0
        %2557 = vmatpush1.bf16.msra.mxu0 %v2540
        %2558 = vmatprep.subr.bf16.mxu0 0
        %2559 = vmatpush1.bf16.msra.mxu0 %v2541
        %2560 = vmatprep.subr.bf16.mxu0 0
        %2561 = vmatpush1.bf16.msra.mxu0 %v2542
        %2562 = vmatprep.subr.bf16.mxu0 0
        %2563 = vmatpush1.bf16.msra.mxu0 %v2543
        %2564 = vmatprep.subr.bf16.mxu0 0
        %2565 = vmatpush1.bf16.msra.mxu0 %v2544
        %2566 = vmatprep.subr.bf16.mxu0 0
        %2567 = vmatpush1.bf16.msra.mxu0 %v2545
        %2568 = vmatprep.subr.bf16.mxu0 0
        %2569 = vmatpush1.bf16.msra.mxu0 %v2546
        %2570 = vmatprep.subr.bf16.mxu0 0
        %2571 = vmatpush1.bf16.msra.mxu0 %v2547
        %2572 = vmatprep.subr.bf16.mxu0 0
        %2573 = vmatpush1.bf16.msra.mxu0 0
        %2574 = vmatprep.subr.bf16.mxu0 0
        %2575 = vmatpush1.bf16.msra.mxu0 0
        %2576 = vmatprep.subr.bf16.mxu0 0
        %2577 = vmatpush1.bf16.msra.mxu0 0
        %2578 = vmatprep.subr.bf16.mxu0 0
        %2579 = vmatpush1.bf16.msra.mxu0 0
        %2580 = vmatprep.subr.bf16.mxu0 0
        %2581 = vmatpush1.bf16.msra.mxu0 0
        %2582 = vmatprep.subr.bf16.mxu0 0
        %2583 = vmatpush1.bf16.msra.mxu0 0
        %2584 = vmatprep.subr.bf16.mxu0 0
        %2585 = vmatpush1.bf16.msra.mxu0 0
        %2586 = vmatprep.subr.bf16.mxu0 0
        %2587 = vmatpush1.bf16.msra.mxu0 0
        %2588 = vmatprep.mubr.bf16.mxu0 0
        %2589 = vmatmul.mubr.bf16.gmra.mrb[0].mxu0 %v2487
        %v2590 = vpop.f32.mrb[0].mxu0
        %v2591 = vadd.f32 0.0, %v2590
        %v2592 = vpop.f32.mrb[0].mxu0
        %v2593 = vpop.f32.mrb[0].mxu0
        %v2594 = vadd.f32 0.0, %v2593
        %v2595 = vpop.f32.mrb[0].mxu0
        %2596 = vmatprep.mubr.bf16.mxu0 0
        %2597 = vmatmul.mubr.bf16.gmra.mrb[0].mxu0 %v2488
        %v2598 = vpop.f32.mrb[0].mxu0
        %v2599 = vadd.f32 0.0, %v2598
        %v2600 = vpop.f32.mrb[0].mxu0
        %v2601 = vpop.f32.mrb[0].mxu0
        %v2602 = vadd.f32 0.0, %v2601
        %v2603 = vpop.f32.mrb[0].mxu0
        %2604 = vmatprep.mubr.bf16.mxu0 0
        %2605 = vmatmul.mubr.bf16.gmra.mrb[0].mxu0 %v2489
        %v2606 = vpop.f32.mrb[0].mxu0
        %v2607 = vadd.f32 0.0, %v2606
        %v2608 = vpop.f32.mrb[0].mxu0
        %v2609 = vpop.f32.mrb[0].mxu0
        %v2610 = vadd.f32 0.0, %v2609
        %v2611 = vpop.f32.mrb[0].mxu0
        %2612 = vmatprep.mubr.bf16.mxu0 0
        %2613 = vmatmul.mubr.bf16.gmra.mrb[0].mxu0 %v2490
        %v2614 = vpop.f32.mrb[0].mxu0
        %v2615 = vadd.f32 0.0, %v2614
        %v2616 = vpop.f32.mrb[0].mxu0
        %v2617 = vpop.f32.mrb[0].mxu0
        %v2618 = vadd.f32 0.0, %v2617
        %v2619 = vpop.f32.mrb[0].mxu0
        %2620 = vdwg.mxu0
        %v2621 = vadd.f32 %v2351, %v2591
        %v2622 = vadd.f32 %v2354, %v2594
        %v2623 = vadd.f32 %v2359, %v2599
        %v2624 = vadd.f32 %v2362, %v2602
        %v2625 = vadd.f32 %v2367, %v2607
        %v2626 = vadd.f32 %v2370, %v2610
        %v2627 = vadd.f32 %v2375, %v2615
        %v2628 = vadd.f32 %v2378, %v2618
        %2629 = vmatprep.subr.bf16.mxu0 0
        %2630 = vmatpush1.bf16.msra.mxu0 %v1980
        %2631 = vmatprep.subr.bf16.mxu0 0
        %2632 = vmatpush1.bf16.msra.mxu0 %v1981
        %2633 = vmatprep.subr.bf16.mxu0 0
        %2634 = vmatpush1.bf16.msra.mxu0 %v1982
        %2635 = vmatprep.subr.bf16.mxu0 0
        %2636 = vmatpush1.bf16.msra.mxu0 %v1983
        %2637 = vmatprep.subr.bf16.mxu0 0
        %2638 = vmatpush1.bf16.msra.mxu0 0
        %2639 = vmatprep.subr.bf16.mxu0 0
        %2640 = vmatpush1.bf16.msra.mxu0 0
        %2641 = vmatprep.subr.bf16.mxu0 0
        %2642 = vmatpush1.bf16.msra.mxu0 0
        %2643 = vmatprep.subr.bf16.mxu0 0
        %2644 = vmatpush1.bf16.msra.mxu0 0
        %2645 = vmatprep.subr.bf16.mxu0 0
        %2646 = vmatpush1.bf16.msra.mxu0 0
        %2647 = vmatprep.subr.bf16.mxu0 0
        %2648 = vmatpush1.bf16.msra.mxu0 0
        %2649 = vmatprep.subr.bf16.mxu0 0
        %2650 = vmatpush1.bf16.msra.mxu0 0
        %2651 = vmatprep.subr.bf16.mxu0 0
        %2652 = vmatpush1.bf16.msra.mxu0 0
        %2653 = vmatprep.subr.bf16.mxu0 0
        %2654 = vmatpush1.bf16.msra.mxu0 0
        %2655 = vmatprep.subr.bf16.mxu0 0
        %2656 = vmatpush1.bf16.msra.mxu0 0
        %2657 = vmatprep.subr.bf16.mxu0 0
        %2658 = vmatpush1.bf16.msra.mxu0 0
        %2659 = vmatprep.subr.bf16.mxu0 0
        %2660 = vmatpush1.bf16.msra.mxu0 0
        %2661 = vmatprep.mubr.bf16.mxu0 0
        %2662 = vmatmul.mubr.bf16.gmra.mrb[0].mxu0 %v1048
        %v2663 = vpop.f32.mrb[0].mxu0
        %v2664 = vadd.f32 0.0, %v2663
        %v2665 = vpop.f32.mrb[0].mxu0
        %v2666 = vpop.f32.mrb[0].mxu0
        %v2667 = vadd.f32 0.0, %v2666
        %v2668 = vpop.f32.mrb[0].mxu0
        %2669 = vmatprep.mubr.bf16.mxu0 0
        %2670 = vmatmul.mubr.bf16.gmra.mrb[0].mxu0 %v1051
        %v2671 = vpop.f32.mrb[0].mxu0
        %v2672 = vadd.f32 0.0, %v2671
        %v2673 = vpop.f32.mrb[0].mxu0
        %v2674 = vpop.f32.mrb[0].mxu0
        %v2675 = vadd.f32 0.0, %v2674
        %v2676 = vpop.f32.mrb[0].mxu0
        %2677 = vmatprep.mubr.bf16.mxu0 0
        %2678 = vmatmul.mubr.bf16.gmra.mrb[0].mxu0 %v1054
        %v2679 = vpop.f32.mrb[0].mxu0
        %v2680 = vadd.f32 0.0, %v2679
        %v2681 = vpop.f32.mrb[0].mxu0
        %v2682 = vpop.f32.mrb[0].mxu0
        %v2683 = vadd.f32 0.0, %v2682
        %v2684 = vpop.f32.mrb[0].mxu0
        %2685 = vmatprep.mubr.bf16.mxu0 0
        %2686 = vmatmul.mubr.bf16.gmra.mrb[0].mxu0 %v1057
        %v2687 = vpop.f32.mrb[0].mxu0
        %v2688 = vadd.f32 0.0, %v2687
        %v2689 = vpop.f32.mrb[0].mxu0
        %v2690 = vpop.f32.mrb[0].mxu0
        %v2691 = vadd.f32 0.0, %v2690
        %v2692 = vpop.f32.mrb[0].mxu0
        %2693 = vdwg.mxu0
        %v2694 = vpack.c.bf16 %v2667, %v2664
        %v2695 = vpack.c.bf16 %v2675, %v2672
        %v2696 = vpack.c.bf16 %v2683, %v2680
        %v2697 = vpack.c.bf16 %v2691, %v2688
        %s2698 = scalar_lea.vmem %s7, 192
        %v2699 = vld [vmem:[%s2698] sm:$0xf]
        %v2700 = vld [vmem:[%s2698 + $0x4] sm:$0xf]
        %v2701 = vld [vmem:[%s2698 + $0x8] sm:$0xf]
        %v2702 = vld [vmem:[%s2698 + $0xc] sm:$0xf]
        %v2703 = vld [vmem:[%s2698 + $0x10] sm:$0xf]
        %v2704 = vld [vmem:[%s2698 + $0x14] sm:$0xf]
        %v2705 = vld [vmem:[%s2698 + $0x18] sm:$0xf]
        %v2706 = vld [vmem:[%s2698 + $0x1c] sm:$0xf]
        %v2707 = vld [vmem:[%s2698 + $0x20] sm:$0xf]
        %v2708 = vld [vmem:[%s2698 + $0x24] sm:$0xf]
        %v2709 = vld [vmem:[%s2698 + $0x28] sm:$0xf]
        %v2710 = vld [vmem:[%s2698 + $0x2c] sm:$0xf]
        %v2711 = vld [vmem:[%s2698 + $0x30] sm:$0xf]
        %v2712 = vld [vmem:[%s2698 + $0x34] sm:$0xf]
        %v2713 = vld [vmem:[%s2698 + $0x38] sm:$0xf]
        %v2714 = vld [vmem:[%s2698 + $0x3c] sm:$0xf]
        %v2731 = vunpack.c.l.b16 %v2699
        %v2732 = vunpack.c.l.b16 %v2700
        %v2733 = vunpack.c.l.b16 %v2701
        %v2734 = vunpack.c.l.b16 %v2702
        %v2735 = vunpack.c.l.b16 %v2703
        %v2736 = vunpack.c.l.b16 %v2704
        %v2737 = vunpack.c.l.b16 %v2705
        %v2738 = vunpack.c.l.b16 %v2706
        %v2739 = vunpack.c.l.b16 %v2707
        %v2740 = vunpack.c.l.b16 %v2708
        %v2741 = vunpack.c.l.b16 %v2709
        %v2742 = vunpack.c.l.b16 %v2710
        %v2743 = vunpack.c.l.b16 %v2711
        %v2744 = vunpack.c.l.b16 %v2712
        %v2745 = vunpack.c.l.b16 %v2713
        %v2746 = vunpack.c.l.b16 %v2714
        %v2747 = vpack.c.b16 %v2732, %v2731
        %v2748 = vpack.c.b16 %v2734, %v2733
        %v2749 = vpack.c.b16 %v2736, %v2735
        %v2750 = vpack.c.b16 %v2738, %v2737
        %v2751 = vpack.c.b16 %v2740, %v2739
        %v2752 = vpack.c.b16 %v2742, %v2741
        %v2753 = vpack.c.b16 %v2744, %v2743
        %v2754 = vpack.c.b16 %v2746, %v2745
        %2763 = vmatprep.subr.bf16.mxu0 0
        %2764 = vmatpush1.bf16.msra.mxu0 %v2747
        %2765 = vmatprep.subr.bf16.mxu0 0
        %2766 = vmatpush1.bf16.msra.mxu0 %v2748
        %2767 = vmatprep.subr.bf16.mxu0 0
        %2768 = vmatpush1.bf16.msra.mxu0 %v2749
        %2769 = vmatprep.subr.bf16.mxu0 0
        %2770 = vmatpush1.bf16.msra.mxu0 %v2750
        %2771 = vmatprep.subr.bf16.mxu0 0
        %2772 = vmatpush1.bf16.msra.mxu0 %v2751
        %2773 = vmatprep.subr.bf16.mxu0 0
        %2774 = vmatpush1.bf16.msra.mxu0 %v2752
        %2775 = vmatprep.subr.bf16.mxu0 0
        %2776 = vmatpush1.bf16.msra.mxu0 %v2753
        %2777 = vmatprep.subr.bf16.mxu0 0
        %2778 = vmatpush1.bf16.msra.mxu0 %v2754
        %2779 = vmatprep.subr.bf16.mxu0 0
        %2780 = vmatpush1.bf16.msra.mxu0 0
        %2781 = vmatprep.subr.bf16.mxu0 0
        %2782 = vmatpush1.bf16.msra.mxu0 0
        %2783 = vmatprep.subr.bf16.mxu0 0
        %2784 = vmatpush1.bf16.msra.mxu0 0
        %2785 = vmatprep.subr.bf16.mxu0 0
        %2786 = vmatpush1.bf16.msra.mxu0 0
        %2787 = vmatprep.subr.bf16.mxu0 0
        %2788 = vmatpush1.bf16.msra.mxu0 0
        %2789 = vmatprep.subr.bf16.mxu0 0
        %2790 = vmatpush1.bf16.msra.mxu0 0
        %2791 = vmatprep.subr.bf16.mxu0 0
        %2792 = vmatpush1.bf16.msra.mxu0 0
        %2793 = vmatprep.subr.bf16.mxu0 0
        %2794 = vmatpush1.bf16.msra.mxu0 0
        %2795 = vmatprep.mubr.bf16.mxu0 0
        %2796 = vmatmul.mubr.bf16.gmra.mrb[0].mxu0 %v2694
        %v2797 = vpop.f32.mrb[0].mxu0
        %v2798 = vadd.f32 0.0, %v2797
        %v2799 = vpop.f32.mrb[0].mxu0
        %v2800 = vpop.f32.mrb[0].mxu0
        %v2801 = vadd.f32 0.0, %v2800
        %v2802 = vpop.f32.mrb[0].mxu0
        %2803 = vmatprep.mubr.bf16.mxu0 0
        %2804 = vmatmul.mubr.bf16.gmra.mrb[0].mxu0 %v2695
        %v2805 = vpop.f32.mrb[0].mxu0
        %v2806 = vadd.f32 0.0, %v2805
        %v2807 = vpop.f32.mrb[0].mxu0
        %v2808 = vpop.f32.mrb[0].mxu0
        %v2809 = vadd.f32 0.0, %v2808
        %v2810 = vpop.f32.mrb[0].mxu0
        %2811 = vmatprep.mubr.bf16.mxu0 0
        %2812 = vmatmul.mubr.bf16.gmra.mrb[0].mxu0 %v2696
        %v2813 = vpop.f32.mrb[0].mxu0
        %v2814 = vadd.f32 0.0, %v2813
        %v2815 = vpop.f32.mrb[0].mxu0
        %v2816 = vpop.f32.mrb[0].mxu0
        %v2817 = vadd.f32 0.0, %v2816
        %v2818 = vpop.f32.mrb[0].mxu0
        %2819 = vmatprep.mubr.bf16.mxu0 0
        %2820 = vmatmul.mubr.bf16.gmra.mrb[0].mxu0 %v2697
        %v2821 = vpop.f32.mrb[0].mxu0
        %v2822 = vadd.f32 0.0, %v2821
        %v2823 = vpop.f32.mrb[0].mxu0
        %v2824 = vpop.f32.mrb[0].mxu0
        %v2825 = vadd.f32 0.0, %v2824
        %v2826 = vpop.f32.mrb[0].mxu0
        %2827 = vdwg.mxu0
        %v2828 = vadd.f32 %v2621, %v2798
        %v2829 = vadd.f32 %v2622, %v2801
        %v2830 = vadd.f32 %v2623, %v2806
        %v2831 = vadd.f32 %v2624, %v2809
        %v2832 = vadd.f32 %v2625, %v2814
        %v2833 = vadd.f32 %v2626, %v2817
        %v2834 = vadd.f32 %v2627, %v2822
        %v2835 = vadd.f32 %v2628, %v2825
        %s2836 = scalar_lea.vmem %s7, 256
        %v2837 = vld [vmem:[%s2836] sm:$0xf]
        %v2838 = vld [vmem:[%s2836 + $0x4] sm:$0xf]
        %v2839 = vld [vmem:[%s2836 + $0x8] sm:$0xf]
        %v2840 = vld [vmem:[%s2836 + $0xc] sm:$0xf]
        %v2841 = vld [vmem:[%s2836 + $0x10] sm:$0xf]
        %v2842 = vld [vmem:[%s2836 + $0x14] sm:$0xf]
        %v2843 = vld [vmem:[%s2836 + $0x18] sm:$0xf]
        %v2844 = vld [vmem:[%s2836 + $0x1c] sm:$0xf]
        %v2845 = vld [vmem:[%s2836 + $0x20] sm:$0xf]
        %v2846 = vld [vmem:[%s2836 + $0x24] sm:$0xf]
        %v2847 = vld [vmem:[%s2836 + $0x28] sm:$0xf]
        %v2848 = vld [vmem:[%s2836 + $0x2c] sm:$0xf]
        %v2849 = vld [vmem:[%s2836 + $0x30] sm:$0xf]
        %v2850 = vld [vmem:[%s2836 + $0x34] sm:$0xf]
        %v2851 = vld [vmem:[%s2836 + $0x38] sm:$0xf]
        %v2852 = vld [vmem:[%s2836 + $0x3c] sm:$0xf]
        %v2869 = vunpack.c.l.b16 %v2837
        %v2870 = vunpack.c.l.b16 %v2838
        %v2871 = vunpack.c.l.b16 %v2839
        %v2872 = vunpack.c.l.b16 %v2840
        %v2873 = vunpack.c.l.b16 %v2841
        %v2874 = vunpack.c.l.b16 %v2842
        %v2875 = vunpack.c.l.b16 %v2843
        %v2876 = vunpack.c.l.b16 %v2844
        %v2877 = vunpack.c.l.b16 %v2845
        %v2878 = vunpack.c.l.b16 %v2846
        %v2879 = vunpack.c.l.b16 %v2847
        %v2880 = vunpack.c.l.b16 %v2848
        %v2881 = vunpack.c.l.b16 %v2849
        %v2882 = vunpack.c.l.b16 %v2850
        %v2883 = vunpack.c.l.b16 %v2851
        %v2884 = vunpack.c.l.b16 %v2852
        %v2885 = vpack.c.b16 %v2870, %v2869
        %v2886 = vpack.c.b16 %v2872, %v2871
        %v2887 = vpack.c.b16 %v2874, %v2873
        %v2888 = vpack.c.b16 %v2876, %v2875
        %v2889 = vpack.c.b16 %v2878, %v2877
        %v2890 = vpack.c.b16 %v2880, %v2879
        %v2891 = vpack.c.b16 %v2882, %v2881
        %v2892 = vpack.c.b16 %v2884, %v2883
        %2901 = vmatprep.subr.bf16.mxu0 0
        %2902 = vmatpush1.bf16.msra.mxu0 %v2885
        %2903 = vmatprep.subr.bf16.mxu0 0
        %2904 = vmatpush1.bf16.msra.mxu0 %v2886
        %2905 = vmatprep.subr.bf16.mxu0 0
        %2906 = vmatpush1.bf16.msra.mxu0 %v2887
        %2907 = vmatprep.subr.bf16.mxu0 0
        %2908 = vmatpush1.bf16.msra.mxu0 %v2888
        %2909 = vmatprep.subr.bf16.mxu0 0
        %2910 = vmatpush1.bf16.msra.mxu0 %v2889
        %2911 = vmatprep.subr.bf16.mxu0 0
        %2912 = vmatpush1.bf16.msra.mxu0 %v2890
        %2913 = vmatprep.subr.bf16.mxu0 0
        %2914 = vmatpush1.bf16.msra.mxu0 %v2891
        %2915 = vmatprep.subr.bf16.mxu0 0
        %2916 = vmatpush1.bf16.msra.mxu0 %v2892
        %2917 = vmatprep.subr.bf16.mxu0 0
        %2918 = vmatpush1.bf16.msra.mxu0 0
        %2919 = vmatprep.subr.bf16.mxu0 0
        %2920 = vmatpush1.bf16.msra.mxu0 0
        %2921 = vmatprep.subr.bf16.mxu0 0
        %2922 = vmatpush1.bf16.msra.mxu0 0
        %2923 = vmatprep.subr.bf16.mxu0 0
        %2924 = vmatpush1.bf16.msra.mxu0 0
        %2925 = vmatprep.subr.bf16.mxu0 0
        %2926 = vmatpush1.bf16.msra.mxu0 0
        %2927 = vmatprep.subr.bf16.mxu0 0
        %2928 = vmatpush1.bf16.msra.mxu0 0
        %2929 = vmatprep.subr.bf16.mxu0 0
        %2930 = vmatpush1.bf16.msra.mxu0 0
        %2931 = vmatprep.subr.bf16.mxu0 0
        %2932 = vmatpush1.bf16.msra.mxu0 0
        %2933 = vmatprep.mubr.bf16.mxu0 0
        %2934 = vmatmul.mubr.bf16.gmra.mrb[0].mxu0 %v1980
        %v2935 = vpop.f32.mrb[0].mxu0
        %v2936 = vadd.f32 0.0, %v2935
        %v2937 = vpop.f32.mrb[0].mxu0
        %v2938 = vpop.f32.mrb[0].mxu0
        %v2939 = vadd.f32 0.0, %v2938
        %v2940 = vpop.f32.mrb[0].mxu0
        %2941 = vmatprep.mubr.bf16.mxu0 0
        %2942 = vmatmul.mubr.bf16.gmra.mrb[0].mxu0 %v1981
        %v2943 = vpop.f32.mrb[0].mxu0
        %v2944 = vadd.f32 0.0, %v2943
        %v2945 = vpop.f32.mrb[0].mxu0
        %v2946 = vpop.f32.mrb[0].mxu0
        %v2947 = vadd.f32 0.0, %v2946
        %v2948 = vpop.f32.mrb[0].mxu0
        %2949 = vmatprep.mubr.bf16.mxu0 0
        %2950 = vmatmul.mubr.bf16.gmra.mrb[0].mxu0 %v1982
        %v2951 = vpop.f32.mrb[0].mxu0
        %v2952 = vadd.f32 0.0, %v2951
        %v2953 = vpop.f32.mrb[0].mxu0
        %v2954 = vpop.f32.mrb[0].mxu0
        %v2955 = vadd.f32 0.0, %v2954
        %v2956 = vpop.f32.mrb[0].mxu0
        %2957 = vmatprep.mubr.bf16.mxu0 0
        %2958 = vmatmul.mubr.bf16.gmra.mrb[0].mxu0 %v1983
        %v2959 = vpop.f32.mrb[0].mxu0
        %v2960 = vadd.f32 0.0, %v2959
        %v2961 = vpop.f32.mrb[0].mxu0
        %v2962 = vpop.f32.mrb[0].mxu0
        %v2963 = vadd.f32 0.0, %v2962
        %v2964 = vpop.f32.mrb[0].mxu0
        %2965 = vdwg.mxu0
        %v2966 = vadd.f32 %v2828, %v2936
        %v2967 = vadd.f32 %v2829, %v2939
        %v2968 = vadd.f32 %v2830, %v2944
        %v2969 = vadd.f32 %v2831, %v2947
        %v2970 = vadd.f32 %v2832, %v2952
        %v2971 = vadd.f32 %v2833, %v2955
        %v2972 = vadd.f32 %v2834, %v2960
        %v2973 = vadd.f32 %v2835, %v2963
        %s2974 = scalar_lea.vmem %s1, 160
        %v2975 = vld [vmem:[%s2974] sm:$0xf]
        %v2976 = vld [vmem:[%s2974 + $0x4] sm:$0xf]
        %v2977 = vld [vmem:[%s2974 + $0x8] sm:$0xf]
        %v2978 = vld [vmem:[%s2974 + $0xc] sm:$0xf]
        %v2979 = vld [vmem:[%s2974 + $0x10] sm:$0xf]
        %v2980 = vld [vmem:[%s2974 + $0x14] sm:$0xf]
        %v2981 = vld [vmem:[%s2974 + $0x18] sm:$0xf]
        %v2982 = vld [vmem:[%s2974 + $0x1c] sm:$0xf]
        %v2991 = vunpack.c.l.b16 %v2975
        %v2992 = vunpack.c.l.b16 %v2976
        %v2993 = vunpack.c.l.b16 %v2977
        %v2994 = vunpack.c.l.b16 %v2978
        %v2995 = vunpack.c.l.b16 %v2979
        %v2996 = vunpack.c.l.b16 %v2980
        %v2997 = vunpack.c.l.b16 %v2981
        %v2998 = vunpack.c.l.b16 %v2982
        %v2999 = vpack.c.b16 %v2992, %v2991
        %v3000 = vpack.c.b16 %v2994, %v2993
        %v3001 = vpack.c.b16 %v2996, %v2995
        %v3002 = vpack.c.b16 %v2998, %v2997
        %v3004 = vsel %vm1046, %v2999, 0
        %v3007 = vsel %vm1046, %v3000, 0
        %v3010 = vsel %vm1046, %v3001, 0
        %v3013 = vsel %vm1046, %v3002, 0
        %3015 = vmatprep.subr.bf16.mxu0 0
        %3016 = vmatpush1.bf16.msra.mxu0 %v1980
        %3017 = vmatprep.subr.bf16.mxu0 0
        %3018 = vmatpush1.bf16.msra.mxu0 %v1981
        %3019 = vmatprep.subr.bf16.mxu0 0
        %3020 = vmatpush1.bf16.msra.mxu0 %v1982
        %3021 = vmatprep.subr.bf16.mxu0 0
        %3022 = vmatpush1.bf16.msra.mxu0 %v1983
        %3023 = vmatprep.subr.bf16.mxu0 0
        %3024 = vmatpush1.bf16.msra.mxu0 0
        %3025 = vmatprep.subr.bf16.mxu0 0
        %3026 = vmatpush1.bf16.msra.mxu0 0
        %3027 = vmatprep.subr.bf16.mxu0 0
        %3028 = vmatpush1.bf16.msra.mxu0 0
        %3029 = vmatprep.subr.bf16.mxu0 0
        %3030 = vmatpush1.bf16.msra.mxu0 0
        %3031 = vmatprep.subr.bf16.mxu0 0
        %3032 = vmatpush1.bf16.msra.mxu0 0
        %3033 = vmatprep.subr.bf16.mxu0 0
        %3034 = vmatpush1.bf16.msra.mxu0 0
        %3035 = vmatprep.subr.bf16.mxu0 0
        %3036 = vmatpush1.bf16.msra.mxu0 0
        %3037 = vmatprep.subr.bf16.mxu0 0
        %3038 = vmatpush1.bf16.msra.mxu0 0
        %3039 = vmatprep.subr.bf16.mxu0 0
        %3040 = vmatpush1.bf16.msra.mxu0 0
        %3041 = vmatprep.subr.bf16.mxu0 0
        %3042 = vmatpush1.bf16.msra.mxu0 0
        %3043 = vmatprep.subr.bf16.mxu0 0
        %3044 = vmatpush1.bf16.msra.mxu0 0
        %3045 = vmatprep.subr.bf16.mxu0 0
        %3046 = vmatpush1.bf16.msra.mxu0 0
        %3047 = vmatprep.mubr.bf16.mxu0 0
        %3048 = vmatmul.mubr.bf16.gmra.mrb[0].mxu0 %v3004
        %v3049 = vpop.f32.mrb[0].mxu0
        %v3050 = vadd.f32 0.0, %v3049
        %v3051 = vpop.f32.mrb[0].mxu0
        %v3052 = vpop.f32.mrb[0].mxu0
        %v3053 = vadd.f32 0.0, %v3052
        %v3054 = vpop.f32.mrb[0].mxu0
        %3055 = vmatprep.mubr.bf16.mxu0 0
        %3056 = vmatmul.mubr.bf16.gmra.mrb[0].mxu0 %v3007
        %v3057 = vpop.f32.mrb[0].mxu0
        %v3058 = vadd.f32 0.0, %v3057
        %v3059 = vpop.f32.mrb[0].mxu0
        %v3060 = vpop.f32.mrb[0].mxu0
        %v3061 = vadd.f32 0.0, %v3060
        %v3062 = vpop.f32.mrb[0].mxu0
        %3063 = vmatprep.mubr.bf16.mxu0 0
        %3064 = vmatmul.mubr.bf16.gmra.mrb[0].mxu0 %v3010
        %v3065 = vpop.f32.mrb[0].mxu0
        %v3066 = vadd.f32 0.0, %v3065
        %v3067 = vpop.f32.mrb[0].mxu0
        %v3068 = vpop.f32.mrb[0].mxu0
        %v3069 = vadd.f32 0.0, %v3068
        %v3070 = vpop.f32.mrb[0].mxu0
        %3071 = vmatprep.mubr.bf16.mxu0 0
        %3072 = vmatmul.mubr.bf16.gmra.mrb[0].mxu0 %v3013
        %v3073 = vpop.f32.mrb[0].mxu0
        %v3074 = vadd.f32 0.0, %v3073
        %v3075 = vpop.f32.mrb[0].mxu0
        %v3076 = vpop.f32.mrb[0].mxu0
        %v3077 = vadd.f32 0.0, %v3076
        %v3078 = vpop.f32.mrb[0].mxu0
        %3079 = vdwg.mxu0
        %v3080 = vpack.c.bf16 %v3053, %v3050
        %v3081 = vpack.c.bf16 %v3061, %v3058
        %v3082 = vpack.c.bf16 %v3069, %v3066
        %v3083 = vpack.c.bf16 %v3077, %v3074
        %s3084 = scalar_lea.vmem %s7, 320
        %v3085 = vld [vmem:[%s3084] sm:$0xf]
        %v3086 = vld [vmem:[%s3084 + $0x4] sm:$0xf]
        %v3087 = vld [vmem:[%s3084 + $0x8] sm:$0xf]
        %v3088 = vld [vmem:[%s3084 + $0xc] sm:$0xf]
        %v3089 = vld [vmem:[%s3084 + $0x10] sm:$0xf]
        %v3090 = vld [vmem:[%s3084 + $0x14] sm:$0xf]
        %v3091 = vld [vmem:[%s3084 + $0x18] sm:$0xf]
        %v3092 = vld [vmem:[%s3084 + $0x1c] sm:$0xf]
        %v3093 = vld [vmem:[%s3084 + $0x20] sm:$0xf]
        %v3094 = vld [vmem:[%s3084 + $0x24] sm:$0xf]
        %v3095 = vld [vmem:[%s3084 + $0x28] sm:$0xf]
        %v3096 = vld [vmem:[%s3084 + $0x2c] sm:$0xf]
        %v3097 = vld [vmem:[%s3084 + $0x30] sm:$0xf]
        %v3098 = vld [vmem:[%s3084 + $0x34] sm:$0xf]
        %v3099 = vld [vmem:[%s3084 + $0x38] sm:$0xf]
        %v3100 = vld [vmem:[%s3084 + $0x3c] sm:$0xf]
        %v3117 = vunpack.c.l.b16 %v3085
        %v3118 = vunpack.c.l.b16 %v3086
        %v3119 = vunpack.c.l.b16 %v3087
        %v3120 = vunpack.c.l.b16 %v3088
        %v3121 = vunpack.c.l.b16 %v3089
        %v3122 = vunpack.c.l.b16 %v3090
        %v3123 = vunpack.c.l.b16 %v3091
        %v3124 = vunpack.c.l.b16 %v3092
        %v3125 = vunpack.c.l.b16 %v3093
        %v3126 = vunpack.c.l.b16 %v3094
        %v3127 = vunpack.c.l.b16 %v3095
        %v3128 = vunpack.c.l.b16 %v3096
        %v3129 = vunpack.c.l.b16 %v3097
        %v3130 = vunpack.c.l.b16 %v3098
        %v3131 = vunpack.c.l.b16 %v3099
        %v3132 = vunpack.c.l.b16 %v3100
        %v3133 = vpack.c.b16 %v3118, %v3117
        %v3134 = vpack.c.b16 %v3120, %v3119
        %v3135 = vpack.c.b16 %v3122, %v3121
        %v3136 = vpack.c.b16 %v3124, %v3123
        %v3137 = vpack.c.b16 %v3126, %v3125
        %v3138 = vpack.c.b16 %v3128, %v3127
        %v3139 = vpack.c.b16 %v3130, %v3129
        %v3140 = vpack.c.b16 %v3132, %v3131
        %3149 = vmatprep.subr.bf16.mxu0 0
        %3150 = vmatpush1.bf16.msra.mxu0 %v3133
        %3151 = vmatprep.subr.bf16.mxu0 0
        %3152 = vmatpush1.bf16.msra.mxu0 %v3134
        %3153 = vmatprep.subr.bf16.mxu0 0
        %3154 = vmatpush1.bf16.msra.mxu0 %v3135
        %3155 = vmatprep.subr.bf16.mxu0 0
        %3156 = vmatpush1.bf16.msra.mxu0 %v3136
        %3157 = vmatprep.subr.bf16.mxu0 0
        %3158 = vmatpush1.bf16.msra.mxu0 %v3137
        %3159 = vmatprep.subr.bf16.mxu0 0
        %3160 = vmatpush1.bf16.msra.mxu0 %v3138
        %3161 = vmatprep.subr.bf16.mxu0 0
        %3162 = vmatpush1.bf16.msra.mxu0 %v3139
        %3163 = vmatprep.subr.bf16.mxu0 0
        %3164 = vmatpush1.bf16.msra.mxu0 %v3140
        %3165 = vmatprep.subr.bf16.mxu0 0
        %3166 = vmatpush1.bf16.msra.mxu0 0
        %3167 = vmatprep.subr.bf16.mxu0 0
        %3168 = vmatpush1.bf16.msra.mxu0 0
        %3169 = vmatprep.subr.bf16.mxu0 0
        %3170 = vmatpush1.bf16.msra.mxu0 0
        %3171 = vmatprep.subr.bf16.mxu0 0
        %3172 = vmatpush1.bf16.msra.mxu0 0
        %3173 = vmatprep.subr.bf16.mxu0 0
        %3174 = vmatpush1.bf16.msra.mxu0 0
        %3175 = vmatprep.subr.bf16.mxu0 0
        %3176 = vmatpush1.bf16.msra.mxu0 0
        %3177 = vmatprep.subr.bf16.mxu0 0
        %3178 = vmatpush1.bf16.msra.mxu0 0
        %3179 = vmatprep.subr.bf16.mxu0 0
        %3180 = vmatpush1.bf16.msra.mxu0 0
        %3181 = vmatprep.mubr.bf16.mxu0 0
        %3182 = vmatmul.mubr.bf16.gmra.mrb[0].mxu0 %v3080
        %v3183 = vpop.f32.mrb[0].mxu0
        %v3184 = vadd.f32 0.0, %v3183
        %v3185 = vpop.f32.mrb[0].mxu0
        %v3186 = vpop.f32.mrb[0].mxu0
        %v3187 = vadd.f32 0.0, %v3186
        %v3188 = vpop.f32.mrb[0].mxu0
        %3189 = vmatprep.mubr.bf16.mxu0 0
        %3190 = vmatmul.mubr.bf16.gmra.mrb[0].mxu0 %v3081
        %v3191 = vpop.f32.mrb[0].mxu0
        %v3192 = vadd.f32 0.0, %v3191
        %v3193 = vpop.f32.mrb[0].mxu0
        %v3194 = vpop.f32.mrb[0].mxu0
        %v3195 = vadd.f32 0.0, %v3194
        %v3196 = vpop.f32.mrb[0].mxu0
        %3197 = vmatprep.mubr.bf16.mxu0 0
        %3198 = vmatmul.mubr.bf16.gmra.mrb[0].mxu0 %v3082
        %v3199 = vpop.f32.mrb[0].mxu0
        %v3200 = vadd.f32 0.0, %v3199
        %v3201 = vpop.f32.mrb[0].mxu0
        %v3202 = vpop.f32.mrb[0].mxu0
        %v3203 = vadd.f32 0.0, %v3202
        %v3204 = vpop.f32.mrb[0].mxu0
        %3205 = vmatprep.mubr.bf16.mxu0 0
        %3206 = vmatmul.mubr.bf16.gmra.mrb[0].mxu0 %v3083
        %v3207 = vpop.f32.mrb[0].mxu0
        %v3208 = vadd.f32 0.0, %v3207
        %v3209 = vpop.f32.mrb[0].mxu0
        %v3210 = vpop.f32.mrb[0].mxu0
        %v3211 = vadd.f32 0.0, %v3210
        %v3212 = vpop.f32.mrb[0].mxu0
        %3213 = vdwg.mxu0
        %v3214 = vadd.f32 %v2966, %v3184
        %v3215 = vadd.f32 %v2967, %v3187
        %v3216 = vadd.f32 %v2968, %v3192
        %v3217 = vadd.f32 %v2969, %v3195
        %v3218 = vadd.f32 %v2970, %v3200
        %v3219 = vadd.f32 %v2971, %v3203
        %v3220 = vadd.f32 %v2972, %v3208
        %v3221 = vadd.f32 %v2973, %v3211
        %s3222 = scalar_lea.vmem %s1, 192
        %v3223 = vld [vmem:[%s3222] sm:$0xf]
        %v3224 = vld [vmem:[%s3222 + $0x4] sm:$0xf]
        %v3225 = vld [vmem:[%s3222 + $0x8] sm:$0xf]
        %v3226 = vld [vmem:[%s3222 + $0xc] sm:$0xf]
        %v3227 = vld [vmem:[%s3222 + $0x10] sm:$0xf]
        %v3228 = vld [vmem:[%s3222 + $0x14] sm:$0xf]
        %v3229 = vld [vmem:[%s3222 + $0x18] sm:$0xf]
        %v3230 = vld [vmem:[%s3222 + $0x1c] sm:$0xf]
        %v3239 = vunpack.c.l.b16 %v3223
        %v3240 = vunpack.c.l.b16 %v3224
        %v3241 = vunpack.c.l.b16 %v3225
        %v3242 = vunpack.c.l.b16 %v3226
        %v3243 = vunpack.c.l.b16 %v3227
        %v3244 = vunpack.c.l.b16 %v3228
        %v3245 = vunpack.c.l.b16 %v3229
        %v3246 = vunpack.c.l.b16 %v3230
        %v3247 = vpack.c.b16 %v3240, %v3239
        %v3248 = vpack.c.b16 %v3242, %v3241
        %v3249 = vpack.c.b16 %v3244, %v3243
        %v3250 = vpack.c.b16 %v3246, %v3245
        %v3252 = vsel %vm1046, %v3247, 0
        %v3255 = vsel %vm1046, %v3248, 0
        %v3258 = vsel %vm1046, %v3249, 0
        %v3261 = vsel %vm1046, %v3250, 0
        %3263 = vmatprep.subr.bf16.mxu0 0
        %3264 = vmatpush1.bf16.msra.mxu0 %v1980
        %3265 = vmatprep.subr.bf16.mxu0 0
        %3266 = vmatpush1.bf16.msra.mxu0 %v1981
        %3267 = vmatprep.subr.bf16.mxu0 0
        %3268 = vmatpush1.bf16.msra.mxu0 %v1982
        %3269 = vmatprep.subr.bf16.mxu0 0
        %3270 = vmatpush1.bf16.msra.mxu0 %v1983
        %3271 = vmatprep.subr.bf16.mxu0 0
        %3272 = vmatpush1.bf16.msra.mxu0 0
        %3273 = vmatprep.subr.bf16.mxu0 0
        %3274 = vmatpush1.bf16.msra.mxu0 0
        %3275 = vmatprep.subr.bf16.mxu0 0
        %3276 = vmatpush1.bf16.msra.mxu0 0
        %3277 = vmatprep.subr.bf16.mxu0 0
        %3278 = vmatpush1.bf16.msra.mxu0 0
        %3279 = vmatprep.subr.bf16.mxu0 0
        %3280 = vmatpush1.bf16.msra.mxu0 0
        %3281 = vmatprep.subr.bf16.mxu0 0
        %3282 = vmatpush1.bf16.msra.mxu0 0
        %3283 = vmatprep.subr.bf16.mxu0 0
        %3284 = vmatpush1.bf16.msra.mxu0 0
        %3285 = vmatprep.subr.bf16.mxu0 0
        %3286 = vmatpush1.bf16.msra.mxu0 0
        %3287 = vmatprep.subr.bf16.mxu0 0
        %3288 = vmatpush1.bf16.msra.mxu0 0
        %3289 = vmatprep.subr.bf16.mxu0 0
        %3290 = vmatpush1.bf16.msra.mxu0 0
        %3291 = vmatprep.subr.bf16.mxu0 0
        %3292 = vmatpush1.bf16.msra.mxu0 0
        %3293 = vmatprep.subr.bf16.mxu0 0
        %3294 = vmatpush1.bf16.msra.mxu0 0
        %3295 = vmatprep.mubr.bf16.mxu0 0
        %3296 = vmatmul.mubr.bf16.gmra.mrb[0].mxu0 %v3252
        %v3297 = vpop.f32.mrb[0].mxu0
        %v3298 = vadd.f32 0.0, %v3297
        %v3299 = vpop.f32.mrb[0].mxu0
        %v3300 = vpop.f32.mrb[0].mxu0
        %v3301 = vadd.f32 0.0, %v3300
        %v3302 = vpop.f32.mrb[0].mxu0
        %3303 = vmatprep.mubr.bf16.mxu0 0
        %3304 = vmatmul.mubr.bf16.gmra.mrb[0].mxu0 %v3255
        %v3305 = vpop.f32.mrb[0].mxu0
        %v3306 = vadd.f32 0.0, %v3305
        %v3307 = vpop.f32.mrb[0].mxu0
        %v3308 = vpop.f32.mrb[0].mxu0
        %v3309 = vadd.f32 0.0, %v3308
        %v3310 = vpop.f32.mrb[0].mxu0
        %3311 = vmatprep.mubr.bf16.mxu0 0
        %3312 = vmatmul.mubr.bf16.gmra.mrb[0].mxu0 %v3258
        %v3313 = vpop.f32.mrb[0].mxu0
        %v3314 = vadd.f32 0.0, %v3313
        %v3315 = vpop.f32.mrb[0].mxu0
        %v3316 = vpop.f32.mrb[0].mxu0
        %v3317 = vadd.f32 0.0, %v3316
        %v3318 = vpop.f32.mrb[0].mxu0
        %3319 = vmatprep.mubr.bf16.mxu0 0
        %3320 = vmatmul.mubr.bf16.gmra.mrb[0].mxu0 %v3261
        %v3321 = vpop.f32.mrb[0].mxu0
        %v3322 = vadd.f32 0.0, %v3321
        %v3323 = vpop.f32.mrb[0].mxu0
        %v3324 = vpop.f32.mrb[0].mxu0
        %v3325 = vadd.f32 0.0, %v3324
        %v3326 = vpop.f32.mrb[0].mxu0
        %3327 = vdwg.mxu0
        %v3328 = vpack.c.bf16 %v3301, %v3298
        %v3329 = vpack.c.bf16 %v3309, %v3306
        %v3330 = vpack.c.bf16 %v3317, %v3314
        %v3331 = vpack.c.bf16 %v3325, %v3322
        %s3332 = scalar_lea.vmem %s7, 384
        %v3333 = vld [vmem:[%s3332] sm:$0xf]
        %v3334 = vld [vmem:[%s3332 + $0x4] sm:$0xf]
        %v3335 = vld [vmem:[%s3332 + $0x8] sm:$0xf]
        %v3336 = vld [vmem:[%s3332 + $0xc] sm:$0xf]
        %v3337 = vld [vmem:[%s3332 + $0x10] sm:$0xf]
        %v3338 = vld [vmem:[%s3332 + $0x14] sm:$0xf]
        %v3339 = vld [vmem:[%s3332 + $0x18] sm:$0xf]
        %v3340 = vld [vmem:[%s3332 + $0x1c] sm:$0xf]
        %v3341 = vld [vmem:[%s3332 + $0x20] sm:$0xf]
        %v3342 = vld [vmem:[%s3332 + $0x24] sm:$0xf]
        %v3343 = vld [vmem:[%s3332 + $0x28] sm:$0xf]
        %v3344 = vld [vmem:[%s3332 + $0x2c] sm:$0xf]
        %v3345 = vld [vmem:[%s3332 + $0x30] sm:$0xf]
        %v3346 = vld [vmem:[%s3332 + $0x34] sm:$0xf]
        %v3347 = vld [vmem:[%s3332 + $0x38] sm:$0xf]
        %v3348 = vld [vmem:[%s3332 + $0x3c] sm:$0xf]
        %v3365 = vunpack.c.l.b16 %v3333
        %v3366 = vunpack.c.l.b16 %v3334
        %v3367 = vunpack.c.l.b16 %v3335
        %v3368 = vunpack.c.l.b16 %v3336
        %v3369 = vunpack.c.l.b16 %v3337
        %v3370 = vunpack.c.l.b16 %v3338
        %v3371 = vunpack.c.l.b16 %v3339
        %v3372 = vunpack.c.l.b16 %v3340
        %v3373 = vunpack.c.l.b16 %v3341
        %v3374 = vunpack.c.l.b16 %v3342
        %v3375 = vunpack.c.l.b16 %v3343
        %v3376 = vunpack.c.l.b16 %v3344
        %v3377 = vunpack.c.l.b16 %v3345
        %v3378 = vunpack.c.l.b16 %v3346
        %v3379 = vunpack.c.l.b16 %v3347
        %v3380 = vunpack.c.l.b16 %v3348
        %v3381 = vpack.c.b16 %v3366, %v3365
        %v3382 = vpack.c.b16 %v3368, %v3367
        %v3383 = vpack.c.b16 %v3370, %v3369
        %v3384 = vpack.c.b16 %v3372, %v3371
        %v3385 = vpack.c.b16 %v3374, %v3373
        %v3386 = vpack.c.b16 %v3376, %v3375
        %v3387 = vpack.c.b16 %v3378, %v3377
        %v3388 = vpack.c.b16 %v3380, %v3379
        %3397 = vmatprep.subr.bf16.mxu0 0
        %3398 = vmatpush1.bf16.msra.mxu0 %v3381
        %3399 = vmatprep.subr.bf16.mxu0 0
        %3400 = vmatpush1.bf16.msra.mxu0 %v3382
        %3401 = vmatprep.subr.bf16.mxu0 0
        %3402 = vmatpush1.bf16.msra.mxu0 %v3383
        %3403 = vmatprep.subr.bf16.mxu0 0
        %3404 = vmatpush1.bf16.msra.mxu0 %v3384
        %3405 = vmatprep.subr.bf16.mxu0 0
        %3406 = vmatpush1.bf16.msra.mxu0 %v3385
        %3407 = vmatprep.subr.bf16.mxu0 0
        %3408 = vmatpush1.bf16.msra.mxu0 %v3386
        %3409 = vmatprep.subr.bf16.mxu0 0
        %3410 = vmatpush1.bf16.msra.mxu0 %v3387
        %3411 = vmatprep.subr.bf16.mxu0 0
        %3412 = vmatpush1.bf16.msra.mxu0 %v3388
        %3413 = vmatprep.subr.bf16.mxu0 0
        %3414 = vmatpush1.bf16.msra.mxu0 0
        %3415 = vmatprep.subr.bf16.mxu0 0
        %3416 = vmatpush1.bf16.msra.mxu0 0
        %3417 = vmatprep.subr.bf16.mxu0 0
        %3418 = vmatpush1.bf16.msra.mxu0 0
        %3419 = vmatprep.subr.bf16.mxu0 0
        %3420 = vmatpush1.bf16.msra.mxu0 0
        %3421 = vmatprep.subr.bf16.mxu0 0
        %3422 = vmatpush1.bf16.msra.mxu0 0
        %3423 = vmatprep.subr.bf16.mxu0 0
        %3424 = vmatpush1.bf16.msra.mxu0 0
        %3425 = vmatprep.subr.bf16.mxu0 0
        %3426 = vmatpush1.bf16.msra.mxu0 0
        %3427 = vmatprep.subr.bf16.mxu0 0
        %3428 = vmatpush1.bf16.msra.mxu0 0
        %3429 = vmatprep.mubr.bf16.mxu0 0
        %3430 = vmatmul.mubr.bf16.gmra.mrb[0].mxu0 %v3328
        %v3431 = vpop.f32.mrb[0].mxu0
        %v3432 = vadd.f32 0.0, %v3431
        %v3433 = vpop.f32.mrb[0].mxu0
        %v3434 = vpop.f32.mrb[0].mxu0
        %v3435 = vadd.f32 0.0, %v3434
        %v3436 = vpop.f32.mrb[0].mxu0
        %3437 = vmatprep.mubr.bf16.mxu0 0
        %3438 = vmatmul.mubr.bf16.gmra.mrb[0].mxu0 %v3329
        %v3439 = vpop.f32.mrb[0].mxu0
        %v3440 = vadd.f32 0.0, %v3439
        %v3441 = vpop.f32.mrb[0].mxu0
        %v3442 = vpop.f32.mrb[0].mxu0
        %v3443 = vadd.f32 0.0, %v3442
        %v3444 = vpop.f32.mrb[0].mxu0
        %3445 = vmatprep.mubr.bf16.mxu0 0
        %3446 = vmatmul.mubr.bf16.gmra.mrb[0].mxu0 %v3330
        %v3447 = vpop.f32.mrb[0].mxu0
        %v3448 = vadd.f32 0.0, %v3447
        %v3449 = vpop.f32.mrb[0].mxu0
        %v3450 = vpop.f32.mrb[0].mxu0
        %v3451 = vadd.f32 0.0, %v3450
        %v3452 = vpop.f32.mrb[0].mxu0
        %3453 = vmatprep.mubr.bf16.mxu0 0
        %3454 = vmatmul.mubr.bf16.gmra.mrb[0].mxu0 %v3331
        %v3455 = vpop.f32.mrb[0].mxu0
        %v3456 = vadd.f32 0.0, %v3455
        %v3457 = vpop.f32.mrb[0].mxu0
        %v3458 = vpop.f32.mrb[0].mxu0
        %v3459 = vadd.f32 0.0, %v3458
        %v3460 = vpop.f32.mrb[0].mxu0
        %3461 = vdwg.mxu0
        %v3462 = vadd.f32 %v3214, %v3432
        %v3463 = vadd.f32 %v3215, %v3435
        %v3464 = vadd.f32 %v3216, %v3440
        %v3465 = vadd.f32 %v3217, %v3443
        %v3466 = vadd.f32 %v3218, %v3448
        %v3467 = vadd.f32 %v3219, %v3451
        %v3468 = vadd.f32 %v3220, %v3456
        %v3469 = vadd.f32 %v3221, %v3459
        %s3470 = scalar_lea.vmem %s1, 224
        %v3471 = vld [vmem:[%s3470] sm:$0xf]
        %v3472 = vld [vmem:[%s3470 + $0x4] sm:$0xf]
        %v3473 = vld [vmem:[%s3470 + $0x8] sm:$0xf]
        %v3474 = vld [vmem:[%s3470 + $0xc] sm:$0xf]
        %v3475 = vld [vmem:[%s3470 + $0x10] sm:$0xf]
        %v3476 = vld [vmem:[%s3470 + $0x14] sm:$0xf]
        %v3477 = vld [vmem:[%s3470 + $0x18] sm:$0xf]
        %v3478 = vld [vmem:[%s3470 + $0x1c] sm:$0xf]
        %v3487 = vunpack.c.l.b16 %v3471
        %v3488 = vunpack.c.l.b16 %v3472
        %v3489 = vunpack.c.l.b16 %v3473
        %v3490 = vunpack.c.l.b16 %v3474
        %v3491 = vunpack.c.l.b16 %v3475
        %v3492 = vunpack.c.l.b16 %v3476
        %v3493 = vunpack.c.l.b16 %v3477
        %v3494 = vunpack.c.l.b16 %v3478
        %v3495 = vpack.c.b16 %v3488, %v3487
        %v3496 = vpack.c.b16 %v3490, %v3489
        %v3497 = vpack.c.b16 %v3492, %v3491
        %v3498 = vpack.c.b16 %v3494, %v3493
        %v3500 = vsel %vm1046, %v3495, 0
        %v3503 = vsel %vm1046, %v3496, 0
        %v3506 = vsel %vm1046, %v3497, 0
        %v3509 = vsel %vm1046, %v3498, 0
        %3511 = vmatprep.subr.bf16.mxu0 0
        %3512 = vmatpush1.bf16.msra.mxu0 %v1980
        %3513 = vmatprep.subr.bf16.mxu0 0
        %3514 = vmatpush1.bf16.msra.mxu0 %v1981
        %3515 = vmatprep.subr.bf16.mxu0 0
        %3516 = vmatpush1.bf16.msra.mxu0 %v1982
        %3517 = vmatprep.subr.bf16.mxu0 0
        %3518 = vmatpush1.bf16.msra.mxu0 %v1983
        %3519 = vmatprep.subr.bf16.mxu0 0
        %3520 = vmatpush1.bf16.msra.mxu0 0
        %3521 = vmatprep.subr.bf16.mxu0 0
        %3522 = vmatpush1.bf16.msra.mxu0 0
        %3523 = vmatprep.subr.bf16.mxu0 0
        %3524 = vmatpush1.bf16.msra.mxu0 0
        %3525 = vmatprep.subr.bf16.mxu0 0
        %3526 = vmatpush1.bf16.msra.mxu0 0
        %3527 = vmatprep.subr.bf16.mxu0 0
        %3528 = vmatpush1.bf16.msra.mxu0 0
        %3529 = vmatprep.subr.bf16.mxu0 0
        %3530 = vmatpush1.bf16.msra.mxu0 0
        %3531 = vmatprep.subr.bf16.mxu0 0
        %3532 = vmatpush1.bf16.msra.mxu0 0
        %3533 = vmatprep.subr.bf16.mxu0 0
        %3534 = vmatpush1.bf16.msra.mxu0 0
        %3535 = vmatprep.subr.bf16.mxu0 0
        %3536 = vmatpush1.bf16.msra.mxu0 0
        %3537 = vmatprep.subr.bf16.mxu0 0
        %3538 = vmatpush1.bf16.msra.mxu0 0
        %3539 = vmatprep.subr.bf16.mxu0 0
        %3540 = vmatpush1.bf16.msra.mxu0 0
        %3541 = vmatprep.subr.bf16.mxu0 0
        %3542 = vmatpush1.bf16.msra.mxu0 0
        %3543 = vmatprep.mubr.bf16.mxu0 0
        %3544 = vmatmul.mubr.bf16.gmra.mrb[0].mxu0 %v3500
        %v3545 = vpop.f32.mrb[0].mxu0
        %v3546 = vadd.f32 0.0, %v3545
        %v3547 = vpop.f32.mrb[0].mxu0
        %v3548 = vpop.f32.mrb[0].mxu0
        %v3549 = vadd.f32 0.0, %v3548
        %v3550 = vpop.f32.mrb[0].mxu0
        %3551 = vmatprep.mubr.bf16.mxu0 0
        %3552 = vmatmul.mubr.bf16.gmra.mrb[0].mxu0 %v3503
        %v3553 = vpop.f32.mrb[0].mxu0
        %v3554 = vadd.f32 0.0, %v3553
        %v3555 = vpop.f32.mrb[0].mxu0
        %v3556 = vpop.f32.mrb[0].mxu0
        %v3557 = vadd.f32 0.0, %v3556
        %v3558 = vpop.f32.mrb[0].mxu0
        %3559 = vmatprep.mubr.bf16.mxu0 0
        %3560 = vmatmul.mubr.bf16.gmra.mrb[0].mxu0 %v3506
        %v3561 = vpop.f32.mrb[0].mxu0
        %v3562 = vadd.f32 0.0, %v3561
        %v3563 = vpop.f32.mrb[0].mxu0
        %v3564 = vpop.f32.mrb[0].mxu0
        %v3565 = vadd.f32 0.0, %v3564
        %v3566 = vpop.f32.mrb[0].mxu0
        %3567 = vmatprep.mubr.bf16.mxu0 0
        %3568 = vmatmul.mubr.bf16.gmra.mrb[0].mxu0 %v3509
        %v3569 = vpop.f32.mrb[0].mxu0
        %v3570 = vadd.f32 0.0, %v3569
        %v3571 = vpop.f32.mrb[0].mxu0
        %v3572 = vpop.f32.mrb[0].mxu0
        %v3573 = vadd.f32 0.0, %v3572
        %v3574 = vpop.f32.mrb[0].mxu0
        %3575 = vdwg.mxu0
        %v3576 = vpack.c.bf16 %v3549, %v3546
        %v3577 = vpack.c.bf16 %v3557, %v3554
        %v3578 = vpack.c.bf16 %v3565, %v3562
        %v3579 = vpack.c.bf16 %v3573, %v3570
        %s3580 = scalar_lea.vmem %s7, 448
        %v3581 = vld [vmem:[%s3580] sm:$0xf]
        %v3582 = vld [vmem:[%s3580 + $0x4] sm:$0xf]
        %v3583 = vld [vmem:[%s3580 + $0x8] sm:$0xf]
        %v3584 = vld [vmem:[%s3580 + $0xc] sm:$0xf]
        %v3585 = vld [vmem:[%s3580 + $0x10] sm:$0xf]
        %v3586 = vld [vmem:[%s3580 + $0x14] sm:$0xf]
        %v3587 = vld [vmem:[%s3580 + $0x18] sm:$0xf]
        %v3588 = vld [vmem:[%s3580 + $0x1c] sm:$0xf]
        %v3589 = vld [vmem:[%s3580 + $0x20] sm:$0xf]
        %v3590 = vld [vmem:[%s3580 + $0x24] sm:$0xf]
        %v3591 = vld [vmem:[%s3580 + $0x28] sm:$0xf]
        %v3592 = vld [vmem:[%s3580 + $0x2c] sm:$0xf]
        %v3593 = vld [vmem:[%s3580 + $0x30] sm:$0xf]
        %v3594 = vld [vmem:[%s3580 + $0x34] sm:$0xf]
        %v3595 = vld [vmem:[%s3580 + $0x38] sm:$0xf]
        %v3596 = vld [vmem:[%s3580 + $0x3c] sm:$0xf]
        %v3613 = vunpack.c.l.b16 %v3581
        %v3614 = vunpack.c.l.b16 %v3582
        %v3615 = vunpack.c.l.b16 %v3583
        %v3616 = vunpack.c.l.b16 %v3584
        %v3617 = vunpack.c.l.b16 %v3585
        %v3618 = vunpack.c.l.b16 %v3586
        %v3619 = vunpack.c.l.b16 %v3587
        %v3620 = vunpack.c.l.b16 %v3588
        %v3621 = vunpack.c.l.b16 %v3589
        %v3622 = vunpack.c.l.b16 %v3590
        %v3623 = vunpack.c.l.b16 %v3591
        %v3624 = vunpack.c.l.b16 %v3592
        %v3625 = vunpack.c.l.b16 %v3593
        %v3626 = vunpack.c.l.b16 %v3594
        %v3627 = vunpack.c.l.b16 %v3595
        %v3628 = vunpack.c.l.b16 %v3596
        %v3629 = vpack.c.b16 %v3614, %v3613
        %v3630 = vpack.c.b16 %v3616, %v3615
        %v3631 = vpack.c.b16 %v3618, %v3617
        %v3632 = vpack.c.b16 %v3620, %v3619
        %v3633 = vpack.c.b16 %v3622, %v3621
        %v3634 = vpack.c.b16 %v3624, %v3623
        %v3635 = vpack.c.b16 %v3626, %v3625
        %v3636 = vpack.c.b16 %v3628, %v3627
        %3645 = vmatprep.subr.bf16.mxu0 0
        %3646 = vmatpush1.bf16.msra.mxu0 %v3629
        %3647 = vmatprep.subr.bf16.mxu0 0
        %3648 = vmatpush1.bf16.msra.mxu0 %v3630
        %3649 = vmatprep.subr.bf16.mxu0 0
        %3650 = vmatpush1.bf16.msra.mxu0 %v3631
        %3651 = vmatprep.subr.bf16.mxu0 0
        %3652 = vmatpush1.bf16.msra.mxu0 %v3632
        %3653 = vmatprep.subr.bf16.mxu0 0
        %3654 = vmatpush1.bf16.msra.mxu0 %v3633
        %3655 = vmatprep.subr.bf16.mxu0 0
        %3656 = vmatpush1.bf16.msra.mxu0 %v3634
        %3657 = vmatprep.subr.bf16.mxu0 0
        %3658 = vmatpush1.bf16.msra.mxu0 %v3635
        %3659 = vmatprep.subr.bf16.mxu0 0
        %3660 = vmatpush1.bf16.msra.mxu0 %v3636
        %3661 = vmatprep.subr.bf16.mxu0 0
        %3662 = vmatpush1.bf16.msra.mxu0 0
        %3663 = vmatprep.subr.bf16.mxu0 0
        %3664 = vmatpush1.bf16.msra.mxu0 0
        %3665 = vmatprep.subr.bf16.mxu0 0
        %3666 = vmatpush1.bf16.msra.mxu0 0
        %3667 = vmatprep.subr.bf16.mxu0 0
        %3668 = vmatpush1.bf16.msra.mxu0 0
        %3669 = vmatprep.subr.bf16.mxu0 0
        %3670 = vmatpush1.bf16.msra.mxu0 0
        %3671 = vmatprep.subr.bf16.mxu0 0
        %3672 = vmatpush1.bf16.msra.mxu0 0
        %3673 = vmatprep.subr.bf16.mxu0 0
        %3674 = vmatpush1.bf16.msra.mxu0 0
        %3675 = vmatprep.subr.bf16.mxu0 0
        %3676 = vmatpush1.bf16.msra.mxu0 0
        %3677 = vmatprep.mubr.bf16.mxu0 0
        %3678 = vmatmul.mubr.bf16.gmra.mrb[0].mxu0 %v3576
        %v3679 = vpop.f32.mrb[0].mxu0
        %v3680 = vadd.f32 0.0, %v3679
        %v3681 = vpop.f32.mrb[0].mxu0
        %v3682 = vpop.f32.mrb[0].mxu0
        %v3683 = vadd.f32 0.0, %v3682
        %v3684 = vpop.f32.mrb[0].mxu0
        %3685 = vmatprep.mubr.bf16.mxu0 0
        %3686 = vmatmul.mubr.bf16.gmra.mrb[0].mxu0 %v3577
        %v3687 = vpop.f32.mrb[0].mxu0
        %v3688 = vadd.f32 0.0, %v3687
        %v3689 = vpop.f32.mrb[0].mxu0
        %v3690 = vpop.f32.mrb[0].mxu0
        %v3691 = vadd.f32 0.0, %v3690
        %v3692 = vpop.f32.mrb[0].mxu0
        %3693 = vmatprep.mubr.bf16.mxu0 0
        %3694 = vmatmul.mubr.bf16.gmra.mrb[0].mxu0 %v3578
        %v3695 = vpop.f32.mrb[0].mxu0
        %v3696 = vadd.f32 0.0, %v3695
        %v3697 = vpop.f32.mrb[0].mxu0
        %v3698 = vpop.f32.mrb[0].mxu0
        %v3699 = vadd.f32 0.0, %v3698
        %v3700 = vpop.f32.mrb[0].mxu0
        %3701 = vmatprep.mubr.bf16.mxu0 0
        %3702 = vmatmul.mubr.bf16.gmra.mrb[0].mxu0 %v3579
        %v3703 = vpop.f32.mrb[0].mxu0
        %v3704 = vadd.f32 0.0, %v3703
        %v3705 = vpop.f32.mrb[0].mxu0
        %v3706 = vpop.f32.mrb[0].mxu0
        %v3707 = vadd.f32 0.0, %v3706
        %v3708 = vpop.f32.mrb[0].mxu0
        %3709 = vdwg.mxu0
        %v3710 = vadd.f32 %v3462, %v3680
        %v3711 = vadd.f32 %v3463, %v3683
        %v3712 = vadd.f32 %v3464, %v3688
        %v3713 = vadd.f32 %v3465, %v3691
        %v3714 = vadd.f32 %v3466, %v3696
        %v3715 = vadd.f32 %v3467, %v3699
        %v3716 = vadd.f32 %v3468, %v3704
        %v3717 = vadd.f32 %v3469, %v3707
        %s3718 = scalar_lea.vmem %s1, 256
        %v3719 = vld [vmem:[%s3718] sm:$0xf]
        %v3720 = vld [vmem:[%s3718 + $0x4] sm:$0xf]
        %v3721 = vld [vmem:[%s3718 + $0x8] sm:$0xf]
        %v3722 = vld [vmem:[%s3718 + $0xc] sm:$0xf]
        %v3723 = vld [vmem:[%s3718 + $0x10] sm:$0xf]
        %v3724 = vld [vmem:[%s3718 + $0x14] sm:$0xf]
        %v3725 = vld [vmem:[%s3718 + $0x18] sm:$0xf]
        %v3726 = vld [vmem:[%s3718 + $0x1c] sm:$0xf]
        %v3735 = vunpack.c.l.b16 %v3719
        %v3736 = vunpack.c.l.b16 %v3720
        %v3737 = vunpack.c.l.b16 %v3721
        %v3738 = vunpack.c.l.b16 %v3722
        %v3739 = vunpack.c.l.b16 %v3723
        %v3740 = vunpack.c.l.b16 %v3724
        %v3741 = vunpack.c.l.b16 %v3725
        %v3742 = vunpack.c.l.b16 %v3726
        %v3743 = vpack.c.b16 %v3736, %v3735
        %v3744 = vpack.c.b16 %v3738, %v3737
        %v3745 = vpack.c.b16 %v3740, %v3739
        %v3746 = vpack.c.b16 %v3742, %v3741
        %v3748 = vsel %vm1046, %v3743, 0
        %v3751 = vsel %vm1046, %v3744, 0
        %v3754 = vsel %vm1046, %v3745, 0
        %v3757 = vsel %vm1046, %v3746, 0
        %3759 = vmatprep.subr.bf16.mxu0 0
        %3760 = vmatpush1.bf16.msra.mxu0 %v1980
        %3761 = vmatprep.subr.bf16.mxu0 0
        %3762 = vmatpush1.bf16.msra.mxu0 %v1981
        %3763 = vmatprep.subr.bf16.mxu0 0
        %3764 = vmatpush1.bf16.msra.mxu0 %v1982
        %3765 = vmatprep.subr.bf16.mxu0 0
        %3766 = vmatpush1.bf16.msra.mxu0 %v1983
        %3767 = vmatprep.subr.bf16.mxu0 0
        %3768 = vmatpush1.bf16.msra.mxu0 0
        %3769 = vmatprep.subr.bf16.mxu0 0
        %3770 = vmatpush1.bf16.msra.mxu0 0
        %3771 = vmatprep.subr.bf16.mxu0 0
        %3772 = vmatpush1.bf16.msra.mxu0 0
        %3773 = vmatprep.subr.bf16.mxu0 0
        %3774 = vmatpush1.bf16.msra.mxu0 0
        %3775 = vmatprep.subr.bf16.mxu0 0
        %3776 = vmatpush1.bf16.msra.mxu0 0
        %3777 = vmatprep.subr.bf16.mxu0 0
        %3778 = vmatpush1.bf16.msra.mxu0 0
        %3779 = vmatprep.subr.bf16.mxu0 0
        %3780 = vmatpush1.bf16.msra.mxu0 0
        %3781 = vmatprep.subr.bf16.mxu0 0
        %3782 = vmatpush1.bf16.msra.mxu0 0
        %3783 = vmatprep.subr.bf16.mxu0 0
        %3784 = vmatpush1.bf16.msra.mxu0 0
        %3785 = vmatprep.subr.bf16.mxu0 0
        %3786 = vmatpush1.bf16.msra.mxu0 0
        %3787 = vmatprep.subr.bf16.mxu0 0
        %3788 = vmatpush1.bf16.msra.mxu0 0
        %3789 = vmatprep.subr.bf16.mxu0 0
        %3790 = vmatpush1.bf16.msra.mxu0 0
        %3791 = vmatprep.mubr.bf16.mxu0 0
        %3792 = vmatmul.mubr.bf16.gmra.mrb[0].mxu0 %v3748
        %v3793 = vpop.f32.mrb[0].mxu0
        %v3794 = vadd.f32 0.0, %v3793
        %v3795 = vpop.f32.mrb[0].mxu0
        %v3796 = vpop.f32.mrb[0].mxu0
        %v3797 = vadd.f32 0.0, %v3796
        %v3798 = vpop.f32.mrb[0].mxu0
        %3799 = vmatprep.mubr.bf16.mxu0 0
        %3800 = vmatmul.mubr.bf16.gmra.mrb[0].mxu0 %v3751
        %v3801 = vpop.f32.mrb[0].mxu0
        %v3802 = vadd.f32 0.0, %v3801
        %v3803 = vpop.f32.mrb[0].mxu0
        %v3804 = vpop.f32.mrb[0].mxu0
        %v3805 = vadd.f32 0.0, %v3804
        %v3806 = vpop.f32.mrb[0].mxu0
        %3807 = vmatprep.mubr.bf16.mxu0 0
        %3808 = vmatmul.mubr.bf16.gmra.mrb[0].mxu0 %v3754
        %v3809 = vpop.f32.mrb[0].mxu0
        %v3810 = vadd.f32 0.0, %v3809
        %v3811 = vpop.f32.mrb[0].mxu0
        %v3812 = vpop.f32.mrb[0].mxu0
        %v3813 = vadd.f32 0.0, %v3812
        %v3814 = vpop.f32.mrb[0].mxu0
        %3815 = vmatprep.mubr.bf16.mxu0 0
        %3816 = vmatmul.mubr.bf16.gmra.mrb[0].mxu0 %v3757
        %v3817 = vpop.f32.mrb[0].mxu0
        %v3818 = vadd.f32 0.0, %v3817
        %v3819 = vpop.f32.mrb[0].mxu0
        %v3820 = vpop.f32.mrb[0].mxu0
        %v3821 = vadd.f32 0.0, %v3820
        %v3822 = vpop.f32.mrb[0].mxu0
        %3823 = vdwg.mxu0
        %v3824 = vpack.c.bf16 %v3797, %v3794
        %v3825 = vpack.c.bf16 %v3805, %v3802
        %v3826 = vpack.c.bf16 %v3813, %v3810
        %v3827 = vpack.c.bf16 %v3821, %v3818
        %s3828 = scalar_lea.vmem %s7, 512
        %v3829 = vld [vmem:[%s3828] sm:$0xf]
        %v3830 = vld [vmem:[%s3828 + $0x4] sm:$0xf]
        %v3831 = vld [vmem:[%s3828 + $0x8] sm:$0xf]
        %v3832 = vld [vmem:[%s3828 + $0xc] sm:$0xf]
        %v3833 = vld [vmem:[%s3828 + $0x10] sm:$0xf]
        %v3834 = vld [vmem:[%s3828 + $0x14] sm:$0xf]
        %v3835 = vld [vmem:[%s3828 + $0x18] sm:$0xf]
        %v3836 = vld [vmem:[%s3828 + $0x1c] sm:$0xf]
        %v3837 = vld [vmem:[%s3828 + $0x20] sm:$0xf]
        %v3838 = vld [vmem:[%s3828 + $0x24] sm:$0xf]
        %v3839 = vld [vmem:[%s3828 + $0x28] sm:$0xf]
        %v3840 = vld [vmem:[%s3828 + $0x2c] sm:$0xf]
        %v3841 = vld [vmem:[%s3828 + $0x30] sm:$0xf]
        %v3842 = vld [vmem:[%s3828 + $0x34] sm:$0xf]
        %v3843 = vld [vmem:[%s3828 + $0x38] sm:$0xf]
        %v3844 = vld [vmem:[%s3828 + $0x3c] sm:$0xf]
        %v3861 = vunpack.c.l.b16 %v3829
        %v3862 = vunpack.c.l.b16 %v3830
        %v3863 = vunpack.c.l.b16 %v3831
        %v3864 = vunpack.c.l.b16 %v3832
        %v3865 = vunpack.c.l.b16 %v3833
        %v3866 = vunpack.c.l.b16 %v3834
        %v3867 = vunpack.c.l.b16 %v3835
        %v3868 = vunpack.c.l.b16 %v3836
        %v3869 = vunpack.c.l.b16 %v3837
        %v3870 = vunpack.c.l.b16 %v3838
        %v3871 = vunpack.c.l.b16 %v3839
        %v3872 = vunpack.c.l.b16 %v3840
        %v3873 = vunpack.c.l.b16 %v3841
        %v3874 = vunpack.c.l.b16 %v3842
        %v3875 = vunpack.c.l.b16 %v3843
        %v3876 = vunpack.c.l.b16 %v3844
        %v3877 = vpack.c.b16 %v3862, %v3861
        %v3878 = vpack.c.b16 %v3864, %v3863
        %v3879 = vpack.c.b16 %v3866, %v3865
        %v3880 = vpack.c.b16 %v3868, %v3867
        %v3881 = vpack.c.b16 %v3870, %v3869
        %v3882 = vpack.c.b16 %v3872, %v3871
        %v3883 = vpack.c.b16 %v3874, %v3873
        %v3884 = vpack.c.b16 %v3876, %v3875
        %3893 = vmatprep.subr.bf16.mxu0 0
        %3894 = vmatpush1.bf16.msra.mxu0 %v3877
        %3895 = vmatprep.subr.bf16.mxu0 0
        %3896 = vmatpush1.bf16.msra.mxu0 %v3878
        %3897 = vmatprep.subr.bf16.mxu0 0
        %3898 = vmatpush1.bf16.msra.mxu0 %v3879
        %3899 = vmatprep.subr.bf16.mxu0 0
        %3900 = vmatpush1.bf16.msra.mxu0 %v3880
        %3901 = vmatprep.subr.bf16.mxu0 0
        %3902 = vmatpush1.bf16.msra.mxu0 %v3881
        %3903 = vmatprep.subr.bf16.mxu0 0
        %3904 = vmatpush1.bf16.msra.mxu0 %v3882
        %3905 = vmatprep.subr.bf16.mxu0 0
        %3906 = vmatpush1.bf16.msra.mxu0 %v3883
        %3907 = vmatprep.subr.bf16.mxu0 0
        %3908 = vmatpush1.bf16.msra.mxu0 %v3884
        %3909 = vmatprep.subr.bf16.mxu0 0
        %3910 = vmatpush1.bf16.msra.mxu0 0
        %3911 = vmatprep.subr.bf16.mxu0 0
        %3912 = vmatpush1.bf16.msra.mxu0 0
        %3913 = vmatprep.subr.bf16.mxu0 0
        %3914 = vmatpush1.bf16.msra.mxu0 0
        %3915 = vmatprep.subr.bf16.mxu0 0
        %3916 = vmatpush1.bf16.msra.mxu0 0
        %3917 = vmatprep.subr.bf16.mxu0 0
        %3918 = vmatpush1.bf16.msra.mxu0 0
        %3919 = vmatprep.subr.bf16.mxu0 0
        %3920 = vmatpush1.bf16.msra.mxu0 0
        %3921 = vmatprep.subr.bf16.mxu0 0
        %3922 = vmatpush1.bf16.msra.mxu0 0
        %3923 = vmatprep.subr.bf16.mxu0 0
        %3924 = vmatpush1.bf16.msra.mxu0 0
        %3925 = vmatprep.mubr.bf16.mxu0 0
        %3926 = vmatmul.mubr.bf16.gmra.mrb[0].mxu0 %v3824
        %v3927 = vpop.f32.mrb[0].mxu0
        %v3928 = vadd.f32 0.0, %v3927
        %v3929 = vpop.f32.mrb[0].mxu0
        %v3930 = vpop.f32.mrb[0].mxu0
        %v3931 = vadd.f32 0.0, %v3930
        %v3932 = vpop.f32.mrb[0].mxu0
        %3933 = vmatprep.mubr.bf16.mxu0 0
        %3934 = vmatmul.mubr.bf16.gmra.mrb[0].mxu0 %v3825
        %v3935 = vpop.f32.mrb[0].mxu0
        %v3936 = vadd.f32 0.0, %v3935
        %v3937 = vpop.f32.mrb[0].mxu0
        %v3938 = vpop.f32.mrb[0].mxu0
        %v3939 = vadd.f32 0.0, %v3938
        %v3940 = vpop.f32.mrb[0].mxu0
        %3941 = vmatprep.mubr.bf16.mxu0 0
        %3942 = vmatmul.mubr.bf16.gmra.mrb[0].mxu0 %v3826
        %v3943 = vpop.f32.mrb[0].mxu0
        %v3944 = vadd.f32 0.0, %v3943
        %v3945 = vpop.f32.mrb[0].mxu0
        %v3946 = vpop.f32.mrb[0].mxu0
        %v3947 = vadd.f32 0.0, %v3946
        %v3948 = vpop.f32.mrb[0].mxu0
        %3949 = vmatprep.mubr.bf16.mxu0 0
        %3950 = vmatmul.mubr.bf16.gmra.mrb[0].mxu0 %v3827
        %v3951 = vpop.f32.mrb[0].mxu0
        %v3952 = vadd.f32 0.0, %v3951
        %v3953 = vpop.f32.mrb[0].mxu0
        %v3954 = vpop.f32.mrb[0].mxu0
        %v3955 = vadd.f32 0.0, %v3954
        %v3956 = vpop.f32.mrb[0].mxu0
        %3957 = vdwg.mxu0
        %v3958 = vadd.f32 %v3710, %v3928
        %v3959 = vadd.f32 %v3711, %v3931
        %v3960 = vadd.f32 %v3712, %v3936
        %v3961 = vadd.f32 %v3713, %v3939
        %v3962 = vadd.f32 %v3714, %v3944
        %v3963 = vadd.f32 %v3715, %v3947
        %v3964 = vadd.f32 %v3716, %v3952
        %v3965 = vadd.f32 %v3717, %v3955
        %v3966 = vld [vmem:[%s8] sm:$0x1]
        %v3968 = vlaneseq
        %v3969 = vshrl.u32 %v3968, 7
        %v3970 = vsub.s32 0, %v3969
        %v3971 = vrot.slane %v3966, %v3970
        %v3973 = vadd.f32 %v3958, %v3971
        %v3974 = vadd.f32 %v3959, %v3971
        %v3975 = vadd.f32 %v3960, %v3971
        %v3976 = vadd.f32 %v3961, %v3971
        %v3977 = vadd.f32 %v3962, %v3971
        %v3978 = vadd.f32 %v3963, %v3971
        %v3979 = vadd.f32 %v3964, %v3971
        %v3980 = vadd.f32 %v3965, %v3971
        %v3981 = vmax.f32 %v3973, 0.0
        %v3982 = vmax.f32 %v3974, 0.0
        %v3983 = vmax.f32 %v3975, 0.0
        %v3984 = vmax.f32 %v3976, 0.0
        %v3985 = vmax.f32 %v3977, 0.0
        %v3986 = vmax.f32 %v3978, 0.0
        %v3987 = vmax.f32 %v3979, 0.0
        %v3988 = vmax.f32 %v3980, 0.0
        %v3989 = vpack.c.bf16 %v3982, %v3981
        %v3990 = vpack.c.bf16 %v3984, %v3983
        %v3991 = vpack.c.bf16 %v3986, %v3985
        %v3992 = vpack.c.bf16 %v3988, %v3987
        %v3993 = vld [vmem:[%s9] sm:$0xf]
        %v3994 = vld [vmem:[%s9 + $0x4] sm:$0xf]
        %v3995 = vld [vmem:[%s9 + $0x8] sm:$0xf]
        %v3996 = vld [vmem:[%s9 + $0xc] sm:$0xf]
        %v3997 = vld [vmem:[%s9 + $0x10] sm:$0xf]
        %v3998 = vld [vmem:[%s9 + $0x14] sm:$0xf]
        %v3999 = vld [vmem:[%s9 + $0x18] sm:$0xf]
        %v4000 = vld [vmem:[%s9 + $0x1c] sm:$0xf]
        %v4001 = vld [vmem:[%s9 + $0x20] sm:$0xf]
        %v4002 = vld [vmem:[%s9 + $0x24] sm:$0xf]
        %v4003 = vld [vmem:[%s9 + $0x28] sm:$0xf]
        %v4004 = vld [vmem:[%s9 + $0x2c] sm:$0xf]
        %v4005 = vld [vmem:[%s9 + $0x30] sm:$0xf]
        %v4006 = vld [vmem:[%s9 + $0x34] sm:$0xf]
        %v4007 = vld [vmem:[%s9 + $0x38] sm:$0xf]
        %v4008 = vld [vmem:[%s9 + $0x3c] sm:$0xf]
        %v4009 = vld [vmem:[%s10] sm:$0x1]
        %v4011 = vlaneseq
        %v4012 = vshrl.u32 %v4011, 7
        %v4013 = vsub.s32 0, %v4012
        %v4014 = vrot.slane %v4009, %v4013
        %v4032 = vunpack.c.l.b16 %v3993
        %v4033 = vunpack.c.l.b16 %v3994
        %v4034 = vunpack.c.l.b16 %v3995
        %v4035 = vunpack.c.l.b16 %v3996
        %v4036 = vunpack.c.l.b16 %v3997
        %v4037 = vunpack.c.l.b16 %v3998
        %v4038 = vunpack.c.l.b16 %v3999
        %v4039 = vunpack.c.l.b16 %v4000
        %v4040 = vunpack.c.l.b16 %v4001
        %v4041 = vunpack.c.l.b16 %v4002
        %v4042 = vunpack.c.l.b16 %v4003
        %v4043 = vunpack.c.l.b16 %v4004
        %v4044 = vunpack.c.l.b16 %v4005
        %v4045 = vunpack.c.l.b16 %v4006
        %v4046 = vunpack.c.l.b16 %v4007
        %v4047 = vunpack.c.l.b16 %v4008
        %v4048 = vpack.c.b16 %v4033, %v4032
        %v4049 = vpack.c.b16 %v4035, %v4034
        %v4050 = vpack.c.b16 %v4037, %v4036
        %v4051 = vpack.c.b16 %v4039, %v4038
        %v4052 = vpack.c.b16 %v4041, %v4040
        %v4053 = vpack.c.b16 %v4043, %v4042
        %v4054 = vpack.c.b16 %v4045, %v4044
        %v4055 = vpack.c.b16 %v4047, %v4046
        %4064 = vmatprep.subr.bf16.mxu0 0
        %4065 = vmatpush1.bf16.msra.mxu0 %v4048
        %4066 = vmatprep.subr.bf16.mxu0 0
        %4067 = vmatpush1.bf16.msra.mxu0 %v4049
        %4068 = vmatprep.subr.bf16.mxu0 0
        %4069 = vmatpush1.bf16.msra.mxu0 %v4050
        %4070 = vmatprep.subr.bf16.mxu0 0
        %4071 = vmatpush1.bf16.msra.mxu0 %v4051
        %4072 = vmatprep.subr.bf16.mxu0 0
        %4073 = vmatpush1.bf16.msra.mxu0 %v4052
        %4074 = vmatprep.subr.bf16.mxu0 0
        %4075 = vmatpush1.bf16.msra.mxu0 %v4053
        %4076 = vmatprep.subr.bf16.mxu0 0
        %4077 = vmatpush1.bf16.msra.mxu0 %v4054
        %4078 = vmatprep.subr.bf16.mxu0 0
        %4079 = vmatpush1.bf16.msra.mxu0 %v4055
        %4080 = vmatprep.subr.bf16.mxu0 0
        %4081 = vmatpush1.bf16.msra.mxu0 0
        %4082 = vmatprep.subr.bf16.mxu0 0
        %4083 = vmatpush1.bf16.msra.mxu0 0
        %4084 = vmatprep.subr.bf16.mxu0 0
        %4085 = vmatpush1.bf16.msra.mxu0 0
        %4086 = vmatprep.subr.bf16.mxu0 0
        %4087 = vmatpush1.bf16.msra.mxu0 0
        %4088 = vmatprep.subr.bf16.mxu0 0
        %4089 = vmatpush1.bf16.msra.mxu0 0
        %4090 = vmatprep.subr.bf16.mxu0 0
        %4091 = vmatpush1.bf16.msra.mxu0 0
        %4092 = vmatprep.subr.bf16.mxu0 0
        %4093 = vmatpush1.bf16.msra.mxu0 0
        %4094 = vmatprep.subr.bf16.mxu0 0
        %4095 = vmatpush1.bf16.msra.mxu0 0
        %4096 = vmatprep.mubr.bf16.mxu0 0
        %4097 = vmatmul.mubr.bf16.gmra.mrb[0].mxu0 %v3989
        %v4098 = vpop.f32.mrb[0].mxu0
        %v4099 = vadd.f32 %v4014, %v4098
        %v4100 = vpop.f32.mrb[0].mxu0
        %v4101 = vpop.f32.mrb[0].mxu0
        %v4102 = vadd.f32 %v4014, %v4101
        %v4103 = vpop.f32.mrb[0].mxu0
        %4104 = vmatprep.mubr.bf16.mxu0 0
        %4105 = vmatmul.mubr.bf16.gmra.mrb[0].mxu0 %v3990
        %v4106 = vpop.f32.mrb[0].mxu0
        %v4107 = vadd.f32 %v4014, %v4106
        %v4108 = vpop.f32.mrb[0].mxu0
        %v4109 = vpop.f32.mrb[0].mxu0
        %v4110 = vadd.f32 %v4014, %v4109
        %v4111 = vpop.f32.mrb[0].mxu0
        %4112 = vmatprep.mubr.bf16.mxu0 0
        %4113 = vmatmul.mubr.bf16.gmra.mrb[0].mxu0 %v3991
        %v4114 = vpop.f32.mrb[0].mxu0
        %v4115 = vadd.f32 %v4014, %v4114
        %v4116 = vpop.f32.mrb[0].mxu0
        %v4117 = vpop.f32.mrb[0].mxu0
        %v4118 = vadd.f32 %v4014, %v4117
        %v4119 = vpop.f32.mrb[0].mxu0
        %4120 = vmatprep.mubr.bf16.mxu0 0
        %4121 = vmatmul.mubr.bf16.gmra.mrb[0].mxu0 %v3992
        %v4122 = vpop.f32.mrb[0].mxu0
        %v4123 = vadd.f32 %v4014, %v4122
        %v4124 = vpop.f32.mrb[0].mxu0
        %v4125 = vpop.f32.mrb[0].mxu0
        %v4126 = vadd.f32 %v4014, %v4125
        %v4127 = vpop.f32.mrb[0].mxu0
        %4128 = vdwg.mxu0
        %v4129 = vadd.f32 %v4099, %v1934
        %v4130 = vadd.f32 %v4102, %v1938
        %v4131 = vadd.f32 %v4107, %v1944
        %v4132 = vadd.f32 %v4110, %v1948
        %v4133 = vadd.f32 %v4115, %v1954
        %v4134 = vadd.f32 %v4118, %v1958
        %v4135 = vadd.f32 %v4123, %v1964
        %v4136 = vadd.f32 %v4126, %v1968
        %v4137 = vmax.f32 %v4129, 0.0
        %v4138 = vmax.f32 %v4130, 0.0
        %v4139 = vmax.f32 %v4131, 0.0
        %v4140 = vmax.f32 %v4132, 0.0
        %v4141 = vmax.f32 %v4133, 0.0
        %v4142 = vmax.f32 %v4134, 0.0
        %v4143 = vmax.f32 %v4135, 0.0
        %v4144 = vmax.f32 %v4136, 0.0
        %v4145 = vpack.c.bf16 %v4138, %v4137
        %v4146 = vpack.c.bf16 %v4140, %v4139
        %v4147 = vpack.c.bf16 %v4142, %v4141
        %v4148 = vpack.c.bf16 %v4144, %v4143
        %v4149 = vld [vmem:[%s11] sm:$0xff]
        %v4150 = vld [vmem:[%s11 + $0x8] sm:$0xff]
        %v4151 = vld [vmem:[%s11 + $0x10] sm:$0xff]
        %v4152 = vld [vmem:[%s11 + $0x18] sm:$0xff]
        %v4153 = vld [vmem:[%s11 + $0x20] sm:$0xff]
        %v4154 = vld [vmem:[%s11 + $0x28] sm:$0xff]
        %v4155 = vld [vmem:[%s11 + $0x30] sm:$0xff]
        %v4156 = vld [vmem:[%s11 + $0x38] sm:$0xff]
        %v4157 = vld [vmem:[%s11 + $0x40] sm:$0xff]
        %v4158 = vld [vmem:[%s11 + $0x48] sm:$0xff]
        %v4159 = vld [vmem:[%s11 + $0x50] sm:$0xff]
        %v4160 = vld [vmem:[%s11 + $0x58] sm:$0xff]
        %v4161 = vld [vmem:[%s11 + $0x60] sm:$0xff]
        %v4162 = vld [vmem:[%s11 + $0x68] sm:$0xff]
        %v4163 = vld [vmem:[%s11 + $0x70] sm:$0xff]
        %v4164 = vld [vmem:[%s11 + $0x78] sm:$0xff]
        %v4165 = vld [vmem:[%s12] sm:$0x3]
        %v4167 = vlaneseq
        %v4168 = vshrl.u32 %v4167, 7
        %v4169 = vsub.s32 0, %v4168
        %v4170 = vrot.slane %v4165, %v4169
        %v4171 = vlaneseq
        %v4172 = vshrl.u32 %v4171, 7
        %v4173 = vsub.s32 1, %v4172
        %v4174 = vrot.slane %v4165, %v4173
        %v4193 = vunpack.c.l.b16 %v4149
        %v4194 = vunpack.c.h.b16 %v4149
        %v4195 = vunpack.c.l.b16 %v4150
        %v4196 = vunpack.c.h.b16 %v4150
        %v4197 = vunpack.c.l.b16 %v4151
        %v4198 = vunpack.c.h.b16 %v4151
        %v4199 = vunpack.c.l.b16 %v4152
        %v4200 = vunpack.c.h.b16 %v4152
        %v4201 = vunpack.c.l.b16 %v4153
        %v4202 = vunpack.c.h.b16 %v4153
        %v4203 = vunpack.c.l.b16 %v4154
        %v4204 = vunpack.c.h.b16 %v4154
        %v4205 = vunpack.c.l.b16 %v4155
        %v4206 = vunpack.c.h.b16 %v4155
        %v4207 = vunpack.c.l.b16 %v4156
        %v4208 = vunpack.c.h.b16 %v4156
        %v4209 = vunpack.c.l.b16 %v4157
        %v4210 = vunpack.c.h.b16 %v4157
        %v4211 = vunpack.c.l.b16 %v4158
        %v4212 = vunpack.c.h.b16 %v4158
        %v4213 = vunpack.c.l.b16 %v4159
        %v4214 = vunpack.c.h.b16 %v4159
        %v4215 = vunpack.c.l.b16 %v4160
        %v4216 = vunpack.c.h.b16 %v4160
        %v4217 = vunpack.c.l.b16 %v4161
        %v4218 = vunpack.c.h.b16 %v4161
        %v4219 = vunpack.c.l.b16 %v4162
        %v4220 = vunpack.c.h.b16 %v4162
        %v4221 = vunpack.c.l.b16 %v4163
        %v4222 = vunpack.c.h.b16 %v4163
        %v4223 = vunpack.c.l.b16 %v4164
        %v4224 = vunpack.c.h.b16 %v4164
        %v4225 = vpack.c.b16 %v4195, %v4193
        %v4226 = vpack.c.b16 %v4196, %v4194
        %v4227 = vpack.c.b16 %v4199, %v4197
        %v4228 = vpack.c.b16 %v4200, %v4198
        %v4229 = vpack.c.b16 %v4203, %v4201
        %v4230 = vpack.c.b16 %v4204, %v4202
        %v4231 = vpack.c.b16 %v4207, %v4205
        %v4232 = vpack.c.b16 %v4208, %v4206
        %v4233 = vpack.c.b16 %v4211, %v4209
        %v4234 = vpack.c.b16 %v4212, %v4210
        %v4235 = vpack.c.b16 %v4215, %v4213
        %v4236 = vpack.c.b16 %v4216, %v4214
        %v4237 = vpack.c.b16 %v4219, %v4217
        %v4238 = vpack.c.b16 %v4220, %v4218
        %v4239 = vpack.c.b16 %v4223, %v4221
        %v4240 = vpack.c.b16 %v4224, %v4222
        %4257 = vmatprep.subr.bf16.mxu0 %v4226
        %4258 = vmatpush1.bf16.msra.mxu0 %v4225
        %4259 = vmatprep.subr.bf16.mxu0 %v4228
        %4260 = vmatpush1.bf16.msra.mxu0 %v4227
        %4261 = vmatprep.subr.bf16.mxu0 %v4230
        %4262 = vmatpush1.bf16.msra.mxu0 %v4229
        %4263 = vmatprep.subr.bf16.mxu0 %v4232
        %4264 = vmatpush1.bf16.msra.mxu0 %v4231
        %4265 = vmatprep.subr.bf16.mxu0 %v4234
        %4266 = vmatpush1.bf16.msra.mxu0 %v4233
        %4267 = vmatprep.subr.bf16.mxu0 %v4236
        %4268 = vmatpush1.bf16.msra.mxu0 %v4235
        %4269 = vmatprep.subr.bf16.mxu0 %v4238
        %4270 = vmatpush1.bf16.msra.mxu0 %v4237
        %4271 = vmatprep.subr.bf16.mxu0 %v4240
        %4272 = vmatpush1.bf16.msra.mxu0 %v4239
        %4273 = vmatprep.subr.bf16.mxu0 0
        %4274 = vmatpush1.bf16.msra.mxu0 0
        %4275 = vmatprep.subr.bf16.mxu0 0
        %4276 = vmatpush1.bf16.msra.mxu0 0
        %4277 = vmatprep.subr.bf16.mxu0 0
        %4278 = vmatpush1.bf16.msra.mxu0 0
        %4279 = vmatprep.subr.bf16.mxu0 0
        %4280 = vmatpush1.bf16.msra.mxu0 0
        %4281 = vmatprep.subr.bf16.mxu0 0
        %4282 = vmatpush1.bf16.msra.mxu0 0
        %4283 = vmatprep.subr.bf16.mxu0 0
        %4284 = vmatpush1.bf16.msra.mxu0 0
        %4285 = vmatprep.subr.bf16.mxu0 0
        %4286 = vmatpush1.bf16.msra.mxu0 0
        %4287 = vmatprep.subr.bf16.mxu0 0
        %4288 = vmatpush1.bf16.msra.mxu0 0
        %4289 = vmatprep.mubr.bf16.mxu0 0
        %4290 = vmatmul.mubr.bf16.gmra.mrb[0].mxu0 %v4145
        %v4291 = vpop.f32.mrb[0].mxu0
        %v4292 = vadd.f32 %v4170, %v4291
        %v4293 = vpop.f32.mrb[0].mxu0
        %v4294 = vadd.f32 %v4174, %v4293
        %v4295 = vpop.f32.mrb[0].mxu0
        %v4296 = vadd.f32 %v4170, %v4295
        %v4297 = vpop.f32.mrb[0].mxu0
        %v4298 = vadd.f32 %v4174, %v4297
        %4299 = vmatprep.mubr.bf16.mxu0 0
        %4300 = vmatmul.mubr.bf16.gmra.mrb[0].mxu0 %v4146
        %v4301 = vpop.f32.mrb[0].mxu0
        %v4302 = vadd.f32 %v4170, %v4301
        %v4303 = vpop.f32.mrb[0].mxu0
        %v4304 = vadd.f32 %v4174, %v4303
        %v4305 = vpop.f32.mrb[0].mxu0
        %v4306 = vadd.f32 %v4170, %v4305
        %v4307 = vpop.f32.mrb[0].mxu0
        %v4308 = vadd.f32 %v4174, %v4307
        %4309 = vmatprep.mubr.bf16.mxu0 0
        %4310 = vmatmul.mubr.bf16.gmra.mrb[0].mxu0 %v4147
        %v4311 = vpop.f32.mrb[0].mxu0
        %v4312 = vadd.f32 %v4170, %v4311
        %v4313 = vpop.f32.mrb[0].mxu0
        %v4314 = vadd.f32 %v4174, %v4313
        %v4315 = vpop.f32.mrb[0].mxu0
        %v4316 = vadd.f32 %v4170, %v4315
        %v4317 = vpop.f32.mrb[0].mxu0
        %v4318 = vadd.f32 %v4174, %v4317
        %4319 = vmatprep.mubr.bf16.mxu0 0
        %4320 = vmatmul.mubr.bf16.gmra.mrb[0].mxu0 %v4148
        %v4321 = vpop.f32.mrb[0].mxu0
        %v4322 = vadd.f32 %v4170, %v4321
        %v4323 = vpop.f32.mrb[0].mxu0
        %v4324 = vadd.f32 %v4174, %v4323
        %v4325 = vpop.f32.mrb[0].mxu0
        %v4326 = vadd.f32 %v4170, %v4325
        %v4327 = vpop.f32.mrb[0].mxu0
        %v4328 = vadd.f32 %v4174, %v4327
        %4329 = vdwg.mxu0
        %s4330 = scalar_lea.vmem %s2, 32
        %v4331 = vld [vmem:[%s4330] sm:$0xf]
        %v4332 = vld [vmem:[%s4330 + $0x4] sm:$0xf]
        %v4333 = vpack.c.bf16 %v4296, %v4292
        %v4334 = vpack.c.bf16 %v4306, %v4302
        %v4335 = vpack.c.bf16 %v4316, %v4312
        %v4336 = vpack.c.bf16 %v4326, %v4322
        %v4339 = vunpack.c.l.b16 %v4331
        %v4340 = vunpack.c.l.b16 %v4332
        %v4341 = vpack.c.b16 %v4340, %v4339
        %v4343 = vsel %vm1046, %v4341, 0
        %4345 = vmatprep.subr.bf16.mxu0 0
        %4346 = vmatpush1.bf16.msra.mxu0 %v4333
        %4347 = vmatprep.subr.bf16.mxu0 0
        %4348 = vmatpush1.bf16.msra.mxu0 %v4334
        %4349 = vmatprep.subr.bf16.mxu0 0
        %4350 = vmatpush1.bf16.msra.mxu0 %v4335
        %4351 = vmatprep.subr.bf16.mxu0 0
        %4352 = vmatpush1.bf16.msra.mxu0 %v4336
        %4353 = vmatprep.subr.bf16.mxu0 0
        %4354 = vmatpush1.bf16.msra.mxu0 0
        %4355 = vmatprep.subr.bf16.mxu0 0
        %4356 = vmatpush1.bf16.msra.mxu0 0
        %4357 = vmatprep.subr.bf16.mxu0 0
        %4358 = vmatpush1.bf16.msra.mxu0 0
        %4359 = vmatprep.subr.bf16.mxu0 0
        %4360 = vmatpush1.bf16.msra.mxu0 0
        %4361 = vmatprep.subr.bf16.mxu0 0
        %4362 = vmatpush1.bf16.msra.mxu0 0
        %4363 = vmatprep.subr.bf16.mxu0 0
        %4364 = vmatpush1.bf16.msra.mxu0 0
        %4365 = vmatprep.subr.bf16.mxu0 0
        %4366 = vmatpush1.bf16.msra.mxu0 0
        %4367 = vmatprep.subr.bf16.mxu0 0
        %4368 = vmatpush1.bf16.msra.mxu0 0
        %4369 = vmatprep.subr.bf16.mxu0 0
        %4370 = vmatpush1.bf16.msra.mxu0 0
        %4371 = vmatprep.subr.bf16.mxu0 0
        %4372 = vmatpush1.bf16.msra.mxu0 0
        %4373 = vmatprep.subr.bf16.mxu0 0
        %4374 = vmatpush1.bf16.msra.mxu0 0
        %4375 = vmatprep.subr.bf16.mxu0 0
        %4376 = vmatpush1.bf16.msra.mxu0 0
        %4377 = vmatprep.mubr.bf16.mxu0 0
        %4378 = vmatmul.mubr.bf16.gmra.mrb[0].mxu0 %v4343
        %v4379 = vpop.f32.mrb[0].mxu0
        %v4380 = vadd.f32 0.0, %v4379
        %v4381 = vpop.f32.mrb[0].mxu0
        %v4382 = vpop.f32.mrb[0].mxu0
        %v4383 = vadd.f32 0.0, %v4382
        %v4384 = vpop.f32.mrb[0].mxu0
        %4385 = vdwg.mxu0
        %v4386 = vmax.f32 %v4294, 0.0
        %v4387 = vmax.f32 %v4298, 0.0
        %v4388 = vmax.f32 %v4304, 0.0
        %v4389 = vmax.f32 %v4308, 0.0
        %v4390 = vmax.f32 %v4314, 0.0
        %v4391 = vmax.f32 %v4318, 0.0
        %v4392 = vmax.f32 %v4324, 0.0
        %v4393 = vmax.f32 %v4328, 0.0
        %v4394 = vpack.c.bf16 %v4387, %v4386
        %v4395 = vpack.c.bf16 %v4389, %v4388
        %v4396 = vpack.c.bf16 %v4391, %v4390
        %v4397 = vpack.c.bf16 %v4393, %v4392
        %v4398 = vld [vmem:[%s2] sm:$0xf]
        %v4399 = vld [vmem:[%s2 + $0x4] sm:$0xf]
        %v4402 = vunpack.c.l.b16 %v4398
        %v4403 = vunpack.c.l.b16 %v4399
        %v4404 = vpack.c.b16 %v4403, %v4402
        %v4406 = vsel %vm1046, %v4404, 0
        %4408 = vmatprep.subr.bf16.mxu0 0
        %4409 = vmatpush1.bf16.msra.mxu0 %v4394
        %4410 = vmatprep.subr.bf16.mxu0 0
        %4411 = vmatpush1.bf16.msra.mxu0 %v4395
        %4412 = vmatprep.subr.bf16.mxu0 0
        %4413 = vmatpush1.bf16.msra.mxu0 %v4396
        %4414 = vmatprep.subr.bf16.mxu0 0
        %4415 = vmatpush1.bf16.msra.mxu0 %v4397
        %4416 = vmatprep.subr.bf16.mxu0 0
        %4417 = vmatpush1.bf16.msra.mxu0 0
        %4418 = vmatprep.subr.bf16.mxu0 0
        %4419 = vmatpush1.bf16.msra.mxu0 0
        %4420 = vmatprep.subr.bf16.mxu0 0
        %4421 = vmatpush1.bf16.msra.mxu0 0
        %4422 = vmatprep.subr.bf16.mxu0 0
        %4423 = vmatpush1.bf16.msra.mxu0 0
        %4424 = vmatprep.subr.bf16.mxu0 0
        %4425 = vmatpush1.bf16.msra.mxu0 0
        %4426 = vmatprep.subr.bf16.mxu0 0
        %4427 = vmatpush1.bf16.msra.mxu0 0
        %4428 = vmatprep.subr.bf16.mxu0 0
        %4429 = vmatpush1.bf16.msra.mxu0 0
        %4430 = vmatprep.subr.bf16.mxu0 0
        %4431 = vmatpush1.bf16.msra.mxu0 0
        %4432 = vmatprep.subr.bf16.mxu0 0
        %4433 = vmatpush1.bf16.msra.mxu0 0
        %4434 = vmatprep.subr.bf16.mxu0 0
        %4435 = vmatpush1.bf16.msra.mxu0 0
        %4436 = vmatprep.subr.bf16.mxu0 0
        %4437 = vmatpush1.bf16.msra.mxu0 0
        %4438 = vmatprep.subr.bf16.mxu0 0
        %4439 = vmatpush1.bf16.msra.mxu0 0
        %4440 = vmatprep.mubr.bf16.mxu0 0
        %4441 = vmatmul.mubr.bf16.gmra.mrb[0].mxu0 %v4406
        %v4442 = vpop.f32.mrb[0].mxu0
        %v4443 = vadd.f32 0.0, %v4442
        %v4444 = vpop.f32.mrb[0].mxu0
        %v4445 = vpop.f32.mrb[0].mxu0
        %v4446 = vadd.f32 0.0, %v4445
        %v4447 = vpop.f32.mrb[0].mxu0
        %4448 = vdwg.mxu0
        %v4449 = vpack.c.bf16 %v4446, %v4443
        %v4450 = vld [vmem:[%s13] sm:$0xf]
        %v4451 = vld [vmem:[%s13 + $0x4] sm:$0xf]
        %v4452 = vld [vmem:[%s13 + $0x8] sm:$0xf]
        %v4453 = vld [vmem:[%s13 + $0xc] sm:$0xf]
        %v4454 = vld [vmem:[%s13 + $0x10] sm:$0xf]
        %v4455 = vld [vmem:[%s13 + $0x14] sm:$0xf]
        %v4456 = vld [vmem:[%s13 + $0x18] sm:$0xf]
        %v4457 = vld [vmem:[%s13 + $0x1c] sm:$0xf]
        %v4458 = vld [vmem:[%s13 + $0x20] sm:$0xf]
        %v4459 = vld [vmem:[%s13 + $0x24] sm:$0xf]
        %v4460 = vld [vmem:[%s13 + $0x28] sm:$0xf]
        %v4461 = vld [vmem:[%s13 + $0x2c] sm:$0xf]
        %v4462 = vld [vmem:[%s13 + $0x30] sm:$0xf]
        %v4463 = vld [vmem:[%s13 + $0x34] sm:$0xf]
        %v4464 = vld [vmem:[%s13 + $0x38] sm:$0xf]
        %v4465 = vld [vmem:[%s13 + $0x3c] sm:$0xf]
        %s4466 = scalar_lea.vmem %s2, 8
        %v4467 = vld [vmem:[%s4466] sm:$0xf]
        %v4468 = vld [vmem:[%s4466 + $0x4] sm:$0xf]
        %v4471 = vunpack.c.l.b16 %v4467
        %v4472 = vunpack.c.l.b16 %v4468
        %v4473 = vpack.c.b16 %v4472, %v4471
        %v4475 = vsel %vm1046, %v4473, 0
        %4477 = vmatprep.subr.bf16.mxu0 0
        %4478 = vmatpush1.bf16.msra.mxu0 %v4394
        %4479 = vmatprep.subr.bf16.mxu0 0
        %4480 = vmatpush1.bf16.msra.mxu0 %v4395
        %4481 = vmatprep.subr.bf16.mxu0 0
        %4482 = vmatpush1.bf16.msra.mxu0 %v4396
        %4483 = vmatprep.subr.bf16.mxu0 0
        %4484 = vmatpush1.bf16.msra.mxu0 %v4397
        %4485 = vmatprep.subr.bf16.mxu0 0
        %4486 = vmatpush1.bf16.msra.mxu0 0
        %4487 = vmatprep.subr.bf16.mxu0 0
        %4488 = vmatpush1.bf16.msra.mxu0 0
        %4489 = vmatprep.subr.bf16.mxu0 0
        %4490 = vmatpush1.bf16.msra.mxu0 0
        %4491 = vmatprep.subr.bf16.mxu0 0
        %4492 = vmatpush1.bf16.msra.mxu0 0
        %4493 = vmatprep.subr.bf16.mxu0 0
        %4494 = vmatpush1.bf16.msra.mxu0 0
        %4495 = vmatprep.subr.bf16.mxu0 0
        %4496 = vmatpush1.bf16.msra.mxu0 0
        %4497 = vmatprep.subr.bf16.mxu0 0
        %4498 = vmatpush1.bf16.msra.mxu0 0
        %4499 = vmatprep.subr.bf16.mxu0 0
        %4500 = vmatpush1.bf16.msra.mxu0 0
        %4501 = vmatprep.subr.bf16.mxu0 0
        %4502 = vmatpush1.bf16.msra.mxu0 0
        %4503 = vmatprep.subr.bf16.mxu0 0
        %4504 = vmatpush1.bf16.msra.mxu0 0
        %4505 = vmatprep.subr.bf16.mxu0 0
        %4506 = vmatpush1.bf16.msra.mxu0 0
        %4507 = vmatprep.subr.bf16.mxu0 0
        %4508 = vmatpush1.bf16.msra.mxu0 0
        %4509 = vmatprep.mubr.bf16.mxu0 0
        %4510 = vmatmul.mubr.bf16.gmra.mrb[0].mxu0 %v4475
        %v4511 = vpop.f32.mrb[0].mxu0
        %v4512 = vadd.f32 0.0, %v4511
        %v4513 = vpop.f32.mrb[0].mxu0
        %v4514 = vpop.f32.mrb[0].mxu0
        %v4515 = vadd.f32 0.0, %v4514
        %v4516 = vpop.f32.mrb[0].mxu0
        %4517 = vdwg.mxu0
        %v4518 = vpack.c.bf16 %v4515, %v4512
        %s4519 = scalar_lea.vmem %s13, 64
        %v4520 = vld [vmem:[%s4519] sm:$0xf]
        %v4521 = vld [vmem:[%s4519 + $0x4] sm:$0xf]
        %v4522 = vld [vmem:[%s4519 + $0x8] sm:$0xf]
        %v4523 = vld [vmem:[%s4519 + $0xc] sm:$0xf]
        %v4524 = vld [vmem:[%s4519 + $0x10] sm:$0xf]
        %v4525 = vld [vmem:[%s4519 + $0x14] sm:$0xf]
        %v4526 = vld [vmem:[%s4519 + $0x18] sm:$0xf]
        %v4527 = vld [vmem:[%s4519 + $0x1c] sm:$0xf]
        %v4528 = vld [vmem:[%s4519 + $0x20] sm:$0xf]
        %v4529 = vld [vmem:[%s4519 + $0x24] sm:$0xf]
        %v4530 = vld [vmem:[%s4519 + $0x28] sm:$0xf]
        %v4531 = vld [vmem:[%s4519 + $0x2c] sm:$0xf]
        %v4532 = vld [vmem:[%s4519 + $0x30] sm:$0xf]
        %v4533 = vld [vmem:[%s4519 + $0x34] sm:$0xf]
        %v4534 = vld [vmem:[%s4519 + $0x38] sm:$0xf]
        %v4535 = vld [vmem:[%s4519 + $0x3c] sm:$0xf]
        %v4552 = vunpack.c.l.b16 %v4520
        %v4553 = vunpack.c.l.b16 %v4521
        %v4554 = vunpack.c.l.b16 %v4522
        %v4555 = vunpack.c.l.b16 %v4523
        %v4556 = vunpack.c.l.b16 %v4524
        %v4557 = vunpack.c.l.b16 %v4525
        %v4558 = vunpack.c.l.b16 %v4526
        %v4559 = vunpack.c.l.b16 %v4527
        %v4560 = vunpack.c.l.b16 %v4528
        %v4561 = vunpack.c.l.b16 %v4529
        %v4562 = vunpack.c.l.b16 %v4530
        %v4563 = vunpack.c.l.b16 %v4531
        %v4564 = vunpack.c.l.b16 %v4532
        %v4565 = vunpack.c.l.b16 %v4533
        %v4566 = vunpack.c.l.b16 %v4534
        %v4567 = vunpack.c.l.b16 %v4535
        %v4568 = vpack.c.b16 %v4553, %v4552
        %v4569 = vpack.c.b16 %v4555, %v4554
        %v4570 = vpack.c.b16 %v4557, %v4556
        %v4571 = vpack.c.b16 %v4559, %v4558
        %v4572 = vpack.c.b16 %v4561, %v4560
        %v4573 = vpack.c.b16 %v4563, %v4562
        %v4574 = vpack.c.b16 %v4565, %v4564
        %v4575 = vpack.c.b16 %v4567, %v4566
        %4584 = vmatprep.subr.bf16.mxu0 0
        %4585 = vmatpush1.bf16.msra.mxu0 %v4568
        %4586 = vmatprep.subr.bf16.mxu0 0
        %4587 = vmatpush1.bf16.msra.mxu0 %v4569
        %4588 = vmatprep.subr.bf16.mxu0 0
        %4589 = vmatpush1.bf16.msra.mxu0 %v4570
        %4590 = vmatprep.subr.bf16.mxu0 0
        %4591 = vmatpush1.bf16.msra.mxu0 %v4571
        %4592 = vmatprep.subr.bf16.mxu0 0
        %4593 = vmatpush1.bf16.msra.mxu0 %v4572
        %4594 = vmatprep.subr.bf16.mxu0 0
        %4595 = vmatpush1.bf16.msra.mxu0 %v4573
        %4596 = vmatprep.subr.bf16.mxu0 0
        %4597 = vmatpush1.bf16.msra.mxu0 %v4574
        %4598 = vmatprep.subr.bf16.mxu0 0
        %4599 = vmatpush1.bf16.msra.mxu0 %v4575
        %4600 = vmatprep.subr.bf16.mxu0 0
        %4601 = vmatpush1.bf16.msra.mxu0 0
        %4602 = vmatprep.subr.bf16.mxu0 0
        %4603 = vmatpush1.bf16.msra.mxu0 0
        %4604 = vmatprep.subr.bf16.mxu0 0
        %4605 = vmatpush1.bf16.msra.mxu0 0
        %4606 = vmatprep.subr.bf16.mxu0 0
        %4607 = vmatpush1.bf16.msra.mxu0 0
        %4608 = vmatprep.subr.bf16.mxu0 0
        %4609 = vmatpush1.bf16.msra.mxu0 0
        %4610 = vmatprep.subr.bf16.mxu0 0
        %4611 = vmatpush1.bf16.msra.mxu0 0
        %4612 = vmatprep.subr.bf16.mxu0 0
        %4613 = vmatpush1.bf16.msra.mxu0 0
        %4614 = vmatprep.subr.bf16.mxu0 0
        %4615 = vmatpush1.bf16.msra.mxu0 0
        %4616 = vmatprep.mubr.bf16.mxu0 0
        %4617 = vmatmul.mubr.bf16.gmra.mrb[0].mxu0 %v4518
        %v4618 = vpop.f32.mrb[0].mxu0
        %v4619 = vadd.f32 0.0, %v4618
        %v4620 = vpop.f32.mrb[0].mxu0
        %v4621 = vpop.f32.mrb[0].mxu0
        %v4622 = vadd.f32 0.0, %v4621
        %v4623 = vpop.f32.mrb[0].mxu0
        %4624 = vdwg.mxu0
        %v4641 = vunpack.c.l.b16 %v4450
        %v4642 = vunpack.c.l.b16 %v4451
        %v4643 = vunpack.c.l.b16 %v4452
        %v4644 = vunpack.c.l.b16 %v4453
        %v4645 = vunpack.c.l.b16 %v4454
        %v4646 = vunpack.c.l.b16 %v4455
        %v4647 = vunpack.c.l.b16 %v4456
        %v4648 = vunpack.c.l.b16 %v4457
        %v4649 = vunpack.c.l.b16 %v4458
        %v4650 = vunpack.c.l.b16 %v4459
        %v4651 = vunpack.c.l.b16 %v4460
        %v4652 = vunpack.c.l.b16 %v4461
        %v4653 = vunpack.c.l.b16 %v4462
        %v4654 = vunpack.c.l.b16 %v4463
        %v4655 = vunpack.c.l.b16 %v4464
        %v4656 = vunpack.c.l.b16 %v4465
        %v4657 = vpack.c.b16 %v4642, %v4641
        %v4658 = vpack.c.b16 %v4644, %v4643
        %v4659 = vpack.c.b16 %v4646, %v4645
        %v4660 = vpack.c.b16 %v4648, %v4647
        %v4661 = vpack.c.b16 %v4650, %v4649
        %v4662 = vpack.c.b16 %v4652, %v4651
        %v4663 = vpack.c.b16 %v4654, %v4653
        %v4664 = vpack.c.b16 %v4656, %v4655
        %4673 = vmatprep.subr.bf16.mxu0 0
        %4674 = vmatpush1.bf16.msra.mxu0 %v4657
        %4675 = vmatprep.subr.bf16.mxu0 0
        %4676 = vmatpush1.bf16.msra.mxu0 %v4658
        %4677 = vmatprep.subr.bf16.mxu0 0
        %4678 = vmatpush1.bf16.msra.mxu0 %v4659
        %4679 = vmatprep.subr.bf16.mxu0 0
        %4680 = vmatpush1.bf16.msra.mxu0 %v4660
        %4681 = vmatprep.subr.bf16.mxu0 0
        %4682 = vmatpush1.bf16.msra.mxu0 %v4661
        %4683 = vmatprep.subr.bf16.mxu0 0
        %4684 = vmatpush1.bf16.msra.mxu0 %v4662
        %4685 = vmatprep.subr.bf16.mxu0 0
        %4686 = vmatpush1.bf16.msra.mxu0 %v4663
        %4687 = vmatprep.subr.bf16.mxu0 0
        %4688 = vmatpush1.bf16.msra.mxu0 %v4664
        %4689 = vmatprep.subr.bf16.mxu0 0
        %4690 = vmatpush1.bf16.msra.mxu0 0
        %4691 = vmatprep.subr.bf16.mxu0 0
        %4692 = vmatpush1.bf16.msra.mxu0 0
        %4693 = vmatprep.subr.bf16.mxu0 0
        %4694 = vmatpush1.bf16.msra.mxu0 0
        %4695 = vmatprep.subr.bf16.mxu0 0
        %4696 = vmatpush1.bf16.msra.mxu0 0
        %4697 = vmatprep.subr.bf16.mxu0 0
        %4698 = vmatpush1.bf16.msra.mxu0 0
        %4699 = vmatprep.subr.bf16.mxu0 0
        %4700 = vmatpush1.bf16.msra.mxu0 0
        %4701 = vmatprep.subr.bf16.mxu0 0
        %4702 = vmatpush1.bf16.msra.mxu0 0
        %4703 = vmatprep.subr.bf16.mxu0 0
        %4704 = vmatpush1.bf16.msra.mxu0 0
        %4705 = vmatprep.mubr.bf16.mxu0 0
        %4706 = vmatmul.mubr.bf16.gmra.mrb[0].mxu0 %v4449
        %v4707 = vpop.f32.mrb[0].mxu0
        %v4708 = vadd.f32 %v4619, %v4707
        %v4709 = vpop.f32.mrb[0].mxu0
        %v4710 = vpop.f32.mrb[0].mxu0
        %v4711 = vadd.f32 %v4622, %v4710
        %v4712 = vpop.f32.mrb[0].mxu0
        %4713 = vdwg.mxu0
        %s4714 = scalar_lea.vmem %s2, 16
        %v4715 = vld [vmem:[%s4714] sm:$0xf]
        %v4716 = vld [vmem:[%s4714 + $0x4] sm:$0xf]
        %v4719 = vunpack.c.l.b16 %v4715
        %v4720 = vunpack.c.l.b16 %v4716
        %v4721 = vpack.c.b16 %v4720, %v4719
        %v4723 = vsel %vm1046, %v4721, 0
        %4725 = vmatprep.subr.bf16.mxu0 0
        %4726 = vmatpush1.bf16.msra.mxu0 %v4394
        %4727 = vmatprep.subr.bf16.mxu0 0
        %4728 = vmatpush1.bf16.msra.mxu0 %v4395
        %4729 = vmatprep.subr.bf16.mxu0 0
        %4730 = vmatpush1.bf16.msra.mxu0 %v4396
        %4731 = vmatprep.subr.bf16.mxu0 0
        %4732 = vmatpush1.bf16.msra.mxu0 %v4397
        %4733 = vmatprep.subr.bf16.mxu0 0
        %4734 = vmatpush1.bf16.msra.mxu0 0
        %4735 = vmatprep.subr.bf16.mxu0 0
        %4736 = vmatpush1.bf16.msra.mxu0 0
        %4737 = vmatprep.subr.bf16.mxu0 0
        %4738 = vmatpush1.bf16.msra.mxu0 0
        %4739 = vmatprep.subr.bf16.mxu0 0
        %4740 = vmatpush1.bf16.msra.mxu0 0
        %4741 = vmatprep.subr.bf16.mxu0 0
        %4742 = vmatpush1.bf16.msra.mxu0 0
        %4743 = vmatprep.subr.bf16.mxu0 0
        %4744 = vmatpush1.bf16.msra.mxu0 0
        %4745 = vmatprep.subr.bf16.mxu0 0
        %4746 = vmatpush1.bf16.msra.mxu0 0
        %4747 = vmatprep.subr.bf16.mxu0 0
        %4748 = vmatpush1.bf16.msra.mxu0 0
        %4749 = vmatprep.subr.bf16.mxu0 0
        %4750 = vmatpush1.bf16.msra.mxu0 0
        %4751 = vmatprep.subr.bf16.mxu0 0
        %4752 = vmatpush1.bf16.msra.mxu0 0
        %4753 = vmatprep.subr.bf16.mxu0 0
        %4754 = vmatpush1.bf16.msra.mxu0 0
        %4755 = vmatprep.subr.bf16.mxu0 0
        %4756 = vmatpush1.bf16.msra.mxu0 0
        %4757 = vmatprep.mubr.bf16.mxu0 0
        %4758 = vmatmul.mubr.bf16.gmra.mrb[0].mxu0 %v4723
        %v4759 = vpop.f32.mrb[0].mxu0
        %v4760 = vadd.f32 0.0, %v4759
        %v4761 = vpop.f32.mrb[0].mxu0
        %v4762 = vpop.f32.mrb[0].mxu0
        %v4763 = vadd.f32 0.0, %v4762
        %v4764 = vpop.f32.mrb[0].mxu0
        %4765 = vdwg.mxu0
        %v4766 = vpack.c.bf16 %v4763, %v4760
        %s4767 = scalar_lea.vmem %s13, 128
        %v4768 = vld [vmem:[%s4767] sm:$0xf]
        %v4769 = vld [vmem:[%s4767 + $0x4] sm:$0xf]
        %v4770 = vld [vmem:[%s4767 + $0x8] sm:$0xf]
        %v4771 = vld [vmem:[%s4767 + $0xc] sm:$0xf]
        %v4772 = vld [vmem:[%s4767 + $0x10] sm:$0xf]
        %v4773 = vld [vmem:[%s4767 + $0x14] sm:$0xf]
        %v4774 = vld [vmem:[%s4767 + $0x18] sm:$0xf]
        %v4775 = vld [vmem:[%s4767 + $0x1c] sm:$0xf]
        %v4776 = vld [vmem:[%s4767 + $0x20] sm:$0xf]
        %v4777 = vld [vmem:[%s4767 + $0x24] sm:$0xf]
        %v4778 = vld [vmem:[%s4767 + $0x28] sm:$0xf]
        %v4779 = vld [vmem:[%s4767 + $0x2c] sm:$0xf]
        %v4780 = vld [vmem:[%s4767 + $0x30] sm:$0xf]
        %v4781 = vld [vmem:[%s4767 + $0x34] sm:$0xf]
        %v4782 = vld [vmem:[%s4767 + $0x38] sm:$0xf]
        %v4783 = vld [vmem:[%s4767 + $0x3c] sm:$0xf]
        %v4800 = vunpack.c.l.b16 %v4768
        %v4801 = vunpack.c.l.b16 %v4769
        %v4802 = vunpack.c.l.b16 %v4770
        %v4803 = vunpack.c.l.b16 %v4771
        %v4804 = vunpack.c.l.b16 %v4772
        %v4805 = vunpack.c.l.b16 %v4773
        %v4806 = vunpack.c.l.b16 %v4774
        %v4807 = vunpack.c.l.b16 %v4775
        %v4808 = vunpack.c.l.b16 %v4776
        %v4809 = vunpack.c.l.b16 %v4777
        %v4810 = vunpack.c.l.b16 %v4778
        %v4811 = vunpack.c.l.b16 %v4779
        %v4812 = vunpack.c.l.b16 %v4780
        %v4813 = vunpack.c.l.b16 %v4781
        %v4814 = vunpack.c.l.b16 %v4782
        %v4815 = vunpack.c.l.b16 %v4783
        %v4816 = vpack.c.b16 %v4801, %v4800
        %v4817 = vpack.c.b16 %v4803, %v4802
        %v4818 = vpack.c.b16 %v4805, %v4804
        %v4819 = vpack.c.b16 %v4807, %v4806
        %v4820 = vpack.c.b16 %v4809, %v4808
        %v4821 = vpack.c.b16 %v4811, %v4810
        %v4822 = vpack.c.b16 %v4813, %v4812
        %v4823 = vpack.c.b16 %v4815, %v4814
        %4832 = vmatprep.subr.bf16.mxu0 0
        %4833 = vmatpush1.bf16.msra.mxu0 %v4816
        %4834 = vmatprep.subr.bf16.mxu0 0
        %4835 = vmatpush1.bf16.msra.mxu0 %v4817
        %4836 = vmatprep.subr.bf16.mxu0 0
        %4837 = vmatpush1.bf16.msra.mxu0 %v4818
        %4838 = vmatprep.subr.bf16.mxu0 0
        %4839 = vmatpush1.bf16.msra.mxu0 %v4819
        %4840 = vmatprep.subr.bf16.mxu0 0
        %4841 = vmatpush1.bf16.msra.mxu0 %v4820
        %4842 = vmatprep.subr.bf16.mxu0 0
        %4843 = vmatpush1.bf16.msra.mxu0 %v4821
        %4844 = vmatprep.subr.bf16.mxu0 0
        %4845 = vmatpush1.bf16.msra.mxu0 %v4822
        %4846 = vmatprep.subr.bf16.mxu0 0
        %4847 = vmatpush1.bf16.msra.mxu0 %v4823
        %4848 = vmatprep.subr.bf16.mxu0 0
        %4849 = vmatpush1.bf16.msra.mxu0 0
        %4850 = vmatprep.subr.bf16.mxu0 0
        %4851 = vmatpush1.bf16.msra.mxu0 0
        %4852 = vmatprep.subr.bf16.mxu0 0
        %4853 = vmatpush1.bf16.msra.mxu0 0
        %4854 = vmatprep.subr.bf16.mxu0 0
        %4855 = vmatpush1.bf16.msra.mxu0 0
        %4856 = vmatprep.subr.bf16.mxu0 0
        %4857 = vmatpush1.bf16.msra.mxu0 0
        %4858 = vmatprep.subr.bf16.mxu0 0
        %4859 = vmatpush1.bf16.msra.mxu0 0
        %4860 = vmatprep.subr.bf16.mxu0 0
        %4861 = vmatpush1.bf16.msra.mxu0 0
        %4862 = vmatprep.subr.bf16.mxu0 0
        %4863 = vmatpush1.bf16.msra.mxu0 0
        %4864 = vmatprep.mubr.bf16.mxu0 0
        %4865 = vmatmul.mubr.bf16.gmra.mrb[0].mxu0 %v4766
        %v4866 = vpop.f32.mrb[0].mxu0
        %v4867 = vadd.f32 0.0, %v4866
        %v4868 = vpop.f32.mrb[0].mxu0
        %v4869 = vpop.f32.mrb[0].mxu0
        %v4870 = vadd.f32 0.0, %v4869
        %v4871 = vpop.f32.mrb[0].mxu0
        %4872 = vdwg.mxu0
        %v4873 = vadd.f32 %v4708, %v4867
        %v4874 = vadd.f32 %v4711, %v4870
        %s4875 = scalar_lea.vmem %s2, 24
        %v4876 = vld [vmem:[%s4875] sm:$0xf]
        %v4877 = vld [vmem:[%s4875 + $0x4] sm:$0xf]
        %v4880 = vunpack.c.l.b16 %v4876
        %v4881 = vunpack.c.l.b16 %v4877
        %v4882 = vpack.c.b16 %v4881, %v4880
        %v4884 = vsel %vm1046, %v4882, 0
        %4886 = vmatprep.subr.bf16.mxu0 0
        %4887 = vmatpush1.bf16.msra.mxu0 %v4394
        %4888 = vmatprep.subr.bf16.mxu0 0
        %4889 = vmatpush1.bf16.msra.mxu0 %v4395
        %4890 = vmatprep.subr.bf16.mxu0 0
        %4891 = vmatpush1.bf16.msra.mxu0 %v4396
        %4892 = vmatprep.subr.bf16.mxu0 0
        %4893 = vmatpush1.bf16.msra.mxu0 %v4397
        %4894 = vmatprep.subr.bf16.mxu0 0
        %4895 = vmatpush1.bf16.msra.mxu0 0
        %4896 = vmatprep.subr.bf16.mxu0 0
        %4897 = vmatpush1.bf16.msra.mxu0 0
        %4898 = vmatprep.subr.bf16.mxu0 0
        %4899 = vmatpush1.bf16.msra.mxu0 0
        %4900 = vmatprep.subr.bf16.mxu0 0
        %4901 = vmatpush1.bf16.msra.mxu0 0
        %4902 = vmatprep.subr.bf16.mxu0 0
        %4903 = vmatpush1.bf16.msra.mxu0 0
        %4904 = vmatprep.subr.bf16.mxu0 0
        %4905 = vmatpush1.bf16.msra.mxu0 0
        %4906 = vmatprep.subr.bf16.mxu0 0
        %4907 = vmatpush1.bf16.msra.mxu0 0
        %4908 = vmatprep.subr.bf16.mxu0 0
        %4909 = vmatpush1.bf16.msra.mxu0 0
        %4910 = vmatprep.subr.bf16.mxu0 0
        %4911 = vmatpush1.bf16.msra.mxu0 0
        %4912 = vmatprep.subr.bf16.mxu0 0
        %4913 = vmatpush1.bf16.msra.mxu0 0
        %4914 = vmatprep.subr.bf16.mxu0 0
        %4915 = vmatpush1.bf16.msra.mxu0 0
        %4916 = vmatprep.subr.bf16.mxu0 0
        %4917 = vmatpush1.bf16.msra.mxu0 0
        %4918 = vmatprep.mubr.bf16.mxu0 0
        %4919 = vmatmul.mubr.bf16.gmra.mrb[0].mxu0 %v4884
        %v4920 = vpop.f32.mrb[0].mxu0
        %v4921 = vadd.f32 0.0, %v4920
        %v4922 = vpop.f32.mrb[0].mxu0
        %v4923 = vpop.f32.mrb[0].mxu0
        %v4924 = vadd.f32 0.0, %v4923
        %v4925 = vpop.f32.mrb[0].mxu0
        %4926 = vdwg.mxu0
        %v4927 = vpack.c.bf16 %v4924, %v4921
        %s4928 = scalar_lea.vmem %s13, 192
        %v4929 = vld [vmem:[%s4928] sm:$0xf]
        %v4930 = vld [vmem:[%s4928 + $0x4] sm:$0xf]
        %v4931 = vld [vmem:[%s4928 + $0x8] sm:$0xf]
        %v4932 = vld [vmem:[%s4928 + $0xc] sm:$0xf]
        %v4933 = vld [vmem:[%s4928 + $0x10] sm:$0xf]
        %v4934 = vld [vmem:[%s4928 + $0x14] sm:$0xf]
        %v4935 = vld [vmem:[%s4928 + $0x18] sm:$0xf]
        %v4936 = vld [vmem:[%s4928 + $0x1c] sm:$0xf]
        %v4937 = vld [vmem:[%s4928 + $0x20] sm:$0xf]
        %v4938 = vld [vmem:[%s4928 + $0x24] sm:$0xf]
        %v4939 = vld [vmem:[%s4928 + $0x28] sm:$0xf]
        %v4940 = vld [vmem:[%s4928 + $0x2c] sm:$0xf]
        %v4941 = vld [vmem:[%s4928 + $0x30] sm:$0xf]
        %v4942 = vld [vmem:[%s4928 + $0x34] sm:$0xf]
        %v4943 = vld [vmem:[%s4928 + $0x38] sm:$0xf]
        %v4944 = vld [vmem:[%s4928 + $0x3c] sm:$0xf]
        %v4961 = vunpack.c.l.b16 %v4929
        %v4962 = vunpack.c.l.b16 %v4930
        %v4963 = vunpack.c.l.b16 %v4931
        %v4964 = vunpack.c.l.b16 %v4932
        %v4965 = vunpack.c.l.b16 %v4933
        %v4966 = vunpack.c.l.b16 %v4934
        %v4967 = vunpack.c.l.b16 %v4935
        %v4968 = vunpack.c.l.b16 %v4936
        %v4969 = vunpack.c.l.b16 %v4937
        %v4970 = vunpack.c.l.b16 %v4938
        %v4971 = vunpack.c.l.b16 %v4939
        %v4972 = vunpack.c.l.b16 %v4940
        %v4973 = vunpack.c.l.b16 %v4941
        %v4974 = vunpack.c.l.b16 %v4942
        %v4975 = vunpack.c.l.b16 %v4943
        %v4976 = vunpack.c.l.b16 %v4944
        %v4977 = vpack.c.b16 %v4962, %v4961
        %v4978 = vpack.c.b16 %v4964, %v4963
        %v4979 = vpack.c.b16 %v4966, %v4965
        %v4980 = vpack.c.b16 %v4968, %v4967
        %v4981 = vpack.c.b16 %v4970, %v4969
        %v4982 = vpack.c.b16 %v4972, %v4971
        %v4983 = vpack.c.b16 %v4974, %v4973
        %v4984 = vpack.c.b16 %v4976, %v4975
        %4993 = vmatprep.subr.bf16.mxu0 0
        %4994 = vmatpush1.bf16.msra.mxu0 %v4977
        %4995 = vmatprep.subr.bf16.mxu0 0
        %4996 = vmatpush1.bf16.msra.mxu0 %v4978
        %4997 = vmatprep.subr.bf16.mxu0 0
        %4998 = vmatpush1.bf16.msra.mxu0 %v4979
        %4999 = vmatprep.subr.bf16.mxu0 0
        %5000 = vmatpush1.bf16.msra.mxu0 %v4980
        %5001 = vmatprep.subr.bf16.mxu0 0
        %5002 = vmatpush1.bf16.msra.mxu0 %v4981
        %5003 = vmatprep.subr.bf16.mxu0 0
        %5004 = vmatpush1.bf16.msra.mxu0 %v4982
        %5005 = vmatprep.subr.bf16.mxu0 0
        %5006 = vmatpush1.bf16.msra.mxu0 %v4983
        %5007 = vmatprep.subr.bf16.mxu0 0
        %5008 = vmatpush1.bf16.msra.mxu0 %v4984
        %5009 = vmatprep.subr.bf16.mxu0 0
        %5010 = vmatpush1.bf16.msra.mxu0 0
        %5011 = vmatprep.subr.bf16.mxu0 0
        %5012 = vmatpush1.bf16.msra.mxu0 0
        %5013 = vmatprep.subr.bf16.mxu0 0
        %5014 = vmatpush1.bf16.msra.mxu0 0
        %5015 = vmatprep.subr.bf16.mxu0 0
        %5016 = vmatpush1.bf16.msra.mxu0 0
        %5017 = vmatprep.subr.bf16.mxu0 0
        %5018 = vmatpush1.bf16.msra.mxu0 0
        %5019 = vmatprep.subr.bf16.mxu0 0
        %5020 = vmatpush1.bf16.msra.mxu0 0
        %5021 = vmatprep.subr.bf16.mxu0 0
        %5022 = vmatpush1.bf16.msra.mxu0 0
        %5023 = vmatprep.subr.bf16.mxu0 0
        %5024 = vmatpush1.bf16.msra.mxu0 0
        %5025 = vmatprep.mubr.bf16.mxu0 0
        %5026 = vmatmul.mubr.bf16.gmra.mrb[0].mxu0 %v4927
        %v5027 = vpop.f32.mrb[0].mxu0
        %v5028 = vadd.f32 0.0, %v5027
        %v5029 = vpop.f32.mrb[0].mxu0
        %v5030 = vpop.f32.mrb[0].mxu0
        %v5031 = vadd.f32 0.0, %v5030
        %v5032 = vpop.f32.mrb[0].mxu0
        %5033 = vdwg.mxu0
        %v5034 = vadd.f32 %v4873, %v5028
        %v5035 = vadd.f32 %v4874, %v5031
        %5036 = vmatprep.subr.bf16.mxu0 0
        %5037 = vmatpush1.bf16.msra.mxu0 %v4394
        %5038 = vmatprep.subr.bf16.mxu0 0
        %5039 = vmatpush1.bf16.msra.mxu0 %v4395
        %5040 = vmatprep.subr.bf16.mxu0 0
        %5041 = vmatpush1.bf16.msra.mxu0 %v4396
        %5042 = vmatprep.subr.bf16.mxu0 0
        %5043 = vmatpush1.bf16.msra.mxu0 %v4397
        %5044 = vmatprep.subr.bf16.mxu0 0
        %5045 = vmatpush1.bf16.msra.mxu0 0
        %5046 = vmatprep.subr.bf16.mxu0 0
        %5047 = vmatpush1.bf16.msra.mxu0 0
        %5048 = vmatprep.subr.bf16.mxu0 0
        %5049 = vmatpush1.bf16.msra.mxu0 0
        %5050 = vmatprep.subr.bf16.mxu0 0
        %5051 = vmatpush1.bf16.msra.mxu0 0
        %5052 = vmatprep.subr.bf16.mxu0 0
        %5053 = vmatpush1.bf16.msra.mxu0 0
        %5054 = vmatprep.subr.bf16.mxu0 0
        %5055 = vmatpush1.bf16.msra.mxu0 0
        %5056 = vmatprep.subr.bf16.mxu0 0
        %5057 = vmatpush1.bf16.msra.mxu0 0
        %5058 = vmatprep.subr.bf16.mxu0 0
        %5059 = vmatpush1.bf16.msra.mxu0 0
        %5060 = vmatprep.subr.bf16.mxu0 0
        %5061 = vmatpush1.bf16.msra.mxu0 0
        %5062 = vmatprep.subr.bf16.mxu0 0
        %5063 = vmatpush1.bf16.msra.mxu0 0
        %5064 = vmatprep.subr.bf16.mxu0 0
        %5065 = vmatpush1.bf16.msra.mxu0 0
        %5066 = vmatprep.subr.bf16.mxu0 0
        %5067 = vmatpush1.bf16.msra.mxu0 0
        %5068 = vmatprep.mubr.bf16.mxu0 0
        %5069 = vmatmul.mubr.bf16.gmra.mrb[0].mxu0 %v4343
        %v5070 = vpop.f32.mrb[0].mxu0
        %v5071 = vadd.f32 0.0, %v5070
        %v5072 = vpop.f32.mrb[0].mxu0
        %v5073 = vpop.f32.mrb[0].mxu0
        %v5074 = vadd.f32 0.0, %v5073
        %v5075 = vpop.f32.mrb[0].mxu0
        %5076 = vdwg.mxu0
        %v5077 = vpack.c.bf16 %v5074, %v5071
        %s5078 = scalar_lea.vmem %s13, 256
        %v5079 = vld [vmem:[%s5078] sm:$0xf]
        %v5080 = vld [vmem:[%s5078 + $0x4] sm:$0xf]
        %v5081 = vld [vmem:[%s5078 + $0x8] sm:$0xf]
        %v5082 = vld [vmem:[%s5078 + $0xc] sm:$0xf]
        %v5083 = vld [vmem:[%s5078 + $0x10] sm:$0xf]
        %v5084 = vld [vmem:[%s5078 + $0x14] sm:$0xf]
        %v5085 = vld [vmem:[%s5078 + $0x18] sm:$0xf]
        %v5086 = vld [vmem:[%s5078 + $0x1c] sm:$0xf]
        %v5087 = vld [vmem:[%s5078 + $0x20] sm:$0xf]
        %v5088 = vld [vmem:[%s5078 + $0x24] sm:$0xf]
        %v5089 = vld [vmem:[%s5078 + $0x28] sm:$0xf]
        %v5090 = vld [vmem:[%s5078 + $0x2c] sm:$0xf]
        %v5091 = vld [vmem:[%s5078 + $0x30] sm:$0xf]
        %v5092 = vld [vmem:[%s5078 + $0x34] sm:$0xf]
        %v5093 = vld [vmem:[%s5078 + $0x38] sm:$0xf]
        %v5094 = vld [vmem:[%s5078 + $0x3c] sm:$0xf]
        %v5111 = vunpack.c.l.b16 %v5079
        %v5112 = vunpack.c.l.b16 %v5080
        %v5113 = vunpack.c.l.b16 %v5081
        %v5114 = vunpack.c.l.b16 %v5082
        %v5115 = vunpack.c.l.b16 %v5083
        %v5116 = vunpack.c.l.b16 %v5084
        %v5117 = vunpack.c.l.b16 %v5085
        %v5118 = vunpack.c.l.b16 %v5086
        %v5119 = vunpack.c.l.b16 %v5087
        %v5120 = vunpack.c.l.b16 %v5088
        %v5121 = vunpack.c.l.b16 %v5089
        %v5122 = vunpack.c.l.b16 %v5090
        %v5123 = vunpack.c.l.b16 %v5091
        %v5124 = vunpack.c.l.b16 %v5092
        %v5125 = vunpack.c.l.b16 %v5093
        %v5126 = vunpack.c.l.b16 %v5094
        %v5127 = vpack.c.b16 %v5112, %v5111
        %v5128 = vpack.c.b16 %v5114, %v5113
        %v5129 = vpack.c.b16 %v5116, %v5115
        %v5130 = vpack.c.b16 %v5118, %v5117
        %v5131 = vpack.c.b16 %v5120, %v5119
        %v5132 = vpack.c.b16 %v5122, %v5121
        %v5133 = vpack.c.b16 %v5124, %v5123
        %v5134 = vpack.c.b16 %v5126, %v5125
        %5143 = vmatprep.subr.bf16.mxu0 0
        %5144 = vmatpush1.bf16.msra.mxu0 %v5127
        %5145 = vmatprep.subr.bf16.mxu0 0
        %5146 = vmatpush1.bf16.msra.mxu0 %v5128
        %5147 = vmatprep.subr.bf16.mxu0 0
        %5148 = vmatpush1.bf16.msra.mxu0 %v5129
        %5149 = vmatprep.subr.bf16.mxu0 0
        %5150 = vmatpush1.bf16.msra.mxu0 %v5130
        %5151 = vmatprep.subr.bf16.mxu0 0
        %5152 = vmatpush1.bf16.msra.mxu0 %v5131
        %5153 = vmatprep.subr.bf16.mxu0 0
        %5154 = vmatpush1.bf16.msra.mxu0 %v5132
        %5155 = vmatprep.subr.bf16.mxu0 0
        %5156 = vmatpush1.bf16.msra.mxu0 %v5133
        %5157 = vmatprep.subr.bf16.mxu0 0
        %5158 = vmatpush1.bf16.msra.mxu0 %v5134
        %5159 = vmatprep.subr.bf16.mxu0 0
        %5160 = vmatpush1.bf16.msra.mxu0 0
        %5161 = vmatprep.subr.bf16.mxu0 0
        %5162 = vmatpush1.bf16.msra.mxu0 0
        %5163 = vmatprep.subr.bf16.mxu0 0
        %5164 = vmatpush1.bf16.msra.mxu0 0
        %5165 = vmatprep.subr.bf16.mxu0 0
        %5166 = vmatpush1.bf16.msra.mxu0 0
        %5167 = vmatprep.subr.bf16.mxu0 0
        %5168 = vmatpush1.bf16.msra.mxu0 0
        %5169 = vmatprep.subr.bf16.mxu0 0
        %5170 = vmatpush1.bf16.msra.mxu0 0
        %5171 = vmatprep.subr.bf16.mxu0 0
        %5172 = vmatpush1.bf16.msra.mxu0 0
        %5173 = vmatprep.subr.bf16.mxu0 0
        %5174 = vmatpush1.bf16.msra.mxu0 0
        %5175 = vmatprep.mubr.bf16.mxu0 0
        %5176 = vmatmul.mubr.bf16.gmra.mrb[0].mxu0 %v5077
        %v5177 = vpop.f32.mrb[0].mxu0
        %v5178 = vadd.f32 0.0, %v5177
        %v5179 = vpop.f32.mrb[0].mxu0
        %v5180 = vpop.f32.mrb[0].mxu0
        %v5181 = vadd.f32 0.0, %v5180
        %v5182 = vpop.f32.mrb[0].mxu0
        %5183 = vdwg.mxu0
        %v5184 = vadd.f32 %v5034, %v5178
        %v5185 = vadd.f32 %v5035, %v5181
        %s5186 = scalar_lea.vmem %s2, 40
        %v5187 = vld [vmem:[%s5186] sm:$0xf]
        %v5188 = vld [vmem:[%s5186 + $0x4] sm:$0xf]
        %v5191 = vunpack.c.l.b16 %v5187
        %v5192 = vunpack.c.l.b16 %v5188
        %v5193 = vpack.c.b16 %v5192, %v5191
        %v5195 = vsel %vm1046, %v5193, 0
        %5197 = vmatprep.subr.bf16.mxu0 0
        %5198 = vmatpush1.bf16.msra.mxu0 %v4394
        %5199 = vmatprep.subr.bf16.mxu0 0
        %5200 = vmatpush1.bf16.msra.mxu0 %v4395
        %5201 = vmatprep.subr.bf16.mxu0 0
        %5202 = vmatpush1.bf16.msra.mxu0 %v4396
        %5203 = vmatprep.subr.bf16.mxu0 0
        %5204 = vmatpush1.bf16.msra.mxu0 %v4397
        %5205 = vmatprep.subr.bf16.mxu0 0
        %5206 = vmatpush1.bf16.msra.mxu0 0
        %5207 = vmatprep.subr.bf16.mxu0 0
        %5208 = vmatpush1.bf16.msra.mxu0 0
        %5209 = vmatprep.subr.bf16.mxu0 0
        %5210 = vmatpush1.bf16.msra.mxu0 0
        %5211 = vmatprep.subr.bf16.mxu0 0
        %5212 = vmatpush1.bf16.msra.mxu0 0
        %5213 = vmatprep.subr.bf16.mxu0 0
        %5214 = vmatpush1.bf16.msra.mxu0 0
        %5215 = vmatprep.subr.bf16.mxu0 0
        %5216 = vmatpush1.bf16.msra.mxu0 0
        %5217 = vmatprep.subr.bf16.mxu0 0
        %5218 = vmatpush1.bf16.msra.mxu0 0
        %5219 = vmatprep.subr.bf16.mxu0 0
        %5220 = vmatpush1.bf16.msra.mxu0 0
        %5221 = vmatprep.subr.bf16.mxu0 0
        %5222 = vmatpush1.bf16.msra.mxu0 0
        %5223 = vmatprep.subr.bf16.mxu0 0
        %5224 = vmatpush1.bf16.msra.mxu0 0
        %5225 = vmatprep.subr.bf16.mxu0 0
        %5226 = vmatpush1.bf16.msra.mxu0 0
        %5227 = vmatprep.subr.bf16.mxu0 0
        %5228 = vmatpush1.bf16.msra.mxu0 0
        %5229 = vmatprep.mubr.bf16.mxu0 0
        %5230 = vmatmul.mubr.bf16.gmra.mrb[0].mxu0 %v5195
        %v5231 = vpop.f32.mrb[0].mxu0
        %v5232 = vadd.f32 0.0, %v5231
        %v5233 = vpop.f32.mrb[0].mxu0
        %v5234 = vpop.f32.mrb[0].mxu0
        %v5235 = vadd.f32 0.0, %v5234
        %v5236 = vpop.f32.mrb[0].mxu0
        %5237 = vdwg.mxu0
        %v5238 = vpack.c.bf16 %v5235, %v5232
        %s5239 = scalar_lea.vmem %s13, 320
        %v5240 = vld [vmem:[%s5239] sm:$0xf]
        %v5241 = vld [vmem:[%s5239 + $0x4] sm:$0xf]
        %v5242 = vld [vmem:[%s5239 + $0x8] sm:$0xf]
        %v5243 = vld [vmem:[%s5239 + $0xc] sm:$0xf]
        %v5244 = vld [vmem:[%s5239 + $0x10] sm:$0xf]
        %v5245 = vld [vmem:[%s5239 + $0x14] sm:$0xf]
        %v5246 = vld [vmem:[%s5239 + $0x18] sm:$0xf]
        %v5247 = vld [vmem:[%s5239 + $0x1c] sm:$0xf]
        %v5248 = vld [vmem:[%s5239 + $0x20] sm:$0xf]
        %v5249 = vld [vmem:[%s5239 + $0x24] sm:$0xf]
        %v5250 = vld [vmem:[%s5239 + $0x28] sm:$0xf]
        %v5251 = vld [vmem:[%s5239 + $0x2c] sm:$0xf]
        %v5252 = vld [vmem:[%s5239 + $0x30] sm:$0xf]
        %v5253 = vld [vmem:[%s5239 + $0x34] sm:$0xf]
        %v5254 = vld [vmem:[%s5239 + $0x38] sm:$0xf]
        %v5255 = vld [vmem:[%s5239 + $0x3c] sm:$0xf]
        %v5272 = vunpack.c.l.b16 %v5240
        %v5273 = vunpack.c.l.b16 %v5241
        %v5274 = vunpack.c.l.b16 %v5242
        %v5275 = vunpack.c.l.b16 %v5243
        %v5276 = vunpack.c.l.b16 %v5244
        %v5277 = vunpack.c.l.b16 %v5245
        %v5278 = vunpack.c.l.b16 %v5246
        %v5279 = vunpack.c.l.b16 %v5247
        %v5280 = vunpack.c.l.b16 %v5248
        %v5281 = vunpack.c.l.b16 %v5249
        %v5282 = vunpack.c.l.b16 %v5250
        %v5283 = vunpack.c.l.b16 %v5251
        %v5284 = vunpack.c.l.b16 %v5252
        %v5285 = vunpack.c.l.b16 %v5253
        %v5286 = vunpack.c.l.b16 %v5254
        %v5287 = vunpack.c.l.b16 %v5255
        %v5288 = vpack.c.b16 %v5273, %v5272
        %v5289 = vpack.c.b16 %v5275, %v5274
        %v5290 = vpack.c.b16 %v5277, %v5276
        %v5291 = vpack.c.b16 %v5279, %v5278
        %v5292 = vpack.c.b16 %v5281, %v5280
        %v5293 = vpack.c.b16 %v5283, %v5282
        %v5294 = vpack.c.b16 %v5285, %v5284
        %v5295 = vpack.c.b16 %v5287, %v5286
        %5304 = vmatprep.subr.bf16.mxu0 0
        %5305 = vmatpush1.bf16.msra.mxu0 %v5288
        %5306 = vmatprep.subr.bf16.mxu0 0
        %5307 = vmatpush1.bf16.msra.mxu0 %v5289
        %5308 = vmatprep.subr.bf16.mxu0 0
        %5309 = vmatpush1.bf16.msra.mxu0 %v5290
        %5310 = vmatprep.subr.bf16.mxu0 0
        %5311 = vmatpush1.bf16.msra.mxu0 %v5291
        %5312 = vmatprep.subr.bf16.mxu0 0
        %5313 = vmatpush1.bf16.msra.mxu0 %v5292
        %5314 = vmatprep.subr.bf16.mxu0 0
        %5315 = vmatpush1.bf16.msra.mxu0 %v5293
        %5316 = vmatprep.subr.bf16.mxu0 0
        %5317 = vmatpush1.bf16.msra.mxu0 %v5294
        %5318 = vmatprep.subr.bf16.mxu0 0
        %5319 = vmatpush1.bf16.msra.mxu0 %v5295
        %5320 = vmatprep.subr.bf16.mxu0 0
        %5321 = vmatpush1.bf16.msra.mxu0 0
        %5322 = vmatprep.subr.bf16.mxu0 0
        %5323 = vmatpush1.bf16.msra.mxu0 0
        %5324 = vmatprep.subr.bf16.mxu0 0
        %5325 = vmatpush1.bf16.msra.mxu0 0
        %5326 = vmatprep.subr.bf16.mxu0 0
        %5327 = vmatpush1.bf16.msra.mxu0 0
        %5328 = vmatprep.subr.bf16.mxu0 0
        %5329 = vmatpush1.bf16.msra.mxu0 0
        %5330 = vmatprep.subr.bf16.mxu0 0
        %5331 = vmatpush1.bf16.msra.mxu0 0
        %5332 = vmatprep.subr.bf16.mxu0 0
        %5333 = vmatpush1.bf16.msra.mxu0 0
        %5334 = vmatprep.subr.bf16.mxu0 0
        %5335 = vmatpush1.bf16.msra.mxu0 0
        %5336 = vmatprep.mubr.bf16.mxu0 0
        %5337 = vmatmul.mubr.bf16.gmra.mrb[0].mxu0 %v5238
        %v5338 = vpop.f32.mrb[0].mxu0
        %v5339 = vadd.f32 0.0, %v5338
        %v5340 = vpop.f32.mrb[0].mxu0
        %v5341 = vpop.f32.mrb[0].mxu0
        %v5342 = vadd.f32 0.0, %v5341
        %v5343 = vpop.f32.mrb[0].mxu0
        %5344 = vdwg.mxu0
        %v5345 = vadd.f32 %v5184, %v5339
        %v5346 = vadd.f32 %v5185, %v5342
        %s5347 = scalar_lea.vmem %s2, 48
        %v5348 = vld [vmem:[%s5347] sm:$0xf]
        %v5349 = vld [vmem:[%s5347 + $0x4] sm:$0xf]
        %v5352 = vunpack.c.l.b16 %v5348
        %v5353 = vunpack.c.l.b16 %v5349
        %v5354 = vpack.c.b16 %v5353, %v5352
        %v5356 = vsel %vm1046, %v5354, 0
        %5358 = vmatprep.subr.bf16.mxu0 0
        %5359 = vmatpush1.bf16.msra.mxu0 %v4394
        %5360 = vmatprep.subr.bf16.mxu0 0
        %5361 = vmatpush1.bf16.msra.mxu0 %v4395
        %5362 = vmatprep.subr.bf16.mxu0 0
        %5363 = vmatpush1.bf16.msra.mxu0 %v4396
        %5364 = vmatprep.subr.bf16.mxu0 0
        %5365 = vmatpush1.bf16.msra.mxu0 %v4397
        %5366 = vmatprep.subr.bf16.mxu0 0
        %5367 = vmatpush1.bf16.msra.mxu0 0
        %5368 = vmatprep.subr.bf16.mxu0 0
        %5369 = vmatpush1.bf16.msra.mxu0 0
        %5370 = vmatprep.subr.bf16.mxu0 0
        %5371 = vmatpush1.bf16.msra.mxu0 0
        %5372 = vmatprep.subr.bf16.mxu0 0
        %5373 = vmatpush1.bf16.msra.mxu0 0
        %5374 = vmatprep.subr.bf16.mxu0 0
        %5375 = vmatpush1.bf16.msra.mxu0 0
        %5376 = vmatprep.subr.bf16.mxu0 0
        %5377 = vmatpush1.bf16.msra.mxu0 0
        %5378 = vmatprep.subr.bf16.mxu0 0
        %5379 = vmatpush1.bf16.msra.mxu0 0
        %5380 = vmatprep.subr.bf16.mxu0 0
        %5381 = vmatpush1.bf16.msra.mxu0 0
        %5382 = vmatprep.subr.bf16.mxu0 0
        %5383 = vmatpush1.bf16.msra.mxu0 0
        %5384 = vmatprep.subr.bf16.mxu0 0
        %5385 = vmatpush1.bf16.msra.mxu0 0
        %5386 = vmatprep.subr.bf16.mxu0 0
        %5387 = vmatpush1.bf16.msra.mxu0 0
        %5388 = vmatprep.subr.bf16.mxu0 0
        %5389 = vmatpush1.bf16.msra.mxu0 0
        %5390 = vmatprep.mubr.bf16.mxu0 0
        %5391 = vmatmul.mubr.bf16.gmra.mrb[0].mxu0 %v5356
        %v5392 = vpop.f32.mrb[0].mxu0
        %v5393 = vadd.f32 0.0, %v5392
        %v5394 = vpop.f32.mrb[0].mxu0
        %v5395 = vpop.f32.mrb[0].mxu0
        %v5396 = vadd.f32 0.0, %v5395
        %v5397 = vpop.f32.mrb[0].mxu0
        %5398 = vdwg.mxu0
        %v5399 = vpack.c.bf16 %v5396, %v5393
        %s5400 = scalar_lea.vmem %s13, 384
        %v5401 = vld [vmem:[%s5400] sm:$0xf]
        %v5402 = vld [vmem:[%s5400 + $0x4] sm:$0xf]
        %v5403 = vld [vmem:[%s5400 + $0x8] sm:$0xf]
        %v5404 = vld [vmem:[%s5400 + $0xc] sm:$0xf]
        %v5405 = vld [vmem:[%s5400 + $0x10] sm:$0xf]
        %v5406 = vld [vmem:[%s5400 + $0x14] sm:$0xf]
        %v5407 = vld [vmem:[%s5400 + $0x18] sm:$0xf]
        %v5408 = vld [vmem:[%s5400 + $0x1c] sm:$0xf]
        %v5409 = vld [vmem:[%s5400 + $0x20] sm:$0xf]
        %v5410 = vld [vmem:[%s5400 + $0x24] sm:$0xf]
        %v5411 = vld [vmem:[%s5400 + $0x28] sm:$0xf]
        %v5412 = vld [vmem:[%s5400 + $0x2c] sm:$0xf]
        %v5413 = vld [vmem:[%s5400 + $0x30] sm:$0xf]
        %v5414 = vld [vmem:[%s5400 + $0x34] sm:$0xf]
        %v5415 = vld [vmem:[%s5400 + $0x38] sm:$0xf]
        %v5416 = vld [vmem:[%s5400 + $0x3c] sm:$0xf]
        %v5433 = vunpack.c.l.b16 %v5401
        %v5434 = vunpack.c.l.b16 %v5402
        %v5435 = vunpack.c.l.b16 %v5403
        %v5436 = vunpack.c.l.b16 %v5404
        %v5437 = vunpack.c.l.b16 %v5405
        %v5438 = vunpack.c.l.b16 %v5406
        %v5439 = vunpack.c.l.b16 %v5407
        %v5440 = vunpack.c.l.b16 %v5408
        %v5441 = vunpack.c.l.b16 %v5409
        %v5442 = vunpack.c.l.b16 %v5410
        %v5443 = vunpack.c.l.b16 %v5411
        %v5444 = vunpack.c.l.b16 %v5412
        %v5445 = vunpack.c.l.b16 %v5413
        %v5446 = vunpack.c.l.b16 %v5414
        %v5447 = vunpack.c.l.b16 %v5415
        %v5448 = vunpack.c.l.b16 %v5416
        %v5449 = vpack.c.b16 %v5434, %v5433
        %v5450 = vpack.c.b16 %v5436, %v5435
        %v5451 = vpack.c.b16 %v5438, %v5437
        %v5452 = vpack.c.b16 %v5440, %v5439
        %v5453 = vpack.c.b16 %v5442, %v5441
        %v5454 = vpack.c.b16 %v5444, %v5443
        %v5455 = vpack.c.b16 %v5446, %v5445
        %v5456 = vpack.c.b16 %v5448, %v5447
        %5465 = vmatprep.subr.bf16.mxu0 0
        %5466 = vmatpush1.bf16.msra.mxu0 %v5449
        %5467 = vmatprep.subr.bf16.mxu0 0
        %5468 = vmatpush1.bf16.msra.mxu0 %v5450
        %5469 = vmatprep.subr.bf16.mxu0 0
        %5470 = vmatpush1.bf16.msra.mxu0 %v5451
        %5471 = vmatprep.subr.bf16.mxu0 0
        %5472 = vmatpush1.bf16.msra.mxu0 %v5452
        %5473 = vmatprep.subr.bf16.mxu0 0
        %5474 = vmatpush1.bf16.msra.mxu0 %v5453
        %5475 = vmatprep.subr.bf16.mxu0 0
        %5476 = vmatpush1.bf16.msra.mxu0 %v5454
        %5477 = vmatprep.subr.bf16.mxu0 0
        %5478 = vmatpush1.bf16.msra.mxu0 %v5455
        %5479 = vmatprep.subr.bf16.mxu0 0
        %5480 = vmatpush1.bf16.msra.mxu0 %v5456
        %5481 = vmatprep.subr.bf16.mxu0 0
        %5482 = vmatpush1.bf16.msra.mxu0 0
        %5483 = vmatprep.subr.bf16.mxu0 0
        %5484 = vmatpush1.bf16.msra.mxu0 0
        %5485 = vmatprep.subr.bf16.mxu0 0
        %5486 = vmatpush1.bf16.msra.mxu0 0
        %5487 = vmatprep.subr.bf16.mxu0 0
        %5488 = vmatpush1.bf16.msra.mxu0 0
        %5489 = vmatprep.subr.bf16.mxu0 0
        %5490 = vmatpush1.bf16.msra.mxu0 0
        %5491 = vmatprep.subr.bf16.mxu0 0
        %5492 = vmatpush1.bf16.msra.mxu0 0
        %5493 = vmatprep.subr.bf16.mxu0 0
        %5494 = vmatpush1.bf16.msra.mxu0 0
        %5495 = vmatprep.subr.bf16.mxu0 0
        %5496 = vmatpush1.bf16.msra.mxu0 0
        %5497 = vmatprep.mubr.bf16.mxu0 0
        %5498 = vmatmul.mubr.bf16.gmra.mrb[0].mxu0 %v5399
        %v5499 = vpop.f32.mrb[0].mxu0
        %v5500 = vadd.f32 0.0, %v5499
        %v5501 = vpop.f32.mrb[0].mxu0
        %v5502 = vpop.f32.mrb[0].mxu0
        %v5503 = vadd.f32 0.0, %v5502
        %v5504 = vpop.f32.mrb[0].mxu0
        %5505 = vdwg.mxu0
        %v5506 = vadd.f32 %v5345, %v5500
        %v5507 = vadd.f32 %v5346, %v5503
        %s5508 = scalar_lea.vmem %s2, 56
        %v5509 = vld [vmem:[%s5508] sm:$0xf]
        %v5510 = vld [vmem:[%s5508 + $0x4] sm:$0xf]
        %v5513 = vunpack.c.l.b16 %v5509
        %v5514 = vunpack.c.l.b16 %v5510
        %v5515 = vpack.c.b16 %v5514, %v5513
        %v5517 = vsel %vm1046, %v5515, 0
        %5519 = vmatprep.subr.bf16.mxu0 0
        %5520 = vmatpush1.bf16.msra.mxu0 %v4394
        %5521 = vmatprep.subr.bf16.mxu0 0
        %5522 = vmatpush1.bf16.msra.mxu0 %v4395
        %5523 = vmatprep.subr.bf16.mxu0 0
        %5524 = vmatpush1.bf16.msra.mxu0 %v4396
        %5525 = vmatprep.subr.bf16.mxu0 0
        %5526 = vmatpush1.bf16.msra.mxu0 %v4397
        %5527 = vmatprep.subr.bf16.mxu0 0
        %5528 = vmatpush1.bf16.msra.mxu0 0
        %5529 = vmatprep.subr.bf16.mxu0 0
        %5530 = vmatpush1.bf16.msra.mxu0 0
        %5531 = vmatprep.subr.bf16.mxu0 0
        %5532 = vmatpush1.bf16.msra.mxu0 0
        %5533 = vmatprep.subr.bf16.mxu0 0
        %5534 = vmatpush1.bf16.msra.mxu0 0
        %5535 = vmatprep.subr.bf16.mxu0 0
        %5536 = vmatpush1.bf16.msra.mxu0 0
        %5537 = vmatprep.subr.bf16.mxu0 0
        %5538 = vmatpush1.bf16.msra.mxu0 0
        %5539 = vmatprep.subr.bf16.mxu0 0
        %5540 = vmatpush1.bf16.msra.mxu0 0
        %5541 = vmatprep.subr.bf16.mxu0 0
        %5542 = vmatpush1.bf16.msra.mxu0 0
        %5543 = vmatprep.subr.bf16.mxu0 0
        %5544 = vmatpush1.bf16.msra.mxu0 0
        %5545 = vmatprep.subr.bf16.mxu0 0
        %5546 = vmatpush1.bf16.msra.mxu0 0
        %5547 = vmatprep.subr.bf16.mxu0 0
        %5548 = vmatpush1.bf16.msra.mxu0 0
        %5549 = vmatprep.subr.bf16.mxu0 0
        %5550 = vmatpush1.bf16.msra.mxu0 0
        %5551 = vmatprep.mubr.bf16.mxu0 0
        %5552 = vmatmul.mubr.bf16.gmra.mrb[0].mxu0 %v5517
        %v5553 = vpop.f32.mrb[0].mxu0
        %v5554 = vadd.f32 0.0, %v5553
        %v5555 = vpop.f32.mrb[0].mxu0
        %v5556 = vpop.f32.mrb[0].mxu0
        %v5557 = vadd.f32 0.0, %v5556
        %v5558 = vpop.f32.mrb[0].mxu0
        %5559 = vdwg.mxu0
        %v5560 = vpack.c.bf16 %v5557, %v5554
        %s5561 = scalar_lea.vmem %s13, 448
        %v5562 = vld [vmem:[%s5561] sm:$0xf]
        %v5563 = vld [vmem:[%s5561 + $0x4] sm:$0xf]
        %v5564 = vld [vmem:[%s5561 + $0x8] sm:$0xf]
        %v5565 = vld [vmem:[%s5561 + $0xc] sm:$0xf]
        %v5566 = vld [vmem:[%s5561 + $0x10] sm:$0xf]
        %v5567 = vld [vmem:[%s5561 + $0x14] sm:$0xf]
        %v5568 = vld [vmem:[%s5561 + $0x18] sm:$0xf]
        %v5569 = vld [vmem:[%s5561 + $0x1c] sm:$0xf]
        %v5570 = vld [vmem:[%s5561 + $0x20] sm:$0xf]
        %v5571 = vld [vmem:[%s5561 + $0x24] sm:$0xf]
        %v5572 = vld [vmem:[%s5561 + $0x28] sm:$0xf]
        %v5573 = vld [vmem:[%s5561 + $0x2c] sm:$0xf]
        %v5574 = vld [vmem:[%s5561 + $0x30] sm:$0xf]
        %v5575 = vld [vmem:[%s5561 + $0x34] sm:$0xf]
        %v5576 = vld [vmem:[%s5561 + $0x38] sm:$0xf]
        %v5577 = vld [vmem:[%s5561 + $0x3c] sm:$0xf]
        %v5594 = vunpack.c.l.b16 %v5562
        %v5595 = vunpack.c.l.b16 %v5563
        %v5596 = vunpack.c.l.b16 %v5564
        %v5597 = vunpack.c.l.b16 %v5565
        %v5598 = vunpack.c.l.b16 %v5566
        %v5599 = vunpack.c.l.b16 %v5567
        %v5600 = vunpack.c.l.b16 %v5568
        %v5601 = vunpack.c.l.b16 %v5569
        %v5602 = vunpack.c.l.b16 %v5570
        %v5603 = vunpack.c.l.b16 %v5571
        %v5604 = vunpack.c.l.b16 %v5572
        %v5605 = vunpack.c.l.b16 %v5573
        %v5606 = vunpack.c.l.b16 %v5574
        %v5607 = vunpack.c.l.b16 %v5575
        %v5608 = vunpack.c.l.b16 %v5576
        %v5609 = vunpack.c.l.b16 %v5577
        %v5610 = vpack.c.b16 %v5595, %v5594
        %v5611 = vpack.c.b16 %v5597, %v5596
        %v5612 = vpack.c.b16 %v5599, %v5598
        %v5613 = vpack.c.b16 %v5601, %v5600
        %v5614 = vpack.c.b16 %v5603, %v5602
        %v5615 = vpack.c.b16 %v5605, %v5604
        %v5616 = vpack.c.b16 %v5607, %v5606
        %v5617 = vpack.c.b16 %v5609, %v5608
        %5626 = vmatprep.subr.bf16.mxu0 0
        %5627 = vmatpush1.bf16.msra.mxu0 %v5610
        %5628 = vmatprep.subr.bf16.mxu0 0
        %5629 = vmatpush1.bf16.msra.mxu0 %v5611
        %5630 = vmatprep.subr.bf16.mxu0 0
        %5631 = vmatpush1.bf16.msra.mxu0 %v5612
        %5632 = vmatprep.subr.bf16.mxu0 0
        %5633 = vmatpush1.bf16.msra.mxu0 %v5613
        %5634 = vmatprep.subr.bf16.mxu0 0
        %5635 = vmatpush1.bf16.msra.mxu0 %v5614
        %5636 = vmatprep.subr.bf16.mxu0 0
        %5637 = vmatpush1.bf16.msra.mxu0 %v5615
        %5638 = vmatprep.subr.bf16.mxu0 0
        %5639 = vmatpush1.bf16.msra.mxu0 %v5616
        %5640 = vmatprep.subr.bf16.mxu0 0
        %5641 = vmatpush1.bf16.msra.mxu0 %v5617
        %5642 = vmatprep.subr.bf16.mxu0 0
        %5643 = vmatpush1.bf16.msra.mxu0 0
        %5644 = vmatprep.subr.bf16.mxu0 0
        %5645 = vmatpush1.bf16.msra.mxu0 0
        %5646 = vmatprep.subr.bf16.mxu0 0
        %5647 = vmatpush1.bf16.msra.mxu0 0
        %5648 = vmatprep.subr.bf16.mxu0 0
        %5649 = vmatpush1.bf16.msra.mxu0 0
        %5650 = vmatprep.subr.bf16.mxu0 0
        %5651 = vmatpush1.bf16.msra.mxu0 0
        %5652 = vmatprep.subr.bf16.mxu0 0
        %5653 = vmatpush1.bf16.msra.mxu0 0
        %5654 = vmatprep.subr.bf16.mxu0 0
        %5655 = vmatpush1.bf16.msra.mxu0 0
        %5656 = vmatprep.subr.bf16.mxu0 0
        %5657 = vmatpush1.bf16.msra.mxu0 0
        %5658 = vmatprep.mubr.bf16.mxu0 0
        %5659 = vmatmul.mubr.bf16.gmra.mrb[0].mxu0 %v5560
        %v5660 = vpop.f32.mrb[0].mxu0
        %v5661 = vadd.f32 0.0, %v5660
        %v5662 = vpop.f32.mrb[0].mxu0
        %v5663 = vpop.f32.mrb[0].mxu0
        %v5664 = vadd.f32 0.0, %v5663
        %v5665 = vpop.f32.mrb[0].mxu0
        %5666 = vdwg.mxu0
        %v5667 = vadd.f32 %v5506, %v5661
        %v5668 = vadd.f32 %v5507, %v5664
        %s5669 = scalar_lea.vmem %s2, 64
        %v5670 = vld [vmem:[%s5669] sm:$0xf]
        %v5671 = vld [vmem:[%s5669 + $0x4] sm:$0xf]
        %v5674 = vunpack.c.l.b16 %v5670
        %v5675 = vunpack.c.l.b16 %v5671
        %v5676 = vpack.c.b16 %v5675, %v5674
        %v5678 = vsel %vm1046, %v5676, 0
        %5680 = vmatprep.subr.bf16.mxu0 0
        %5681 = vmatpush1.bf16.msra.mxu0 %v4394
        %5682 = vmatprep.subr.bf16.mxu0 0
        %5683 = vmatpush1.bf16.msra.mxu0 %v4395
        %5684 = vmatprep.subr.bf16.mxu0 0
        %5685 = vmatpush1.bf16.msra.mxu0 %v4396
        %5686 = vmatprep.subr.bf16.mxu0 0
        %5687 = vmatpush1.bf16.msra.mxu0 %v4397
        %5688 = vmatprep.subr.bf16.mxu0 0
        %5689 = vmatpush1.bf16.msra.mxu0 0
        %5690 = vmatprep.subr.bf16.mxu0 0
        %5691 = vmatpush1.bf16.msra.mxu0 0
        %5692 = vmatprep.subr.bf16.mxu0 0
        %5693 = vmatpush1.bf16.msra.mxu0 0
        %5694 = vmatprep.subr.bf16.mxu0 0
        %5695 = vmatpush1.bf16.msra.mxu0 0
        %5696 = vmatprep.subr.bf16.mxu0 0
        %5697 = vmatpush1.bf16.msra.mxu0 0
        %5698 = vmatprep.subr.bf16.mxu0 0
        %5699 = vmatpush1.bf16.msra.mxu0 0
        %5700 = vmatprep.subr.bf16.mxu0 0
        %5701 = vmatpush1.bf16.msra.mxu0 0
        %5702 = vmatprep.subr.bf16.mxu0 0
        %5703 = vmatpush1.bf16.msra.mxu0 0
        %5704 = vmatprep.subr.bf16.mxu0 0
        %5705 = vmatpush1.bf16.msra.mxu0 0
        %5706 = vmatprep.subr.bf16.mxu0 0
        %5707 = vmatpush1.bf16.msra.mxu0 0
        %5708 = vmatprep.subr.bf16.mxu0 0
        %5709 = vmatpush1.bf16.msra.mxu0 0
        %5710 = vmatprep.subr.bf16.mxu0 0
        %5711 = vmatpush1.bf16.msra.mxu0 0
        %5712 = vmatprep.mubr.bf16.mxu0 0
        %5713 = vmatmul.mubr.bf16.gmra.mrb[0].mxu0 %v5678
        %v5714 = vpop.f32.mrb[0].mxu0
        %v5715 = vadd.f32 0.0, %v5714
        %v5716 = vpop.f32.mrb[0].mxu0
        %v5717 = vpop.f32.mrb[0].mxu0
        %v5718 = vadd.f32 0.0, %v5717
        %v5719 = vpop.f32.mrb[0].mxu0
        %5720 = vdwg.mxu0
        %v5721 = vpack.c.bf16 %v5718, %v5715
        %s5722 = scalar_lea.vmem %s13, 512
        %v5723 = vld [vmem:[%s5722] sm:$0xf]
        %v5724 = vld [vmem:[%s5722 + $0x4] sm:$0xf]
        %v5725 = vld [vmem:[%s5722 + $0x8] sm:$0xf]
        %v5726 = vld [vmem:[%s5722 + $0xc] sm:$0xf]
        %v5727 = vld [vmem:[%s5722 + $0x10] sm:$0xf]
        %v5728 = vld [vmem:[%s5722 + $0x14] sm:$0xf]
        %v5729 = vld [vmem:[%s5722 + $0x18] sm:$0xf]
        %v5730 = vld [vmem:[%s5722 + $0x1c] sm:$0xf]
        %v5731 = vld [vmem:[%s5722 + $0x20] sm:$0xf]
        %v5732 = vld [vmem:[%s5722 + $0x24] sm:$0xf]
        %v5733 = vld [vmem:[%s5722 + $0x28] sm:$0xf]
        %v5734 = vld [vmem:[%s5722 + $0x2c] sm:$0xf]
        %v5735 = vld [vmem:[%s5722 + $0x30] sm:$0xf]
        %v5736 = vld [vmem:[%s5722 + $0x34] sm:$0xf]
        %v5737 = vld [vmem:[%s5722 + $0x38] sm:$0xf]
        %v5738 = vld [vmem:[%s5722 + $0x3c] sm:$0xf]
        %v5755 = vunpack.c.l.b16 %v5723
        %v5756 = vunpack.c.l.b16 %v5724
        %v5757 = vunpack.c.l.b16 %v5725
        %v5758 = vunpack.c.l.b16 %v5726
        %v5759 = vunpack.c.l.b16 %v5727
        %v5760 = vunpack.c.l.b16 %v5728
        %v5761 = vunpack.c.l.b16 %v5729
        %v5762 = vunpack.c.l.b16 %v5730
        %v5763 = vunpack.c.l.b16 %v5731
        %v5764 = vunpack.c.l.b16 %v5732
        %v5765 = vunpack.c.l.b16 %v5733
        %v5766 = vunpack.c.l.b16 %v5734
        %v5767 = vunpack.c.l.b16 %v5735
        %v5768 = vunpack.c.l.b16 %v5736
        %v5769 = vunpack.c.l.b16 %v5737
        %v5770 = vunpack.c.l.b16 %v5738
        %v5771 = vpack.c.b16 %v5756, %v5755
        %v5772 = vpack.c.b16 %v5758, %v5757
        %v5773 = vpack.c.b16 %v5760, %v5759
        %v5774 = vpack.c.b16 %v5762, %v5761
        %v5775 = vpack.c.b16 %v5764, %v5763
        %v5776 = vpack.c.b16 %v5766, %v5765
        %v5777 = vpack.c.b16 %v5768, %v5767
        %v5778 = vpack.c.b16 %v5770, %v5769
        %5787 = vmatprep.subr.bf16.mxu0 0
        %5788 = vmatpush1.bf16.msra.mxu0 %v5771
        %5789 = vmatprep.subr.bf16.mxu0 0
        %5790 = vmatpush1.bf16.msra.mxu0 %v5772
        %5791 = vmatprep.subr.bf16.mxu0 0
        %5792 = vmatpush1.bf16.msra.mxu0 %v5773
        %5793 = vmatprep.subr.bf16.mxu0 0
        %5794 = vmatpush1.bf16.msra.mxu0 %v5774
        %5795 = vmatprep.subr.bf16.mxu0 0
        %5796 = vmatpush1.bf16.msra.mxu0 %v5775
        %5797 = vmatprep.subr.bf16.mxu0 0
        %5798 = vmatpush1.bf16.msra.mxu0 %v5776
        %5799 = vmatprep.subr.bf16.mxu0 0
        %5800 = vmatpush1.bf16.msra.mxu0 %v5777
        %5801 = vmatprep.subr.bf16.mxu0 0
        %5802 = vmatpush1.bf16.msra.mxu0 %v5778
        %5803 = vmatprep.subr.bf16.mxu0 0
        %5804 = vmatpush1.bf16.msra.mxu0 0
        %5805 = vmatprep.subr.bf16.mxu0 0
        %5806 = vmatpush1.bf16.msra.mxu0 0
        %5807 = vmatprep.subr.bf16.mxu0 0
        %5808 = vmatpush1.bf16.msra.mxu0 0
        %5809 = vmatprep.subr.bf16.mxu0 0
        %5810 = vmatpush1.bf16.msra.mxu0 0
        %5811 = vmatprep.subr.bf16.mxu0 0
        %5812 = vmatpush1.bf16.msra.mxu0 0
        %5813 = vmatprep.subr.bf16.mxu0 0
        %5814 = vmatpush1.bf16.msra.mxu0 0
        %5815 = vmatprep.subr.bf16.mxu0 0
        %5816 = vmatpush1.bf16.msra.mxu0 0
        %5817 = vmatprep.subr.bf16.mxu0 0
        %5818 = vmatpush1.bf16.msra.mxu0 0
        %5819 = vmatprep.mubr.bf16.mxu0 0
        %5820 = vmatmul.mubr.bf16.gmra.mrb[0].mxu0 %v5721
        %v5821 = vpop.f32.mrb[0].mxu0
        %v5822 = vadd.f32 0.0, %v5821
        %v5823 = vpop.f32.mrb[0].mxu0
        %v5824 = vpop.f32.mrb[0].mxu0
        %v5825 = vadd.f32 0.0, %v5824
        %v5826 = vpop.f32.mrb[0].mxu0
        %5827 = vdwg.mxu0
        %v5828 = vadd.f32 %v5667, %v5822
        %v5829 = vadd.f32 %v5668, %v5825
        %v5830 = vld [vmem:[%s14] sm:$0x1]
        %v5832 = vlaneseq
        %v5833 = vshrl.u32 %v5832, 7
        %v5834 = vsub.s32 0, %v5833
        %v5835 = vrot.slane %v5830, %v5834
        %v5837 = vadd.f32 %v5828, %v5835
        %v5838 = vadd.f32 %v5829, %v5835
        %v5839 = vmax.f32 %v5837, 0.0
        %v5840 = vmax.f32 %v5838, 0.0
        %v5841 = vpack.c.bf16 %v5840, %v5839
        %v5842 = vld [vmem:[%s15] sm:$0xf]
        %v5843 = vld [vmem:[%s15 + $0x4] sm:$0xf]
        %v5844 = vld [vmem:[%s15 + $0x8] sm:$0xf]
        %v5845 = vld [vmem:[%s15 + $0xc] sm:$0xf]
        %v5846 = vld [vmem:[%s15 + $0x10] sm:$0xf]
        %v5847 = vld [vmem:[%s15 + $0x14] sm:$0xf]
        %v5848 = vld [vmem:[%s15 + $0x18] sm:$0xf]
        %v5849 = vld [vmem:[%s15 + $0x1c] sm:$0xf]
        %v5850 = vld [vmem:[%s15 + $0x20] sm:$0xf]
        %v5851 = vld [vmem:[%s15 + $0x24] sm:$0xf]
        %v5852 = vld [vmem:[%s15 + $0x28] sm:$0xf]
        %v5853 = vld [vmem:[%s15 + $0x2c] sm:$0xf]
        %v5854 = vld [vmem:[%s15 + $0x30] sm:$0xf]
        %v5855 = vld [vmem:[%s15 + $0x34] sm:$0xf]
        %v5856 = vld [vmem:[%s15 + $0x38] sm:$0xf]
        %v5857 = vld [vmem:[%s15 + $0x3c] sm:$0xf]
        %v5858 = vld [vmem:[%s16] sm:$0x1]
        %v5860 = vlaneseq
        %v5861 = vshrl.u32 %v5860, 7
        %v5862 = vsub.s32 0, %v5861
        %v5863 = vrot.slane %v5858, %v5862
        %v5881 = vunpack.c.l.b16 %v5842
        %v5882 = vunpack.c.l.b16 %v5843
        %v5883 = vunpack.c.l.b16 %v5844
        %v5884 = vunpack.c.l.b16 %v5845
        %v5885 = vunpack.c.l.b16 %v5846
        %v5886 = vunpack.c.l.b16 %v5847
        %v5887 = vunpack.c.l.b16 %v5848
        %v5888 = vunpack.c.l.b16 %v5849
        %v5889 = vunpack.c.l.b16 %v5850
        %v5890 = vunpack.c.l.b16 %v5851
        %v5891 = vunpack.c.l.b16 %v5852
        %v5892 = vunpack.c.l.b16 %v5853
        %v5893 = vunpack.c.l.b16 %v5854
        %v5894 = vunpack.c.l.b16 %v5855
        %v5895 = vunpack.c.l.b16 %v5856
        %v5896 = vunpack.c.l.b16 %v5857
        %v5897 = vpack.c.b16 %v5882, %v5881
        %v5898 = vpack.c.b16 %v5884, %v5883
        %v5899 = vpack.c.b16 %v5886, %v5885
        %v5900 = vpack.c.b16 %v5888, %v5887
        %v5901 = vpack.c.b16 %v5890, %v5889
        %v5902 = vpack.c.b16 %v5892, %v5891
        %v5903 = vpack.c.b16 %v5894, %v5893
        %v5904 = vpack.c.b16 %v5896, %v5895
        %5913 = vmatprep.subr.bf16.mxu0 0
        %5914 = vmatpush1.bf16.msra.mxu0 %v5897
        %5915 = vmatprep.subr.bf16.mxu0 0
        %5916 = vmatpush1.bf16.msra.mxu0 %v5898
        %5917 = vmatprep.subr.bf16.mxu0 0
        %5918 = vmatpush1.bf16.msra.mxu0 %v5899
        %5919 = vmatprep.subr.bf16.mxu0 0
        %5920 = vmatpush1.bf16.msra.mxu0 %v5900
        %5921 = vmatprep.subr.bf16.mxu0 0
        %5922 = vmatpush1.bf16.msra.mxu0 %v5901
        %5923 = vmatprep.subr.bf16.mxu0 0
        %5924 = vmatpush1.bf16.msra.mxu0 %v5902
        %5925 = vmatprep.subr.bf16.mxu0 0
        %5926 = vmatpush1.bf16.msra.mxu0 %v5903
        %5927 = vmatprep.subr.bf16.mxu0 0
        %5928 = vmatpush1.bf16.msra.mxu0 %v5904
        %5929 = vmatprep.subr.bf16.mxu0 0
        %5930 = vmatpush1.bf16.msra.mxu0 0
        %5931 = vmatprep.subr.bf16.mxu0 0
        %5932 = vmatpush1.bf16.msra.mxu0 0
        %5933 = vmatprep.subr.bf16.mxu0 0
        %5934 = vmatpush1.bf16.msra.mxu0 0
        %5935 = vmatprep.subr.bf16.mxu0 0
        %5936 = vmatpush1.bf16.msra.mxu0 0
        %5937 = vmatprep.subr.bf16.mxu0 0
        %5938 = vmatpush1.bf16.msra.mxu0 0
        %5939 = vmatprep.subr.bf16.mxu0 0
        %5940 = vmatpush1.bf16.msra.mxu0 0
        %5941 = vmatprep.subr.bf16.mxu0 0
        %5942 = vmatpush1.bf16.msra.mxu0 0
        %5943 = vmatprep.subr.bf16.mxu0 0
        %5944 = vmatpush1.bf16.msra.mxu0 0
        %5945 = vmatprep.mubr.bf16.mxu0 0
        %5946 = vmatmul.mubr.bf16.gmra.mrb[0].mxu0 %v5841
        %v5947 = vpop.f32.mrb[0].mxu0
        %v5948 = vadd.f32 %v5863, %v5947
        %v5949 = vpop.f32.mrb[0].mxu0
        %v5950 = vpop.f32.mrb[0].mxu0
        %v5951 = vadd.f32 %v5863, %v5950
        %v5952 = vpop.f32.mrb[0].mxu0
        %5953 = vdwg.mxu0
        %v5954 = vadd.f32 %v5948, %v4380
        %v5955 = vadd.f32 %v5951, %v4383
        %v5956 = vmax.f32 %v5954, 0.0
        %v5957 = vmax.f32 %v5955, 0.0
        %v5958 = vpack.c.bf16 %v5957, %v5956
        %v5959 = vld [vmem:[%s17] sm:$0xff]
        %v5960 = vld [vmem:[%s17 + $0x8] sm:$0xf]
        %v5961 = vld [vmem:[%s17 + $0xc] sm:$0xff]
        %v5962 = vld [vmem:[%s17 + $0x14] sm:$0xf]
        %v5963 = vld [vmem:[%s17 + $0x18] sm:$0xff]
        %v5964 = vld [vmem:[%s17 + $0x20] sm:$0xf]
        %v5965 = vld [vmem:[%s17 + $0x24] sm:$0xff]
        %v5966 = vld [vmem:[%s17 + $0x2c] sm:$0xf]
        %v5967 = vld [vmem:[%s17 + $0x30] sm:$0xff]
        %v5968 = vld [vmem:[%s17 + $0x38] sm:$0xf]
        %v5969 = vld [vmem:[%s17 + $0x3c] sm:$0xff]
        %v5970 = vld [vmem:[%s17 + $0x44] sm:$0xf]
        %v5971 = vld [vmem:[%s17 + $0x48] sm:$0xff]
        %v5972 = vld [vmem:[%s17 + $0x50] sm:$0xf]
        %v5973 = vld [vmem:[%s17 + $0x54] sm:$0xff]
        %v5974 = vld [vmem:[%s17 + $0x5c] sm:$0xf]
        %v5975 = vld [vmem:[%s17 + $0x60] sm:$0xff]
        %v5976 = vld [vmem:[%s17 + $0x68] sm:$0xf]
        %v5977 = vld [vmem:[%s17 + $0x6c] sm:$0xff]
        %v5978 = vld [vmem:[%s17 + $0x74] sm:$0xf]
        %v5979 = vld [vmem:[%s17 + $0x78] sm:$0xff]
        %v5980 = vld [vmem:[%s17 + $0x80] sm:$0xf]
        %v5981 = vld [vmem:[%s17 + $0x84] sm:$0xff]
        %v5982 = vld [vmem:[%s17 + $0x8c] sm:$0xf]
        %v5983 = vld [vmem:[%s17 + $0x90] sm:$0xff]
        %v5984 = vld [vmem:[%s17 + $0x98] sm:$0xf]
        %v5985 = vld [vmem:[%s17 + $0x9c] sm:$0xff]
        %v5986 = vld [vmem:[%s17 + $0xa4] sm:$0xf]
        %v5987 = vld [vmem:[%s17 + $0xa8] sm:$0xff]
        %v5988 = vld [vmem:[%s17 + $0xb0] sm:$0xf]
        %v5989 = vld [vmem:[%s17 + $0xb4] sm:$0xff]
        %v5990 = vld [vmem:[%s17 + $0xbc] sm:$0xf]
        %v5991 = vld [vmem:[%s18] sm:$0x7]
        %v5993 = vlaneseq
        %v5994 = vshrl.u32 %v5993, 7
        %v5995 = vsub.s32 0, %v5994
        %v5996 = vrot.slane %v5991, %v5995
        %v5997 = vlaneseq
        %v5998 = vshrl.u32 %v5997, 7
        %v5999 = vsub.s32 1, %v5998
        %v6000 = vrot.slane %v5991, %v5999
        %v6001 = vlaneseq
        %v6002 = vshrl.u32 %v6001, 7
        %v6003 = vsub.s32 2, %v6002
        %v6004 = vrot.slane %v5991, %v6003
        %v6040 = vunpack.c.l.b16 %v5959
        %v6041 = vunpack.c.h.b16 %v5959
        %v6042 = vunpack.c.l.b16 %v5960
        %v6043 = vunpack.c.l.b16 %v5961
        %v6044 = vunpack.c.h.b16 %v5961
        %v6045 = vunpack.c.l.b16 %v5962
        %v6046 = vunpack.c.l.b16 %v5963
        %v6047 = vunpack.c.h.b16 %v5963
        %v6048 = vunpack.c.l.b16 %v5964
        %v6049 = vunpack.c.l.b16 %v5965
        %v6050 = vunpack.c.h.b16 %v5965
        %v6051 = vunpack.c.l.b16 %v5966
        %v6052 = vunpack.c.l.b16 %v5967
        %v6053 = vunpack.c.h.b16 %v5967
        %v6054 = vunpack.c.l.b16 %v5968
        %v6055 = vunpack.c.l.b16 %v5969
        %v6056 = vunpack.c.h.b16 %v5969
        %v6057 = vunpack.c.l.b16 %v5970
        %v6058 = vunpack.c.l.b16 %v5971
        %v6059 = vunpack.c.h.b16 %v5971
        %v6060 = vunpack.c.l.b16 %v5972
        %v6061 = vunpack.c.l.b16 %v5973
        %v6062 = vunpack.c.h.b16 %v5973
        %v6063 = vunpack.c.l.b16 %v5974
        %v6064 = vunpack.c.l.b16 %v5975
        %v6065 = vunpack.c.h.b16 %v5975
        %v6066 = vunpack.c.l.b16 %v5976
        %v6067 = vunpack.c.l.b16 %v5977
        %v6068 = vunpack.c.h.b16 %v5977
        %v6069 = vunpack.c.l.b16 %v5978
        %v6070 = vunpack.c.l.b16 %v5979
        %v6071 = vunpack.c.h.b16 %v5979
        %v6072 = vunpack.c.l.b16 %v5980
        %v6073 = vunpack.c.l.b16 %v5981
        %v6074 = vunpack.c.h.b16 %v5981
        %v6075 = vunpack.c.l.b16 %v5982
        %v6076 = vunpack.c.l.b16 %v5983
        %v6077 = vunpack.c.h.b16 %v5983
        %v6078 = vunpack.c.l.b16 %v5984
        %v6079 = vunpack.c.l.b16 %v5985
        %v6080 = vunpack.c.h.b16 %v5985
        %v6081 = vunpack.c.l.b16 %v5986
        %v6082 = vunpack.c.l.b16 %v5987
        %v6083 = vunpack.c.h.b16 %v5987
        %v6084 = vunpack.c.l.b16 %v5988
        %v6085 = vunpack.c.l.b16 %v5989
        %v6086 = vunpack.c.h.b16 %v5989
        %v6087 = vunpack.c.l.b16 %v5990
        %v6088 = vpack.c.b16 %v6043, %v6040
        %v6089 = vpack.c.b16 %v6044, %v6041
        %v6090 = vpack.c.b16 %v6045, %v6042
        %v6091 = vpack.c.b16 %v6049, %v6046
        %v6092 = vpack.c.b16 %v6050, %v6047
        %v6093 = vpack.c.b16 %v6051, %v6048
        %v6094 = vpack.c.b16 %v6055, %v6052
        %v6095 = vpack.c.b16 %v6056, %v6053
        %v6096 = vpack.c.b16 %v6057, %v6054
        %v6097 = vpack.c.b16 %v6061, %v6058
        %v6098 = vpack.c.b16 %v6062, %v6059
        %v6099 = vpack.c.b16 %v6063, %v6060
        %v6100 = vpack.c.b16 %v6067, %v6064
        %v6101 = vpack.c.b16 %v6068, %v6065
        %v6102 = vpack.c.b16 %v6069, %v6066
        %v6103 = vpack.c.b16 %v6073, %v6070
        %v6104 = vpack.c.b16 %v6074, %v6071
        %v6105 = vpack.c.b16 %v6075, %v6072
        %v6106 = vpack.c.b16 %v6079, %v6076
        %v6107 = vpack.c.b16 %v6080, %v6077
        %v6108 = vpack.c.b16 %v6081, %v6078
        %v6109 = vpack.c.b16 %v6085, %v6082
        %v6110 = vpack.c.b16 %v6086, %v6083
        %v6111 = vpack.c.b16 %v6087, %v6084
        %6136 = vmatprep.subr.bf16.mxu0 %v6089
        %6137 = vmatpush1.bf16.msra.mxu0 %v6088
        %6138 = vmatprep.subr.bf16.mxu0 %v6092
        %6139 = vmatpush1.bf16.msra.mxu0 %v6091
        %6140 = vmatprep.subr.bf16.mxu0 %v6095
        %6141 = vmatpush1.bf16.msra.mxu0 %v6094
        %6142 = vmatprep.subr.bf16.mxu0 %v6098
        %6143 = vmatpush1.bf16.msra.mxu0 %v6097
        %6144 = vmatprep.subr.bf16.mxu0 %v6101
        %6145 = vmatpush1.bf16.msra.mxu0 %v6100
        %6146 = vmatprep.subr.bf16.mxu0 %v6104
        %6147 = vmatpush1.bf16.msra.mxu0 %v6103
        %6148 = vmatprep.subr.bf16.mxu0 %v6107
        %6149 = vmatpush1.bf16.msra.mxu0 %v6106
        %6150 = vmatprep.subr.bf16.mxu0 %v6110
        %6151 = vmatpush1.bf16.msra.mxu0 %v6109
        %6152 = vmatprep.subr.bf16.mxu0 0
        %6153 = vmatpush1.bf16.msra.mxu0 0
        %6154 = vmatprep.subr.bf16.mxu0 0
        %6155 = vmatpush1.bf16.msra.mxu0 0
        %6156 = vmatprep.subr.bf16.mxu0 0
        %6157 = vmatpush1.bf16.msra.mxu0 0
        %6158 = vmatprep.subr.bf16.mxu0 0
        %6159 = vmatpush1.bf16.msra.mxu0 0
        %6160 = vmatprep.subr.bf16.mxu0 0
        %6161 = vmatpush1.bf16.msra.mxu0 0
        %6162 = vmatprep.subr.bf16.mxu0 0
        %6163 = vmatpush1.bf16.msra.mxu0 0
        %6164 = vmatprep.subr.bf16.mxu0 0
        %6165 = vmatpush1.bf16.msra.mxu0 0
        %6166 = vmatprep.subr.bf16.mxu0 0
        %6167 = vmatpush1.bf16.msra.mxu0 0
        %6168 = vmatprep.mubr.bf16.mxu0 0
        %6169 = vmatmul.mubr.bf16.gmra.mrb[0].mxu0 %v5958
        %v6170 = vpop.f32.mrb[0].mxu0
        %v6171 = vadd.f32 %v5996, %v6170
        %v6172 = vpop.f32.mrb[0].mxu0
        %v6173 = vadd.f32 %v6000, %v6172
        %v6174 = vpop.f32.mrb[0].mxu0
        %v6175 = vadd.f32 %v5996, %v6174
        %v6176 = vpop.f32.mrb[0].mxu0
        %v6177 = vadd.f32 %v6000, %v6176
        %6178 = vdwg.mxu0
        %6179 = vmatprep.subr.bf16.mxu0 0
        %6180 = vmatpush1.bf16.msra.mxu0 %v6090
        %6181 = vmatprep.subr.bf16.mxu0 0
        %6182 = vmatpush1.bf16.msra.mxu0 %v6093
        %6183 = vmatprep.subr.bf16.mxu0 0
        %6184 = vmatpush1.bf16.msra.mxu0 %v6096
        %6185 = vmatprep.subr.bf16.mxu0 0
        %6186 = vmatpush1.bf16.msra.mxu0 %v6099
        %6187 = vmatprep.subr.bf16.mxu0 0
        %6188 = vmatpush1.bf16.msra.mxu0 %v6102
        %6189 = vmatprep.subr.bf16.mxu0 0
        %6190 = vmatpush1.bf16.msra.mxu0 %v6105
        %6191 = vmatprep.subr.bf16.mxu0 0
        %6192 = vmatpush1.bf16.msra.mxu0 %v6108
        %6193 = vmatprep.subr.bf16.mxu0 0
        %6194 = vmatpush1.bf16.msra.mxu0 %v6111
        %6195 = vmatprep.subr.bf16.mxu0 0
        %6196 = vmatpush1.bf16.msra.mxu0 0
        %6197 = vmatprep.subr.bf16.mxu0 0
        %6198 = vmatpush1.bf16.msra.mxu0 0
        %6199 = vmatprep.subr.bf16.mxu0 0
        %6200 = vmatpush1.bf16.msra.mxu0 0
        %6201 = vmatprep.subr.bf16.mxu0 0
        %6202 = vmatpush1.bf16.msra.mxu0 0
        %6203 = vmatprep.subr.bf16.mxu0 0
        %6204 = vmatpush1.bf16.msra.mxu0 0
        %6205 = vmatprep.subr.bf16.mxu0 0
        %6206 = vmatpush1.bf16.msra.mxu0 0
        %6207 = vmatprep.subr.bf16.mxu0 0
        %6208 = vmatpush1.bf16.msra.mxu0 0
        %6209 = vmatprep.subr.bf16.mxu0 0
        %6210 = vmatpush1.bf16.msra.mxu0 0
        %6211 = vmatprep.mubr.bf16.mxu0 0
        %6212 = vmatmul.mubr.bf16.gmra.mrb[0].mxu0 %v5958
        %v6213 = vpop.f32.mrb[0].mxu0
        %v6214 = vadd.f32 %v6004, %v6213
        %v6215 = vpop.f32.mrb[0].mxu0
        %v6216 = vpop.f32.mrb[0].mxu0
        %v6217 = vadd.f32 %v6004, %v6216
        %v6218 = vpop.f32.mrb[0].mxu0
        %6219 = vdwg.mxu0
        %v6220 = vpack.c.bf16 %v6175, %v6171
        %v6221 = vpack.c.bf16 %v6177, %v6173
        %v6222 = vpack.c.bf16 %v6217, %v6214
        %6223 = vmatprep.subr.bf16.mxu0 0
        %6224 = vmatpush1.bf16.xpose.msra.mxu0 %v6221
        %6225 = vmatprep.subr.bf16.mxu0 0
        %6226 = vmatpush1.bf16.xpose.msra.mxu0 0
        %6227 = vmatprep.subr.bf16.mxu0 0
        %6228 = vmatpush1.bf16.xpose.msra.mxu0 0
        %6229 = vmatprep.subr.bf16.mxu0 0
        %6230 = vmatpush1.bf16.xpose.msra.mxu0 0
        %6231 = vmatprep.subr.bf16.mxu0 0
        %6232 = vmatpush1.bf16.xpose.msra.mxu0 0
        %6233 = vmatprep.subr.bf16.mxu0 0
        %6234 = vmatpush1.bf16.xpose.msra.mxu0 0
        %6235 = vmatprep.subr.bf16.mxu0 0
        %6236 = vmatpush1.bf16.xpose.msra.mxu0 0
        %6237 = vmatprep.subr.bf16.mxu0 0
        %6238 = vmatpush1.bf16.xpose.msra.mxu0 0
        %6239 = vmatprep.subr.bf16.mxu0 0
        %6240 = vmatpush1.bf16.xpose.msra.mxu0 0
        %6241 = vmatprep.subr.bf16.mxu0 0
        %6242 = vmatpush1.bf16.xpose.msra.mxu0 0
        %6243 = vmatprep.subr.bf16.mxu0 0
        %6244 = vmatpush1.bf16.xpose.msra.mxu0 0
        %6245 = vmatprep.subr.bf16.mxu0 0
        %6246 = vmatpush1.bf16.xpose.msra.mxu0 0
        %6247 = vmatprep.subr.bf16.mxu0 0
        %6248 = vmatpush1.bf16.xpose.msra.mxu0 0
        %6249 = vmatprep.subr.bf16.mxu0 0
        %6250 = vmatpush1.bf16.xpose.msra.mxu0 0
        %6251 = vmatprep.subr.bf16.mxu0 0
        %6252 = vmatpush1.bf16.xpose.msra.mxu0 0
        %6253 = vmatprep.subr.bf16.mxu0 0
        %6254 = vmatpush1.bf16.xpose.msra.mxu0 0
        %6255 = vmatprep.mubr.bf16.mxu0 0
        %6256 = vmatmul.mubr.bf16.gmra.mrb[0].mxu0 %v6220
        %v6257 = vpop.f32.mrb[0].mxu0
        %v6258 = vadd.f32 0.0, %v6257
        %v6259 = vpop.f32.mrb[0].mxu0
        %v6260 = vpop.f32.mrb[0].mxu0
        %v6261 = vadd.f32 0.0, %v6260
        %v6262 = vpop.f32.mrb[0].mxu0
        %6263 = vdwg.mxu0
        %vm6264 = vcmask 130048
        %v6265 = vsel %vm6264, %v6258, -inf
        %6266 = vmax.xlane.f32.xlu0 %v6265
        %v6267 = vpop.xlane.xlu0 %6266
        %v6268 = vsel %vm6264, %v6261, -inf
        %6269 = vmax.xlane.f32.xlu0 %v6268
        %v6270 = vpop.xlane.xlu0 %6269
        %v6271 = vsub.f32 %v6258, %v6267
        %v6272 = vsub.f32 %v6261, %v6270
        %v6273 = vmul.f32 %v6271, 1.442695
        %v6274 = vpow.pop %v6273
        %v6275 = vmul.f32 %v6272, 1.442695
        %v6276 = vpow.pop %v6275
        %v6277 = vsel %vm6264, %v6274, 0.0
        %6278 = vadd.xlane.f32.xlu0 %v6277
        %v6279 = vpop.xlane.xlu0 %6278
        %v6280 = vsel %vm6264, %v6276, 0.0
        %6281 = vadd.xlane.f32.xlu0 %v6280
        %v6282 = vpop.xlane.xlu0 %6281
        %v6283 = vrcp.pop %v6279
        %v6284 = vrcp.pop %v6282
        %v6285 = vmul.f32 %v6274, %v6283
        %v6286 = vmul.f32 %v6276, %v6284
        %v6287 = vpack.c.bf16 %v6286, %v6285
        %v6289 = vsel %vm6264, %v6287, 0
        %6291 = vmatprep.subr.bf16.mxu0 0
        %6292 = vmatpush1.bf16.msra.mxu0 %v6222
        %6293 = vmatprep.subr.bf16.mxu0 0
        %6294 = vmatpush1.bf16.msra.mxu0 0
        %6295 = vmatprep.subr.bf16.mxu0 0
        %6296 = vmatpush1.bf16.msra.mxu0 0
        %6297 = vmatprep.subr.bf16.mxu0 0
        %6298 = vmatpush1.bf16.msra.mxu0 0
        %6299 = vmatprep.subr.bf16.mxu0 0
        %6300 = vmatpush1.bf16.msra.mxu0 0
        %6301 = vmatprep.subr.bf16.mxu0 0
        %6302 = vmatpush1.bf16.msra.mxu0 0
        %6303 = vmatprep.subr.bf16.mxu0 0
        %6304 = vmatpush1.bf16.msra.mxu0 0
        %6305 = vmatprep.subr.bf16.mxu0 0
        %6306 = vmatpush1.bf16.msra.mxu0 0
        %6307 = vmatprep.subr.bf16.mxu0 0
        %6308 = vmatpush1.bf16.msra.mxu0 0
        %6309 = vmatprep.subr.bf16.mxu0 0
        %6310 = vmatpush1.bf16.msra.mxu0 0
        %6311 = vmatprep.subr.bf16.mxu0 0
        %6312 = vmatpush1.bf16.msra.mxu0 0
        %6313 = vmatprep.subr.bf16.mxu0 0
        %6314 = vmatpush1.bf16.msra.mxu0 0
        %6315 = vmatprep.subr.bf16.mxu0 0
        %6316 = vmatpush1.bf16.msra.mxu0 0
        %6317 = vmatprep.subr.bf16.mxu0 0
        %6318 = vmatpush1.bf16.msra.mxu0 0
        %6319 = vmatprep.subr.bf16.mxu0 0
        %6320 = vmatpush1.bf16.msra.mxu0 0
        %6321 = vmatprep.subr.bf16.mxu0 0
        %6322 = vmatpush1.bf16.msra.mxu0 0
        %6323 = vmatprep.mubr.bf16.mxu0 0
        %6324 = vmatmul.mubr.bf16.gmra.mrb[0].mxu0 %v6289
        %v6325 = vpop.f32.mrb[0].mxu0
        %v6326 = vadd.f32 0.0, %v6325
        %v6327 = vpop.f32.mrb[0].mxu0
        %v6328 = vpop.f32.mrb[0].mxu0
        %v6329 = vadd.f32 0.0, %v6328
        %v6330 = vpop.f32.mrb[0].mxu0
        %6331 = vdwg.mxu0
        %6332 = vst [vmem:[%s598] sm:$0xff] %v6326
        %6333 = vst [vmem:[%s598 + $0x8] sm:$0xff] %v6329
        %s6334 = sand.u32 %s445, 1
        %s6335 = scalar_lea.sflag [#allocation3], %s6334
        %s6336 = sand.u32 %s445, 1
        %s6337 = smul.addr %s6336, 16
        %s6338 = scalar_lea.vmem [#allocation2], %s6337
        // Predicated region
        $region97: #{_lambda_.1} parent=95 // pred_check
          %p6339 = pneg %p455
        $region98: #{_lambda_.1} parent=95 // pred_check_branch
          %6341 = sbr.rel (%p6339) target = $region100
        $region99: #{_lambda_.1} parent=95 // pred_region
          %s6342 = smul.u32 2, %s33
          %s6344 = ssub.s32 256, 256
          %6345 = vsyncadd %s6335, %s6344
          %s6346 = smul.addr %s6342, 128
          %s6347 = scalar_lea.hbm %s19, %s6346
          %s6348 = sshll.u32 %s6338, 4
          %s6349 = int_to_ptr.vmem [resolvable:$true] %s6348
          %6354 = dma.vmem_to_hbm [thread:$0]  %s6349, 256, %s6347, %s6335, 128, 128, 8
        $region100: #{_lambda_.1} parent=95 // pred_fallthru
          _
      $region96: #{_lambda_.1} parent=5 // pred_fallthru
        _
      %p6355 = scmp.le.s32.totalorder 2, %s28
      // Predicated region
      $region101: #{_lambda_.1} parent=5 // pred_check
        %p6356 = pneg %p6355
      $region102: #{_lambda_.1} parent=5 // pred_check_branch
        %6358 = sbr.rel (%p6356) target = $region104
      $region103: #{_lambda_.1} parent=5 // pred_region
        %s6359 = ssub.s32 %s28, 2
        // Predicated region
        $region105: #{_lambda_.1} parent=103 // pred_check
          %p6360 = pneg %p461
        $region106: #{_lambda_.1} parent=103 // pred_check_branch
          %6362 = sbr.rel (%p6360) target = $region108
        $region107: #{_lambda_.1} parent=103 // pred_region
          %s6363 = sand.u32 %s446, 1
          %s6364 = scalar_lea.sflag [#allocation3], %s6363
          %s6365 = sand.u32 %s446, 1
          %s6366 = smul.addr %s6365, 16
          %s6367 = scalar_lea.vmem [#allocation2], %s6366
          %6368 = dma.done %s6364, 256
        $region108: #{_lambda_.1} parent=103 // pred_fallthru
          _
      $region104: #{_lambda_.1} parent=5 // pred_fallthru
        _
    $region6: #{_lambda_.1} parent=1 // loop_footer
      %s32 = sadd.s32 1, %s28
    $region7: #{_lambda_.1} parent=1 // loop_footer_branch
      %27 = sbr.rel target = $region3
    $region8: #{_lambda_.1} parent=1 // loop_exit
      _
    %6369 = vsyncpa [#allocation3], 1
    %s6370 = scalar_lea.sflag [#allocation3], 1
    %6371 = vsyncpa %s6370, 1

</llo_original>
